<compile_context>
chip_gen: v5e
topology: v5e:2x2
jax: 0.10.0
libtpu: 0.0.40
codegen_flags: <defaults>
</compile_context>

<pallas_src>
import functools

import jax
import jax.numpy as jnp
from jax import lax
from jax.experimental import pallas as pl
from jax.experimental.pallas import tpu as pltpu


# ----------------------------------------------------------------------------
# Fused conv1 -> relu -> pool -> conv2 -> relu -> pool kernel (one image/step)
# ----------------------------------------------------------------------------
def _fused_conv_kernel(x_ref, w1_ref, b1_ref, w2_ref, b2_ref, o_ref, xf2_ref,
                       *, H1, W1, C1, H2, W2, C2):
    f32 = jnp.float32
    Wf1 = W1 + 1                 # flat row stride of the padded conv1 input
    Wf2 = W2 + 1                 # flat row stride of the padded conv2 input
    M1 = H1 * Wf1                # rows of the conv1 output (incl. 1 junk col)
    M2 = H2 * Wf2                # rows of the conv2 output (incl. 1 junk col)
    OFF2 = 2 * Wf2               # pixel (0,0) offset inside xf2 scratch
    Wo1, Wo2 = W1 // 2, W2 // 2  # pooled widths

    # --- 0/1 selection matrices for the stride-2 column pooling (in-VMEM) ---
    def pool_selectors(wo, wf):
        rows = lax.broadcasted_iota(jnp.int32, (wo, wf), 0)
        cols = lax.broadcasted_iota(jnp.int32, (wo, wf), 1)
        se = jnp.where(cols == 2 * rows, 1.0, 0.0).astype(f32)
        so = jnp.where(cols == 2 * rows + 1, 1.0, 0.0).astype(f32)
        return se, so

    se1, so1 = pool_selectors(Wo1, Wf1)
    se2, so2 = pool_selectors(Wo2, Wf2)

    # ---------------- conv1: 9 shifted taps, Cin == 1 -> broadcast multiply --
    acc1 = jnp.broadcast_to(b1_ref[...], (M1, C1))          # bias in the init
    for dy in range(3):
        for dx in range(3):
            t = 3 * dy + dx
            start = (dy + 1) * Wf1 + dx - 1
            patch = x_ref[0, start:start + M1, :]            # (M1, 1) contiguous
            acc1 = acc1 + patch * w1_ref[t:t + 1, :]         # (M1, C1)
    act1 = jnp.maximum(acc1, 0.0)

    # ---------------- maxpool1, written straight into conv2's padded scratch -
    xf2_ref[...] = jnp.zeros_like(xf2_ref)                   # zero pad regions
    for i in range(H1 // 2):
        top = act1[(2 * i) * Wf1:(2 * i + 1) * Wf1, :]       # (Wf1, C1)
        bot = act1[(2 * i + 1) * Wf1:(2 * i + 2) * Wf1, :]
        rp = jnp.maximum(top, bot)
        pooled = jnp.maximum(
            jnp.dot(se1, rp, preferred_element_type=f32),
            jnp.dot(so1, rp, preferred_element_type=f32))     # (Wo1, C1)
        xf2_ref[OFF2 + i * Wf2:OFF2 + i * Wf2 + Wo1, :] = pooled

    # ---------------- conv2: 9 shifted taps, MXU matmuls, f32 accumulation ---
    acc2 = jnp.broadcast_to(b2_ref[...], (M2, C2))           # bias in the init
    for dy in range(3):
        for dx in range(3):
            t = 3 * dy + dx
            start = (dy + 1) * Wf2 + dx - 1
            patch = xf2_ref[start:start + M2, :]              # (M2, C1) contiguous
            acc2 = acc2 + jnp.dot(patch, w2_ref[t],
                                  preferred_element_type=f32)
    act2 = jnp.maximum(acc2, 0.0)

    # ---------------- maxpool2 -> (49, C2) feature rows (spatial-major) ------
    for i in range(H2 // 2):
        top = act2[(2 * i) * Wf2:(2 * i + 1) * Wf2, :]
        bot = act2[(2 * i + 1) * Wf2:(2 * i + 2) * Wf2, :]
        rp = jnp.maximum(top, bot)
        pooled = jnp.maximum(
            jnp.dot(se2, rp, preferred_element_type=f32),
            jnp.dot(so2, rp, preferred_element_type=f32))     # (Wo2, C2)
        o_ref[0, i * Wo2:(i + 1) * Wo2, :] = pooled.astype(o_ref.dtype)


# ----------------------------------------------------------------------------
# Final fully-connected layer kernel (whole problem fits VMEM comfortably)
# ----------------------------------------------------------------------------
def _fc_kernel(x_ref, w_ref, b_ref, o_ref):
    o_ref[...] = (jnp.dot(x_ref[...], w_ref[...],
                          preferred_element_type=jnp.float32)
                  + b_ref[...]).astype(o_ref.dtype)


_VMEM_SPEC = pl.BlockSpec(memory_space=pltpu.MemorySpace.VMEM)


# ----------------------------------------------------------------------------
# Forward pass (host-side code is layout plumbing only, all tiny)
# ----------------------------------------------------------------------------
def mnist_forward(x_nchw, params):
    """Exact forward of the PyTorch MnistModel.  x_nchw: (N, 1, 28, 28) f32."""
    n = x_nchw.shape[0]
    H1 = W1 = 28
    C1 = 16
    H2 = W2 = 14
    C2 = 32
    Wf1 = W1 + 1

    # C == 1, so NCHW -> NHWC is a pure reshape (no data movement), then build
    # the flat padded layout: 2 zero rows top/bottom + 1 zero column on the
    # right, flattened to ((H1+4)*Wf1,) rows of Cin=1 channels per image.
    x_nhwc = x_nchw.reshape(n, H1, W1, 1)
    x_flat = jnp.pad(x_nhwc, ((0, 0), (2, 2), (0, 1), (0, 0))
                     ).reshape(n, (H1 + 4) * Wf1, 1)

    # One-time weight re-layouts (tiny): taps-first conv weights and an fc
    # weight pre-permuted to the kernel's (spatial, channel) feature order, so
    # no runtime activation/weight transposes are needed.
    w1 = jnp.transpose(params["conv1_w"], (2, 3, 1, 0)).reshape(9, C1)
    b1 = params["conv1_b"].reshape(1, C1)
    w2 = jnp.transpose(params["conv2_w"], (2, 3, 1, 0)).reshape(9, C1, C2)
    b2 = params["conv2_b"].reshape(1, C2)
    n_spatial = (H2 // 2) * (W2 // 2)                              # 49
    wfc = jnp.transpose(params["fc_w"].reshape(10, C2, n_spatial),
                        (2, 1, 0)).reshape(n_spatial * C2, 10)
    bfc = params["fc_b"].reshape(1, 10)

    feats = pl.pallas_call(
        functools.partial(_fused_conv_kernel,
                          H1=H1, W1=W1, C1=C1, H2=H2, W2=W2, C2=C2),
        out_shape=jax.ShapeDtypeStruct((n, n_spatial, C2), jnp.float32),
        grid=(n,),
        in_specs=[
            pl.BlockSpec((1, (H1 + 4) * Wf1, 1), lambda i: (i, 0, 0)),
            pl.BlockSpec((9, C1), lambda i: (0, 0)),
            pl.BlockSpec((1, C1), lambda i: (0, 0)),
            pl.BlockSpec((9, C1, C2), lambda i: (0, 0, 0)),
            pl.BlockSpec((1, C2), lambda i: (0, 0)),
        ],
        out_specs=pl.BlockSpec((1, n_spatial, C2), lambda i: (i, 0, 0)),
        scratch_shapes=[pltpu.VMEM(((H2 + 4) * (W2 + 1), C1), jnp.float32)],
        compiler_params=pltpu.CompilerParams(
            dimension_semantics=("parallel",)),
    )(x_flat, w1, b1, w2, b2)

    # (N, 49, 32) -> (N, 1568) is a free row-major reshape; fc is one matmul.
    feat2d = feats.reshape(n, n_spatial * C2)
    out = pl.pallas_call(
        _fc_kernel,
        out_shape=jax.ShapeDtypeStruct((n, 10), jnp.float32),
        in_specs=[_VMEM_SPEC, _VMEM_SPEC, _VMEM_SPEC],
        out_specs=_VMEM_SPEC,
    )(feat2d, wfc, bfc)
    return out


# ----------------------------------------------------------------------------
# Pure-JAX reference (for the correctness check only)
# ----------------------------------------------------------------------------
def _ref_forward(x_nchw, params):
    def conv(x, w, b):
        y = lax.conv_general_dilated(
            x, w, window_strides=(1, 1), padding=((1, 1), (1, 1)),
            dimension_numbers=("NCHW", "OIHW", "NCHW"))
        return y + b.reshape(1, -1, 1, 1)

    def pool(x):
        return lax.reduce_window(x, -jnp.inf, lax.max,
                                 window_dimensions=(1, 1, 2, 2),
                                 window_strides=(1, 1, 2, 2),
                                 padding="VALID")

    h = pool(jnp.maximum(conv(x_nchw, params["conv1_w"], params["conv1_b"]), 0.0))
    h = pool(jnp.maximum(conv(h, params["conv2_w"], params["conv2_b"]), 0.0))
    feat = h.reshape(h.shape[0], -1)
    return feat @ params["fc_w"].T + params["fc_b"]


# ----------------------------------------------------------------------------
# Main
# ----------------------------------------------------------------------------
if __name__ == "__main__":
    key = jax.random.PRNGKey(0)
    k_x, k1, k2, k3, k4, k5, k6 = jax.random.split(key, 7)

    # Deterministic synthetic parameters (shapes from MnistModel.__init__).
    params = {
        "conv1_w": 0.05 * jax.random.normal(k1, (16, 1, 3, 3), jnp.float32),
        "conv1_b": 0.05 * jax.random.normal(k2, (16,), jnp.float32),
        "conv2_w": 0.05 * jax.random.normal(k3, (32, 16, 3, 3), jnp.float32),
        "conv2_b": 0.05 * jax.random.normal(k4, (32,), jnp.float32),
        "fc_w": 0.05 * jax.random.normal(k5, (10, 32 * 49), jnp.float32),
        "fc_b": 0.05 * jax.random.normal(k6, (10,), jnp.float32),
    }

    # MNIST-shaped input: batch=2, 1 channel, 28x28 (fc dim 32*49 implies 28x28).
    x = jax.random.normal(k_x, (2, 1, 28, 28), jnp.float32)

    out = jax.block_until_ready(mnist_forward(x, params))
    ref = jax.block_until_ready(_ref_forward(x, params))

    assert out.shape == (2, 10) and out.dtype == jnp.float32
    assert jnp.allclose(out, ref, atol=2e-4, rtol=2e-4), "mismatch vs. JAX reference"

    print("KERNEL_OK")
</pallas_src>

<mosaic_0001>
module attributes {stable_mosaic.version = 11 : i64} {
  func.func @_fused_conv_kernel(%arg0: i32, %arg1: memref<1x928x1xf32, #tpu.memory_space<vmem>>, %arg2: memref<9x16xf32, #tpu.memory_space<vmem>>, %arg3: memref<1x16xf32, #tpu.memory_space<vmem>>, %arg4: memref<9x16x32xf32, #tpu.memory_space<vmem>>, %arg5: memref<1x32xf32, #tpu.memory_space<vmem>>, %arg6: memref<1x49x32xf32, #tpu.memory_space<vmem>>, %arg7: memref<270x16xf32, #tpu.memory_space<vmem>>) attributes {dimension_semantics = [#tpu.dimension_semantics<parallel>], iteration_bounds = array<i64: 2>, scalar_prefetch = 0 : i64, scratch_operands = 1 : i64, tpu.core_type = #tpu.core_type<tc>, window_params = [{transform_indices = @transform_0, window_bounds = array<i64: 1, 928, 1>}, {pipeline_mode = #tpu.pipeline_mode<synchronous>, transform_indices = @transform_1, window_bounds = array<i64: 9, 16>}, {pipeline_mode = #tpu.pipeline_mode<synchronous>, transform_indices = @transform_2, window_bounds = array<i64: 1, 16>}, {pipeline_mode = #tpu.pipeline_mode<synchronous>, transform_indices = @transform_3, window_bounds = array<i64: 9, 16, 32>}, {pipeline_mode = #tpu.pipeline_mode<synchronous>, transform_indices = @transform_4, window_bounds = array<i64: 1, 32>}, {transform_indices = @transform_5, window_bounds = array<i64: 1, 49, 32>}]} {
    %0 = tpu.iota {dimensions = array<i32: 0>} : vector<14x29xi32>
    %1 = tpu.iota {dimensions = array<i32: 1>} : vector<14x29xi32>
    %c2_i32 = arith.constant 2 : i32
    %2 = vector.broadcast %c2_i32 : i32 to vector<14x29xi32>
    %3 = arith.muli %2, %0 : vector<14x29xi32>
    %4 = arith.cmpi eq, %1, %3 : vector<14x29xi32>
    %cst = arith.constant 1.000000e+00 : f32
    %cst_0 = arith.constant 0.000000e+00 : f32
    %5 = vector.broadcast %cst : f32 to vector<14x29xf32>
    %6 = vector.broadcast %cst_0 : f32 to vector<14x29xf32>
    %7 = arith.select %4, %5, %6 : vector<14x29xi1>, vector<14x29xf32>
    %c2_i32_1 = arith.constant 2 : i32
    %8 = vector.broadcast %c2_i32_1 : i32 to vector<14x29xi32>
    %9 = arith.muli %8, %0 : vector<14x29xi32>
    %c1_i32 = arith.constant 1 : i32
    %10 = vector.broadcast %c1_i32 : i32 to vector<14x29xi32>
    %11 = arith.addi %9, %10 : vector<14x29xi32>
    %12 = arith.cmpi eq, %1, %11 : vector<14x29xi32>
    %cst_2 = arith.constant 1.000000e+00 : f32
    %cst_3 = arith.constant 0.000000e+00 : f32
    %13 = vector.broadcast %cst_2 : f32 to vector<14x29xf32>
    %14 = vector.broadcast %cst_3 : f32 to vector<14x29xf32>
    %15 = arith.select %12, %13, %14 : vector<14x29xi1>, vector<14x29xf32>
    %16 = tpu.iota {dimensions = array<i32: 0>} : vector<7x15xi32>
    %17 = tpu.iota {dimensions = array<i32: 1>} : vector<7x15xi32>
    %c2_i32_4 = arith.constant 2 : i32
    %18 = vector.broadcast %c2_i32_4 : i32 to vector<7x15xi32>
    %19 = arith.muli %18, %16 : vector<7x15xi32>
    %20 = arith.cmpi eq, %17, %19 : vector<7x15xi32>
    %cst_5 = arith.constant 1.000000e+00 : f32
    %cst_6 = arith.constant 0.000000e+00 : f32
    %21 = vector.broadcast %cst_5 : f32 to vector<7x15xf32>
    %22 = vector.broadcast %cst_6 : f32 to vector<7x15xf32>
    %23 = arith.select %20, %21, %22 : vector<7x15xi1>, vector<7x15xf32>
    %c2_i32_7 = arith.constant 2 : i32
    %24 = vector.broadcast %c2_i32_7 : i32 to vector<7x15xi32>
    %25 = arith.muli %24, %16 : vector<7x15xi32>
    %c1_i32_8 = arith.constant 1 : i32
    %26 = vector.broadcast %c1_i32_8 : i32 to vector<7x15xi32>
    %27 = arith.addi %25, %26 : vector<7x15xi32>
    %28 = arith.cmpi eq, %17, %27 : vector<7x15xi32>
    %cst_9 = arith.constant 1.000000e+00 : f32
    %cst_10 = arith.constant 0.000000e+00 : f32
    %29 = vector.broadcast %cst_9 : f32 to vector<7x15xf32>
    %30 = vector.broadcast %cst_10 : f32 to vector<7x15xf32>
    %31 = arith.select %28, %29, %30 : vector<7x15xi1>, vector<7x15xf32>
    %c0 = arith.constant 0 : index
    %c0_11 = arith.constant 0 : index
    %32 = vector.load %arg3[%c0, %c0_11] : memref<1x16xf32, #tpu.memory_space<vmem>>, vector<1x16xf32>
    %33 = vector.shape_cast %32 : vector<1x16xf32> to vector<1x16xf32>
    %34 = vector.broadcast %33 : vector<1x16xf32> to vector<812x16xf32>
    %c0_12 = arith.constant 0 : index
    %c28 = arith.constant 28 : index
    %c0_13 = arith.constant 0 : index
    %35 = vector.load %arg1[%c0_12, %c28, %c0_13] : memref<1x928x1xf32, #tpu.memory_space<vmem>>, vector<1x812x1xf32>
    %36 = vector.shape_cast %35 : vector<1x812x1xf32> to vector<812x1xf32>
    %c0_14 = arith.constant 0 : index
    %c0_15 = arith.constant 0 : index
    %37 = vector.load %arg2[%c0_14, %c0_15] : memref<9x16xf32, #tpu.memory_space<vmem>>, vector<1x16xf32>
    %38 = vector.broadcast %36 : vector<812x1xf32> to vector<812x16xf32>
    %39 = vector.broadcast %37 : vector<1x16xf32> to vector<812x16xf32>
    %40 = arith.mulf %38, %39 : vector<812x16xf32>
    %41 = arith.addf %34, %40 : vector<812x16xf32>
    %c0_16 = arith.constant 0 : index
    %c29 = arith.constant 29 : index
    %c0_17 = arith.constant 0 : index
    %42 = vector.load %arg1[%c0_16, %c29, %c0_17] : memref<1x928x1xf32, #tpu.memory_space<vmem>>, vector<1x812x1xf32>
    %43 = vector.shape_cast %42 : vector<1x812x1xf32> to vector<812x1xf32>
    %c1 = arith.constant 1 : index
    %c0_18 = arith.constant 0 : index
    %44 = vector.load %arg2[%c1, %c0_18] : memref<9x16xf32, #tpu.memory_space<vmem>>, vector<1x16xf32>
    %45 = vector.broadcast %43 : vector<812x1xf32> to vector<812x16xf32>
    %46 = vector.broadcast %44 : vector<1x16xf32> to vector<812x16xf32>
    %47 = arith.mulf %45, %46 : vector<812x16xf32>
    %48 = arith.addf %41, %47 : vector<812x16xf32>
    %c0_19 = arith.constant 0 : index
    %c30 = arith.constant 30 : index
    %c0_20 = arith.constant 0 : index
    %49 = vector.load %arg1[%c0_19, %c30, %c0_20] : memref<1x928x1xf32, #tpu.memory_space<vmem>>, vector<1x812x1xf32>
    %50 = vector.shape_cast %49 : vector<1x812x1xf32> to vector<812x1xf32>
    %c2 = arith.constant 2 : index
    %c0_21 = arith.constant 0 : index
    %51 = vector.load %arg2[%c2, %c0_21] : memref<9x16xf32, #tpu.memory_space<vmem>>, vector<1x16xf32>
    %52 = vector.broadcast %50 : vector<812x1xf32> to vector<812x16xf32>
    %53 = vector.broadcast %51 : vector<1x16xf32> to vector<812x16xf32>
    %54 = arith.mulf %52, %53 : vector<812x16xf32>
    %55 = arith.addf %48, %54 : vector<812x16xf32>
    %c0_22 = arith.constant 0 : index
    %c57 = arith.constant 57 : index
    %c0_23 = arith.constant 0 : index
    %56 = vector.load %arg1[%c0_22, %c57, %c0_23] : memref<1x928x1xf32, #tpu.memory_space<vmem>>, vector<1x812x1xf32>
    %57 = vector.shape_cast %56 : vector<1x812x1xf32> to vector<812x1xf32>
    %c3 = arith.constant 3 : index
    %c0_24 = arith.constant 0 : index
    %58 = vector.load %arg2[%c3, %c0_24] : memref<9x16xf32, #tpu.memory_space<vmem>>, vector<1x16xf32>
    %59 = vector.broadcast %57 : vector<812x1xf32> to vector<812x16xf32>
    %60 = vector.broadcast %58 : vector<1x16xf32> to vector<812x16xf32>
    %61 = arith.mulf %59, %60 : vector<812x16xf32>
    %62 = arith.addf %55, %61 : vector<812x16xf32>
    %c0_25 = arith.constant 0 : index
    %c58 = arith.constant 58 : index
    %c0_26 = arith.constant 0 : index
    %63 = vector.load %arg1[%c0_25, %c58, %c0_26] : memref<1x928x1xf32, #tpu.memory_space<vmem>>, vector<1x812x1xf32>
    %64 = vector.shape_cast %63 : vector<1x812x1xf32> to vector<812x1xf32>
    %c4 = arith.constant 4 : index
    %c0_27 = arith.constant 0 : index
    %65 = vector.load %arg2[%c4, %c0_27] : memref<9x16xf32, #tpu.memory_space<vmem>>, vector<1x16xf32>
    %66 = vector.broadcast %64 : vector<812x1xf32> to vector<812x16xf32>
    %67 = vector.broadcast %65 : vector<1x16xf32> to vector<812x16xf32>
    %68 = arith.mulf %66, %67 : vector<812x16xf32>
    %69 = arith.addf %62, %68 : vector<812x16xf32>
    %c0_28 = arith.constant 0 : index
    %c59 = arith.constant 59 : index
    %c0_29 = arith.constant 0 : index
    %70 = vector.load %arg1[%c0_28, %c59, %c0_29] : memref<1x928x1xf32, #tpu.memory_space<vmem>>, vector<1x812x1xf32>
    %71 = vector.shape_cast %70 : vector<1x812x1xf32> to vector<812x1xf32>
    %c5 = arith.constant 5 : index
    %c0_30 = arith.constant 0 : index
    %72 = vector.load %arg2[%c5, %c0_30] : memref<9x16xf32, #tpu.memory_space<vmem>>, vector<1x16xf32>
    %73 = vector.broadcast %71 : vector<812x1xf32> to vector<812x16xf32>
    %74 = vector.broadcast %72 : vector<1x16xf32> to vector<812x16xf32>
    %75 = arith.mulf %73, %74 : vector<812x16xf32>
    %76 = arith.addf %69, %75 : vector<812x16xf32>
    %c0_31 = arith.constant 0 : index
    %c86 = arith.constant 86 : index
    %c0_32 = arith.constant 0 : index
    %77 = vector.load %arg1[%c0_31, %c86, %c0_32] : memref<1x928x1xf32, #tpu.memory_space<vmem>>, vector<1x812x1xf32>
    %78 = vector.shape_cast %77 : vector<1x812x1xf32> to vector<812x1xf32>
    %c6 = arith.constant 6 : index
    %c0_33 = arith.constant 0 : index
    %79 = vector.load %arg2[%c6, %c0_33] : memref<9x16xf32, #tpu.memory_space<vmem>>, vector<1x16xf32>
    %80 = vector.broadcast %78 : vector<812x1xf32> to vector<812x16xf32>
    %81 = vector.broadcast %79 : vector<1x16xf32> to vector<812x16xf32>
    %82 = arith.mulf %80, %81 : vector<812x16xf32>
    %83 = arith.addf %76, %82 : vector<812x16xf32>
    %c0_34 = arith.constant 0 : index
    %c87 = arith.constant 87 : index
    %c0_35 = arith.constant 0 : index
    %84 = vector.load %arg1[%c0_34, %c87, %c0_35] : memref<1x928x1xf32, #tpu.memory_space<vmem>>, vector<1x812x1xf32>
    %85 = vector.shape_cast %84 : vector<1x812x1xf32> to vector<812x1xf32>
    %c7 = arith.constant 7 : index
    %c0_36 = arith.constant 0 : index
    %86 = vector.load %arg2[%c7, %c0_36] : memref<9x16xf32, #tpu.memory_space<vmem>>, vector<1x16xf32>
    %87 = vector.broadcast %85 : vector<812x1xf32> to vector<812x16xf32>
    %88 = vector.broadcast %86 : vector<1x16xf32> to vector<812x16xf32>
    %89 = arith.mulf %87, %88 : vector<812x16xf32>
    %90 = arith.addf %83, %89 : vector<812x16xf32>
    %c0_37 = arith.constant 0 : index
    %c88 = arith.constant 88 : index
    %c0_38 = arith.constant 0 : index
    %91 = vector.load %arg1[%c0_37, %c88, %c0_38] : memref<1x928x1xf32, #tpu.memory_space<vmem>>, vector<1x812x1xf32>
    %92 = vector.shape_cast %91 : vector<1x812x1xf32> to vector<812x1xf32>
    %c8 = arith.constant 8 : index
    %c0_39 = arith.constant 0 : index
    %93 = vector.load %arg2[%c8, %c0_39] : memref<9x16xf32, #tpu.memory_space<vmem>>, vector<1x16xf32>
    %94 = vector.broadcast %92 : vector<812x1xf32> to vector<812x16xf32>
    %95 = vector.broadcast %93 : vector<1x16xf32> to vector<812x16xf32>
    %96 = arith.mulf %94, %95 : vector<812x16xf32>
    %97 = arith.addf %90, %96 : vector<812x16xf32>
    %cst_40 = arith.constant 0.000000e+00 : f32
    %98 = vector.broadcast %cst_40 : f32 to vector<812x16xf32>
    %99 = arith.maximumf %97, %98 : vector<812x16xf32>
    %cst_41 = arith.constant 0.000000e+00 : f32
    %100 = vector.broadcast %cst_41 : f32 to vector<270x16xf32>
    %c0_42 = arith.constant 0 : index
    %c0_43 = arith.constant 0 : index
    %101 = vector.load %arg7[%c0_42, %c0_43] : memref<270x16xf32, #tpu.memory_space<vmem>>, vector<270x16xf32>
    tpu.vector_store %arg7[%c0_42, %c0_43], %100 {strides = array<i32>} : memref<270x16xf32, #tpu.memory_space<vmem>>, vector<270x16xf32>,
    %102 = vector.extract_strided_slice %99 {offsets = [0, 0], sizes = [29, 16], strides = [1, 1]} : vector<812x16xf32> to vector<29x16xf32>
    %103 = vector.extract_strided_slice %99 {offsets = [29, 0], sizes = [29, 16], strides = [1, 1]} : vector<812x16xf32> to vector<29x16xf32>
    %104 = arith.maximumf %102, %103 : vector<29x16xf32>
    %cst_44 = arith.constant dense<0.000000e+00> : vector<14x16xf32>
    %105 = tpu.matmul %7, %104, %cst_44 {dimension_numbers = #tpu.dot_dimension_numbers<[1], [0], [0], [1], [0, 0, 1, 1], [], []>} : vector<14x29xf32>, vector<29x16xf32>, vector<14x16xf32> -> vector<14x16xf32>
    %cst_45 = arith.constant dense<0.000000e+00> : vector<14x16xf32>
    %106 = tpu.matmul %15, %104, %cst_45 {dimension_numbers = #tpu.dot_dimension_numbers<[1], [0], [0], [1], [0, 0, 1, 1], [], []>} : vector<14x29xf32>, vector<29x16xf32>, vector<14x16xf32> -> vector<14x16xf32>
    %107 = arith.maximumf %105, %106 : vector<14x16xf32>
    %c30_46 = arith.constant 30 : index
    %c0_47 = arith.constant 0 : index
    %108 = vector.load %arg7[%c30_46, %c0_47] : memref<270x16xf32, #tpu.memory_space<vmem>>, vector<14x16xf32>
    tpu.vector_store %arg7[%c30_46, %c0_47], %107 {strides = array<i32>} : memref<270x16xf32, #tpu.memory_space<vmem>>, vector<14x16xf32>,
    %109 = vector.extract_strided_slice %99 {offsets = [58, 0], sizes = [29, 16], strides = [1, 1]} : vector<812x16xf32> to vector<29x16xf32>
    %110 = vector.extract_strided_slice %99 {offsets = [87, 0], sizes = [29, 16], strides = [1, 1]} : vector<812x16xf32> to vector<29x16xf32>
    %111 = arith.maximumf %109, %110 : vector<29x16xf32>
    %cst_48 = arith.constant dense<0.000000e+00> : vector<14x16xf32>
    %112 = tpu.matmul %7, %111, %cst_48 {dimension_numbers = #tpu.dot_dimension_numbers<[1], [0], [0], [1], [0, 0, 1, 1], [], []>} : vector<14x29xf32>, vector<29x16xf32>, vector<14x16xf32> -> vector<14x16xf32>
    %cst_49 = arith.constant dense<0.000000e+00> : vector<14x16xf32>
    %113 = tpu.matmul %15, %111, %cst_49 {dimension_numbers = #tpu.dot_dimension_numbers<[1], [0], [0], [1], [0, 0, 1, 1], [], []>} : vector<14x29xf32>, vector<29x16xf32>, vector<14x16xf32> -> vector<14x16xf32>
    %114 = arith.maximumf %112, %113 : vector<14x16xf32>
    %c45 = arith.constant 45 : index
    %c0_50 = arith.constant 0 : index
    %115 = vector.load %arg7[%c45, %c0_50] : memref<270x16xf32, #tpu.memory_space<vmem>>, vector<14x16xf32>
    tpu.vector_store %arg7[%c45, %c0_50], %114 {strides = array<i32>} : memref<270x16xf32, #tpu.memory_space<vmem>>, vector<14x16xf32>,
    %116 = vector.extract_strided_slice %99 {offsets = [116, 0], sizes = [29, 16], strides = [1, 1]} : vector<812x16xf32> to vector<29x16xf32>
    %117 = vector.extract_strided_slice %99 {offsets = [145, 0], sizes = [29, 16], strides = [1, 1]} : vector<812x16xf32> to vector<29x16xf32>
    %118 = arith.maximumf %116, %117 : vector<29x16xf32>
    %cst_51 = arith.constant dense<0.000000e+00> : vector<14x16xf32>
    %119 = tpu.matmul %7, %118, %cst_51 {dimension_numbers = #tpu.dot_dimension_numbers<[1], [0], [0], [1], [0, 0, 1, 1], [], []>} : vector<14x29xf32>, vector<29x16xf32>, vector<14x16xf32> -> vector<14x16xf32>
    %cst_52 = arith.constant dense<0.000000e+00> : vector<14x16xf32>
    %120 = tpu.matmul %15, %118, %cst_52 {dimension_numbers = #tpu.dot_dimension_numbers<[1], [0], [0], [1], [0, 0, 1, 1], [], []>} : vector<14x29xf32>, vector<29x16xf32>, vector<14x16xf32> -> vector<14x16xf32>
    %121 = arith.maximumf %119, %120 : vector<14x16xf32>
    %c60 = arith.constant 60 : index
    %c0_53 = arith.constant 0 : index
    %122 = vector.load %arg7[%c60, %c0_53] : memref<270x16xf32, #tpu.memory_space<vmem>>, vector<14x16xf32>
    tpu.vector_store %arg7[%c60, %c0_53], %121 {strides = array<i32>} : memref<270x16xf32, #tpu.memory_space<vmem>>, vector<14x16xf32>,
    %123 = vector.extract_strided_slice %99 {offsets = [174, 0], sizes = [29, 16], strides = [1, 1]} : vector<812x16xf32> to vector<29x16xf32>
    %124 = vector.extract_strided_slice %99 {offsets = [203, 0], sizes = [29, 16], strides = [1, 1]} : vector<812x16xf32> to vector<29x16xf32>
    %125 = arith.maximumf %123, %124 : vector<29x16xf32>
    %cst_54 = arith.constant dense<0.000000e+00> : vector<14x16xf32>
    %126 = tpu.matmul %7, %125, %cst_54 {dimension_numbers = #tpu.dot_dimension_numbers<[1], [0], [0], [1], [0, 0, 1, 1], [], []>} : vector<14x29xf32>, vector<29x16xf32>, vector<14x16xf32> -> vector<14x16xf32>
    %cst_55 = arith.constant dense<0.000000e+00> : vector<14x16xf32>
    %127 = tpu.matmul %15, %125, %cst_55 {dimension_numbers = #tpu.dot_dimension_numbers<[1], [0], [0], [1], [0, 0, 1, 1], [], []>} : vector<14x29xf32>, vector<29x16xf32>, vector<14x16xf32> -> vector<14x16xf32>
    %128 = arith.maximumf %126, %127 : vector<14x16xf32>
    %c75 = arith.constant 75 : index
    %c0_56 = arith.constant 0 : index
    %129 = vector.load %arg7[%c75, %c0_56] : memref<270x16xf32, #tpu.memory_space<vmem>>, vector<14x16xf32>
    tpu.vector_store %arg7[%c75, %c0_56], %128 {strides = array<i32>} : memref<270x16xf32, #tpu.memory_space<vmem>>, vector<14x16xf32>,
    %130 = vector.extract_strided_slice %99 {offsets = [232, 0], sizes = [29, 16], strides = [1, 1]} : vector<812x16xf32> to vector<29x16xf32>
    %131 = vector.extract_strided_slice %99 {offsets = [261, 0], sizes = [29, 16], strides = [1, 1]} : vector<812x16xf32> to vector<29x16xf32>
    %132 = arith.maximumf %130, %131 : vector<29x16xf32>
    %cst_57 = arith.constant dense<0.000000e+00> : vector<14x16xf32>
    %133 = tpu.matmul %7, %132, %cst_57 {dimension_numbers = #tpu.dot_dimension_numbers<[1], [0], [0], [1], [0, 0, 1, 1], [], []>} : vector<14x29xf32>, vector<29x16xf32>, vector<14x16xf32> -> vector<14x16xf32>
    %cst_58 = arith.constant dense<0.000000e+00> : vector<14x16xf32>
    %134 = tpu.matmul %15, %132, %cst_58 {dimension_numbers = #tpu.dot_dimension_numbers<[1], [0], [0], [1], [0, 0, 1, 1], [], []>} : vector<14x29xf32>, vector<29x16xf32>, vector<14x16xf32> -> vector<14x16xf32>
    %135 = arith.maximumf %133, %134 : vector<14x16xf32>
    %c90 = arith.constant 90 : index
    %c0_59 = arith.constant 0 : index
    %136 = vector.load %arg7[%c90, %c0_59] : memref<270x16xf32, #tpu.memory_space<vmem>>, vector<14x16xf32>
    tpu.vector_store %arg7[%c90, %c0_59], %135 {strides = array<i32>} : memref<270x16xf32, #tpu.memory_space<vmem>>, vector<14x16xf32>,
    %137 = vector.extract_strided_slice %99 {offsets = [290, 0], sizes = [29, 16], strides = [1, 1]} : vector<812x16xf32> to vector<29x16xf32>
    %138 = vector.extract_strided_slice %99 {offsets = [319, 0], sizes = [29, 16], strides = [1, 1]} : vector<812x16xf32> to vector<29x16xf32>
    %139 = arith.maximumf %137, %138 : vector<29x16xf32>
    %cst_60 = arith.constant dense<0.000000e+00> : vector<14x16xf32>
    %140 = tpu.matmul %7, %139, %cst_60 {dimension_numbers = #tpu.dot_dimension_numbers<[1], [0], [0], [1], [0, 0, 1, 1], [], []>} : vector<14x29xf32>, vector<29x16xf32>, vector<14x16xf32> -> vector<14x16xf32>
    %cst_61 = arith.constant dense<0.000000e+00> : vector<14x16xf32>
    %141 = tpu.matmul %15, %139, %cst_61 {dimension_numbers = #tpu.dot_dimension_numbers<[1], [0], [0], [1], [0, 0, 1, 1], [], []>} : vector<14x29xf32>, vector<29x16xf32>, vector<14x16xf32> -> vector<14x16xf32>
    %142 = arith.maximumf %140, %141 : vector<14x16xf32>
    %c105 = arith.constant 105 : index
    %c0_62 = arith.constant 0 : index
    %143 = vector.load %arg7[%c105, %c0_62] : memref<270x16xf32, #tpu.memory_space<vmem>>, vector<14x16xf32>
    tpu.vector_store %arg7[%c105, %c0_62], %142 {strides = array<i32>} : memref<270x16xf32, #tpu.memory_space<vmem>>, vector<14x16xf32>,
    %144 = vector.extract_strided_slice %99 {offsets = [348, 0], sizes = [29, 16], strides = [1, 1]} : vector<812x16xf32> to vector<29x16xf32>
    %145 = vector.extract_strided_slice %99 {offsets = [377, 0], sizes = [29, 16], strides = [1, 1]} : vector<812x16xf32> to vector<29x16xf32>
    %146 = arith.maximumf %144, %145 : vector<29x16xf32>
    %cst_63 = arith.constant dense<0.000000e+00> : vector<14x16xf32>
    %147 = tpu.matmul %7, %146, %cst_63 {dimension_numbers = #tpu.dot_dimension_numbers<[1], [0], [0], [1], [0, 0, 1, 1], [], []>} : vector<14x29xf32>, vector<29x16xf32>, vector<14x16xf32> -> vector<14x16xf32>
    %cst_64 = arith.constant dense<0.000000e+00> : vector<14x16xf32>
    %148 = tpu.matmul %15, %146, %cst_64 {dimension_numbers = #tpu.dot_dimension_numbers<[1], [0], [0], [1], [0, 0, 1, 1], [], []>} : vector<14x29xf32>, vector<29x16xf32>, vector<14x16xf32> -> vector<14x16xf32>
    %149 = arith.maximumf %147, %148 : vector<14x16xf32>
    %c120 = arith.constant 120 : index
    %c0_65 = arith.constant 0 : index
    %150 = vector.load %arg7[%c120, %c0_65] : memref<270x16xf32, #tpu.memory_space<vmem>>, vector<14x16xf32>
    tpu.vector_store %arg7[%c120, %c0_65], %149 {strides = array<i32>} : memref<270x16xf32, #tpu.memory_space<vmem>>, vector<14x16xf32>,
    %151 = vector.extract_strided_slice %99 {offsets = [406, 0], sizes = [29, 16], strides = [1, 1]} : vector<812x16xf32> to vector<29x16xf32>
    %152 = vector.extract_strided_slice %99 {offsets = [435, 0], sizes = [29, 16], strides = [1, 1]} : vector<812x16xf32> to vector<29x16xf32>
    %153 = arith.maximumf %151, %152 : vector<29x16xf32>
    %cst_66 = arith.constant dense<0.000000e+00> : vector<14x16xf32>
    %154 = tpu.matmul %7, %153, %cst_66 {dimension_numbers = #tpu.dot_dimension_numbers<[1], [0], [0], [1], [0, 0, 1, 1], [], []>} : vector<14x29xf32>, vector<29x16xf32>, vector<14x16xf32> -> vector<14x16xf32>
    %cst_67 = arith.constant dense<0.000000e+00> : vector<14x16xf32>
    %155 = tpu.matmul %15, %153, %cst_67 {dimension_numbers = #tpu.dot_dimension_numbers<[1], [0], [0], [1], [0, 0, 1, 1], [], []>} : vector<14x29xf32>, vector<29x16xf32>, vector<14x16xf32> -> vector<14x16xf32>
    %156 = arith.maximumf %154, %155 : vector<14x16xf32>
    %c135 = arith.constant 135 : index
    %c0_68 = arith.constant 0 : index
    %157 = vector.load %arg7[%c135, %c0_68] : memref<270x16xf32, #tpu.memory_space<vmem>>, vector<14x16xf32>
    tpu.vector_store %arg7[%c135, %c0_68], %156 {strides = array<i32>} : memref<270x16xf32, #tpu.memory_space<vmem>>, vector<14x16xf32>,
    %158 = vector.extract_strided_slice %99 {offsets = [464, 0], sizes = [29, 16], strides = [1, 1]} : vector<812x16xf32> to vector<29x16xf32>
    %159 = vector.extract_strided_slice %99 {offsets = [493, 0], sizes = [29, 16], strides = [1, 1]} : vector<812x16xf32> to vector<29x16xf32>
    %160 = arith.maximumf %158, %159 : vector<29x16xf32>
    %cst_69 = arith.constant dense<0.000000e+00> : vector<14x16xf32>
    %161 = tpu.matmul %7, %160, %cst_69 {dimension_numbers = #tpu.dot_dimension_numbers<[1], [0], [0], [1], [0, 0, 1, 1], [], []>} : vector<14x29xf32>, vector<29x16xf32>, vector<14x16xf32> -> vector<14x16xf32>
    %cst_70 = arith.constant dense<0.000000e+00> : vector<14x16xf32>
    %162 = tpu.matmul %15, %160, %cst_70 {dimension_numbers = #tpu.dot_dimension_numbers<[1], [0], [0], [1], [0, 0, 1, 1], [], []>} : vector<14x29xf32>, vector<29x16xf32>, vector<14x16xf32> -> vector<14x16xf32>
    %163 = arith.maximumf %161, %162 : vector<14x16xf32>
    %c150 = arith.constant 150 : index
    %c0_71 = arith.constant 0 : index
    %164 = vector.load %arg7[%c150, %c0_71] : memref<270x16xf32, #tpu.memory_space<vmem>>, vector<14x16xf32>
    tpu.vector_store %arg7[%c150, %c0_71], %163 {strides = array<i32>} : memref<270x16xf32, #tpu.memory_space<vmem>>, vector<14x16xf32>,
    %165 = vector.extract_strided_slice %99 {offsets = [522, 0], sizes = [29, 16], strides = [1, 1]} : vector<812x16xf32> to vector<29x16xf32>
    %166 = vector.extract_strided_slice %99 {offsets = [551, 0], sizes = [29, 16], strides = [1, 1]} : vector<812x16xf32> to vector<29x16xf32>
    %167 = arith.maximumf %165, %166 : vector<29x16xf32>
    %cst_72 = arith.constant dense<0.000000e+00> : vector<14x16xf32>
    %168 = tpu.matmul %7, %167, %cst_72 {dimension_numbers = #tpu.dot_dimension_numbers<[1], [0], [0], [1], [0, 0, 1, 1], [], []>} : vector<14x29xf32>, vector<29x16xf32>, vector<14x16xf32> -> vector<14x16xf32>
    %cst_73 = arith.constant dense<0.000000e+00> : vector<14x16xf32>
    %169 = tpu.matmul %15, %167, %cst_73 {dimension_numbers = #tpu.dot_dimension_numbers<[1], [0], [0], [1], [0, 0, 1, 1], [], []>} : vector<14x29xf32>, vector<29x16xf32>, vector<14x16xf32> -> vector<14x16xf32>
    %170 = arith.maximumf %168, %169 : vector<14x16xf32>
    %c165 = arith.constant 165 : index
    %c0_74 = arith.constant 0 : index
    %171 = vector.load %arg7[%c165, %c0_74] : memref<270x16xf32, #tpu.memory_space<vmem>>, vector<14x16xf32>
    tpu.vector_store %arg7[%c165, %c0_74], %170 {strides = array<i32>} : memref<270x16xf32, #tpu.memory_space<vmem>>, vector<14x16xf32>,
    %172 = vector.extract_strided_slice %99 {offsets = [580, 0], sizes = [29, 16], strides = [1, 1]} : vector<812x16xf32> to vector<29x16xf32>
    %173 = vector.extract_strided_slice %99 {offsets = [609, 0], sizes = [29, 16], strides = [1, 1]} : vector<812x16xf32> to vector<29x16xf32>
    %174 = arith.maximumf %172, %173 : vector<29x16xf32>
    %cst_75 = arith.constant dense<0.000000e+00> : vector<14x16xf32>
    %175 = tpu.matmul %7, %174, %cst_75 {dimension_numbers = #tpu.dot_dimension_numbers<[1], [0], [0], [1], [0, 0, 1, 1], [], []>} : vector<14x29xf32>, vector<29x16xf32>, vector<14x16xf32> -> vector<14x16xf32>
    %cst_76 = arith.constant dense<0.000000e+00> : vector<14x16xf32>
    %176 = tpu.matmul %15, %174, %cst_76 {dimension_numbers = #tpu.dot_dimension_numbers<[1], [0], [0], [1], [0, 0, 1, 1], [], []>} : vector<14x29xf32>, vector<29x16xf32>, vector<14x16xf32> -> vector<14x16xf32>
    %177 = arith.maximumf %175, %176 : vector<14x16xf32>
    %c180 = arith.constant 180 : index
    %c0_77 = arith.constant 0 : index
    %178 = vector.load %arg7[%c180, %c0_77] : memref<270x16xf32, #tpu.memory_space<vmem>>, vector<14x16xf32>
    tpu.vector_store %arg7[%c180, %c0_77], %177 {strides = array<i32>} : memref<270x16xf32, #tpu.memory_space<vmem>>, vector<14x16xf32>,
    %179 = vector.extract_strided_slice %99 {offsets = [638, 0], sizes = [29, 16], strides = [1, 1]} : vector<812x16xf32> to vector<29x16xf32>
    %180 = vector.extract_strided_slice %99 {offsets = [667, 0], sizes = [29, 16], strides = [1, 1]} : vector<812x16xf32> to vector<29x16xf32>
    %181 = arith.maximumf %179, %180 : vector<29x16xf32>
    %cst_78 = arith.constant dense<0.000000e+00> : vector<14x16xf32>
    %182 = tpu.matmul %7, %181, %cst_78 {dimension_numbers = #tpu.dot_dimension_numbers<[1], [0], [0], [1], [0, 0, 1, 1], [], []>} : vector<14x29xf32>, vector<29x16xf32>, vector<14x16xf32> -> vector<14x16xf32>
    %cst_79 = arith.constant dense<0.000000e+00> : vector<14x16xf32>
    %183 = tpu.matmul %15, %181, %cst_79 {dimension_numbers = #tpu.dot_dimension_numbers<[1], [0], [0], [1], [0, 0, 1, 1], [], []>} : vector<14x29xf32>, vector<29x16xf32>, vector<14x16xf32> -> vector<14x16xf32>
    %184 = arith.maximumf %182, %183 : vector<14x16xf32>
    %c195 = arith.constant 195 : index
    %c0_80 = arith.constant 0 : index
    %185 = vector.load %arg7[%c195, %c0_80] : memref<270x16xf32, #tpu.memory_space<vmem>>, vector<14x16xf32>
    tpu.vector_store %arg7[%c195, %c0_80], %184 {strides = array<i32>} : memref<270x16xf32, #tpu.memory_space<vmem>>, vector<14x16xf32>,
    %186 = vector.extract_strided_slice %99 {offsets = [696, 0], sizes = [29, 16], strides = [1, 1]} : vector<812x16xf32> to vector<29x16xf32>
    %187 = vector.extract_strided_slice %99 {offsets = [725, 0], sizes = [29, 16], strides = [1, 1]} : vector<812x16xf32> to vector<29x16xf32>
    %188 = arith.maximumf %186, %187 : vector<29x16xf32>
    %cst_81 = arith.constant dense<0.000000e+00> : vector<14x16xf32>
    %189 = tpu.matmul %7, %188, %cst_81 {dimension_numbers = #tpu.dot_dimension_numbers<[1], [0], [0], [1], [0, 0, 1, 1], [], []>} : vector<14x29xf32>, vector<29x16xf32>, vector<14x16xf32> -> vector<14x16xf32>
    %cst_82 = arith.constant dense<0.000000e+00> : vector<14x16xf32>
    %190 = tpu.matmul %15, %188, %cst_82 {dimension_numbers = #tpu.dot_dimension_numbers<[1], [0], [0], [1], [0, 0, 1, 1], [], []>} : vector<14x29xf32>, vector<29x16xf32>, vector<14x16xf32> -> vector<14x16xf32>
    %191 = arith.maximumf %189, %190 : vector<14x16xf32>
    %c210 = arith.constant 210 : index
    %c0_83 = arith.constant 0 : index
    %192 = vector.load %arg7[%c210, %c0_83] : memref<270x16xf32, #tpu.memory_space<vmem>>, vector<14x16xf32>
    tpu.vector_store %arg7[%c210, %c0_83], %191 {strides = array<i32>} : memref<270x16xf32, #tpu.memory_space<vmem>>, vector<14x16xf32>,
    %193 = vector.extract_strided_slice %99 {offsets = [754, 0], sizes = [29, 16], strides = [1, 1]} : vector<812x16xf32> to vector<29x16xf32>
    %194 = vector.extract_strided_slice %99 {offsets = [783, 0], sizes = [29, 16], strides = [1, 1]} : vector<812x16xf32> to vector<29x16xf32>
    %195 = arith.maximumf %193, %194 : vector<29x16xf32>
    %cst_84 = arith.constant dense<0.000000e+00> : vector<14x16xf32>
    %196 = tpu.matmul %7, %195, %cst_84 {dimension_numbers = #tpu.dot_dimension_numbers<[1], [0], [0], [1], [0, 0, 1, 1], [], []>} : vector<14x29xf32>, vector<29x16xf32>, vector<14x16xf32> -> vector<14x16xf32>
    %cst_85 = arith.constant dense<0.000000e+00> : vector<14x16xf32>
    %197 = tpu.matmul %15, %195, %cst_85 {dimension_numbers = #tpu.dot_dimension_numbers<[1], [0], [0], [1], [0, 0, 1, 1], [], []>} : vector<14x29xf32>, vector<29x16xf32>, vector<14x16xf32> -> vector<14x16xf32>
    %198 = arith.maximumf %196, %197 : vector<14x16xf32>
    %c225 = arith.constant 225 : index
    %c0_86 = arith.constant 0 : index
    %199 = vector.load %arg7[%c225, %c0_86] : memref<270x16xf32, #tpu.memory_space<vmem>>, vector<14x16xf32>
    tpu.vector_store %arg7[%c225, %c0_86], %198 {strides = array<i32>} : memref<270x16xf32, #tpu.memory_space<vmem>>, vector<14x16xf32>,
    %c0_87 = arith.constant 0 : index
    %c0_88 = arith.constant 0 : index
    %200 = vector.load %arg5[%c0_87, %c0_88] : memref<1x32xf32, #tpu.memory_space<vmem>>, vector<1x32xf32>
    %201 = vector.shape_cast %200 : vector<1x32xf32> to vector<1x32xf32>
    %202 = vector.broadcast %201 : vector<1x32xf32> to vector<210x32xf32>
    %c14 = arith.constant 14 : index
    %c0_89 = arith.constant 0 : index
    %203 = vector.load %arg7[%c14, %c0_89] : memref<270x16xf32, #tpu.memory_space<vmem>>, vector<210x16xf32>
    %c0_90 = arith.constant 0 : index
    %c0_91 = arith.constant 0 : index
    %c0_92 = arith.constant 0 : index
    %204 = vector.load %arg4[%c0_90, %c0_91, %c0_92] : memref<9x16x32xf32, #tpu.memory_space<vmem>>, vector<1x16x32xf32>
    %205 = vector.shape_cast %204 : vector<1x16x32xf32> to vector<16x32xf32>
    %cst_93 = arith.constant dense<0.000000e+00> : vector<210x32xf32>
    %206 = tpu.matmul %203, %205, %cst_93 {dimension_numbers = #tpu.dot_dimension_numbers<[1], [0], [0], [1], [0, 0, 1, 1], [], []>} : vector<210x16xf32>, vector<16x32xf32>, vector<210x32xf32> -> vector<210x32xf32>
    %207 = arith.addf %202, %206 : vector<210x32xf32>
    %c15 = arith.constant 15 : index
    %c0_94 = arith.constant 0 : index
    %208 = vector.load %arg7[%c15, %c0_94] : memref<270x16xf32, #tpu.memory_space<vmem>>, vector<210x16xf32>
    %c1_95 = arith.constant 1 : index
    %c0_96 = arith.constant 0 : index
    %c0_97 = arith.constant 0 : index
    %209 = vector.load %arg4[%c1_95, %c0_96, %c0_97] : memref<9x16x32xf32, #tpu.memory_space<vmem>>, vector<1x16x32xf32>
    %210 = vector.shape_cast %209 : vector<1x16x32xf32> to vector<16x32xf32>
    %cst_98 = arith.constant dense<0.000000e+00> : vector<210x32xf32>
    %211 = tpu.matmul %208, %210, %cst_98 {dimension_numbers = #tpu.dot_dimension_numbers<[1], [0], [0], [1], [0, 0, 1, 1], [], []>} : vector<210x16xf32>, vector<16x32xf32>, vector<210x32xf32> -> vector<210x32xf32>
    %212 = arith.addf %207, %211 : vector<210x32xf32>
    %c16 = arith.constant 16 : index
    %c0_99 = arith.constant 0 : index
    %213 = vector.load %arg7[%c16, %c0_99] : memref<270x16xf32, #tpu.memory_space<vmem>>, vector<210x16xf32>
    %c2_100 = arith.constant 2 : index
    %c0_101 = arith.constant 0 : index
    %c0_102 = arith.constant 0 : index
    %214 = vector.load %arg4[%c2_100, %c0_101, %c0_102] : memref<9x16x32xf32, #tpu.memory_space<vmem>>, vector<1x16x32xf32>
    %215 = vector.shape_cast %214 : vector<1x16x32xf32> to vector<16x32xf32>
    %cst_103 = arith.constant dense<0.000000e+00> : vector<210x32xf32>
    %216 = tpu.matmul %213, %215, %cst_103 {dimension_numbers = #tpu.dot_dimension_numbers<[1], [0], [0], [1], [0, 0, 1, 1], [], []>} : vector<210x16xf32>, vector<16x32xf32>, vector<210x32xf32> -> vector<210x32xf32>
    %217 = arith.addf %212, %216 : vector<210x32xf32>
    %c29_104 = arith.constant 29 : index
    %c0_105 = arith.constant 0 : index
    %218 = vector.load %arg7[%c29_104, %c0_105] : memref<270x16xf32, #tpu.memory_space<vmem>>, vector<210x16xf32>
    %c3_106 = arith.constant 3 : index
    %c0_107 = arith.constant 0 : index
    %c0_108 = arith.constant 0 : index
    %219 = vector.load %arg4[%c3_106, %c0_107, %c0_108] : memref<9x16x32xf32, #tpu.memory_space<vmem>>, vector<1x16x32xf32>
    %220 = vector.shape_cast %219 : vector<1x16x32xf32> to vector<16x32xf32>
    %cst_109 = arith.constant dense<0.000000e+00> : vector<210x32xf32>
    %221 = tpu.matmul %218, %220, %cst_109 {dimension_numbers = #tpu.dot_dimension_numbers<[1], [0], [0], [1], [0, 0, 1, 1], [], []>} : vector<210x16xf32>, vector<16x32xf32>, vector<210x32xf32> -> vector<210x32xf32>
    %222 = arith.addf %217, %221 : vector<210x32xf32>
    %c30_110 = arith.constant 30 : index
    %c0_111 = arith.constant 0 : index
    %223 = vector.load %arg7[%c30_110, %c0_111] : memref<270x16xf32, #tpu.memory_space<vmem>>, vector<210x16xf32>
    %c4_112 = arith.constant 4 : index
    %c0_113 = arith.constant 0 : index
    %c0_114 = arith.constant 0 : index
    %224 = vector.load %arg4[%c4_112, %c0_113, %c0_114] : memref<9x16x32xf32, #tpu.memory_space<vmem>>, vector<1x16x32xf32>
    %225 = vector.shape_cast %224 : vector<1x16x32xf32> to vector<16x32xf32>
    %cst_115 = arith.constant dense<0.000000e+00> : vector<210x32xf32>
    %226 = tpu.matmul %223, %225, %cst_115 {dimension_numbers = #tpu.dot_dimension_numbers<[1], [0], [0], [1], [0, 0, 1, 1], [], []>} : vector<210x16xf32>, vector<16x32xf32>, vector<210x32xf32> -> vector<210x32xf32>
    %227 = arith.addf %222, %226 : vector<210x32xf32>
    %c31 = arith.constant 31 : index
    %c0_116 = arith.constant 0 : index
    %228 = vector.load %arg7[%c31, %c0_116] : memref<270x16xf32, #tpu.memory_space<vmem>>, vector<210x16xf32>
    %c5_117 = arith.constant 5 : index
    %c0_118 = arith.constant 0 : index
    %c0_119 = arith.constant 0 : index
    %229 = vector.load %arg4[%c5_117, %c0_118, %c0_119] : memref<9x16x32xf32, #tpu.memory_space<vmem>>, vector<1x16x32xf32>
    %230 = vector.shape_cast %229 : vector<1x16x32xf32> to vector<16x32xf32>
    %cst_120 = arith.constant dense<0.000000e+00> : vector<210x32xf32>
    %231 = tpu.matmul %228, %230, %cst_120 {dimension_numbers = #tpu.dot_dimension_numbers<[1], [0], [0], [1], [0, 0, 1, 1], [], []>} : vector<210x16xf32>, vector<16x32xf32>, vector<210x32xf32> -> vector<210x32xf32>
    %232 = arith.addf %227, %231 : vector<210x32xf32>
    %c44 = arith.constant 44 : index
    %c0_121 = arith.constant 0 : index
    %233 = vector.load %arg7[%c44, %c0_121] : memref<270x16xf32, #tpu.memory_space<vmem>>, vector<210x16xf32>
    %c6_122 = arith.constant 6 : index
    %c0_123 = arith.constant 0 : index
    %c0_124 = arith.constant 0 : index
    %234 = vector.load %arg4[%c6_122, %c0_123, %c0_124] : memref<9x16x32xf32, #tpu.memory_space<vmem>>, vector<1x16x32xf32>
    %235 = vector.shape_cast %234 : vector<1x16x32xf32> to vector<16x32xf32>
    %cst_125 = arith.constant dense<0.000000e+00> : vector<210x32xf32>
    %236 = tpu.matmul %233, %235, %cst_125 {dimension_numbers = #tpu.dot_dimension_numbers<[1], [0], [0], [1], [0, 0, 1, 1], [], []>} : vector<210x16xf32>, vector<16x32xf32>, vector<210x32xf32> -> vector<210x32xf32>
    %237 = arith.addf %232, %236 : vector<210x32xf32>
    %c45_126 = arith.constant 45 : index
    %c0_127 = arith.constant 0 : index
    %238 = vector.load %arg7[%c45_126, %c0_127] : memref<270x16xf32, #tpu.memory_space<vmem>>, vector<210x16xf32>
    %c7_128 = arith.constant 7 : index
    %c0_129 = arith.constant 0 : index
    %c0_130 = arith.constant 0 : index
    %239 = vector.load %arg4[%c7_128, %c0_129, %c0_130] : memref<9x16x32xf32, #tpu.memory_space<vmem>>, vector<1x16x32xf32>
    %240 = vector.shape_cast %239 : vector<1x16x32xf32> to vector<16x32xf32>
    %cst_131 = arith.constant dense<0.000000e+00> : vector<210x32xf32>
    %241 = tpu.matmul %238, %240, %cst_131 {dimension_numbers = #tpu.dot_dimension_numbers<[1], [0], [0], [1], [0, 0, 1, 1], [], []>} : vector<210x16xf32>, vector<16x32xf32>, vector<210x32xf32> -> vector<210x32xf32>
    %242 = arith.addf %237, %241 : vector<210x32xf32>
    %c46 = arith.constant 46 : index
    %c0_132 = arith.constant 0 : index
    %243 = vector.load %arg7[%c46, %c0_132] : memref<270x16xf32, #tpu.memory_space<vmem>>, vector<210x16xf32>
    %c8_133 = arith.constant 8 : index
    %c0_134 = arith.constant 0 : index
    %c0_135 = arith.constant 0 : index
    %244 = vector.load %arg4[%c8_133, %c0_134, %c0_135] : memref<9x16x32xf32, #tpu.memory_space<vmem>>, vector<1x16x32xf32>
    %245 = vector.shape_cast %244 : vector<1x16x32xf32> to vector<16x32xf32>
    %cst_136 = arith.constant dense<0.000000e+00> : vector<210x32xf32>
    %246 = tpu.matmul %243, %245, %cst_136 {dimension_numbers = #tpu.dot_dimension_numbers<[1], [0], [0], [1], [0, 0, 1, 1], [], []>} : vector<210x16xf32>, vector<16x32xf32>, vector<210x32xf32> -> vector<210x32xf32>
    %247 = arith.addf %242, %246 : vector<210x32xf32>
    %cst_137 = arith.constant 0.000000e+00 : f32
    %248 = vector.broadcast %cst_137 : f32 to vector<210x32xf32>
    %249 = arith.maximumf %247, %248 : vector<210x32xf32>
    %250 = vector.extract_strided_slice %249 {offsets = [0, 0], sizes = [15, 32], strides = [1, 1]} : vector<210x32xf32> to vector<15x32xf32>
    %251 = vector.extract_strided_slice %249 {offsets = [15, 0], sizes = [15, 32], strides = [1, 1]} : vector<210x32xf32> to vector<15x32xf32>
    %252 = arith.maximumf %250, %251 : vector<15x32xf32>
    %cst_138 = arith.constant dense<0.000000e+00> : vector<7x32xf32>
    %253 = tpu.matmul %23, %252, %cst_138 {dimension_numbers = #tpu.dot_dimension_numbers<[1], [0], [0], [1], [0, 0, 1, 1], [], []>} : vector<7x15xf32>, vector<15x32xf32>, vector<7x32xf32> -> vector<7x32xf32>
    %cst_139 = arith.constant dense<0.000000e+00> : vector<7x32xf32>
    %254 = tpu.matmul %31, %252, %cst_139 {dimension_numbers = #tpu.dot_dimension_numbers<[1], [0], [0], [1], [0, 0, 1, 1], [], []>} : vector<7x15xf32>, vector<15x32xf32>, vector<7x32xf32> -> vector<7x32xf32>
    %255 = arith.maximumf %253, %254 : vector<7x32xf32>
    %c0_140 = arith.constant 0 : index
    %c0_141 = arith.constant 0 : index
    %c0_142 = arith.constant 0 : index
    %256 = vector.load %arg6[%c0_140, %c0_141, %c0_142] : memref<1x49x32xf32, #tpu.memory_space<vmem>>, vector<1x7x32xf32>
    %257 = vector.shape_cast %256 : vector<1x7x32xf32> to vector<7x32xf32>
    %258 = vector.shape_cast %255 : vector<7x32xf32> to vector<1x7x32xf32>
    tpu.vector_store %arg6[%c0_140, %c0_141, %c0_142], %258 {strides = array<i32>} : memref<1x49x32xf32, #tpu.memory_space<vmem>>, vector<1x7x32xf32>,
    %259 = vector.extract_strided_slice %249 {offsets = [30, 0], sizes = [15, 32], strides = [1, 1]} : vector<210x32xf32> to vector<15x32xf32>
    %260 = vector.extract_strided_slice %249 {offsets = [45, 0], sizes = [15, 32], strides = [1, 1]} : vector<210x32xf32> to vector<15x32xf32>
    %261 = arith.maximumf %259, %260 : vector<15x32xf32>
    %cst_143 = arith.constant dense<0.000000e+00> : vector<7x32xf32>
    %262 = tpu.matmul %23, %261, %cst_143 {dimension_numbers = #tpu.dot_dimension_numbers<[1], [0], [0], [1], [0, 0, 1, 1], [], []>} : vector<7x15xf32>, vector<15x32xf32>, vector<7x32xf32> -> vector<7x32xf32>
    %cst_144 = arith.constant dense<0.000000e+00> : vector<7x32xf32>
    %263 = tpu.matmul %31, %261, %cst_144 {dimension_numbers = #tpu.dot_dimension_numbers<[1], [0], [0], [1], [0, 0, 1, 1], [], []>} : vector<7x15xf32>, vector<15x32xf32>, vector<7x32xf32> -> vector<7x32xf32>
    %264 = arith.maximumf %262, %263 : vector<7x32xf32>
    %c0_145 = arith.constant 0 : index
    %c7_146 = arith.constant 7 : index
    %c0_147 = arith.constant 0 : index
    %265 = vector.load %arg6[%c0_145, %c7_146, %c0_147] : memref<1x49x32xf32, #tpu.memory_space<vmem>>, vector<1x7x32xf32>
    %266 = vector.shape_cast %265 : vector<1x7x32xf32> to vector<7x32xf32>
    %267 = vector.shape_cast %264 : vector<7x32xf32> to vector<1x7x32xf32>
    tpu.vector_store %arg6[%c0_145, %c7_146, %c0_147], %267 {strides = array<i32>} : memref<1x49x32xf32, #tpu.memory_space<vmem>>, vector<1x7x32xf32>,
    %268 = vector.extract_strided_slice %249 {offsets = [60, 0], sizes = [15, 32], strides = [1, 1]} : vector<210x32xf32> to vector<15x32xf32>
    %269 = vector.extract_strided_slice %249 {offsets = [75, 0], sizes = [15, 32], strides = [1, 1]} : vector<210x32xf32> to vector<15x32xf32>
    %270 = arith.maximumf %268, %269 : vector<15x32xf32>
    %cst_148 = arith.constant dense<0.000000e+00> : vector<7x32xf32>
    %271 = tpu.matmul %23, %270, %cst_148 {dimension_numbers = #tpu.dot_dimension_numbers<[1], [0], [0], [1], [0, 0, 1, 1], [], []>} : vector<7x15xf32>, vector<15x32xf32>, vector<7x32xf32> -> vector<7x32xf32>
    %cst_149 = arith.constant dense<0.000000e+00> : vector<7x32xf32>
    %272 = tpu.matmul %31, %270, %cst_149 {dimension_numbers = #tpu.dot_dimension_numbers<[1], [0], [0], [1], [0, 0, 1, 1], [], []>} : vector<7x15xf32>, vector<15x32xf32>, vector<7x32xf32> -> vector<7x32xf32>
    %273 = arith.maximumf %271, %272 : vector<7x32xf32>
    %c0_150 = arith.constant 0 : index
    %c14_151 = arith.constant 14 : index
    %c0_152 = arith.constant 0 : index
    %274 = vector.load %arg6[%c0_150, %c14_151, %c0_152] : memref<1x49x32xf32, #tpu.memory_space<vmem>>, vector<1x7x32xf32>
    %275 = vector.shape_cast %274 : vector<1x7x32xf32> to vector<7x32xf32>
    %276 = vector.shape_cast %273 : vector<7x32xf32> to vector<1x7x32xf32>
    tpu.vector_store %arg6[%c0_150, %c14_151, %c0_152], %276 {strides = array<i32>} : memref<1x49x32xf32, #tpu.memory_space<vmem>>, vector<1x7x32xf32>,
    %277 = vector.extract_strided_slice %249 {offsets = [90, 0], sizes = [15, 32], strides = [1, 1]} : vector<210x32xf32> to vector<15x32xf32>
    %278 = vector.extract_strided_slice %249 {offsets = [105, 0], sizes = [15, 32], strides = [1, 1]} : vector<210x32xf32> to vector<15x32xf32>
    %279 = arith.maximumf %277, %278 : vector<15x32xf32>
    %cst_153 = arith.constant dense<0.000000e+00> : vector<7x32xf32>
    %280 = tpu.matmul %23, %279, %cst_153 {dimension_numbers = #tpu.dot_dimension_numbers<[1], [0], [0], [1], [0, 0, 1, 1], [], []>} : vector<7x15xf32>, vector<15x32xf32>, vector<7x32xf32> -> vector<7x32xf32>
    %cst_154 = arith.constant dense<0.000000e+00> : vector<7x32xf32>
    %281 = tpu.matmul %31, %279, %cst_154 {dimension_numbers = #tpu.dot_dimension_numbers<[1], [0], [0], [1], [0, 0, 1, 1], [], []>} : vector<7x15xf32>, vector<15x32xf32>, vector<7x32xf32> -> vector<7x32xf32>
    %282 = arith.maximumf %280, %281 : vector<7x32xf32>
    %c0_155 = arith.constant 0 : index
    %c21 = arith.constant 21 : index
    %c0_156 = arith.constant 0 : index
    %283 = vector.load %arg6[%c0_155, %c21, %c0_156] : memref<1x49x32xf32, #tpu.memory_space<vmem>>, vector<1x7x32xf32>
    %284 = vector.shape_cast %283 : vector<1x7x32xf32> to vector<7x32xf32>
    %285 = vector.shape_cast %282 : vector<7x32xf32> to vector<1x7x32xf32>
    tpu.vector_store %arg6[%c0_155, %c21, %c0_156], %285 {strides = array<i32>} : memref<1x49x32xf32, #tpu.memory_space<vmem>>, vector<1x7x32xf32>,
    %286 = vector.extract_strided_slice %249 {offsets = [120, 0], sizes = [15, 32], strides = [1, 1]} : vector<210x32xf32> to vector<15x32xf32>
    %287 = vector.extract_strided_slice %249 {offsets = [135, 0], sizes = [15, 32], strides = [1, 1]} : vector<210x32xf32> to vector<15x32xf32>
    %288 = arith.maximumf %286, %287 : vector<15x32xf32>
    %cst_157 = arith.constant dense<0.000000e+00> : vector<7x32xf32>
    %289 = tpu.matmul %23, %288, %cst_157 {dimension_numbers = #tpu.dot_dimension_numbers<[1], [0], [0], [1], [0, 0, 1, 1], [], []>} : vector<7x15xf32>, vector<15x32xf32>, vector<7x32xf32> -> vector<7x32xf32>
    %cst_158 = arith.constant dense<0.000000e+00> : vector<7x32xf32>
    %290 = tpu.matmul %31, %288, %cst_158 {dimension_numbers = #tpu.dot_dimension_numbers<[1], [0], [0], [1], [0, 0, 1, 1], [], []>} : vector<7x15xf32>, vector<15x32xf32>, vector<7x32xf32> -> vector<7x32xf32>
    %291 = arith.maximumf %289, %290 : vector<7x32xf32>
    %c0_159 = arith.constant 0 : index
    %c28_160 = arith.constant 28 : index
    %c0_161 = arith.constant 0 : index
    %292 = vector.load %arg6[%c0_159, %c28_160, %c0_161] : memref<1x49x32xf32, #tpu.memory_space<vmem>>, vector<1x7x32xf32>
    %293 = vector.shape_cast %292 : vector<1x7x32xf32> to vector<7x32xf32>
    %294 = vector.shape_cast %291 : vector<7x32xf32> to vector<1x7x32xf32>
    tpu.vector_store %arg6[%c0_159, %c28_160, %c0_161], %294 {strides = array<i32>} : memref<1x49x32xf32, #tpu.memory_space<vmem>>, vector<1x7x32xf32>,
    %295 = vector.extract_strided_slice %249 {offsets = [150, 0], sizes = [15, 32], strides = [1, 1]} : vector<210x32xf32> to vector<15x32xf32>
    %296 = vector.extract_strided_slice %249 {offsets = [165, 0], sizes = [15, 32], strides = [1, 1]} : vector<210x32xf32> to vector<15x32xf32>
    %297 = arith.maximumf %295, %296 : vector<15x32xf32>
    %cst_162 = arith.constant dense<0.000000e+00> : vector<7x32xf32>
    %298 = tpu.matmul %23, %297, %cst_162 {dimension_numbers = #tpu.dot_dimension_numbers<[1], [0], [0], [1], [0, 0, 1, 1], [], []>} : vector<7x15xf32>, vector<15x32xf32>, vector<7x32xf32> -> vector<7x32xf32>
    %cst_163 = arith.constant dense<0.000000e+00> : vector<7x32xf32>
    %299 = tpu.matmul %31, %297, %cst_163 {dimension_numbers = #tpu.dot_dimension_numbers<[1], [0], [0], [1], [0, 0, 1, 1], [], []>} : vector<7x15xf32>, vector<15x32xf32>, vector<7x32xf32> -> vector<7x32xf32>
    %300 = arith.maximumf %298, %299 : vector<7x32xf32>
    %c0_164 = arith.constant 0 : index
    %c35 = arith.constant 35 : index
    %c0_165 = arith.constant 0 : index
    %301 = vector.load %arg6[%c0_164, %c35, %c0_165] : memref<1x49x32xf32, #tpu.memory_space<vmem>>, vector<1x7x32xf32>
    %302 = vector.shape_cast %301 : vector<1x7x32xf32> to vector<7x32xf32>
    %303 = vector.shape_cast %300 : vector<7x32xf32> to vector<1x7x32xf32>
    tpu.vector_store %arg6[%c0_164, %c35, %c0_165], %303 {strides = array<i32>} : memref<1x49x32xf32, #tpu.memory_space<vmem>>, vector<1x7x32xf32>,
    %304 = vector.extract_strided_slice %249 {offsets = [180, 0], sizes = [15, 32], strides = [1, 1]} : vector<210x32xf32> to vector<15x32xf32>
    %305 = vector.extract_strided_slice %249 {offsets = [195, 0], sizes = [15, 32], strides = [1, 1]} : vector<210x32xf32> to vector<15x32xf32>
    %306 = arith.maximumf %304, %305 : vector<15x32xf32>
    %cst_166 = arith.constant dense<0.000000e+00> : vector<7x32xf32>
    %307 = tpu.matmul %23, %306, %cst_166 {dimension_numbers = #tpu.dot_dimension_numbers<[1], [0], [0], [1], [0, 0, 1, 1], [], []>} : vector<7x15xf32>, vector<15x32xf32>, vector<7x32xf32> -> vector<7x32xf32>
    %cst_167 = arith.constant dense<0.000000e+00> : vector<7x32xf32>
    %308 = tpu.matmul %31, %306, %cst_167 {dimension_numbers = #tpu.dot_dimension_numbers<[1], [0], [0], [1], [0, 0, 1, 1], [], []>} : vector<7x15xf32>, vector<15x32xf32>, vector<7x32xf32> -> vector<7x32xf32>
    %309 = arith.maximumf %307, %308 : vector<7x32xf32>
    %c0_168 = arith.constant 0 : index
    %c42 = arith.constant 42 : index
    %c0_169 = arith.constant 0 : index
    %310 = vector.load %arg6[%c0_168, %c42, %c0_169] : memref<1x49x32xf32, #tpu.memory_space<vmem>>, vector<1x7x32xf32>
    %311 = vector.shape_cast %310 : vector<1x7x32xf32> to vector<7x32xf32>
    %312 = vector.shape_cast %309 : vector<7x32xf32> to vector<1x7x32xf32>
    tpu.vector_store %arg6[%c0_168, %c42, %c0_169], %312 {strides = array<i32>} : memref<1x49x32xf32, #tpu.memory_space<vmem>>, vector<1x7x32xf32>,
    return
  }
  func.func @transform_0(%arg0: i32) -> (i32, i32, i32) {
    %c0_i32 = arith.constant 0 : i32
    %c0_i32_0 = arith.constant 0 : i32
    %c0_i32_1 = arith.constant 0 : i32
    return %arg0, %c0_i32, %c0_i32_0 : i32, i32, i32
  }
  func.func @transform_1(%arg0: i32) -> (i32, i32) {
    %c0_i32 = arith.constant 0 : i32
    %c0_i32_0 = arith.constant 0 : i32
    %c0_i32_1 = arith.constant 0 : i32
    return %c0_i32, %c0_i32_0 : i32, i32
  }
  func.func @transform_2(%arg0: i32) -> (i32, i32) {
    %c0_i32 = arith.constant 0 : i32
    %c0_i32_0 = arith.constant 0 : i32
    %c0_i32_1 = arith.constant 0 : i32
    return %c0_i32, %c0_i32_0 : i32, i32
  }
  func.func @transform_3(%arg0: i32) -> (i32, i32, i32) {
    %c0_i32 = arith.constant 0 : i32
    %c0_i32_0 = arith.constant 0 : i32
    %c0_i32_1 = arith.constant 0 : i32
    %c0_i32_2 = arith.constant 0 : i32
    return %c0_i32, %c0_i32_0, %c0_i32_1 : i32, i32, i32
  }
  func.func @transform_4(%arg0: i32) -> (i32, i32) {
    %c0_i32 = arith.constant 0 : i32
    %c0_i32_0 = arith.constant 0 : i32
    %c0_i32_1 = arith.constant 0 : i32
    return %c0_i32, %c0_i32_0 : i32, i32
  }
  func.func @transform_5(%arg0: i32) -> (i32, i32, i32) {
    %c0_i32 = arith.constant 0 : i32
    %c0_i32_0 = arith.constant 0 : i32
    %c0_i32_1 = arith.constant 0 : i32
    return %arg0, %c0_i32, %c0_i32_0 : i32, i32, i32
  }
}

</mosaic_0001>

<llo_original>
// kernel: tpu_custom_call.1
$region0: #{tpu_custom_call.1}
  #allocation0 [shape = 'u32[]', space=smem, size = 0x4, offset = 0x4, fixed_abs, tag = 'smem constant byte address 0x4 - core index']
  #allocation1 [shape = 'u32[72,128]{1,0:T(1,128)}', space=vmem, size = 0x9000, scoped, tag = 'internal scratch']
  #allocation2 [shape = 'f32[270,16]{1,0:T(8,128)}', space=vmem, size = 0x22000, scoped, tag = 'scratch operand']
  %s0 = inlined_call_operand.vmem [shape: f32[2,928,1], index: 0, kind: input, shape index: {}]
  %s1 = inlined_call_operand.vmem [shape: f32[9,16], index: 1, kind: input, shape index: {}]
  %s2 = inlined_call_operand.vmem [shape: f32[1,16], index: 2, kind: input, shape index: {}]
  %s3 = inlined_call_operand.vmem [shape: f32[9,16,32], index: 3, kind: input, shape index: {}]
  %s4 = inlined_call_operand.vmem [shape: f32[1,32], index: 4, kind: input, shape index: {}]
  %s5 = inlined_call_operand.vmem [shape: f32[2,49,32], index: 5, kind: output, shape index: {}]
  %s6 = sld [smem:[#allocation0]]
  $region53: #{tpu_custom_call.1} parent=0
    _
  %s8 = ssub.s32 1, %s6
  %s9 = scalar_select 0, %s8, %s6
  loop: start=0, step=1, limit=4
  $region2: #{tpu_custom_call.1} parent=0 // loop_pre_header
    _
  $region3: #{tpu_custom_call.1} parent=0 // loop_header
    %s11 = sphi 0, %s15
    %p12 = scmp.ge.s32.totalorder %s11, 4
    %s21 = sphi 0, %s23
    %s24 = sphi 0, %s21
    %s25 = sphi 0, %s24
    %s41 = sphi 0, %s25
    %s45 = sphi 0, %s45
    %s47 = sphi 0, %s45
    %s48 = sphi 0, %s47
    %s62 = sphi 0, %s48
    %s66 = sphi 0, %s66
    %s68 = sphi 0, %s66
    %s69 = sphi 0, %s68
    %s83 = sphi 0, %s69
    %s87 = sphi 0, %s87
    %s89 = sphi 0, %s87
    %s90 = sphi 0, %s89
    %s104 = sphi 0, %s90
    %s108 = sphi 0, %s108
    %s110 = sphi 0, %s108
    %s111 = sphi 0, %s110
    %s125 = sphi 0, %s111
    %s131 = sphi 0, %s133
    %s134 = sphi 0, %s131
    %s135 = sphi 0, %s134
    %s151 = sphi 0, %s135
  $region4: #{tpu_custom_call.1} parent=0 // loop_header_branch
    %14 = sbr.rel (%p12) target = $region8
  $region5: #{tpu_custom_call.1} parent=0 // loop_body
    %s16 = ssub.s32 %s11, 1
    %s17 = ssub.s32 %s11, 2
    %s18 = sadd.s32 %s11, 1
    %s19 = ssub.s32 %s11, %s18
    %p20 = scmp.eq.s32.totalorder %s19, 0
    %s22 = sadd.s32 %s21, 1
    %s23 = scalar_select %p20, %s21, %s22
    %p26 = pneg %p20
    %p27 = scmp.eq.s32.totalorder %s11, 1
    %p28 = por %p26, %p27
    %p29 = scmp.ne.s32.totalorder %s21, %s24
    %p30 = scmp.eq.s32.totalorder %s11, 0
    %p31 = por %p29, %p30
    %p32 = scmp.ne.s32.totalorder %s21, %s24
    %p33 = scmp.eq.s32.totalorder %s16, 1
    %p34 = por %p32, %p33
    %p35 = scmp.ne.s32.totalorder %s24, %s25
    %p36 = scmp.eq.s32.totalorder %s16, 0
    %p37 = por %p35, %p36
    %p38 = scmp.ne.s32.totalorder %s24, %s25
    %p39 = scmp.eq.s32.totalorder %s17, 1
    %p40 = por %p38, %p39
    %p42 = scmp.ne.s32.totalorder %s25, %s41
    %p43 = scmp.eq.s32.totalorder %s17, 0
    %p44 = por %p42, %p43
    %s46 = sadd.s32 %s45, 1
    %p49 = scmp.eq.s32.totalorder %s11, 1
    %p50 = scmp.ne.s32.totalorder %s45, %s47
    %p51 = scmp.eq.s32.totalorder %s11, 0
    %p52 = por %p50, %p51
    %p53 = scmp.ne.s32.totalorder %s45, %s47
    %p54 = scmp.eq.s32.totalorder %s16, 1
    %p55 = por %p53, %p54
    %p56 = scmp.ne.s32.totalorder %s47, %s48
    %p57 = scmp.eq.s32.totalorder %s16, 0
    %p58 = por %p56, %p57
    %p59 = scmp.ne.s32.totalorder %s47, %s48
    %p60 = scmp.eq.s32.totalorder %s17, 1
    %p61 = por %p59, %p60
    %p63 = scmp.ne.s32.totalorder %s48, %s62
    %p64 = scmp.eq.s32.totalorder %s17, 0
    %p65 = por %p63, %p64
    %s67 = sadd.s32 %s66, 1
    %p70 = scmp.eq.s32.totalorder %s11, 1
    %p71 = scmp.ne.s32.totalorder %s66, %s68
    %p72 = scmp.eq.s32.totalorder %s11, 0
    %p73 = por %p71, %p72
    %p74 = scmp.ne.s32.totalorder %s66, %s68
    %p75 = scmp.eq.s32.totalorder %s16, 1
    %p76 = por %p74, %p75
    %p77 = scmp.ne.s32.totalorder %s68, %s69
    %p78 = scmp.eq.s32.totalorder %s16, 0
    %p79 = por %p77, %p78
    %p80 = scmp.ne.s32.totalorder %s68, %s69
    %p81 = scmp.eq.s32.totalorder %s17, 1
    %p82 = por %p80, %p81
    %p84 = scmp.ne.s32.totalorder %s69, %s83
    %p85 = scmp.eq.s32.totalorder %s17, 0
    %p86 = por %p84, %p85
    %s88 = sadd.s32 %s87, 1
    %p91 = scmp.eq.s32.totalorder %s11, 1
    %p92 = scmp.ne.s32.totalorder %s87, %s89
    %p93 = scmp.eq.s32.totalorder %s11, 0
    %p94 = por %p92, %p93
    %p95 = scmp.ne.s32.totalorder %s87, %s89
    %p96 = scmp.eq.s32.totalorder %s16, 1
    %p97 = por %p95, %p96
    %p98 = scmp.ne.s32.totalorder %s89, %s90
    %p99 = scmp.eq.s32.totalorder %s16, 0
    %p100 = por %p98, %p99
    %p101 = scmp.ne.s32.totalorder %s89, %s90
    %p102 = scmp.eq.s32.totalorder %s17, 1
    %p103 = por %p101, %p102
    %p105 = scmp.ne.s32.totalorder %s90, %s104
    %p106 = scmp.eq.s32.totalorder %s17, 0
    %p107 = por %p105, %p106
    %s109 = sadd.s32 %s108, 1
    %p112 = scmp.eq.s32.totalorder %s11, 1
    %p113 = scmp.ne.s32.totalorder %s108, %s110
    %p114 = scmp.eq.s32.totalorder %s11, 0
    %p115 = por %p113, %p114
    %p116 = scmp.ne.s32.totalorder %s108, %s110
    %p117 = scmp.eq.s32.totalorder %s16, 1
    %p118 = por %p116, %p117
    %p119 = scmp.ne.s32.totalorder %s110, %s111
    %p120 = scmp.eq.s32.totalorder %s16, 0
    %p121 = por %p119, %p120
    %p122 = scmp.ne.s32.totalorder %s110, %s111
    %p123 = scmp.eq.s32.totalorder %s17, 1
    %p124 = por %p122, %p123
    %p126 = scmp.ne.s32.totalorder %s111, %s125
    %p127 = scmp.eq.s32.totalorder %s17, 0
    %p128 = por %p126, %p127
    %s129 = ssub.s32 %s11, %s18
    %p130 = scmp.eq.s32.totalorder %s129, 0
    %s132 = sadd.s32 %s131, 1
    %s133 = scalar_select %p130, %s131, %s132
    %p136 = pneg %p130
    %p137 = scmp.eq.s32.totalorder %s11, 1
    %p138 = por %p136, %p137
    %p139 = scmp.ne.s32.totalorder %s131, %s134
    %p140 = scmp.eq.s32.totalorder %s11, 0
    %p141 = por %p139, %p140
    %p142 = scmp.ne.s32.totalorder %s131, %s134
    %p143 = scmp.eq.s32.totalorder %s16, 1
    %p144 = por %p142, %p143
    %p145 = scmp.ne.s32.totalorder %s134, %s135
    %p146 = scmp.eq.s32.totalorder %s16, 0
    %p147 = por %p145, %p146
    %p148 = scmp.ne.s32.totalorder %s134, %s135
    %p149 = scmp.eq.s32.totalorder %s17, 1
    %p150 = por %p148, %p149
    %p152 = scmp.ne.s32.totalorder %s135, %s151
    %p153 = scmp.eq.s32.totalorder %s17, 0
    %p154 = por %p152, %p153
    %p155 = scmp.le.s32.totalorder 1, %s11
    %p156 = scmp.lt.s32.totalorder %s11, 3
    %p157 = pnand %p155, %p156
    %p158 = pneg %p157
    // Predicated region
    $region9: #{tpu_custom_call.1} parent=5 // pred_check
      _
    $region10: #{tpu_custom_call.1} parent=5 // pred_check_branch
      %160 = sbr.rel (%p157) target = $region12
    $region11: #{tpu_custom_call.1} parent=5 // pred_region
      %s161 = ssub.s32 %s11, 1
      // Predicated region
      $region13: #{tpu_custom_call.1} parent=11 // pred_check
        %p162 = pneg %p58
      $region14: #{tpu_custom_call.1} parent=11 // pred_check_branch
        %164 = sbr.rel (%p162) target = $region16
      $region15: #{tpu_custom_call.1} parent=11 // pred_region
        _
      $region16: #{tpu_custom_call.1} parent=11 // pred_fallthru
        _
      // Predicated region
      $region17: #{tpu_custom_call.1} parent=11 // pred_check
        %p165 = pneg %p79
      $region18: #{tpu_custom_call.1} parent=11 // pred_check_branch
        %167 = sbr.rel (%p165) target = $region20
      $region19: #{tpu_custom_call.1} parent=11 // pred_region
        _
      $region20: #{tpu_custom_call.1} parent=11 // pred_fallthru
        _
      // Predicated region
      $region21: #{tpu_custom_call.1} parent=11 // pred_check
        %p168 = pneg %p100
      $region22: #{tpu_custom_call.1} parent=11 // pred_check_branch
        %170 = sbr.rel (%p168) target = $region24
      $region23: #{tpu_custom_call.1} parent=11 // pred_region
        _
      $region24: #{tpu_custom_call.1} parent=11 // pred_fallthru
        _
      // Predicated region
      $region25: #{tpu_custom_call.1} parent=11 // pred_check
        %p171 = pneg %p121
      $region26: #{tpu_custom_call.1} parent=11 // pred_check_branch
        %173 = sbr.rel (%p171) target = $region28
      $region27: #{tpu_custom_call.1} parent=11 // pred_region
        _
      $region28: #{tpu_custom_call.1} parent=11 // pred_fallthru
        _
    $region12: #{tpu_custom_call.1} parent=5 // pred_fallthru
      _
    %p174 = scmp.lt.s32.totalorder %s11, 2
    // Predicated region
    $region29: #{tpu_custom_call.1} parent=5 // pred_check
      %p175 = pneg %p174
    $region30: #{tpu_custom_call.1} parent=5 // pred_check_branch
      %177 = sbr.rel (%p175) target = $region32
    $region31: #{tpu_custom_call.1} parent=5 // pred_region
      // Predicated region
      $region33: #{tpu_custom_call.1} parent=31 // pred_check
        %p178 = pneg %p31
      $region34: #{tpu_custom_call.1} parent=31 // pred_check_branch
        %180 = sbr.rel (%p178) target = $region36
      $region35: #{tpu_custom_call.1} parent=31 // pred_region
        %p181 = scmp.lt.s32.totalorder %s11, 1
        %s182 = scalar_select %p181, %s11, 1
        %s183 = smul.addr %s182, 116
        %s184 = smul.addr %s183, 8
        %s185 = scalar_lea.vmem %s0, %s184
      $region36: #{tpu_custom_call.1} parent=31 // pred_fallthru
        _
    $region32: #{tpu_custom_call.1} parent=5 // pred_fallthru
      _
    %p186 = scmp.le.s32.totalorder 1, %s11
    %p187 = scmp.lt.s32.totalorder %s11, 3
    %p188 = pnand %p186, %p187
    %p189 = pneg %p188
    // Predicated region
    $region37: #{tpu_custom_call.1} parent=5 // pred_check
      _
    $region38: #{tpu_custom_call.1} parent=5 // pred_check_branch
      %191 = sbr.rel (%p188) target = $region40
    $region39: #{tpu_custom_call.1} parent=5 // pred_region
      %s192 = ssub.s32 %s11, 1
      %p193 = scmp.lt.s32.totalorder %s16, 1
      %s194 = scalar_select %p193, %s16, 1
      %s195 = smul.addr %s194, 116
      %s196 = smul.addr %s195, 8
      %s197 = scalar_lea.vmem %s0, %s196
      %p198 = pneg %p37
      %p199 = pneg %p34
      %p200 = pneg %p58
      %p201 = pneg %p55
      %p202 = pneg %p79
      %p203 = pneg %p76
      %p204 = pneg %p100
      %p205 = pneg %p97
      %p206 = pneg %p121
      %p207 = pneg %p118
      %p208 = pneg %p147
      %p209 = pneg %p144
      %p210 = scmp.lt.s32.totalorder %s16, 1
      %s211 = scalar_select %p210, %s16, 1
      %s212 = smul.addr %s211, 7
      %s213 = smul.addr %s212, 8
      %s214 = scalar_lea.vmem %s5, %s213
      %p215 = scmp.lt.s32.totalorder %s16, 1
      %s216 = scalar_select %p215, %s16, 1
      %s217 = smul.addr %s216, 116
      %s218 = smul.addr %s217, 8
      %s219 = scalar_lea.vmem %s0, %s218
      %p220 = scmp.lt.s32.totalorder %s16, 1
      %s221 = scalar_select %p220, %s16, 1
      %s222 = smul.addr %s221, 7
      %s223 = smul.addr %s222, 8
      %s224 = scalar_lea.vmem %s5, %s223
      %v225 = vlaneseq
      %v226 = vshrl.u32 %v225, 7
      %v227 = vadd.s32 %v226, 8
      %v228 = vlaneseq
      %v229 = vand.u32 %v228, 127
      %v230 = vmul.u32 %v226, 2
      %v231 = vmul.u32 %v227, 2
      %vm232 = vcmp.eq.s32.totalorder %v229, %v230
      %vm233 = vcmp.eq.s32.totalorder %v229, %v231
      %v234 = vsel %vm232, 1.0, 0.0
      %v235 = vsel %vm233, 1.0, 0.0
      %v236 = vadd.s32 %v230, 1
      %v237 = vadd.s32 %v231, 1
      %vm238 = vcmp.eq.s32.totalorder %v229, %v236
      %vm239 = vcmp.eq.s32.totalorder %v229, %v237
      %v240 = vsel %vm238, 1.0, 0.0
      %v241 = vsel %vm239, 1.0, 0.0
      %v242 = vld [vmem:[%s2] sm:$0x1]
      %v244 = vperm.slane %v242, 0
      %v246 = vld [vmem:[%s219 + $0x1c] sm:$0xff]
      %v247 = vld [vmem:[%s219 + $0x24] sm:$0xff]
      %v248 = vld [vmem:[%s219 + $0x2c] sm:$0xff]
      %v249 = vld [vmem:[%s219 + $0x34] sm:$0xff]
      %v250 = vld [vmem:[%s219 + $0x3c] sm:$0xff]
      %v251 = vld [vmem:[%s219 + $0x44] sm:$0xff]
      %v252 = vld [vmem:[%s219 + $0x4c] sm:$0xff]
      %v253 = vld [vmem:[%s219 + $0x54] sm:$0xff]
      %v254 = vld [vmem:[%s219 + $0x5c] sm:$0xff]
      %v255 = vld [vmem:[%s219 + $0x64] sm:$0xff]
      %v256 = vld [vmem:[%s219 + $0x6c] sm:$0xff]
      %v257 = vld [vmem:[%s219 + $0x74] sm:$0xff]
      %v258 = vld [vmem:[%s219 + $0x7c] sm:$0xff]
      %v259 = vld [vmem:[%s219 + $0x84] sm:$0xff]
      %v260 = vld [vmem:[%s219 + $0x8c] sm:$0xff]
      %v261 = vld [vmem:[%s219 + $0x94] sm:$0xff]
      %v262 = vld [vmem:[%s219 + $0x9c] sm:$0xff]
      %v263 = vld [vmem:[%s219 + $0xa4] sm:$0xff]
      %v264 = vld [vmem:[%s219 + $0xac] sm:$0xff]
      %v265 = vld [vmem:[%s219 + $0xb4] sm:$0xff]
      %v266 = vld [vmem:[%s219 + $0xbc] sm:$0xff]
      %v267 = vld [vmem:[%s219 + $0xc4] sm:$0xff]
      %v268 = vld [vmem:[%s219 + $0xcc] sm:$0xff]
      %v269 = vld [vmem:[%s219 + $0xd4] sm:$0xff]
      %v270 = vld [vmem:[%s219 + $0xdc] sm:$0xff]
      %v271 = vld [vmem:[%s219 + $0xe4] sm:$0xff]
      %v272 = vld [vmem:[%s219 + $0xec] sm:$0xff]
      %v273 = vld [vmem:[%s219 + $0xf4] sm:$0xff]
      %v274 = vld [vmem:[%s219 + $0xfc] sm:$0xff]
      %v275 = vld [vmem:[%s219 + $0x104] sm:$0xff]
      %v276 = vld [vmem:[%s219 + $0x10c] sm:$0xff]
      %v277 = vld [vmem:[%s219 + $0x114] sm:$0xff]
      %v278 = vld [vmem:[%s219 + $0x11c] sm:$0xff]
      %v279 = vld [vmem:[%s219 + $0x124] sm:$0xff]
      %v280 = vld [vmem:[%s219 + $0x12c] sm:$0xff]
      %v281 = vld [vmem:[%s219 + $0x134] sm:$0xff]
      %v282 = vld [vmem:[%s219 + $0x13c] sm:$0xff]
      %v283 = vld [vmem:[%s219 + $0x144] sm:$0xff]
      %v284 = vld [vmem:[%s219 + $0x14c] sm:$0xff]
      %v285 = vld [vmem:[%s219 + $0x154] sm:$0xff]
      %v286 = vld [vmem:[%s219 + $0x15c] sm:$0xff]
      %v287 = vld [vmem:[%s219 + $0x164] sm:$0xff]
      %v288 = vld [vmem:[%s219 + $0x16c] sm:$0xff]
      %v289 = vld [vmem:[%s219 + $0x174] sm:$0xff]
      %v290 = vld [vmem:[%s219 + $0x17c] sm:$0xff]
      %v291 = vld [vmem:[%s219 + $0x184] sm:$0xff]
      %v292 = vld [vmem:[%s219 + $0x18c] sm:$0xff]
      %v293 = vld [vmem:[%s219 + $0x194] sm:$0xff]
      %v294 = vld [vmem:[%s219 + $0x19c] sm:$0xff]
      %v295 = vld [vmem:[%s219 + $0x1a4] sm:$0xff]
      %v296 = vld [vmem:[%s219 + $0x1ac] sm:$0xff]
      %v297 = vld [vmem:[%s219 + $0x1b4] sm:$0xff]
      %v298 = vld [vmem:[%s219 + $0x1bc] sm:$0xff]
      %v299 = vld [vmem:[%s219 + $0x1c4] sm:$0xff]
      %v300 = vld [vmem:[%s219 + $0x1cc] sm:$0xff]
      %v301 = vld [vmem:[%s219 + $0x1d4] sm:$0xff]
      %v302 = vld [vmem:[%s219 + $0x1dc] sm:$0xff]
      %v303 = vld [vmem:[%s219 + $0x1e4] sm:$0xff]
      %v304 = vld [vmem:[%s219 + $0x1ec] sm:$0xff]
      %v305 = vld [vmem:[%s219 + $0x1f4] sm:$0xff]
      %v306 = vld [vmem:[%s219 + $0x1fc] sm:$0xff]
      %v307 = vld [vmem:[%s219 + $0x204] sm:$0xff]
      %v308 = vld [vmem:[%s219 + $0x20c] sm:$0xff]
      %v309 = vld [vmem:[%s219 + $0x214] sm:$0xff]
      %v310 = vld [vmem:[%s219 + $0x21c] sm:$0xff]
      %v311 = vld [vmem:[%s219 + $0x224] sm:$0xff]
      %v312 = vld [vmem:[%s219 + $0x22c] sm:$0xff]
      %v313 = vld [vmem:[%s219 + $0x234] sm:$0xff]
      %v314 = vld [vmem:[%s219 + $0x23c] sm:$0xff]
      %v315 = vld [vmem:[%s219 + $0x244] sm:$0xff]
      %v316 = vld [vmem:[%s219 + $0x24c] sm:$0xff]
      %v317 = vld [vmem:[%s219 + $0x254] sm:$0xff]
      %v318 = vld [vmem:[%s219 + $0x25c] sm:$0xff]
      %v319 = vld [vmem:[%s219 + $0x264] sm:$0xff]
      %v320 = vld [vmem:[%s219 + $0x26c] sm:$0xff]
      %v321 = vld [vmem:[%s219 + $0x274] sm:$0xff]
      %v322 = vld [vmem:[%s219 + $0x27c] sm:$0xff]
      %v323 = vld [vmem:[%s219 + $0x284] sm:$0xff]
      %v324 = vld [vmem:[%s219 + $0x28c] sm:$0xff]
      %v325 = vld [vmem:[%s219 + $0x294] sm:$0xff]
      %v326 = vld [vmem:[%s219 + $0x29c] sm:$0xff]
      %v327 = vld [vmem:[%s219 + $0x2a4] sm:$0xff]
      %v328 = vld [vmem:[%s219 + $0x2ac] sm:$0xff]
      %v329 = vld [vmem:[%s219 + $0x2b4] sm:$0xff]
      %v330 = vld [vmem:[%s219 + $0x2bc] sm:$0xff]
      %v331 = vld [vmem:[%s219 + $0x2c4] sm:$0xff]
      %v332 = vld [vmem:[%s219 + $0x2cc] sm:$0xff]
      %v333 = vld [vmem:[%s219 + $0x2d4] sm:$0xff]
      %v334 = vld [vmem:[%s219 + $0x2dc] sm:$0xff]
      %v335 = vld [vmem:[%s219 + $0x2e4] sm:$0xff]
      %v336 = vld [vmem:[%s219 + $0x2ec] sm:$0xff]
      %v337 = vld [vmem:[%s219 + $0x2f4] sm:$0xff]
      %v338 = vld [vmem:[%s219 + $0x2fc] sm:$0xff]
      %v339 = vld [vmem:[%s219 + $0x304] sm:$0xff]
      %v340 = vld [vmem:[%s219 + $0x30c] sm:$0xff]
      %v341 = vld [vmem:[%s219 + $0x314] sm:$0xff]
      %v342 = vld [vmem:[%s219 + $0x31c] sm:$0xff]
      %v343 = vld [vmem:[%s219 + $0x324] sm:$0xff]
      %v344 = vld [vmem:[%s219 + $0x32c] sm:$0xff]
      %v345 = vld [vmem:[%s219 + $0x334] sm:$0xff]
      %v346 = vld [vmem:[%s219 + $0x33c] sm:$0xff]
      %v347 = vld [vmem:[%s219 + $0x344] sm:$0xf]
      %v348 = vld [vmem:[%s1] sm:$0x1]
      %350 = vset.pattern.permute.xlu0 0
      %351 = vperm.xlu0 %350, %v246
      %v352 = vpop.permute.xlu0 %351
      %355 = vset.pattern.permute.xlu0 0
      %356 = vperm.xlu0 %355, %v247
      %v357 = vpop.permute.xlu0 %356
      %360 = vset.pattern.permute.xlu0 0
      %361 = vperm.xlu0 %360, %v248
      %v362 = vpop.permute.xlu0 %361
      %365 = vset.pattern.permute.xlu0 0
      %366 = vperm.xlu0 %365, %v249
      %v367 = vpop.permute.xlu0 %366
      %370 = vset.pattern.permute.xlu0 0
      %371 = vperm.xlu0 %370, %v250
      %v372 = vpop.permute.xlu0 %371
      %375 = vset.pattern.permute.xlu0 0
      %376 = vperm.xlu0 %375, %v251
      %v377 = vpop.permute.xlu0 %376
      %380 = vset.pattern.permute.xlu0 0
      %381 = vperm.xlu0 %380, %v252
      %v382 = vpop.permute.xlu0 %381
      %385 = vset.pattern.permute.xlu0 0
      %386 = vperm.xlu0 %385, %v253
      %v387 = vpop.permute.xlu0 %386
      %390 = vset.pattern.permute.xlu0 0
      %391 = vperm.xlu0 %390, %v254
      %v392 = vpop.permute.xlu0 %391
      %395 = vset.pattern.permute.xlu0 0
      %396 = vperm.xlu0 %395, %v255
      %v397 = vpop.permute.xlu0 %396
      %400 = vset.pattern.permute.xlu0 0
      %401 = vperm.xlu0 %400, %v256
      %v402 = vpop.permute.xlu0 %401
      %405 = vset.pattern.permute.xlu0 0
      %406 = vperm.xlu0 %405, %v257
      %v407 = vpop.permute.xlu0 %406
      %410 = vset.pattern.permute.xlu0 0
      %411 = vperm.xlu0 %410, %v258
      %v412 = vpop.permute.xlu0 %411
      %415 = vset.pattern.permute.xlu0 0
      %416 = vperm.xlu0 %415, %v259
      %v417 = vpop.permute.xlu0 %416
      %420 = vset.pattern.permute.xlu0 0
      %421 = vperm.xlu0 %420, %v260
      %v422 = vpop.permute.xlu0 %421
      %425 = vset.pattern.permute.xlu0 0
      %426 = vperm.xlu0 %425, %v261
      %v427 = vpop.permute.xlu0 %426
      %430 = vset.pattern.permute.xlu0 0
      %431 = vperm.xlu0 %430, %v262
      %v432 = vpop.permute.xlu0 %431
      %435 = vset.pattern.permute.xlu0 0
      %436 = vperm.xlu0 %435, %v263
      %v437 = vpop.permute.xlu0 %436
      %440 = vset.pattern.permute.xlu0 0
      %441 = vperm.xlu0 %440, %v264
      %v442 = vpop.permute.xlu0 %441
      %445 = vset.pattern.permute.xlu0 0
      %446 = vperm.xlu0 %445, %v265
      %v447 = vpop.permute.xlu0 %446
      %450 = vset.pattern.permute.xlu0 0
      %451 = vperm.xlu0 %450, %v266
      %v452 = vpop.permute.xlu0 %451
      %455 = vset.pattern.permute.xlu0 0
      %456 = vperm.xlu0 %455, %v267
      %v457 = vpop.permute.xlu0 %456
      %460 = vset.pattern.permute.xlu0 0
      %461 = vperm.xlu0 %460, %v268
      %v462 = vpop.permute.xlu0 %461
      %465 = vset.pattern.permute.xlu0 0
      %466 = vperm.xlu0 %465, %v269
      %v467 = vpop.permute.xlu0 %466
      %470 = vset.pattern.permute.xlu0 0
      %471 = vperm.xlu0 %470, %v270
      %v472 = vpop.permute.xlu0 %471
      %475 = vset.pattern.permute.xlu0 0
      %476 = vperm.xlu0 %475, %v271
      %v477 = vpop.permute.xlu0 %476
      %480 = vset.pattern.permute.xlu0 0
      %481 = vperm.xlu0 %480, %v272
      %v482 = vpop.permute.xlu0 %481
      %485 = vset.pattern.permute.xlu0 0
      %486 = vperm.xlu0 %485, %v273
      %v487 = vpop.permute.xlu0 %486
      %490 = vset.pattern.permute.xlu0 0
      %491 = vperm.xlu0 %490, %v274
      %v492 = vpop.permute.xlu0 %491
      %495 = vset.pattern.permute.xlu0 0
      %496 = vperm.xlu0 %495, %v275
      %v497 = vpop.permute.xlu0 %496
      %500 = vset.pattern.permute.xlu0 0
      %501 = vperm.xlu0 %500, %v276
      %v502 = vpop.permute.xlu0 %501
      %505 = vset.pattern.permute.xlu0 0
      %506 = vperm.xlu0 %505, %v277
      %v507 = vpop.permute.xlu0 %506
      %510 = vset.pattern.permute.xlu0 0
      %511 = vperm.xlu0 %510, %v278
      %v512 = vpop.permute.xlu0 %511
      %515 = vset.pattern.permute.xlu0 0
      %516 = vperm.xlu0 %515, %v279
      %v517 = vpop.permute.xlu0 %516
      %520 = vset.pattern.permute.xlu0 0
      %521 = vperm.xlu0 %520, %v280
      %v522 = vpop.permute.xlu0 %521
      %525 = vset.pattern.permute.xlu0 0
      %526 = vperm.xlu0 %525, %v281
      %v527 = vpop.permute.xlu0 %526
      %530 = vset.pattern.permute.xlu0 0
      %531 = vperm.xlu0 %530, %v282
      %v532 = vpop.permute.xlu0 %531
      %535 = vset.pattern.permute.xlu0 0
      %536 = vperm.xlu0 %535, %v283
      %v537 = vpop.permute.xlu0 %536
      %540 = vset.pattern.permute.xlu0 0
      %541 = vperm.xlu0 %540, %v284
      %v542 = vpop.permute.xlu0 %541
      %545 = vset.pattern.permute.xlu0 0
      %546 = vperm.xlu0 %545, %v285
      %v547 = vpop.permute.xlu0 %546
      %550 = vset.pattern.permute.xlu0 0
      %551 = vperm.xlu0 %550, %v286
      %v552 = vpop.permute.xlu0 %551
      %555 = vset.pattern.permute.xlu0 0
      %556 = vperm.xlu0 %555, %v287
      %v557 = vpop.permute.xlu0 %556
      %560 = vset.pattern.permute.xlu0 0
      %561 = vperm.xlu0 %560, %v288
      %v562 = vpop.permute.xlu0 %561
      %565 = vset.pattern.permute.xlu0 0
      %566 = vperm.xlu0 %565, %v289
      %v567 = vpop.permute.xlu0 %566
      %570 = vset.pattern.permute.xlu0 0
      %571 = vperm.xlu0 %570, %v290
      %v572 = vpop.permute.xlu0 %571
      %575 = vset.pattern.permute.xlu0 0
      %576 = vperm.xlu0 %575, %v291
      %v577 = vpop.permute.xlu0 %576
      %580 = vset.pattern.permute.xlu0 0
      %581 = vperm.xlu0 %580, %v292
      %v582 = vpop.permute.xlu0 %581
      %585 = vset.pattern.permute.xlu0 0
      %586 = vperm.xlu0 %585, %v293
      %v587 = vpop.permute.xlu0 %586
      %590 = vset.pattern.permute.xlu0 0
      %591 = vperm.xlu0 %590, %v294
      %v592 = vpop.permute.xlu0 %591
      %595 = vset.pattern.permute.xlu0 0
      %596 = vperm.xlu0 %595, %v295
      %v597 = vpop.permute.xlu0 %596
      %600 = vset.pattern.permute.xlu0 0
      %601 = vperm.xlu0 %600, %v296
      %v602 = vpop.permute.xlu0 %601
      %605 = vset.pattern.permute.xlu0 0
      %606 = vperm.xlu0 %605, %v297
      %v607 = vpop.permute.xlu0 %606
      %610 = vset.pattern.permute.xlu0 0
      %611 = vperm.xlu0 %610, %v298
      %v612 = vpop.permute.xlu0 %611
      %615 = vset.pattern.permute.xlu0 0
      %616 = vperm.xlu0 %615, %v299
      %v617 = vpop.permute.xlu0 %616
      %620 = vset.pattern.permute.xlu0 0
      %621 = vperm.xlu0 %620, %v300
      %v622 = vpop.permute.xlu0 %621
      %625 = vset.pattern.permute.xlu0 0
      %626 = vperm.xlu0 %625, %v301
      %v627 = vpop.permute.xlu0 %626
      %630 = vset.pattern.permute.xlu0 0
      %631 = vperm.xlu0 %630, %v302
      %v632 = vpop.permute.xlu0 %631
      %635 = vset.pattern.permute.xlu0 0
      %636 = vperm.xlu0 %635, %v303
      %v637 = vpop.permute.xlu0 %636
      %640 = vset.pattern.permute.xlu0 0
      %641 = vperm.xlu0 %640, %v304
      %v642 = vpop.permute.xlu0 %641
      %645 = vset.pattern.permute.xlu0 0
      %646 = vperm.xlu0 %645, %v305
      %v647 = vpop.permute.xlu0 %646
      %650 = vset.pattern.permute.xlu0 0
      %651 = vperm.xlu0 %650, %v306
      %v652 = vpop.permute.xlu0 %651
      %655 = vset.pattern.permute.xlu0 0
      %656 = vperm.xlu0 %655, %v307
      %v657 = vpop.permute.xlu0 %656
      %660 = vset.pattern.permute.xlu0 0
      %661 = vperm.xlu0 %660, %v308
      %v662 = vpop.permute.xlu0 %661
      %665 = vset.pattern.permute.xlu0 0
      %666 = vperm.xlu0 %665, %v309
      %v667 = vpop.permute.xlu0 %666
      %670 = vset.pattern.permute.xlu0 0
      %671 = vperm.xlu0 %670, %v310
      %v672 = vpop.permute.xlu0 %671
      %675 = vset.pattern.permute.xlu0 0
      %676 = vperm.xlu0 %675, %v311
      %v677 = vpop.permute.xlu0 %676
      %680 = vset.pattern.permute.xlu0 0
      %681 = vperm.xlu0 %680, %v312
      %v682 = vpop.permute.xlu0 %681
      %685 = vset.pattern.permute.xlu0 0
      %686 = vperm.xlu0 %685, %v313
      %v687 = vpop.permute.xlu0 %686
      %690 = vset.pattern.permute.xlu0 0
      %691 = vperm.xlu0 %690, %v314
      %v692 = vpop.permute.xlu0 %691
      %695 = vset.pattern.permute.xlu0 0
      %696 = vperm.xlu0 %695, %v315
      %v697 = vpop.permute.xlu0 %696
      %700 = vset.pattern.permute.xlu0 0
      %701 = vperm.xlu0 %700, %v316
      %v702 = vpop.permute.xlu0 %701
      %705 = vset.pattern.permute.xlu0 0
      %706 = vperm.xlu0 %705, %v317
      %v707 = vpop.permute.xlu0 %706
      %710 = vset.pattern.permute.xlu0 0
      %711 = vperm.xlu0 %710, %v318
      %v712 = vpop.permute.xlu0 %711
      %715 = vset.pattern.permute.xlu0 0
      %716 = vperm.xlu0 %715, %v319
      %v717 = vpop.permute.xlu0 %716
      %720 = vset.pattern.permute.xlu0 0
      %721 = vperm.xlu0 %720, %v320
      %v722 = vpop.permute.xlu0 %721
      %725 = vset.pattern.permute.xlu0 0
      %726 = vperm.xlu0 %725, %v321
      %v727 = vpop.permute.xlu0 %726
      %730 = vset.pattern.permute.xlu0 0
      %731 = vperm.xlu0 %730, %v322
      %v732 = vpop.permute.xlu0 %731
      %735 = vset.pattern.permute.xlu0 0
      %736 = vperm.xlu0 %735, %v323
      %v737 = vpop.permute.xlu0 %736
      %740 = vset.pattern.permute.xlu0 0
      %741 = vperm.xlu0 %740, %v324
      %v742 = vpop.permute.xlu0 %741
      %745 = vset.pattern.permute.xlu0 0
      %746 = vperm.xlu0 %745, %v325
      %v747 = vpop.permute.xlu0 %746
      %750 = vset.pattern.permute.xlu0 0
      %751 = vperm.xlu0 %750, %v326
      %v752 = vpop.permute.xlu0 %751
      %755 = vset.pattern.permute.xlu0 0
      %756 = vperm.xlu0 %755, %v327
      %v757 = vpop.permute.xlu0 %756
      %760 = vset.pattern.permute.xlu0 0
      %761 = vperm.xlu0 %760, %v328
      %v762 = vpop.permute.xlu0 %761
      %765 = vset.pattern.permute.xlu0 0
      %766 = vperm.xlu0 %765, %v329
      %v767 = vpop.permute.xlu0 %766
      %770 = vset.pattern.permute.xlu0 0
      %771 = vperm.xlu0 %770, %v330
      %v772 = vpop.permute.xlu0 %771
      %775 = vset.pattern.permute.xlu0 0
      %776 = vperm.xlu0 %775, %v331
      %v777 = vpop.permute.xlu0 %776
      %780 = vset.pattern.permute.xlu0 0
      %781 = vperm.xlu0 %780, %v332
      %v782 = vpop.permute.xlu0 %781
      %785 = vset.pattern.permute.xlu0 0
      %786 = vperm.xlu0 %785, %v333
      %v787 = vpop.permute.xlu0 %786
      %790 = vset.pattern.permute.xlu0 0
      %791 = vperm.xlu0 %790, %v334
      %v792 = vpop.permute.xlu0 %791
      %795 = vset.pattern.permute.xlu0 0
      %796 = vperm.xlu0 %795, %v335
      %v797 = vpop.permute.xlu0 %796
      %800 = vset.pattern.permute.xlu0 0
      %801 = vperm.xlu0 %800, %v336
      %v802 = vpop.permute.xlu0 %801
      %805 = vset.pattern.permute.xlu0 0
      %806 = vperm.xlu0 %805, %v337
      %v807 = vpop.permute.xlu0 %806
      %810 = vset.pattern.permute.xlu0 0
      %811 = vperm.xlu0 %810, %v338
      %v812 = vpop.permute.xlu0 %811
      %815 = vset.pattern.permute.xlu0 0
      %816 = vperm.xlu0 %815, %v339
      %v817 = vpop.permute.xlu0 %816
      %820 = vset.pattern.permute.xlu0 0
      %821 = vperm.xlu0 %820, %v340
      %v822 = vpop.permute.xlu0 %821
      %825 = vset.pattern.permute.xlu0 0
      %826 = vperm.xlu0 %825, %v341
      %v827 = vpop.permute.xlu0 %826
      %830 = vset.pattern.permute.xlu0 0
      %831 = vperm.xlu0 %830, %v342
      %v832 = vpop.permute.xlu0 %831
      %835 = vset.pattern.permute.xlu0 0
      %836 = vperm.xlu0 %835, %v343
      %v837 = vpop.permute.xlu0 %836
      %840 = vset.pattern.permute.xlu0 0
      %841 = vperm.xlu0 %840, %v344
      %v842 = vpop.permute.xlu0 %841
      %845 = vset.pattern.permute.xlu0 0
      %846 = vperm.xlu0 %845, %v345
      %v847 = vpop.permute.xlu0 %846
      %850 = vset.pattern.permute.xlu0 0
      %851 = vperm.xlu0 %850, %v346
      %v852 = vpop.permute.xlu0 %851
      %855 = vset.pattern.permute.xlu0 0
      %856 = vperm.xlu0 %855, %v347
      %v857 = vpop.permute.xlu0 %856
      %v859 = vperm.slane %v348, 0
      %v860 = vmul.f32 %v352, %v859
      %v861 = vmul.f32 %v357, %v859
      %v862 = vmul.f32 %v362, %v859
      %v863 = vmul.f32 %v367, %v859
      %v864 = vmul.f32 %v372, %v859
      %v865 = vmul.f32 %v377, %v859
      %v866 = vmul.f32 %v382, %v859
      %v867 = vmul.f32 %v387, %v859
      %v868 = vmul.f32 %v392, %v859
      %v869 = vmul.f32 %v397, %v859
      %v870 = vmul.f32 %v402, %v859
      %v871 = vmul.f32 %v407, %v859
      %v872 = vmul.f32 %v412, %v859
      %v873 = vmul.f32 %v417, %v859
      %v874 = vmul.f32 %v422, %v859
      %v875 = vmul.f32 %v427, %v859
      %v876 = vmul.f32 %v432, %v859
      %v877 = vmul.f32 %v437, %v859
      %v878 = vmul.f32 %v442, %v859
      %v879 = vmul.f32 %v447, %v859
      %v880 = vmul.f32 %v452, %v859
      %v881 = vmul.f32 %v457, %v859
      %v882 = vmul.f32 %v462, %v859
      %v883 = vmul.f32 %v467, %v859
      %v884 = vmul.f32 %v472, %v859
      %v885 = vmul.f32 %v477, %v859
      %v886 = vmul.f32 %v482, %v859
      %v887 = vmul.f32 %v487, %v859
      %v888 = vmul.f32 %v492, %v859
      %v889 = vmul.f32 %v497, %v859
      %v890 = vmul.f32 %v502, %v859
      %v891 = vmul.f32 %v507, %v859
      %v892 = vmul.f32 %v512, %v859
      %v893 = vmul.f32 %v517, %v859
      %v894 = vmul.f32 %v522, %v859
      %v895 = vmul.f32 %v527, %v859
      %v896 = vmul.f32 %v532, %v859
      %v897 = vmul.f32 %v537, %v859
      %v898 = vmul.f32 %v542, %v859
      %v899 = vmul.f32 %v547, %v859
      %v900 = vmul.f32 %v552, %v859
      %v901 = vmul.f32 %v557, %v859
      %v902 = vmul.f32 %v562, %v859
      %v903 = vmul.f32 %v567, %v859
      %v904 = vmul.f32 %v572, %v859
      %v905 = vmul.f32 %v577, %v859
      %v906 = vmul.f32 %v582, %v859
      %v907 = vmul.f32 %v587, %v859
      %v908 = vmul.f32 %v592, %v859
      %v909 = vmul.f32 %v597, %v859
      %v910 = vmul.f32 %v602, %v859
      %v911 = vmul.f32 %v607, %v859
      %v912 = vmul.f32 %v612, %v859
      %v913 = vmul.f32 %v617, %v859
      %v914 = vmul.f32 %v622, %v859
      %v915 = vmul.f32 %v627, %v859
      %v916 = vmul.f32 %v632, %v859
      %v917 = vmul.f32 %v637, %v859
      %v918 = vmul.f32 %v642, %v859
      %v919 = vmul.f32 %v647, %v859
      %v920 = vmul.f32 %v652, %v859
      %v921 = vmul.f32 %v657, %v859
      %v922 = vmul.f32 %v662, %v859
      %v923 = vmul.f32 %v667, %v859
      %v924 = vmul.f32 %v672, %v859
      %v925 = vmul.f32 %v677, %v859
      %v926 = vmul.f32 %v682, %v859
      %v927 = vmul.f32 %v687, %v859
      %v928 = vmul.f32 %v692, %v859
      %v929 = vmul.f32 %v697, %v859
      %v930 = vmul.f32 %v702, %v859
      %v931 = vmul.f32 %v707, %v859
      %v932 = vmul.f32 %v712, %v859
      %v933 = vmul.f32 %v717, %v859
      %v934 = vmul.f32 %v722, %v859
      %v935 = vmul.f32 %v727, %v859
      %v936 = vmul.f32 %v732, %v859
      %v937 = vmul.f32 %v737, %v859
      %v938 = vmul.f32 %v742, %v859
      %v939 = vmul.f32 %v747, %v859
      %v940 = vmul.f32 %v752, %v859
      %v941 = vmul.f32 %v757, %v859
      %v942 = vmul.f32 %v762, %v859
      %v943 = vmul.f32 %v767, %v859
      %v944 = vmul.f32 %v772, %v859
      %v945 = vmul.f32 %v777, %v859
      %v946 = vmul.f32 %v782, %v859
      %v947 = vmul.f32 %v787, %v859
      %v948 = vmul.f32 %v792, %v859
      %v949 = vmul.f32 %v797, %v859
      %v950 = vmul.f32 %v802, %v859
      %v951 = vmul.f32 %v807, %v859
      %v952 = vmul.f32 %v812, %v859
      %v953 = vmul.f32 %v817, %v859
      %v954 = vmul.f32 %v822, %v859
      %v955 = vmul.f32 %v827, %v859
      %v956 = vmul.f32 %v832, %v859
      %v957 = vmul.f32 %v837, %v859
      %v958 = vmul.f32 %v842, %v859
      %v959 = vmul.f32 %v847, %v859
      %v960 = vmul.f32 %v852, %v859
      %v961 = vmul.f32 %v857, %v859
      %v962 = vadd.f32 %v244, %v860
      %v963 = vadd.f32 %v244, %v861
      %v964 = vadd.f32 %v244, %v862
      %v965 = vadd.f32 %v244, %v863
      %v966 = vadd.f32 %v244, %v864
      %v967 = vadd.f32 %v244, %v865
      %v968 = vadd.f32 %v244, %v866
      %v969 = vadd.f32 %v244, %v867
      %v970 = vadd.f32 %v244, %v868
      %v971 = vadd.f32 %v244, %v869
      %v972 = vadd.f32 %v244, %v870
      %v973 = vadd.f32 %v244, %v871
      %v974 = vadd.f32 %v244, %v872
      %v975 = vadd.f32 %v244, %v873
      %v976 = vadd.f32 %v244, %v874
      %v977 = vadd.f32 %v244, %v875
      %v978 = vadd.f32 %v244, %v876
      %v979 = vadd.f32 %v244, %v877
      %v980 = vadd.f32 %v244, %v878
      %v981 = vadd.f32 %v244, %v879
      %v982 = vadd.f32 %v244, %v880
      %v983 = vadd.f32 %v244, %v881
      %v984 = vadd.f32 %v244, %v882
      %v985 = vadd.f32 %v244, %v883
      %v986 = vadd.f32 %v244, %v884
      %v987 = vadd.f32 %v244, %v885
      %v988 = vadd.f32 %v244, %v886
      %v989 = vadd.f32 %v244, %v887
      %v990 = vadd.f32 %v244, %v888
      %v991 = vadd.f32 %v244, %v889
      %v992 = vadd.f32 %v244, %v890
      %v993 = vadd.f32 %v244, %v891
      %v994 = vadd.f32 %v244, %v892
      %v995 = vadd.f32 %v244, %v893
      %v996 = vadd.f32 %v244, %v894
      %v997 = vadd.f32 %v244, %v895
      %v998 = vadd.f32 %v244, %v896
      %v999 = vadd.f32 %v244, %v897
      %v1000 = vadd.f32 %v244, %v898
      %v1001 = vadd.f32 %v244, %v899
      %v1002 = vadd.f32 %v244, %v900
      %v1003 = vadd.f32 %v244, %v901
      %v1004 = vadd.f32 %v244, %v902
      %v1005 = vadd.f32 %v244, %v903
      %v1006 = vadd.f32 %v244, %v904
      %v1007 = vadd.f32 %v244, %v905
      %v1008 = vadd.f32 %v244, %v906
      %v1009 = vadd.f32 %v244, %v907
      %v1010 = vadd.f32 %v244, %v908
      %v1011 = vadd.f32 %v244, %v909
      %v1012 = vadd.f32 %v244, %v910
      %v1013 = vadd.f32 %v244, %v911
      %v1014 = vadd.f32 %v244, %v912
      %v1015 = vadd.f32 %v244, %v913
      %v1016 = vadd.f32 %v244, %v914
      %v1017 = vadd.f32 %v244, %v915
      %v1018 = vadd.f32 %v244, %v916
      %v1019 = vadd.f32 %v244, %v917
      %v1020 = vadd.f32 %v244, %v918
      %v1021 = vadd.f32 %v244, %v919
      %v1022 = vadd.f32 %v244, %v920
      %v1023 = vadd.f32 %v244, %v921
      %v1024 = vadd.f32 %v244, %v922
      %v1025 = vadd.f32 %v244, %v923
      %v1026 = vadd.f32 %v244, %v924
      %v1027 = vadd.f32 %v244, %v925
      %v1028 = vadd.f32 %v244, %v926
      %v1029 = vadd.f32 %v244, %v927
      %v1030 = vadd.f32 %v244, %v928
      %v1031 = vadd.f32 %v244, %v929
      %v1032 = vadd.f32 %v244, %v930
      %v1033 = vadd.f32 %v244, %v931
      %v1034 = vadd.f32 %v244, %v932
      %v1035 = vadd.f32 %v244, %v933
      %v1036 = vadd.f32 %v244, %v934
      %v1037 = vadd.f32 %v244, %v935
      %v1038 = vadd.f32 %v244, %v936
      %v1039 = vadd.f32 %v244, %v937
      %v1040 = vadd.f32 %v244, %v938
      %v1041 = vadd.f32 %v244, %v939
      %v1042 = vadd.f32 %v244, %v940
      %v1043 = vadd.f32 %v244, %v941
      %v1044 = vadd.f32 %v244, %v942
      %v1045 = vadd.f32 %v244, %v943
      %v1046 = vadd.f32 %v244, %v944
      %v1047 = vadd.f32 %v244, %v945
      %v1048 = vadd.f32 %v244, %v946
      %v1049 = vadd.f32 %v244, %v947
      %v1050 = vadd.f32 %v244, %v948
      %v1051 = vadd.f32 %v244, %v949
      %v1052 = vadd.f32 %v244, %v950
      %v1053 = vadd.f32 %v244, %v951
      %v1054 = vadd.f32 %v244, %v952
      %v1055 = vadd.f32 %v244, %v953
      %v1056 = vadd.f32 %v244, %v954
      %v1057 = vadd.f32 %v244, %v955
      %v1058 = vadd.f32 %v244, %v956
      %v1059 = vadd.f32 %v244, %v957
      %v1060 = vadd.f32 %v244, %v958
      %v1061 = vadd.f32 %v244, %v959
      %v1062 = vadd.f32 %v244, %v960
      %v1063 = vadd.f32 %v244, %v961
      %v1064 = vld [vmem:[%s219 + $0x1d] sm:$0xff]
      %v1065 = vld [vmem:[%s219 + $0x25] sm:$0xff]
      %v1066 = vld [vmem:[%s219 + $0x2d] sm:$0xff]
      %v1067 = vld [vmem:[%s219 + $0x35] sm:$0xff]
      %v1068 = vld [vmem:[%s219 + $0x3d] sm:$0xff]
      %v1069 = vld [vmem:[%s219 + $0x45] sm:$0xff]
      %v1070 = vld [vmem:[%s219 + $0x4d] sm:$0xff]
      %v1071 = vld [vmem:[%s219 + $0x55] sm:$0xff]
      %v1072 = vld [vmem:[%s219 + $0x5d] sm:$0xff]
      %v1073 = vld [vmem:[%s219 + $0x65] sm:$0xff]
      %v1074 = vld [vmem:[%s219 + $0x6d] sm:$0xff]
      %v1075 = vld [vmem:[%s219 + $0x75] sm:$0xff]
      %v1076 = vld [vmem:[%s219 + $0x7d] sm:$0xff]
      %v1077 = vld [vmem:[%s219 + $0x85] sm:$0xff]
      %v1078 = vld [vmem:[%s219 + $0x8d] sm:$0xff]
      %v1079 = vld [vmem:[%s219 + $0x95] sm:$0xff]
      %v1080 = vld [vmem:[%s219 + $0x9d] sm:$0xff]
      %v1081 = vld [vmem:[%s219 + $0xa5] sm:$0xff]
      %v1082 = vld [vmem:[%s219 + $0xad] sm:$0xff]
      %v1083 = vld [vmem:[%s219 + $0xb5] sm:$0xff]
      %v1084 = vld [vmem:[%s219 + $0xbd] sm:$0xff]
      %v1085 = vld [vmem:[%s219 + $0xc5] sm:$0xff]
      %v1086 = vld [vmem:[%s219 + $0xcd] sm:$0xff]
      %v1087 = vld [vmem:[%s219 + $0xd5] sm:$0xff]
      %v1088 = vld [vmem:[%s219 + $0xdd] sm:$0xff]
      %v1089 = vld [vmem:[%s219 + $0xe5] sm:$0xff]
      %v1090 = vld [vmem:[%s219 + $0xed] sm:$0xff]
      %v1091 = vld [vmem:[%s219 + $0xf5] sm:$0xff]
      %v1092 = vld [vmem:[%s219 + $0xfd] sm:$0xff]
      %v1093 = vld [vmem:[%s219 + $0x105] sm:$0xff]
      %v1094 = vld [vmem:[%s219 + $0x10d] sm:$0xff]
      %v1095 = vld [vmem:[%s219 + $0x115] sm:$0xff]
      %v1096 = vld [vmem:[%s219 + $0x11d] sm:$0xff]
      %v1097 = vld [vmem:[%s219 + $0x125] sm:$0xff]
      %v1098 = vld [vmem:[%s219 + $0x12d] sm:$0xff]
      %v1099 = vld [vmem:[%s219 + $0x135] sm:$0xff]
      %v1100 = vld [vmem:[%s219 + $0x13d] sm:$0xff]
      %v1101 = vld [vmem:[%s219 + $0x145] sm:$0xff]
      %v1102 = vld [vmem:[%s219 + $0x14d] sm:$0xff]
      %v1103 = vld [vmem:[%s219 + $0x155] sm:$0xff]
      %v1104 = vld [vmem:[%s219 + $0x15d] sm:$0xff]
      %v1105 = vld [vmem:[%s219 + $0x165] sm:$0xff]
      %v1106 = vld [vmem:[%s219 + $0x16d] sm:$0xff]
      %v1107 = vld [vmem:[%s219 + $0x175] sm:$0xff]
      %v1108 = vld [vmem:[%s219 + $0x17d] sm:$0xff]
      %v1109 = vld [vmem:[%s219 + $0x185] sm:$0xff]
      %v1110 = vld [vmem:[%s219 + $0x18d] sm:$0xff]
      %v1111 = vld [vmem:[%s219 + $0x195] sm:$0xff]
      %v1112 = vld [vmem:[%s219 + $0x19d] sm:$0xff]
      %v1113 = vld [vmem:[%s219 + $0x1a5] sm:$0xff]
      %v1114 = vld [vmem:[%s219 + $0x1ad] sm:$0xff]
      %v1115 = vld [vmem:[%s219 + $0x1b5] sm:$0xff]
      %v1116 = vld [vmem:[%s219 + $0x1bd] sm:$0xff]
      %v1117 = vld [vmem:[%s219 + $0x1c5] sm:$0xff]
      %v1118 = vld [vmem:[%s219 + $0x1cd] sm:$0xff]
      %v1119 = vld [vmem:[%s219 + $0x1d5] sm:$0xff]
      %v1120 = vld [vmem:[%s219 + $0x1dd] sm:$0xff]
      %v1121 = vld [vmem:[%s219 + $0x1e5] sm:$0xff]
      %v1122 = vld [vmem:[%s219 + $0x1ed] sm:$0xff]
      %v1123 = vld [vmem:[%s219 + $0x1f5] sm:$0xff]
      %v1124 = vld [vmem:[%s219 + $0x1fd] sm:$0xff]
      %v1125 = vld [vmem:[%s219 + $0x205] sm:$0xff]
      %v1126 = vld [vmem:[%s219 + $0x20d] sm:$0xff]
      %v1127 = vld [vmem:[%s219 + $0x215] sm:$0xff]
      %v1128 = vld [vmem:[%s219 + $0x21d] sm:$0xff]
      %v1129 = vld [vmem:[%s219 + $0x225] sm:$0xff]
      %v1130 = vld [vmem:[%s219 + $0x22d] sm:$0xff]
      %v1131 = vld [vmem:[%s219 + $0x235] sm:$0xff]
      %v1132 = vld [vmem:[%s219 + $0x23d] sm:$0xff]
      %v1133 = vld [vmem:[%s219 + $0x245] sm:$0xff]
      %v1134 = vld [vmem:[%s219 + $0x24d] sm:$0xff]
      %v1135 = vld [vmem:[%s219 + $0x255] sm:$0xff]
      %v1136 = vld [vmem:[%s219 + $0x25d] sm:$0xff]
      %v1137 = vld [vmem:[%s219 + $0x265] sm:$0xff]
      %v1138 = vld [vmem:[%s219 + $0x26d] sm:$0xff]
      %v1139 = vld [vmem:[%s219 + $0x275] sm:$0xff]
      %v1140 = vld [vmem:[%s219 + $0x27d] sm:$0xff]
      %v1141 = vld [vmem:[%s219 + $0x285] sm:$0xff]
      %v1142 = vld [vmem:[%s219 + $0x28d] sm:$0xff]
      %v1143 = vld [vmem:[%s219 + $0x295] sm:$0xff]
      %v1144 = vld [vmem:[%s219 + $0x29d] sm:$0xff]
      %v1145 = vld [vmem:[%s219 + $0x2a5] sm:$0xff]
      %v1146 = vld [vmem:[%s219 + $0x2ad] sm:$0xff]
      %v1147 = vld [vmem:[%s219 + $0x2b5] sm:$0xff]
      %v1148 = vld [vmem:[%s219 + $0x2bd] sm:$0xff]
      %v1149 = vld [vmem:[%s219 + $0x2c5] sm:$0xff]
      %v1150 = vld [vmem:[%s219 + $0x2cd] sm:$0xff]
      %v1151 = vld [vmem:[%s219 + $0x2d5] sm:$0xff]
      %v1152 = vld [vmem:[%s219 + $0x2dd] sm:$0xff]
      %v1153 = vld [vmem:[%s219 + $0x2e5] sm:$0xff]
      %v1154 = vld [vmem:[%s219 + $0x2ed] sm:$0xff]
      %v1155 = vld [vmem:[%s219 + $0x2f5] sm:$0xff]
      %v1156 = vld [vmem:[%s219 + $0x2fd] sm:$0xff]
      %v1157 = vld [vmem:[%s219 + $0x305] sm:$0xff]
      %v1158 = vld [vmem:[%s219 + $0x30d] sm:$0xff]
      %v1159 = vld [vmem:[%s219 + $0x315] sm:$0xff]
      %v1160 = vld [vmem:[%s219 + $0x31d] sm:$0xff]
      %v1161 = vld [vmem:[%s219 + $0x325] sm:$0xff]
      %v1162 = vld [vmem:[%s219 + $0x32d] sm:$0xff]
      %v1163 = vld [vmem:[%s219 + $0x335] sm:$0xff]
      %v1164 = vld [vmem:[%s219 + $0x33d] sm:$0xff]
      %v1165 = vld [vmem:[%s219 + $0x345] sm:$0xf]
      %v1166 = vld [vmem:[%s1 + $0x1] sm:$0x1]
      %1168 = vset.pattern.permute.xlu0 0
      %1169 = vperm.xlu0 %1168, %v1064
      %v1170 = vpop.permute.xlu0 %1169
      %1173 = vset.pattern.permute.xlu0 0
      %1174 = vperm.xlu0 %1173, %v1065
      %v1175 = vpop.permute.xlu0 %1174
      %1178 = vset.pattern.permute.xlu0 0
      %1179 = vperm.xlu0 %1178, %v1066
      %v1180 = vpop.permute.xlu0 %1179
      %1183 = vset.pattern.permute.xlu0 0
      %1184 = vperm.xlu0 %1183, %v1067
      %v1185 = vpop.permute.xlu0 %1184
      %1188 = vset.pattern.permute.xlu0 0
      %1189 = vperm.xlu0 %1188, %v1068
      %v1190 = vpop.permute.xlu0 %1189
      %1193 = vset.pattern.permute.xlu0 0
      %1194 = vperm.xlu0 %1193, %v1069
      %v1195 = vpop.permute.xlu0 %1194
      %1198 = vset.pattern.permute.xlu0 0
      %1199 = vperm.xlu0 %1198, %v1070
      %v1200 = vpop.permute.xlu0 %1199
      %1203 = vset.pattern.permute.xlu0 0
      %1204 = vperm.xlu0 %1203, %v1071
      %v1205 = vpop.permute.xlu0 %1204
      %1208 = vset.pattern.permute.xlu0 0
      %1209 = vperm.xlu0 %1208, %v1072
      %v1210 = vpop.permute.xlu0 %1209
      %1213 = vset.pattern.permute.xlu0 0
      %1214 = vperm.xlu0 %1213, %v1073
      %v1215 = vpop.permute.xlu0 %1214
      %1218 = vset.pattern.permute.xlu0 0
      %1219 = vperm.xlu0 %1218, %v1074
      %v1220 = vpop.permute.xlu0 %1219
      %1223 = vset.pattern.permute.xlu0 0
      %1224 = vperm.xlu0 %1223, %v1075
      %v1225 = vpop.permute.xlu0 %1224
      %1228 = vset.pattern.permute.xlu0 0
      %1229 = vperm.xlu0 %1228, %v1076
      %v1230 = vpop.permute.xlu0 %1229
      %1233 = vset.pattern.permute.xlu0 0
      %1234 = vperm.xlu0 %1233, %v1077
      %v1235 = vpop.permute.xlu0 %1234
      %1238 = vset.pattern.permute.xlu0 0
      %1239 = vperm.xlu0 %1238, %v1078
      %v1240 = vpop.permute.xlu0 %1239
      %1243 = vset.pattern.permute.xlu0 0
      %1244 = vperm.xlu0 %1243, %v1079
      %v1245 = vpop.permute.xlu0 %1244
      %1248 = vset.pattern.permute.xlu0 0
      %1249 = vperm.xlu0 %1248, %v1080
      %v1250 = vpop.permute.xlu0 %1249
      %1253 = vset.pattern.permute.xlu0 0
      %1254 = vperm.xlu0 %1253, %v1081
      %v1255 = vpop.permute.xlu0 %1254
      %1258 = vset.pattern.permute.xlu0 0
      %1259 = vperm.xlu0 %1258, %v1082
      %v1260 = vpop.permute.xlu0 %1259
      %1263 = vset.pattern.permute.xlu0 0
      %1264 = vperm.xlu0 %1263, %v1083
      %v1265 = vpop.permute.xlu0 %1264
      %1268 = vset.pattern.permute.xlu0 0
      %1269 = vperm.xlu0 %1268, %v1084
      %v1270 = vpop.permute.xlu0 %1269
      %1273 = vset.pattern.permute.xlu0 0
      %1274 = vperm.xlu0 %1273, %v1085
      %v1275 = vpop.permute.xlu0 %1274
      %1278 = vset.pattern.permute.xlu0 0
      %1279 = vperm.xlu0 %1278, %v1086
      %v1280 = vpop.permute.xlu0 %1279
      %1283 = vset.pattern.permute.xlu0 0
      %1284 = vperm.xlu0 %1283, %v1087
      %v1285 = vpop.permute.xlu0 %1284
      %1288 = vset.pattern.permute.xlu0 0
      %1289 = vperm.xlu0 %1288, %v1088
      %v1290 = vpop.permute.xlu0 %1289
      %1293 = vset.pattern.permute.xlu0 0
      %1294 = vperm.xlu0 %1293, %v1089
      %v1295 = vpop.permute.xlu0 %1294
      %1298 = vset.pattern.permute.xlu0 0
      %1299 = vperm.xlu0 %1298, %v1090
      %v1300 = vpop.permute.xlu0 %1299
      %1303 = vset.pattern.permute.xlu0 0
      %1304 = vperm.xlu0 %1303, %v1091
      %v1305 = vpop.permute.xlu0 %1304
      %1308 = vset.pattern.permute.xlu0 0
      %1309 = vperm.xlu0 %1308, %v1092
      %v1310 = vpop.permute.xlu0 %1309
      %1313 = vset.pattern.permute.xlu0 0
      %1314 = vperm.xlu0 %1313, %v1093
      %v1315 = vpop.permute.xlu0 %1314
      %1318 = vset.pattern.permute.xlu0 0
      %1319 = vperm.xlu0 %1318, %v1094
      %v1320 = vpop.permute.xlu0 %1319
      %1323 = vset.pattern.permute.xlu0 0
      %1324 = vperm.xlu0 %1323, %v1095
      %v1325 = vpop.permute.xlu0 %1324
      %1328 = vset.pattern.permute.xlu0 0
      %1329 = vperm.xlu0 %1328, %v1096
      %v1330 = vpop.permute.xlu0 %1329
      %1333 = vset.pattern.permute.xlu0 0
      %1334 = vperm.xlu0 %1333, %v1097
      %v1335 = vpop.permute.xlu0 %1334
      %1338 = vset.pattern.permute.xlu0 0
      %1339 = vperm.xlu0 %1338, %v1098
      %v1340 = vpop.permute.xlu0 %1339
      %1343 = vset.pattern.permute.xlu0 0
      %1344 = vperm.xlu0 %1343, %v1099
      %v1345 = vpop.permute.xlu0 %1344
      %1348 = vset.pattern.permute.xlu0 0
      %1349 = vperm.xlu0 %1348, %v1100
      %v1350 = vpop.permute.xlu0 %1349
      %1353 = vset.pattern.permute.xlu0 0
      %1354 = vperm.xlu0 %1353, %v1101
      %v1355 = vpop.permute.xlu0 %1354
      %1358 = vset.pattern.permute.xlu0 0
      %1359 = vperm.xlu0 %1358, %v1102
      %v1360 = vpop.permute.xlu0 %1359
      %1363 = vset.pattern.permute.xlu0 0
      %1364 = vperm.xlu0 %1363, %v1103
      %v1365 = vpop.permute.xlu0 %1364
      %1368 = vset.pattern.permute.xlu0 0
      %1369 = vperm.xlu0 %1368, %v1104
      %v1370 = vpop.permute.xlu0 %1369
      %1373 = vset.pattern.permute.xlu0 0
      %1374 = vperm.xlu0 %1373, %v1105
      %v1375 = vpop.permute.xlu0 %1374
      %1378 = vset.pattern.permute.xlu0 0
      %1379 = vperm.xlu0 %1378, %v1106
      %v1380 = vpop.permute.xlu0 %1379
      %1383 = vset.pattern.permute.xlu0 0
      %1384 = vperm.xlu0 %1383, %v1107
      %v1385 = vpop.permute.xlu0 %1384
      %1388 = vset.pattern.permute.xlu0 0
      %1389 = vperm.xlu0 %1388, %v1108
      %v1390 = vpop.permute.xlu0 %1389
      %1393 = vset.pattern.permute.xlu0 0
      %1394 = vperm.xlu0 %1393, %v1109
      %v1395 = vpop.permute.xlu0 %1394
      %1398 = vset.pattern.permute.xlu0 0
      %1399 = vperm.xlu0 %1398, %v1110
      %v1400 = vpop.permute.xlu0 %1399
      %1403 = vset.pattern.permute.xlu0 0
      %1404 = vperm.xlu0 %1403, %v1111
      %v1405 = vpop.permute.xlu0 %1404
      %1408 = vset.pattern.permute.xlu0 0
      %1409 = vperm.xlu0 %1408, %v1112
      %v1410 = vpop.permute.xlu0 %1409
      %1413 = vset.pattern.permute.xlu0 0
      %1414 = vperm.xlu0 %1413, %v1113
      %v1415 = vpop.permute.xlu0 %1414
      %1418 = vset.pattern.permute.xlu0 0
      %1419 = vperm.xlu0 %1418, %v1114
      %v1420 = vpop.permute.xlu0 %1419
      %1423 = vset.pattern.permute.xlu0 0
      %1424 = vperm.xlu0 %1423, %v1115
      %v1425 = vpop.permute.xlu0 %1424
      %1428 = vset.pattern.permute.xlu0 0
      %1429 = vperm.xlu0 %1428, %v1116
      %v1430 = vpop.permute.xlu0 %1429
      %1433 = vset.pattern.permute.xlu0 0
      %1434 = vperm.xlu0 %1433, %v1117
      %v1435 = vpop.permute.xlu0 %1434
      %1438 = vset.pattern.permute.xlu0 0
      %1439 = vperm.xlu0 %1438, %v1118
      %v1440 = vpop.permute.xlu0 %1439
      %1443 = vset.pattern.permute.xlu0 0
      %1444 = vperm.xlu0 %1443, %v1119
      %v1445 = vpop.permute.xlu0 %1444
      %1448 = vset.pattern.permute.xlu0 0
      %1449 = vperm.xlu0 %1448, %v1120
      %v1450 = vpop.permute.xlu0 %1449
      %1453 = vset.pattern.permute.xlu0 0
      %1454 = vperm.xlu0 %1453, %v1121
      %v1455 = vpop.permute.xlu0 %1454
      %1458 = vset.pattern.permute.xlu0 0
      %1459 = vperm.xlu0 %1458, %v1122
      %v1460 = vpop.permute.xlu0 %1459
      %1463 = vset.pattern.permute.xlu0 0
      %1464 = vperm.xlu0 %1463, %v1123
      %v1465 = vpop.permute.xlu0 %1464
      %1468 = vset.pattern.permute.xlu0 0
      %1469 = vperm.xlu0 %1468, %v1124
      %v1470 = vpop.permute.xlu0 %1469
      %1473 = vset.pattern.permute.xlu0 0
      %1474 = vperm.xlu0 %1473, %v1125
      %v1475 = vpop.permute.xlu0 %1474
      %1478 = vset.pattern.permute.xlu0 0
      %1479 = vperm.xlu0 %1478, %v1126
      %v1480 = vpop.permute.xlu0 %1479
      %1483 = vset.pattern.permute.xlu0 0
      %1484 = vperm.xlu0 %1483, %v1127
      %v1485 = vpop.permute.xlu0 %1484
      %1488 = vset.pattern.permute.xlu0 0
      %1489 = vperm.xlu0 %1488, %v1128
      %v1490 = vpop.permute.xlu0 %1489
      %1493 = vset.pattern.permute.xlu0 0
      %1494 = vperm.xlu0 %1493, %v1129
      %v1495 = vpop.permute.xlu0 %1494
      %1498 = vset.pattern.permute.xlu0 0
      %1499 = vperm.xlu0 %1498, %v1130
      %v1500 = vpop.permute.xlu0 %1499
      %1503 = vset.pattern.permute.xlu0 0
      %1504 = vperm.xlu0 %1503, %v1131
      %v1505 = vpop.permute.xlu0 %1504
      %1508 = vset.pattern.permute.xlu0 0
      %1509 = vperm.xlu0 %1508, %v1132
      %v1510 = vpop.permute.xlu0 %1509
      %1513 = vset.pattern.permute.xlu0 0
      %1514 = vperm.xlu0 %1513, %v1133
      %v1515 = vpop.permute.xlu0 %1514
      %1518 = vset.pattern.permute.xlu0 0
      %1519 = vperm.xlu0 %1518, %v1134
      %v1520 = vpop.permute.xlu0 %1519
      %1523 = vset.pattern.permute.xlu0 0
      %1524 = vperm.xlu0 %1523, %v1135
      %v1525 = vpop.permute.xlu0 %1524
      %1528 = vset.pattern.permute.xlu0 0
      %1529 = vperm.xlu0 %1528, %v1136
      %v1530 = vpop.permute.xlu0 %1529
      %1533 = vset.pattern.permute.xlu0 0
      %1534 = vperm.xlu0 %1533, %v1137
      %v1535 = vpop.permute.xlu0 %1534
      %1538 = vset.pattern.permute.xlu0 0
      %1539 = vperm.xlu0 %1538, %v1138
      %v1540 = vpop.permute.xlu0 %1539
      %1543 = vset.pattern.permute.xlu0 0
      %1544 = vperm.xlu0 %1543, %v1139
      %v1545 = vpop.permute.xlu0 %1544
      %1548 = vset.pattern.permute.xlu0 0
      %1549 = vperm.xlu0 %1548, %v1140
      %v1550 = vpop.permute.xlu0 %1549
      %1553 = vset.pattern.permute.xlu0 0
      %1554 = vperm.xlu0 %1553, %v1141
      %v1555 = vpop.permute.xlu0 %1554
      %1558 = vset.pattern.permute.xlu0 0
      %1559 = vperm.xlu0 %1558, %v1142
      %v1560 = vpop.permute.xlu0 %1559
      %1563 = vset.pattern.permute.xlu0 0
      %1564 = vperm.xlu0 %1563, %v1143
      %v1565 = vpop.permute.xlu0 %1564
      %1568 = vset.pattern.permute.xlu0 0
      %1569 = vperm.xlu0 %1568, %v1144
      %v1570 = vpop.permute.xlu0 %1569
      %1573 = vset.pattern.permute.xlu0 0
      %1574 = vperm.xlu0 %1573, %v1145
      %v1575 = vpop.permute.xlu0 %1574
      %1578 = vset.pattern.permute.xlu0 0
      %1579 = vperm.xlu0 %1578, %v1146
      %v1580 = vpop.permute.xlu0 %1579
      %1583 = vset.pattern.permute.xlu0 0
      %1584 = vperm.xlu0 %1583, %v1147
      %v1585 = vpop.permute.xlu0 %1584
      %1588 = vset.pattern.permute.xlu0 0
      %1589 = vperm.xlu0 %1588, %v1148
      %v1590 = vpop.permute.xlu0 %1589
      %1593 = vset.pattern.permute.xlu0 0
      %1594 = vperm.xlu0 %1593, %v1149
      %v1595 = vpop.permute.xlu0 %1594
      %1598 = vset.pattern.permute.xlu0 0
      %1599 = vperm.xlu0 %1598, %v1150
      %v1600 = vpop.permute.xlu0 %1599
      %1603 = vset.pattern.permute.xlu0 0
      %1604 = vperm.xlu0 %1603, %v1151
      %v1605 = vpop.permute.xlu0 %1604
      %1608 = vset.pattern.permute.xlu0 0
      %1609 = vperm.xlu0 %1608, %v1152
      %v1610 = vpop.permute.xlu0 %1609
      %1613 = vset.pattern.permute.xlu0 0
      %1614 = vperm.xlu0 %1613, %v1153
      %v1615 = vpop.permute.xlu0 %1614
      %1618 = vset.pattern.permute.xlu0 0
      %1619 = vperm.xlu0 %1618, %v1154
      %v1620 = vpop.permute.xlu0 %1619
      %1623 = vset.pattern.permute.xlu0 0
      %1624 = vperm.xlu0 %1623, %v1155
      %v1625 = vpop.permute.xlu0 %1624
      %1628 = vset.pattern.permute.xlu0 0
      %1629 = vperm.xlu0 %1628, %v1156
      %v1630 = vpop.permute.xlu0 %1629
      %1633 = vset.pattern.permute.xlu0 0
      %1634 = vperm.xlu0 %1633, %v1157
      %v1635 = vpop.permute.xlu0 %1634
      %1638 = vset.pattern.permute.xlu0 0
      %1639 = vperm.xlu0 %1638, %v1158
      %v1640 = vpop.permute.xlu0 %1639
      %1643 = vset.pattern.permute.xlu0 0
      %1644 = vperm.xlu0 %1643, %v1159
      %v1645 = vpop.permute.xlu0 %1644
      %1648 = vset.pattern.permute.xlu0 0
      %1649 = vperm.xlu0 %1648, %v1160
      %v1650 = vpop.permute.xlu0 %1649
      %1653 = vset.pattern.permute.xlu0 0
      %1654 = vperm.xlu0 %1653, %v1161
      %v1655 = vpop.permute.xlu0 %1654
      %1658 = vset.pattern.permute.xlu0 0
      %1659 = vperm.xlu0 %1658, %v1162
      %v1660 = vpop.permute.xlu0 %1659
      %1663 = vset.pattern.permute.xlu0 0
      %1664 = vperm.xlu0 %1663, %v1163
      %v1665 = vpop.permute.xlu0 %1664
      %1668 = vset.pattern.permute.xlu0 0
      %1669 = vperm.xlu0 %1668, %v1164
      %v1670 = vpop.permute.xlu0 %1669
      %1673 = vset.pattern.permute.xlu0 0
      %1674 = vperm.xlu0 %1673, %v1165
      %v1675 = vpop.permute.xlu0 %1674
      %v1677 = vperm.slane %v1166, 0
      %v1678 = vmul.f32 %v1170, %v1677
      %v1679 = vmul.f32 %v1175, %v1677
      %v1680 = vmul.f32 %v1180, %v1677
      %v1681 = vmul.f32 %v1185, %v1677
      %v1682 = vmul.f32 %v1190, %v1677
      %v1683 = vmul.f32 %v1195, %v1677
      %v1684 = vmul.f32 %v1200, %v1677
      %v1685 = vmul.f32 %v1205, %v1677
      %v1686 = vmul.f32 %v1210, %v1677
      %v1687 = vmul.f32 %v1215, %v1677
      %v1688 = vmul.f32 %v1220, %v1677
      %v1689 = vmul.f32 %v1225, %v1677
      %v1690 = vmul.f32 %v1230, %v1677
      %v1691 = vmul.f32 %v1235, %v1677
      %v1692 = vmul.f32 %v1240, %v1677
      %v1693 = vmul.f32 %v1245, %v1677
      %v1694 = vmul.f32 %v1250, %v1677
      %v1695 = vmul.f32 %v1255, %v1677
      %v1696 = vmul.f32 %v1260, %v1677
      %v1697 = vmul.f32 %v1265, %v1677
      %v1698 = vmul.f32 %v1270, %v1677
      %v1699 = vmul.f32 %v1275, %v1677
      %v1700 = vmul.f32 %v1280, %v1677
      %v1701 = vmul.f32 %v1285, %v1677
      %v1702 = vmul.f32 %v1290, %v1677
      %v1703 = vmul.f32 %v1295, %v1677
      %v1704 = vmul.f32 %v1300, %v1677
      %v1705 = vmul.f32 %v1305, %v1677
      %v1706 = vmul.f32 %v1310, %v1677
      %v1707 = vmul.f32 %v1315, %v1677
      %v1708 = vmul.f32 %v1320, %v1677
      %v1709 = vmul.f32 %v1325, %v1677
      %v1710 = vmul.f32 %v1330, %v1677
      %v1711 = vmul.f32 %v1335, %v1677
      %v1712 = vmul.f32 %v1340, %v1677
      %v1713 = vmul.f32 %v1345, %v1677
      %v1714 = vmul.f32 %v1350, %v1677
      %v1715 = vmul.f32 %v1355, %v1677
      %v1716 = vmul.f32 %v1360, %v1677
      %v1717 = vmul.f32 %v1365, %v1677
      %v1718 = vmul.f32 %v1370, %v1677
      %v1719 = vmul.f32 %v1375, %v1677
      %v1720 = vmul.f32 %v1380, %v1677
      %v1721 = vmul.f32 %v1385, %v1677
      %v1722 = vmul.f32 %v1390, %v1677
      %v1723 = vmul.f32 %v1395, %v1677
      %v1724 = vmul.f32 %v1400, %v1677
      %v1725 = vmul.f32 %v1405, %v1677
      %v1726 = vmul.f32 %v1410, %v1677
      %v1727 = vmul.f32 %v1415, %v1677
      %v1728 = vmul.f32 %v1420, %v1677
      %v1729 = vmul.f32 %v1425, %v1677
      %v1730 = vmul.f32 %v1430, %v1677
      %v1731 = vmul.f32 %v1435, %v1677
      %v1732 = vmul.f32 %v1440, %v1677
      %v1733 = vmul.f32 %v1445, %v1677
      %v1734 = vmul.f32 %v1450, %v1677
      %v1735 = vmul.f32 %v1455, %v1677
      %v1736 = vmul.f32 %v1460, %v1677
      %v1737 = vmul.f32 %v1465, %v1677
      %v1738 = vmul.f32 %v1470, %v1677
      %v1739 = vmul.f32 %v1475, %v1677
      %v1740 = vmul.f32 %v1480, %v1677
      %v1741 = vmul.f32 %v1485, %v1677
      %v1742 = vmul.f32 %v1490, %v1677
      %v1743 = vmul.f32 %v1495, %v1677
      %v1744 = vmul.f32 %v1500, %v1677
      %v1745 = vmul.f32 %v1505, %v1677
      %v1746 = vmul.f32 %v1510, %v1677
      %v1747 = vmul.f32 %v1515, %v1677
      %v1748 = vmul.f32 %v1520, %v1677
      %v1749 = vmul.f32 %v1525, %v1677
      %v1750 = vmul.f32 %v1530, %v1677
      %v1751 = vmul.f32 %v1535, %v1677
      %v1752 = vmul.f32 %v1540, %v1677
      %v1753 = vmul.f32 %v1545, %v1677
      %v1754 = vmul.f32 %v1550, %v1677
      %v1755 = vmul.f32 %v1555, %v1677
      %v1756 = vmul.f32 %v1560, %v1677
      %v1757 = vmul.f32 %v1565, %v1677
      %v1758 = vmul.f32 %v1570, %v1677
      %v1759 = vmul.f32 %v1575, %v1677
      %v1760 = vmul.f32 %v1580, %v1677
      %v1761 = vmul.f32 %v1585, %v1677
      %v1762 = vmul.f32 %v1590, %v1677
      %v1763 = vmul.f32 %v1595, %v1677
      %v1764 = vmul.f32 %v1600, %v1677
      %v1765 = vmul.f32 %v1605, %v1677
      %v1766 = vmul.f32 %v1610, %v1677
      %v1767 = vmul.f32 %v1615, %v1677
      %v1768 = vmul.f32 %v1620, %v1677
      %v1769 = vmul.f32 %v1625, %v1677
      %v1770 = vmul.f32 %v1630, %v1677
      %v1771 = vmul.f32 %v1635, %v1677
      %v1772 = vmul.f32 %v1640, %v1677
      %v1773 = vmul.f32 %v1645, %v1677
      %v1774 = vmul.f32 %v1650, %v1677
      %v1775 = vmul.f32 %v1655, %v1677
      %v1776 = vmul.f32 %v1660, %v1677
      %v1777 = vmul.f32 %v1665, %v1677
      %v1778 = vmul.f32 %v1670, %v1677
      %v1779 = vmul.f32 %v1675, %v1677
      %v1780 = vadd.f32 %v962, %v1678
      %v1781 = vadd.f32 %v963, %v1679
      %v1782 = vadd.f32 %v964, %v1680
      %v1783 = vadd.f32 %v965, %v1681
      %v1784 = vadd.f32 %v966, %v1682
      %v1785 = vadd.f32 %v967, %v1683
      %v1786 = vadd.f32 %v968, %v1684
      %v1787 = vadd.f32 %v969, %v1685
      %v1788 = vadd.f32 %v970, %v1686
      %v1789 = vadd.f32 %v971, %v1687
      %v1790 = vadd.f32 %v972, %v1688
      %v1791 = vadd.f32 %v973, %v1689
      %v1792 = vadd.f32 %v974, %v1690
      %v1793 = vadd.f32 %v975, %v1691
      %v1794 = vadd.f32 %v976, %v1692
      %v1795 = vadd.f32 %v977, %v1693
      %v1796 = vadd.f32 %v978, %v1694
      %v1797 = vadd.f32 %v979, %v1695
      %v1798 = vadd.f32 %v980, %v1696
      %v1799 = vadd.f32 %v981, %v1697
      %v1800 = vadd.f32 %v982, %v1698
      %v1801 = vadd.f32 %v983, %v1699
      %v1802 = vadd.f32 %v984, %v1700
      %v1803 = vadd.f32 %v985, %v1701
      %v1804 = vadd.f32 %v986, %v1702
      %v1805 = vadd.f32 %v987, %v1703
      %v1806 = vadd.f32 %v988, %v1704
      %v1807 = vadd.f32 %v989, %v1705
      %v1808 = vadd.f32 %v990, %v1706
      %v1809 = vadd.f32 %v991, %v1707
      %v1810 = vadd.f32 %v992, %v1708
      %v1811 = vadd.f32 %v993, %v1709
      %v1812 = vadd.f32 %v994, %v1710
      %v1813 = vadd.f32 %v995, %v1711
      %v1814 = vadd.f32 %v996, %v1712
      %v1815 = vadd.f32 %v997, %v1713
      %v1816 = vadd.f32 %v998, %v1714
      %v1817 = vadd.f32 %v999, %v1715
      %v1818 = vadd.f32 %v1000, %v1716
      %v1819 = vadd.f32 %v1001, %v1717
      %v1820 = vadd.f32 %v1002, %v1718
      %v1821 = vadd.f32 %v1003, %v1719
      %v1822 = vadd.f32 %v1004, %v1720
      %v1823 = vadd.f32 %v1005, %v1721
      %v1824 = vadd.f32 %v1006, %v1722
      %v1825 = vadd.f32 %v1007, %v1723
      %v1826 = vadd.f32 %v1008, %v1724
      %v1827 = vadd.f32 %v1009, %v1725
      %v1828 = vadd.f32 %v1010, %v1726
      %v1829 = vadd.f32 %v1011, %v1727
      %v1830 = vadd.f32 %v1012, %v1728
      %v1831 = vadd.f32 %v1013, %v1729
      %v1832 = vadd.f32 %v1014, %v1730
      %v1833 = vadd.f32 %v1015, %v1731
      %v1834 = vadd.f32 %v1016, %v1732
      %v1835 = vadd.f32 %v1017, %v1733
      %v1836 = vadd.f32 %v1018, %v1734
      %v1837 = vadd.f32 %v1019, %v1735
      %v1838 = vadd.f32 %v1020, %v1736
      %v1839 = vadd.f32 %v1021, %v1737
      %v1840 = vadd.f32 %v1022, %v1738
      %v1841 = vadd.f32 %v1023, %v1739
      %v1842 = vadd.f32 %v1024, %v1740
      %v1843 = vadd.f32 %v1025, %v1741
      %v1844 = vadd.f32 %v1026, %v1742
      %v1845 = vadd.f32 %v1027, %v1743
      %v1846 = vadd.f32 %v1028, %v1744
      %v1847 = vadd.f32 %v1029, %v1745
      %v1848 = vadd.f32 %v1030, %v1746
      %v1849 = vadd.f32 %v1031, %v1747
      %v1850 = vadd.f32 %v1032, %v1748
      %v1851 = vadd.f32 %v1033, %v1749
      %v1852 = vadd.f32 %v1034, %v1750
      %v1853 = vadd.f32 %v1035, %v1751
      %v1854 = vadd.f32 %v1036, %v1752
      %v1855 = vadd.f32 %v1037, %v1753
      %v1856 = vadd.f32 %v1038, %v1754
      %v1857 = vadd.f32 %v1039, %v1755
      %v1858 = vadd.f32 %v1040, %v1756
      %v1859 = vadd.f32 %v1041, %v1757
      %v1860 = vadd.f32 %v1042, %v1758
      %v1861 = vadd.f32 %v1043, %v1759
      %v1862 = vadd.f32 %v1044, %v1760
      %v1863 = vadd.f32 %v1045, %v1761
      %v1864 = vadd.f32 %v1046, %v1762
      %v1865 = vadd.f32 %v1047, %v1763
      %v1866 = vadd.f32 %v1048, %v1764
      %v1867 = vadd.f32 %v1049, %v1765
      %v1868 = vadd.f32 %v1050, %v1766
      %v1869 = vadd.f32 %v1051, %v1767
      %v1870 = vadd.f32 %v1052, %v1768
      %v1871 = vadd.f32 %v1053, %v1769
      %v1872 = vadd.f32 %v1054, %v1770
      %v1873 = vadd.f32 %v1055, %v1771
      %v1874 = vadd.f32 %v1056, %v1772
      %v1875 = vadd.f32 %v1057, %v1773
      %v1876 = vadd.f32 %v1058, %v1774
      %v1877 = vadd.f32 %v1059, %v1775
      %v1878 = vadd.f32 %v1060, %v1776
      %v1879 = vadd.f32 %v1061, %v1777
      %v1880 = vadd.f32 %v1062, %v1778
      %v1881 = vadd.f32 %v1063, %v1779
      %v1882 = vld [vmem:[%s219 + $0x1e] sm:$0xff]
      %v1883 = vld [vmem:[%s219 + $0x26] sm:$0xff]
      %v1884 = vld [vmem:[%s219 + $0x2e] sm:$0xff]
      %v1885 = vld [vmem:[%s219 + $0x36] sm:$0xff]
      %v1886 = vld [vmem:[%s219 + $0x3e] sm:$0xff]
      %v1887 = vld [vmem:[%s219 + $0x46] sm:$0xff]
      %v1888 = vld [vmem:[%s219 + $0x4e] sm:$0xff]
      %v1889 = vld [vmem:[%s219 + $0x56] sm:$0xff]
      %v1890 = vld [vmem:[%s219 + $0x5e] sm:$0xff]
      %v1891 = vld [vmem:[%s219 + $0x66] sm:$0xff]
      %v1892 = vld [vmem:[%s219 + $0x6e] sm:$0xff]
      %v1893 = vld [vmem:[%s219 + $0x76] sm:$0xff]
      %v1894 = vld [vmem:[%s219 + $0x7e] sm:$0xff]
      %v1895 = vld [vmem:[%s219 + $0x86] sm:$0xff]
      %v1896 = vld [vmem:[%s219 + $0x8e] sm:$0xff]
      %v1897 = vld [vmem:[%s219 + $0x96] sm:$0xff]
      %v1898 = vld [vmem:[%s219 + $0x9e] sm:$0xff]
      %v1899 = vld [vmem:[%s219 + $0xa6] sm:$0xff]
      %v1900 = vld [vmem:[%s219 + $0xae] sm:$0xff]
      %v1901 = vld [vmem:[%s219 + $0xb6] sm:$0xff]
      %v1902 = vld [vmem:[%s219 + $0xbe] sm:$0xff]
      %v1903 = vld [vmem:[%s219 + $0xc6] sm:$0xff]
      %v1904 = vld [vmem:[%s219 + $0xce] sm:$0xff]
      %v1905 = vld [vmem:[%s219 + $0xd6] sm:$0xff]
      %v1906 = vld [vmem:[%s219 + $0xde] sm:$0xff]
      %v1907 = vld [vmem:[%s219 + $0xe6] sm:$0xff]
      %v1908 = vld [vmem:[%s219 + $0xee] sm:$0xff]
      %v1909 = vld [vmem:[%s219 + $0xf6] sm:$0xff]
      %v1910 = vld [vmem:[%s219 + $0xfe] sm:$0xff]
      %v1911 = vld [vmem:[%s219 + $0x106] sm:$0xff]
      %v1912 = vld [vmem:[%s219 + $0x10e] sm:$0xff]
      %v1913 = vld [vmem:[%s219 + $0x116] sm:$0xff]
      %v1914 = vld [vmem:[%s219 + $0x11e] sm:$0xff]
      %v1915 = vld [vmem:[%s219 + $0x126] sm:$0xff]
      %v1916 = vld [vmem:[%s219 + $0x12e] sm:$0xff]
      %v1917 = vld [vmem:[%s219 + $0x136] sm:$0xff]
      %v1918 = vld [vmem:[%s219 + $0x13e] sm:$0xff]
      %v1919 = vld [vmem:[%s219 + $0x146] sm:$0xff]
      %v1920 = vld [vmem:[%s219 + $0x14e] sm:$0xff]
      %v1921 = vld [vmem:[%s219 + $0x156] sm:$0xff]
      %v1922 = vld [vmem:[%s219 + $0x15e] sm:$0xff]
      %v1923 = vld [vmem:[%s219 + $0x166] sm:$0xff]
      %v1924 = vld [vmem:[%s219 + $0x16e] sm:$0xff]
      %v1925 = vld [vmem:[%s219 + $0x176] sm:$0xff]
      %v1926 = vld [vmem:[%s219 + $0x17e] sm:$0xff]
      %v1927 = vld [vmem:[%s219 + $0x186] sm:$0xff]
      %v1928 = vld [vmem:[%s219 + $0x18e] sm:$0xff]
      %v1929 = vld [vmem:[%s219 + $0x196] sm:$0xff]
      %v1930 = vld [vmem:[%s219 + $0x19e] sm:$0xff]
      %v1931 = vld [vmem:[%s219 + $0x1a6] sm:$0xff]
      %v1932 = vld [vmem:[%s219 + $0x1ae] sm:$0xff]
      %v1933 = vld [vmem:[%s219 + $0x1b6] sm:$0xff]
      %v1934 = vld [vmem:[%s219 + $0x1be] sm:$0xff]
      %v1935 = vld [vmem:[%s219 + $0x1c6] sm:$0xff]
      %v1936 = vld [vmem:[%s219 + $0x1ce] sm:$0xff]
      %v1937 = vld [vmem:[%s219 + $0x1d6] sm:$0xff]
      %v1938 = vld [vmem:[%s219 + $0x1de] sm:$0xff]
      %v1939 = vld [vmem:[%s219 + $0x1e6] sm:$0xff]
      %v1940 = vld [vmem:[%s219 + $0x1ee] sm:$0xff]
      %v1941 = vld [vmem:[%s219 + $0x1f6] sm:$0xff]
      %v1942 = vld [vmem:[%s219 + $0x1fe] sm:$0xff]
      %v1943 = vld [vmem:[%s219 + $0x206] sm:$0xff]
      %v1944 = vld [vmem:[%s219 + $0x20e] sm:$0xff]
      %v1945 = vld [vmem:[%s219 + $0x216] sm:$0xff]
      %v1946 = vld [vmem:[%s219 + $0x21e] sm:$0xff]
      %v1947 = vld [vmem:[%s219 + $0x226] sm:$0xff]
      %v1948 = vld [vmem:[%s219 + $0x22e] sm:$0xff]
      %v1949 = vld [vmem:[%s219 + $0x236] sm:$0xff]
      %v1950 = vld [vmem:[%s219 + $0x23e] sm:$0xff]
      %v1951 = vld [vmem:[%s219 + $0x246] sm:$0xff]
      %v1952 = vld [vmem:[%s219 + $0x24e] sm:$0xff]
      %v1953 = vld [vmem:[%s219 + $0x256] sm:$0xff]
      %v1954 = vld [vmem:[%s219 + $0x25e] sm:$0xff]
      %v1955 = vld [vmem:[%s219 + $0x266] sm:$0xff]
      %v1956 = vld [vmem:[%s219 + $0x26e] sm:$0xff]
      %v1957 = vld [vmem:[%s219 + $0x276] sm:$0xff]
      %v1958 = vld [vmem:[%s219 + $0x27e] sm:$0xff]
      %v1959 = vld [vmem:[%s219 + $0x286] sm:$0xff]
      %v1960 = vld [vmem:[%s219 + $0x28e] sm:$0xff]
      %v1961 = vld [vmem:[%s219 + $0x296] sm:$0xff]
      %v1962 = vld [vmem:[%s219 + $0x29e] sm:$0xff]
      %v1963 = vld [vmem:[%s219 + $0x2a6] sm:$0xff]
      %v1964 = vld [vmem:[%s219 + $0x2ae] sm:$0xff]
      %v1965 = vld [vmem:[%s219 + $0x2b6] sm:$0xff]
      %v1966 = vld [vmem:[%s219 + $0x2be] sm:$0xff]
      %v1967 = vld [vmem:[%s219 + $0x2c6] sm:$0xff]
      %v1968 = vld [vmem:[%s219 + $0x2ce] sm:$0xff]
      %v1969 = vld [vmem:[%s219 + $0x2d6] sm:$0xff]
      %v1970 = vld [vmem:[%s219 + $0x2de] sm:$0xff]
      %v1971 = vld [vmem:[%s219 + $0x2e6] sm:$0xff]
      %v1972 = vld [vmem:[%s219 + $0x2ee] sm:$0xff]
      %v1973 = vld [vmem:[%s219 + $0x2f6] sm:$0xff]
      %v1974 = vld [vmem:[%s219 + $0x2fe] sm:$0xff]
      %v1975 = vld [vmem:[%s219 + $0x306] sm:$0xff]
      %v1976 = vld [vmem:[%s219 + $0x30e] sm:$0xff]
      %v1977 = vld [vmem:[%s219 + $0x316] sm:$0xff]
      %v1978 = vld [vmem:[%s219 + $0x31e] sm:$0xff]
      %v1979 = vld [vmem:[%s219 + $0x326] sm:$0xff]
      %v1980 = vld [vmem:[%s219 + $0x32e] sm:$0xff]
      %v1981 = vld [vmem:[%s219 + $0x336] sm:$0xff]
      %v1982 = vld [vmem:[%s219 + $0x33e] sm:$0xff]
      %v1983 = vld [vmem:[%s219 + $0x346] sm:$0xf]
      %v1984 = vld [vmem:[%s1 + $0x2] sm:$0x1]
      %1986 = vset.pattern.permute.xlu0 0
      %1987 = vperm.xlu0 %1986, %v1882
      %v1988 = vpop.permute.xlu0 %1987
      %1991 = vset.pattern.permute.xlu0 0
      %1992 = vperm.xlu0 %1991, %v1883
      %v1993 = vpop.permute.xlu0 %1992
      %1996 = vset.pattern.permute.xlu0 0
      %1997 = vperm.xlu0 %1996, %v1884
      %v1998 = vpop.permute.xlu0 %1997
      %2001 = vset.pattern.permute.xlu0 0
      %2002 = vperm.xlu0 %2001, %v1885
      %v2003 = vpop.permute.xlu0 %2002
      %2006 = vset.pattern.permute.xlu0 0
      %2007 = vperm.xlu0 %2006, %v1886
      %v2008 = vpop.permute.xlu0 %2007
      %2011 = vset.pattern.permute.xlu0 0
      %2012 = vperm.xlu0 %2011, %v1887
      %v2013 = vpop.permute.xlu0 %2012
      %2016 = vset.pattern.permute.xlu0 0
      %2017 = vperm.xlu0 %2016, %v1888
      %v2018 = vpop.permute.xlu0 %2017
      %2021 = vset.pattern.permute.xlu0 0
      %2022 = vperm.xlu0 %2021, %v1889
      %v2023 = vpop.permute.xlu0 %2022
      %2026 = vset.pattern.permute.xlu0 0
      %2027 = vperm.xlu0 %2026, %v1890
      %v2028 = vpop.permute.xlu0 %2027
      %2031 = vset.pattern.permute.xlu0 0
      %2032 = vperm.xlu0 %2031, %v1891
      %v2033 = vpop.permute.xlu0 %2032
      %2036 = vset.pattern.permute.xlu0 0
      %2037 = vperm.xlu0 %2036, %v1892
      %v2038 = vpop.permute.xlu0 %2037
      %2041 = vset.pattern.permute.xlu0 0
      %2042 = vperm.xlu0 %2041, %v1893
      %v2043 = vpop.permute.xlu0 %2042
      %2046 = vset.pattern.permute.xlu0 0
      %2047 = vperm.xlu0 %2046, %v1894
      %v2048 = vpop.permute.xlu0 %2047
      %2051 = vset.pattern.permute.xlu0 0
      %2052 = vperm.xlu0 %2051, %v1895
      %v2053 = vpop.permute.xlu0 %2052
      %2056 = vset.pattern.permute.xlu0 0
      %2057 = vperm.xlu0 %2056, %v1896
      %v2058 = vpop.permute.xlu0 %2057
      %2061 = vset.pattern.permute.xlu0 0
      %2062 = vperm.xlu0 %2061, %v1897
      %v2063 = vpop.permute.xlu0 %2062
      %2066 = vset.pattern.permute.xlu0 0
      %2067 = vperm.xlu0 %2066, %v1898
      %v2068 = vpop.permute.xlu0 %2067
      %2071 = vset.pattern.permute.xlu0 0
      %2072 = vperm.xlu0 %2071, %v1899
      %v2073 = vpop.permute.xlu0 %2072
      %2076 = vset.pattern.permute.xlu0 0
      %2077 = vperm.xlu0 %2076, %v1900
      %v2078 = vpop.permute.xlu0 %2077
      %2081 = vset.pattern.permute.xlu0 0
      %2082 = vperm.xlu0 %2081, %v1901
      %v2083 = vpop.permute.xlu0 %2082
      %2086 = vset.pattern.permute.xlu0 0
      %2087 = vperm.xlu0 %2086, %v1902
      %v2088 = vpop.permute.xlu0 %2087
      %2091 = vset.pattern.permute.xlu0 0
      %2092 = vperm.xlu0 %2091, %v1903
      %v2093 = vpop.permute.xlu0 %2092
      %2096 = vset.pattern.permute.xlu0 0
      %2097 = vperm.xlu0 %2096, %v1904
      %v2098 = vpop.permute.xlu0 %2097
      %2101 = vset.pattern.permute.xlu0 0
      %2102 = vperm.xlu0 %2101, %v1905
      %v2103 = vpop.permute.xlu0 %2102
      %2106 = vset.pattern.permute.xlu0 0
      %2107 = vperm.xlu0 %2106, %v1906
      %v2108 = vpop.permute.xlu0 %2107
      %2111 = vset.pattern.permute.xlu0 0
      %2112 = vperm.xlu0 %2111, %v1907
      %v2113 = vpop.permute.xlu0 %2112
      %2116 = vset.pattern.permute.xlu0 0
      %2117 = vperm.xlu0 %2116, %v1908
      %v2118 = vpop.permute.xlu0 %2117
      %2121 = vset.pattern.permute.xlu0 0
      %2122 = vperm.xlu0 %2121, %v1909
      %v2123 = vpop.permute.xlu0 %2122
      %2126 = vset.pattern.permute.xlu0 0
      %2127 = vperm.xlu0 %2126, %v1910
      %v2128 = vpop.permute.xlu0 %2127
      %2131 = vset.pattern.permute.xlu0 0
      %2132 = vperm.xlu0 %2131, %v1911
      %v2133 = vpop.permute.xlu0 %2132
      %2136 = vset.pattern.permute.xlu0 0
      %2137 = vperm.xlu0 %2136, %v1912
      %v2138 = vpop.permute.xlu0 %2137
      %2141 = vset.pattern.permute.xlu0 0
      %2142 = vperm.xlu0 %2141, %v1913
      %v2143 = vpop.permute.xlu0 %2142
      %2146 = vset.pattern.permute.xlu0 0
      %2147 = vperm.xlu0 %2146, %v1914
      %v2148 = vpop.permute.xlu0 %2147
      %2151 = vset.pattern.permute.xlu0 0
      %2152 = vperm.xlu0 %2151, %v1915
      %v2153 = vpop.permute.xlu0 %2152
      %2156 = vset.pattern.permute.xlu0 0
      %2157 = vperm.xlu0 %2156, %v1916
      %v2158 = vpop.permute.xlu0 %2157
      %2161 = vset.pattern.permute.xlu0 0
      %2162 = vperm.xlu0 %2161, %v1917
      %v2163 = vpop.permute.xlu0 %2162
      %2166 = vset.pattern.permute.xlu0 0
      %2167 = vperm.xlu0 %2166, %v1918
      %v2168 = vpop.permute.xlu0 %2167
      %2171 = vset.pattern.permute.xlu0 0
      %2172 = vperm.xlu0 %2171, %v1919
      %v2173 = vpop.permute.xlu0 %2172
      %2176 = vset.pattern.permute.xlu0 0
      %2177 = vperm.xlu0 %2176, %v1920
      %v2178 = vpop.permute.xlu0 %2177
      %2181 = vset.pattern.permute.xlu0 0
      %2182 = vperm.xlu0 %2181, %v1921
      %v2183 = vpop.permute.xlu0 %2182
      %2186 = vset.pattern.permute.xlu0 0
      %2187 = vperm.xlu0 %2186, %v1922
      %v2188 = vpop.permute.xlu0 %2187
      %2191 = vset.pattern.permute.xlu0 0
      %2192 = vperm.xlu0 %2191, %v1923
      %v2193 = vpop.permute.xlu0 %2192
      %2196 = vset.pattern.permute.xlu0 0
      %2197 = vperm.xlu0 %2196, %v1924
      %v2198 = vpop.permute.xlu0 %2197
      %2201 = vset.pattern.permute.xlu0 0
      %2202 = vperm.xlu0 %2201, %v1925
      %v2203 = vpop.permute.xlu0 %2202
      %2206 = vset.pattern.permute.xlu0 0
      %2207 = vperm.xlu0 %2206, %v1926
      %v2208 = vpop.permute.xlu0 %2207
      %2211 = vset.pattern.permute.xlu0 0
      %2212 = vperm.xlu0 %2211, %v1927
      %v2213 = vpop.permute.xlu0 %2212
      %2216 = vset.pattern.permute.xlu0 0
      %2217 = vperm.xlu0 %2216, %v1928
      %v2218 = vpop.permute.xlu0 %2217
      %2221 = vset.pattern.permute.xlu0 0
      %2222 = vperm.xlu0 %2221, %v1929
      %v2223 = vpop.permute.xlu0 %2222
      %2226 = vset.pattern.permute.xlu0 0
      %2227 = vperm.xlu0 %2226, %v1930
      %v2228 = vpop.permute.xlu0 %2227
      %2231 = vset.pattern.permute.xlu0 0
      %2232 = vperm.xlu0 %2231, %v1931
      %v2233 = vpop.permute.xlu0 %2232
      %2236 = vset.pattern.permute.xlu0 0
      %2237 = vperm.xlu0 %2236, %v1932
      %v2238 = vpop.permute.xlu0 %2237
      %2241 = vset.pattern.permute.xlu0 0
      %2242 = vperm.xlu0 %2241, %v1933
      %v2243 = vpop.permute.xlu0 %2242
      %2246 = vset.pattern.permute.xlu0 0
      %2247 = vperm.xlu0 %2246, %v1934
      %v2248 = vpop.permute.xlu0 %2247
      %2251 = vset.pattern.permute.xlu0 0
      %2252 = vperm.xlu0 %2251, %v1935
      %v2253 = vpop.permute.xlu0 %2252
      %2256 = vset.pattern.permute.xlu0 0
      %2257 = vperm.xlu0 %2256, %v1936
      %v2258 = vpop.permute.xlu0 %2257
      %2261 = vset.pattern.permute.xlu0 0
      %2262 = vperm.xlu0 %2261, %v1937
      %v2263 = vpop.permute.xlu0 %2262
      %2266 = vset.pattern.permute.xlu0 0
      %2267 = vperm.xlu0 %2266, %v1938
      %v2268 = vpop.permute.xlu0 %2267
      %2271 = vset.pattern.permute.xlu0 0
      %2272 = vperm.xlu0 %2271, %v1939
      %v2273 = vpop.permute.xlu0 %2272
      %2276 = vset.pattern.permute.xlu0 0
      %2277 = vperm.xlu0 %2276, %v1940
      %v2278 = vpop.permute.xlu0 %2277
      %2281 = vset.pattern.permute.xlu0 0
      %2282 = vperm.xlu0 %2281, %v1941
      %v2283 = vpop.permute.xlu0 %2282
      %2286 = vset.pattern.permute.xlu0 0
      %2287 = vperm.xlu0 %2286, %v1942
      %v2288 = vpop.permute.xlu0 %2287
      %2291 = vset.pattern.permute.xlu0 0
      %2292 = vperm.xlu0 %2291, %v1943
      %v2293 = vpop.permute.xlu0 %2292
      %2296 = vset.pattern.permute.xlu0 0
      %2297 = vperm.xlu0 %2296, %v1944
      %v2298 = vpop.permute.xlu0 %2297
      %2301 = vset.pattern.permute.xlu0 0
      %2302 = vperm.xlu0 %2301, %v1945
      %v2303 = vpop.permute.xlu0 %2302
      %2306 = vset.pattern.permute.xlu0 0
      %2307 = vperm.xlu0 %2306, %v1946
      %v2308 = vpop.permute.xlu0 %2307
      %2311 = vset.pattern.permute.xlu0 0
      %2312 = vperm.xlu0 %2311, %v1947
      %v2313 = vpop.permute.xlu0 %2312
      %2316 = vset.pattern.permute.xlu0 0
      %2317 = vperm.xlu0 %2316, %v1948
      %v2318 = vpop.permute.xlu0 %2317
      %2321 = vset.pattern.permute.xlu0 0
      %2322 = vperm.xlu0 %2321, %v1949
      %v2323 = vpop.permute.xlu0 %2322
      %2326 = vset.pattern.permute.xlu0 0
      %2327 = vperm.xlu0 %2326, %v1950
      %v2328 = vpop.permute.xlu0 %2327
      %2331 = vset.pattern.permute.xlu0 0
      %2332 = vperm.xlu0 %2331, %v1951
      %v2333 = vpop.permute.xlu0 %2332
      %2336 = vset.pattern.permute.xlu0 0
      %2337 = vperm.xlu0 %2336, %v1952
      %v2338 = vpop.permute.xlu0 %2337
      %2341 = vset.pattern.permute.xlu0 0
      %2342 = vperm.xlu0 %2341, %v1953
      %v2343 = vpop.permute.xlu0 %2342
      %2346 = vset.pattern.permute.xlu0 0
      %2347 = vperm.xlu0 %2346, %v1954
      %v2348 = vpop.permute.xlu0 %2347
      %2351 = vset.pattern.permute.xlu0 0
      %2352 = vperm.xlu0 %2351, %v1955
      %v2353 = vpop.permute.xlu0 %2352
      %2356 = vset.pattern.permute.xlu0 0
      %2357 = vperm.xlu0 %2356, %v1956
      %v2358 = vpop.permute.xlu0 %2357
      %2361 = vset.pattern.permute.xlu0 0
      %2362 = vperm.xlu0 %2361, %v1957
      %v2363 = vpop.permute.xlu0 %2362
      %2366 = vset.pattern.permute.xlu0 0
      %2367 = vperm.xlu0 %2366, %v1958
      %v2368 = vpop.permute.xlu0 %2367
      %2371 = vset.pattern.permute.xlu0 0
      %2372 = vperm.xlu0 %2371, %v1959
      %v2373 = vpop.permute.xlu0 %2372
      %2376 = vset.pattern.permute.xlu0 0
      %2377 = vperm.xlu0 %2376, %v1960
      %v2378 = vpop.permute.xlu0 %2377
      %2381 = vset.pattern.permute.xlu0 0
      %2382 = vperm.xlu0 %2381, %v1961
      %v2383 = vpop.permute.xlu0 %2382
      %2386 = vset.pattern.permute.xlu0 0
      %2387 = vperm.xlu0 %2386, %v1962
      %v2388 = vpop.permute.xlu0 %2387
      %2391 = vset.pattern.permute.xlu0 0
      %2392 = vperm.xlu0 %2391, %v1963
      %v2393 = vpop.permute.xlu0 %2392
      %2396 = vset.pattern.permute.xlu0 0
      %2397 = vperm.xlu0 %2396, %v1964
      %v2398 = vpop.permute.xlu0 %2397
      %2401 = vset.pattern.permute.xlu0 0
      %2402 = vperm.xlu0 %2401, %v1965
      %v2403 = vpop.permute.xlu0 %2402
      %2406 = vset.pattern.permute.xlu0 0
      %2407 = vperm.xlu0 %2406, %v1966
      %v2408 = vpop.permute.xlu0 %2407
      %2411 = vset.pattern.permute.xlu0 0
      %2412 = vperm.xlu0 %2411, %v1967
      %v2413 = vpop.permute.xlu0 %2412
      %2416 = vset.pattern.permute.xlu0 0
      %2417 = vperm.xlu0 %2416, %v1968
      %v2418 = vpop.permute.xlu0 %2417
      %2421 = vset.pattern.permute.xlu0 0
      %2422 = vperm.xlu0 %2421, %v1969
      %v2423 = vpop.permute.xlu0 %2422
      %2426 = vset.pattern.permute.xlu0 0
      %2427 = vperm.xlu0 %2426, %v1970
      %v2428 = vpop.permute.xlu0 %2427
      %2431 = vset.pattern.permute.xlu0 0
      %2432 = vperm.xlu0 %2431, %v1971
      %v2433 = vpop.permute.xlu0 %2432
      %2436 = vset.pattern.permute.xlu0 0
      %2437 = vperm.xlu0 %2436, %v1972
      %v2438 = vpop.permute.xlu0 %2437
      %2441 = vset.pattern.permute.xlu0 0
      %2442 = vperm.xlu0 %2441, %v1973
      %v2443 = vpop.permute.xlu0 %2442
      %2446 = vset.pattern.permute.xlu0 0
      %2447 = vperm.xlu0 %2446, %v1974
      %v2448 = vpop.permute.xlu0 %2447
      %2451 = vset.pattern.permute.xlu0 0
      %2452 = vperm.xlu0 %2451, %v1975
      %v2453 = vpop.permute.xlu0 %2452
      %2456 = vset.pattern.permute.xlu0 0
      %2457 = vperm.xlu0 %2456, %v1976
      %v2458 = vpop.permute.xlu0 %2457
      %2461 = vset.pattern.permute.xlu0 0
      %2462 = vperm.xlu0 %2461, %v1977
      %v2463 = vpop.permute.xlu0 %2462
      %2466 = vset.pattern.permute.xlu0 0
      %2467 = vperm.xlu0 %2466, %v1978
      %v2468 = vpop.permute.xlu0 %2467
      %2471 = vset.pattern.permute.xlu0 0
      %2472 = vperm.xlu0 %2471, %v1979
      %v2473 = vpop.permute.xlu0 %2472
      %2476 = vset.pattern.permute.xlu0 0
      %2477 = vperm.xlu0 %2476, %v1980
      %v2478 = vpop.permute.xlu0 %2477
      %2481 = vset.pattern.permute.xlu0 0
      %2482 = vperm.xlu0 %2481, %v1981
      %v2483 = vpop.permute.xlu0 %2482
      %2486 = vset.pattern.permute.xlu0 0
      %2487 = vperm.xlu0 %2486, %v1982
      %v2488 = vpop.permute.xlu0 %2487
      %2491 = vset.pattern.permute.xlu0 0
      %2492 = vperm.xlu0 %2491, %v1983
      %v2493 = vpop.permute.xlu0 %2492
      %v2495 = vperm.slane %v1984, 0
      %v2496 = vmul.f32 %v1988, %v2495
      %v2497 = vmul.f32 %v1993, %v2495
      %v2498 = vmul.f32 %v1998, %v2495
      %v2499 = vmul.f32 %v2003, %v2495
      %v2500 = vmul.f32 %v2008, %v2495
      %v2501 = vmul.f32 %v2013, %v2495
      %v2502 = vmul.f32 %v2018, %v2495
      %v2503 = vmul.f32 %v2023, %v2495
      %v2504 = vmul.f32 %v2028, %v2495
      %v2505 = vmul.f32 %v2033, %v2495
      %v2506 = vmul.f32 %v2038, %v2495
      %v2507 = vmul.f32 %v2043, %v2495
      %v2508 = vmul.f32 %v2048, %v2495
      %v2509 = vmul.f32 %v2053, %v2495
      %v2510 = vmul.f32 %v2058, %v2495
      %v2511 = vmul.f32 %v2063, %v2495
      %v2512 = vmul.f32 %v2068, %v2495
      %v2513 = vmul.f32 %v2073, %v2495
      %v2514 = vmul.f32 %v2078, %v2495
      %v2515 = vmul.f32 %v2083, %v2495
      %v2516 = vmul.f32 %v2088, %v2495
      %v2517 = vmul.f32 %v2093, %v2495
      %v2518 = vmul.f32 %v2098, %v2495
      %v2519 = vmul.f32 %v2103, %v2495
      %v2520 = vmul.f32 %v2108, %v2495
      %v2521 = vmul.f32 %v2113, %v2495
      %v2522 = vmul.f32 %v2118, %v2495
      %v2523 = vmul.f32 %v2123, %v2495
      %v2524 = vmul.f32 %v2128, %v2495
      %v2525 = vmul.f32 %v2133, %v2495
      %v2526 = vmul.f32 %v2138, %v2495
      %v2527 = vmul.f32 %v2143, %v2495
      %v2528 = vmul.f32 %v2148, %v2495
      %v2529 = vmul.f32 %v2153, %v2495
      %v2530 = vmul.f32 %v2158, %v2495
      %v2531 = vmul.f32 %v2163, %v2495
      %v2532 = vmul.f32 %v2168, %v2495
      %v2533 = vmul.f32 %v2173, %v2495
      %v2534 = vmul.f32 %v2178, %v2495
      %v2535 = vmul.f32 %v2183, %v2495
      %v2536 = vmul.f32 %v2188, %v2495
      %v2537 = vmul.f32 %v2193, %v2495
      %v2538 = vmul.f32 %v2198, %v2495
      %v2539 = vmul.f32 %v2203, %v2495
      %v2540 = vmul.f32 %v2208, %v2495
      %v2541 = vmul.f32 %v2213, %v2495
      %v2542 = vmul.f32 %v2218, %v2495
      %v2543 = vmul.f32 %v2223, %v2495
      %v2544 = vmul.f32 %v2228, %v2495
      %v2545 = vmul.f32 %v2233, %v2495
      %v2546 = vmul.f32 %v2238, %v2495
      %v2547 = vmul.f32 %v2243, %v2495
      %v2548 = vmul.f32 %v2248, %v2495
      %v2549 = vmul.f32 %v2253, %v2495
      %v2550 = vmul.f32 %v2258, %v2495
      %v2551 = vmul.f32 %v2263, %v2495
      %v2552 = vmul.f32 %v2268, %v2495
      %v2553 = vmul.f32 %v2273, %v2495
      %v2554 = vmul.f32 %v2278, %v2495
      %v2555 = vmul.f32 %v2283, %v2495
      %v2556 = vmul.f32 %v2288, %v2495
      %v2557 = vmul.f32 %v2293, %v2495
      %v2558 = vmul.f32 %v2298, %v2495
      %v2559 = vmul.f32 %v2303, %v2495
      %v2560 = vmul.f32 %v2308, %v2495
      %v2561 = vmul.f32 %v2313, %v2495
      %v2562 = vmul.f32 %v2318, %v2495
      %v2563 = vmul.f32 %v2323, %v2495
      %v2564 = vmul.f32 %v2328, %v2495
      %v2565 = vmul.f32 %v2333, %v2495
      %v2566 = vmul.f32 %v2338, %v2495
      %v2567 = vmul.f32 %v2343, %v2495
      %v2568 = vmul.f32 %v2348, %v2495
      %v2569 = vmul.f32 %v2353, %v2495
      %v2570 = vmul.f32 %v2358, %v2495
      %v2571 = vmul.f32 %v2363, %v2495
      %v2572 = vmul.f32 %v2368, %v2495
      %v2573 = vmul.f32 %v2373, %v2495
      %v2574 = vmul.f32 %v2378, %v2495
      %v2575 = vmul.f32 %v2383, %v2495
      %v2576 = vmul.f32 %v2388, %v2495
      %v2577 = vmul.f32 %v2393, %v2495
      %v2578 = vmul.f32 %v2398, %v2495
      %v2579 = vmul.f32 %v2403, %v2495
      %v2580 = vmul.f32 %v2408, %v2495
      %v2581 = vmul.f32 %v2413, %v2495
      %v2582 = vmul.f32 %v2418, %v2495
      %v2583 = vmul.f32 %v2423, %v2495
      %v2584 = vmul.f32 %v2428, %v2495
      %v2585 = vmul.f32 %v2433, %v2495
      %v2586 = vmul.f32 %v2438, %v2495
      %v2587 = vmul.f32 %v2443, %v2495
      %v2588 = vmul.f32 %v2448, %v2495
      %v2589 = vmul.f32 %v2453, %v2495
      %v2590 = vmul.f32 %v2458, %v2495
      %v2591 = vmul.f32 %v2463, %v2495
      %v2592 = vmul.f32 %v2468, %v2495
      %v2593 = vmul.f32 %v2473, %v2495
      %v2594 = vmul.f32 %v2478, %v2495
      %v2595 = vmul.f32 %v2483, %v2495
      %v2596 = vmul.f32 %v2488, %v2495
      %v2597 = vmul.f32 %v2493, %v2495
      %v2598 = vadd.f32 %v1780, %v2496
      %v2599 = vadd.f32 %v1781, %v2497
      %v2600 = vadd.f32 %v1782, %v2498
      %v2601 = vadd.f32 %v1783, %v2499
      %v2602 = vadd.f32 %v1784, %v2500
      %v2603 = vadd.f32 %v1785, %v2501
      %v2604 = vadd.f32 %v1786, %v2502
      %v2605 = vadd.f32 %v1787, %v2503
      %v2606 = vadd.f32 %v1788, %v2504
      %v2607 = vadd.f32 %v1789, %v2505
      %v2608 = vadd.f32 %v1790, %v2506
      %v2609 = vadd.f32 %v1791, %v2507
      %v2610 = vadd.f32 %v1792, %v2508
      %v2611 = vadd.f32 %v1793, %v2509
      %v2612 = vadd.f32 %v1794, %v2510
      %v2613 = vadd.f32 %v1795, %v2511
      %v2614 = vadd.f32 %v1796, %v2512
      %v2615 = vadd.f32 %v1797, %v2513
      %v2616 = vadd.f32 %v1798, %v2514
      %v2617 = vadd.f32 %v1799, %v2515
      %v2618 = vadd.f32 %v1800, %v2516
      %v2619 = vadd.f32 %v1801, %v2517
      %v2620 = vadd.f32 %v1802, %v2518
      %v2621 = vadd.f32 %v1803, %v2519
      %v2622 = vadd.f32 %v1804, %v2520
      %v2623 = vadd.f32 %v1805, %v2521
      %v2624 = vadd.f32 %v1806, %v2522
      %v2625 = vadd.f32 %v1807, %v2523
      %v2626 = vadd.f32 %v1808, %v2524
      %v2627 = vadd.f32 %v1809, %v2525
      %v2628 = vadd.f32 %v1810, %v2526
      %v2629 = vadd.f32 %v1811, %v2527
      %v2630 = vadd.f32 %v1812, %v2528
      %v2631 = vadd.f32 %v1813, %v2529
      %v2632 = vadd.f32 %v1814, %v2530
      %v2633 = vadd.f32 %v1815, %v2531
      %v2634 = vadd.f32 %v1816, %v2532
      %v2635 = vadd.f32 %v1817, %v2533
      %v2636 = vadd.f32 %v1818, %v2534
      %v2637 = vadd.f32 %v1819, %v2535
      %v2638 = vadd.f32 %v1820, %v2536
      %v2639 = vadd.f32 %v1821, %v2537
      %v2640 = vadd.f32 %v1822, %v2538
      %v2641 = vadd.f32 %v1823, %v2539
      %v2642 = vadd.f32 %v1824, %v2540
      %v2643 = vadd.f32 %v1825, %v2541
      %v2644 = vadd.f32 %v1826, %v2542
      %v2645 = vadd.f32 %v1827, %v2543
      %v2646 = vadd.f32 %v1828, %v2544
      %v2647 = vadd.f32 %v1829, %v2545
      %v2648 = vadd.f32 %v1830, %v2546
      %v2649 = vadd.f32 %v1831, %v2547
      %v2650 = vadd.f32 %v1832, %v2548
      %v2651 = vadd.f32 %v1833, %v2549
      %v2652 = vadd.f32 %v1834, %v2550
      %v2653 = vadd.f32 %v1835, %v2551
      %v2654 = vadd.f32 %v1836, %v2552
      %v2655 = vadd.f32 %v1837, %v2553
      %v2656 = vadd.f32 %v1838, %v2554
      %v2657 = vadd.f32 %v1839, %v2555
      %v2658 = vadd.f32 %v1840, %v2556
      %v2659 = vadd.f32 %v1841, %v2557
      %v2660 = vadd.f32 %v1842, %v2558
      %v2661 = vadd.f32 %v1843, %v2559
      %v2662 = vadd.f32 %v1844, %v2560
      %v2663 = vadd.f32 %v1845, %v2561
      %v2664 = vadd.f32 %v1846, %v2562
      %v2665 = vadd.f32 %v1847, %v2563
      %v2666 = vadd.f32 %v1848, %v2564
      %v2667 = vadd.f32 %v1849, %v2565
      %v2668 = vadd.f32 %v1850, %v2566
      %v2669 = vadd.f32 %v1851, %v2567
      %v2670 = vadd.f32 %v1852, %v2568
      %v2671 = vadd.f32 %v1853, %v2569
      %v2672 = vadd.f32 %v1854, %v2570
      %v2673 = vadd.f32 %v1855, %v2571
      %v2674 = vadd.f32 %v1856, %v2572
      %v2675 = vadd.f32 %v1857, %v2573
      %v2676 = vadd.f32 %v1858, %v2574
      %v2677 = vadd.f32 %v1859, %v2575
      %v2678 = vadd.f32 %v1860, %v2576
      %v2679 = vadd.f32 %v1861, %v2577
      %v2680 = vadd.f32 %v1862, %v2578
      %v2681 = vadd.f32 %v1863, %v2579
      %v2682 = vadd.f32 %v1864, %v2580
      %v2683 = vadd.f32 %v1865, %v2581
      %v2684 = vadd.f32 %v1866, %v2582
      %v2685 = vadd.f32 %v1867, %v2583
      %v2686 = vadd.f32 %v1868, %v2584
      %v2687 = vadd.f32 %v1869, %v2585
      %v2688 = vadd.f32 %v1870, %v2586
      %v2689 = vadd.f32 %v1871, %v2587
      %v2690 = vadd.f32 %v1872, %v2588
      %v2691 = vadd.f32 %v1873, %v2589
      %v2692 = vadd.f32 %v1874, %v2590
      %v2693 = vadd.f32 %v1875, %v2591
      %v2694 = vadd.f32 %v1876, %v2592
      %v2695 = vadd.f32 %v1877, %v2593
      %v2696 = vadd.f32 %v1878, %v2594
      %v2697 = vadd.f32 %v1879, %v2595
      %v2698 = vadd.f32 %v1880, %v2596
      %v2699 = vadd.f32 %v1881, %v2597
      %v2700 = vld [vmem:[%s219 + $0x39] sm:$0xff]
      %v2701 = vld [vmem:[%s219 + $0x41] sm:$0xff]
      %v2702 = vld [vmem:[%s219 + $0x49] sm:$0xff]
      %v2703 = vld [vmem:[%s219 + $0x51] sm:$0xff]
      %v2704 = vld [vmem:[%s219 + $0x59] sm:$0xff]
      %v2705 = vld [vmem:[%s219 + $0x61] sm:$0xff]
      %v2706 = vld [vmem:[%s219 + $0x69] sm:$0xff]
      %v2707 = vld [vmem:[%s219 + $0x71] sm:$0xff]
      %v2708 = vld [vmem:[%s219 + $0x79] sm:$0xff]
      %v2709 = vld [vmem:[%s219 + $0x81] sm:$0xff]
      %v2710 = vld [vmem:[%s219 + $0x89] sm:$0xff]
      %v2711 = vld [vmem:[%s219 + $0x91] sm:$0xff]
      %v2712 = vld [vmem:[%s219 + $0x99] sm:$0xff]
      %v2713 = vld [vmem:[%s219 + $0xa1] sm:$0xff]
      %v2714 = vld [vmem:[%s219 + $0xa9] sm:$0xff]
      %v2715 = vld [vmem:[%s219 + $0xb1] sm:$0xff]
      %v2716 = vld [vmem:[%s219 + $0xb9] sm:$0xff]
      %v2717 = vld [vmem:[%s219 + $0xc1] sm:$0xff]
      %v2718 = vld [vmem:[%s219 + $0xc9] sm:$0xff]
      %v2719 = vld [vmem:[%s219 + $0xd1] sm:$0xff]
      %v2720 = vld [vmem:[%s219 + $0xd9] sm:$0xff]
      %v2721 = vld [vmem:[%s219 + $0xe1] sm:$0xff]
      %v2722 = vld [vmem:[%s219 + $0xe9] sm:$0xff]
      %v2723 = vld [vmem:[%s219 + $0xf1] sm:$0xff]
      %v2724 = vld [vmem:[%s219 + $0xf9] sm:$0xff]
      %v2725 = vld [vmem:[%s219 + $0x101] sm:$0xff]
      %v2726 = vld [vmem:[%s219 + $0x109] sm:$0xff]
      %v2727 = vld [vmem:[%s219 + $0x111] sm:$0xff]
      %v2728 = vld [vmem:[%s219 + $0x119] sm:$0xff]
      %v2729 = vld [vmem:[%s219 + $0x121] sm:$0xff]
      %v2730 = vld [vmem:[%s219 + $0x129] sm:$0xff]
      %v2731 = vld [vmem:[%s219 + $0x131] sm:$0xff]
      %v2732 = vld [vmem:[%s219 + $0x139] sm:$0xff]
      %v2733 = vld [vmem:[%s219 + $0x141] sm:$0xff]
      %v2734 = vld [vmem:[%s219 + $0x149] sm:$0xff]
      %v2735 = vld [vmem:[%s219 + $0x151] sm:$0xff]
      %v2736 = vld [vmem:[%s219 + $0x159] sm:$0xff]
      %v2737 = vld [vmem:[%s219 + $0x161] sm:$0xff]
      %v2738 = vld [vmem:[%s219 + $0x169] sm:$0xff]
      %v2739 = vld [vmem:[%s219 + $0x171] sm:$0xff]
      %v2740 = vld [vmem:[%s219 + $0x179] sm:$0xff]
      %v2741 = vld [vmem:[%s219 + $0x181] sm:$0xff]
      %v2742 = vld [vmem:[%s219 + $0x189] sm:$0xff]
      %v2743 = vld [vmem:[%s219 + $0x191] sm:$0xff]
      %v2744 = vld [vmem:[%s219 + $0x199] sm:$0xff]
      %v2745 = vld [vmem:[%s219 + $0x1a1] sm:$0xff]
      %v2746 = vld [vmem:[%s219 + $0x1a9] sm:$0xff]
      %v2747 = vld [vmem:[%s219 + $0x1b1] sm:$0xff]
      %v2748 = vld [vmem:[%s219 + $0x1b9] sm:$0xff]
      %v2749 = vld [vmem:[%s219 + $0x1c1] sm:$0xff]
      %v2750 = vld [vmem:[%s219 + $0x1c9] sm:$0xff]
      %v2751 = vld [vmem:[%s219 + $0x1d1] sm:$0xff]
      %v2752 = vld [vmem:[%s219 + $0x1d9] sm:$0xff]
      %v2753 = vld [vmem:[%s219 + $0x1e1] sm:$0xff]
      %v2754 = vld [vmem:[%s219 + $0x1e9] sm:$0xff]
      %v2755 = vld [vmem:[%s219 + $0x1f1] sm:$0xff]
      %v2756 = vld [vmem:[%s219 + $0x1f9] sm:$0xff]
      %v2757 = vld [vmem:[%s219 + $0x201] sm:$0xff]
      %v2758 = vld [vmem:[%s219 + $0x209] sm:$0xff]
      %v2759 = vld [vmem:[%s219 + $0x211] sm:$0xff]
      %v2760 = vld [vmem:[%s219 + $0x219] sm:$0xff]
      %v2761 = vld [vmem:[%s219 + $0x221] sm:$0xff]
      %v2762 = vld [vmem:[%s219 + $0x229] sm:$0xff]
      %v2763 = vld [vmem:[%s219 + $0x231] sm:$0xff]
      %v2764 = vld [vmem:[%s219 + $0x239] sm:$0xff]
      %v2765 = vld [vmem:[%s219 + $0x241] sm:$0xff]
      %v2766 = vld [vmem:[%s219 + $0x249] sm:$0xff]
      %v2767 = vld [vmem:[%s219 + $0x251] sm:$0xff]
      %v2768 = vld [vmem:[%s219 + $0x259] sm:$0xff]
      %v2769 = vld [vmem:[%s219 + $0x261] sm:$0xff]
      %v2770 = vld [vmem:[%s219 + $0x269] sm:$0xff]
      %v2771 = vld [vmem:[%s219 + $0x271] sm:$0xff]
      %v2772 = vld [vmem:[%s219 + $0x279] sm:$0xff]
      %v2773 = vld [vmem:[%s219 + $0x281] sm:$0xff]
      %v2774 = vld [vmem:[%s219 + $0x289] sm:$0xff]
      %v2775 = vld [vmem:[%s219 + $0x291] sm:$0xff]
      %v2776 = vld [vmem:[%s219 + $0x299] sm:$0xff]
      %v2777 = vld [vmem:[%s219 + $0x2a1] sm:$0xff]
      %v2778 = vld [vmem:[%s219 + $0x2a9] sm:$0xff]
      %v2779 = vld [vmem:[%s219 + $0x2b1] sm:$0xff]
      %v2780 = vld [vmem:[%s219 + $0x2b9] sm:$0xff]
      %v2781 = vld [vmem:[%s219 + $0x2c1] sm:$0xff]
      %v2782 = vld [vmem:[%s219 + $0x2c9] sm:$0xff]
      %v2783 = vld [vmem:[%s219 + $0x2d1] sm:$0xff]
      %v2784 = vld [vmem:[%s219 + $0x2d9] sm:$0xff]
      %v2785 = vld [vmem:[%s219 + $0x2e1] sm:$0xff]
      %v2786 = vld [vmem:[%s219 + $0x2e9] sm:$0xff]
      %v2787 = vld [vmem:[%s219 + $0x2f1] sm:$0xff]
      %v2788 = vld [vmem:[%s219 + $0x2f9] sm:$0xff]
      %v2789 = vld [vmem:[%s219 + $0x301] sm:$0xff]
      %v2790 = vld [vmem:[%s219 + $0x309] sm:$0xff]
      %v2791 = vld [vmem:[%s219 + $0x311] sm:$0xff]
      %v2792 = vld [vmem:[%s219 + $0x319] sm:$0xff]
      %v2793 = vld [vmem:[%s219 + $0x321] sm:$0xff]
      %v2794 = vld [vmem:[%s219 + $0x329] sm:$0xff]
      %v2795 = vld [vmem:[%s219 + $0x331] sm:$0xff]
      %v2796 = vld [vmem:[%s219 + $0x339] sm:$0xff]
      %v2797 = vld [vmem:[%s219 + $0x341] sm:$0xff]
      %v2798 = vld [vmem:[%s219 + $0x349] sm:$0xff]
      %v2799 = vld [vmem:[%s219 + $0x351] sm:$0xff]
      %v2800 = vld [vmem:[%s219 + $0x359] sm:$0xff]
      %v2801 = vld [vmem:[%s219 + $0x361] sm:$0xf]
      %v2802 = vld [vmem:[%s1 + $0x3] sm:$0x1]
      %2804 = vset.pattern.permute.xlu0 0
      %2805 = vperm.xlu0 %2804, %v2700
      %v2806 = vpop.permute.xlu0 %2805
      %2809 = vset.pattern.permute.xlu0 0
      %2810 = vperm.xlu0 %2809, %v2701
      %v2811 = vpop.permute.xlu0 %2810
      %2814 = vset.pattern.permute.xlu0 0
      %2815 = vperm.xlu0 %2814, %v2702
      %v2816 = vpop.permute.xlu0 %2815
      %2819 = vset.pattern.permute.xlu0 0
      %2820 = vperm.xlu0 %2819, %v2703
      %v2821 = vpop.permute.xlu0 %2820
      %2824 = vset.pattern.permute.xlu0 0
      %2825 = vperm.xlu0 %2824, %v2704
      %v2826 = vpop.permute.xlu0 %2825
      %2829 = vset.pattern.permute.xlu0 0
      %2830 = vperm.xlu0 %2829, %v2705
      %v2831 = vpop.permute.xlu0 %2830
      %2834 = vset.pattern.permute.xlu0 0
      %2835 = vperm.xlu0 %2834, %v2706
      %v2836 = vpop.permute.xlu0 %2835
      %2839 = vset.pattern.permute.xlu0 0
      %2840 = vperm.xlu0 %2839, %v2707
      %v2841 = vpop.permute.xlu0 %2840
      %2844 = vset.pattern.permute.xlu0 0
      %2845 = vperm.xlu0 %2844, %v2708
      %v2846 = vpop.permute.xlu0 %2845
      %2849 = vset.pattern.permute.xlu0 0
      %2850 = vperm.xlu0 %2849, %v2709
      %v2851 = vpop.permute.xlu0 %2850
      %2854 = vset.pattern.permute.xlu0 0
      %2855 = vperm.xlu0 %2854, %v2710
      %v2856 = vpop.permute.xlu0 %2855
      %2859 = vset.pattern.permute.xlu0 0
      %2860 = vperm.xlu0 %2859, %v2711
      %v2861 = vpop.permute.xlu0 %2860
      %2864 = vset.pattern.permute.xlu0 0
      %2865 = vperm.xlu0 %2864, %v2712
      %v2866 = vpop.permute.xlu0 %2865
      %2869 = vset.pattern.permute.xlu0 0
      %2870 = vperm.xlu0 %2869, %v2713
      %v2871 = vpop.permute.xlu0 %2870
      %2874 = vset.pattern.permute.xlu0 0
      %2875 = vperm.xlu0 %2874, %v2714
      %v2876 = vpop.permute.xlu0 %2875
      %2879 = vset.pattern.permute.xlu0 0
      %2880 = vperm.xlu0 %2879, %v2715
      %v2881 = vpop.permute.xlu0 %2880
      %2884 = vset.pattern.permute.xlu0 0
      %2885 = vperm.xlu0 %2884, %v2716
      %v2886 = vpop.permute.xlu0 %2885
      %2889 = vset.pattern.permute.xlu0 0
      %2890 = vperm.xlu0 %2889, %v2717
      %v2891 = vpop.permute.xlu0 %2890
      %2894 = vset.pattern.permute.xlu0 0
      %2895 = vperm.xlu0 %2894, %v2718
      %v2896 = vpop.permute.xlu0 %2895
      %2899 = vset.pattern.permute.xlu0 0
      %2900 = vperm.xlu0 %2899, %v2719
      %v2901 = vpop.permute.xlu0 %2900
      %2904 = vset.pattern.permute.xlu0 0
      %2905 = vperm.xlu0 %2904, %v2720
      %v2906 = vpop.permute.xlu0 %2905
      %2909 = vset.pattern.permute.xlu0 0
      %2910 = vperm.xlu0 %2909, %v2721
      %v2911 = vpop.permute.xlu0 %2910
      %2914 = vset.pattern.permute.xlu0 0
      %2915 = vperm.xlu0 %2914, %v2722
      %v2916 = vpop.permute.xlu0 %2915
      %2919 = vset.pattern.permute.xlu0 0
      %2920 = vperm.xlu0 %2919, %v2723
      %v2921 = vpop.permute.xlu0 %2920
      %2924 = vset.pattern.permute.xlu0 0
      %2925 = vperm.xlu0 %2924, %v2724
      %v2926 = vpop.permute.xlu0 %2925
      %2929 = vset.pattern.permute.xlu0 0
      %2930 = vperm.xlu0 %2929, %v2725
      %v2931 = vpop.permute.xlu0 %2930
      %2934 = vset.pattern.permute.xlu0 0
      %2935 = vperm.xlu0 %2934, %v2726
      %v2936 = vpop.permute.xlu0 %2935
      %2939 = vset.pattern.permute.xlu0 0
      %2940 = vperm.xlu0 %2939, %v2727
      %v2941 = vpop.permute.xlu0 %2940
      %2944 = vset.pattern.permute.xlu0 0
      %2945 = vperm.xlu0 %2944, %v2728
      %v2946 = vpop.permute.xlu0 %2945
      %2949 = vset.pattern.permute.xlu0 0
      %2950 = vperm.xlu0 %2949, %v2729
      %v2951 = vpop.permute.xlu0 %2950
      %2954 = vset.pattern.permute.xlu0 0
      %2955 = vperm.xlu0 %2954, %v2730
      %v2956 = vpop.permute.xlu0 %2955
      %2959 = vset.pattern.permute.xlu0 0
      %2960 = vperm.xlu0 %2959, %v2731
      %v2961 = vpop.permute.xlu0 %2960
      %2964 = vset.pattern.permute.xlu0 0
      %2965 = vperm.xlu0 %2964, %v2732
      %v2966 = vpop.permute.xlu0 %2965
      %2969 = vset.pattern.permute.xlu0 0
      %2970 = vperm.xlu0 %2969, %v2733
      %v2971 = vpop.permute.xlu0 %2970
      %2974 = vset.pattern.permute.xlu0 0
      %2975 = vperm.xlu0 %2974, %v2734
      %v2976 = vpop.permute.xlu0 %2975
      %2979 = vset.pattern.permute.xlu0 0
      %2980 = vperm.xlu0 %2979, %v2735
      %v2981 = vpop.permute.xlu0 %2980
      %2984 = vset.pattern.permute.xlu0 0
      %2985 = vperm.xlu0 %2984, %v2736
      %v2986 = vpop.permute.xlu0 %2985
      %2989 = vset.pattern.permute.xlu0 0
      %2990 = vperm.xlu0 %2989, %v2737
      %v2991 = vpop.permute.xlu0 %2990
      %2994 = vset.pattern.permute.xlu0 0
      %2995 = vperm.xlu0 %2994, %v2738
      %v2996 = vpop.permute.xlu0 %2995
      %2999 = vset.pattern.permute.xlu0 0
      %3000 = vperm.xlu0 %2999, %v2739
      %v3001 = vpop.permute.xlu0 %3000
      %3004 = vset.pattern.permute.xlu0 0
      %3005 = vperm.xlu0 %3004, %v2740
      %v3006 = vpop.permute.xlu0 %3005
      %3009 = vset.pattern.permute.xlu0 0
      %3010 = vperm.xlu0 %3009, %v2741
      %v3011 = vpop.permute.xlu0 %3010
      %3014 = vset.pattern.permute.xlu0 0
      %3015 = vperm.xlu0 %3014, %v2742
      %v3016 = vpop.permute.xlu0 %3015
      %3019 = vset.pattern.permute.xlu0 0
      %3020 = vperm.xlu0 %3019, %v2743
      %v3021 = vpop.permute.xlu0 %3020
      %3024 = vset.pattern.permute.xlu0 0
      %3025 = vperm.xlu0 %3024, %v2744
      %v3026 = vpop.permute.xlu0 %3025
      %3029 = vset.pattern.permute.xlu0 0
      %3030 = vperm.xlu0 %3029, %v2745
      %v3031 = vpop.permute.xlu0 %3030
      %3034 = vset.pattern.permute.xlu0 0
      %3035 = vperm.xlu0 %3034, %v2746
      %v3036 = vpop.permute.xlu0 %3035
      %3039 = vset.pattern.permute.xlu0 0
      %3040 = vperm.xlu0 %3039, %v2747
      %v3041 = vpop.permute.xlu0 %3040
      %3044 = vset.pattern.permute.xlu0 0
      %3045 = vperm.xlu0 %3044, %v2748
      %v3046 = vpop.permute.xlu0 %3045
      %3049 = vset.pattern.permute.xlu0 0
      %3050 = vperm.xlu0 %3049, %v2749
      %v3051 = vpop.permute.xlu0 %3050
      %3054 = vset.pattern.permute.xlu0 0
      %3055 = vperm.xlu0 %3054, %v2750
      %v3056 = vpop.permute.xlu0 %3055
      %3059 = vset.pattern.permute.xlu0 0
      %3060 = vperm.xlu0 %3059, %v2751
      %v3061 = vpop.permute.xlu0 %3060
      %3064 = vset.pattern.permute.xlu0 0
      %3065 = vperm.xlu0 %3064, %v2752
      %v3066 = vpop.permute.xlu0 %3065
      %3069 = vset.pattern.permute.xlu0 0
      %3070 = vperm.xlu0 %3069, %v2753
      %v3071 = vpop.permute.xlu0 %3070
      %3074 = vset.pattern.permute.xlu0 0
      %3075 = vperm.xlu0 %3074, %v2754
      %v3076 = vpop.permute.xlu0 %3075
      %3079 = vset.pattern.permute.xlu0 0
      %3080 = vperm.xlu0 %3079, %v2755
      %v3081 = vpop.permute.xlu0 %3080
      %3084 = vset.pattern.permute.xlu0 0
      %3085 = vperm.xlu0 %3084, %v2756
      %v3086 = vpop.permute.xlu0 %3085
      %3089 = vset.pattern.permute.xlu0 0
      %3090 = vperm.xlu0 %3089, %v2757
      %v3091 = vpop.permute.xlu0 %3090
      %3094 = vset.pattern.permute.xlu0 0
      %3095 = vperm.xlu0 %3094, %v2758
      %v3096 = vpop.permute.xlu0 %3095
      %3099 = vset.pattern.permute.xlu0 0
      %3100 = vperm.xlu0 %3099, %v2759
      %v3101 = vpop.permute.xlu0 %3100
      %3104 = vset.pattern.permute.xlu0 0
      %3105 = vperm.xlu0 %3104, %v2760
      %v3106 = vpop.permute.xlu0 %3105
      %3109 = vset.pattern.permute.xlu0 0
      %3110 = vperm.xlu0 %3109, %v2761
      %v3111 = vpop.permute.xlu0 %3110
      %3114 = vset.pattern.permute.xlu0 0
      %3115 = vperm.xlu0 %3114, %v2762
      %v3116 = vpop.permute.xlu0 %3115
      %3119 = vset.pattern.permute.xlu0 0
      %3120 = vperm.xlu0 %3119, %v2763
      %v3121 = vpop.permute.xlu0 %3120
      %3124 = vset.pattern.permute.xlu0 0
      %3125 = vperm.xlu0 %3124, %v2764
      %v3126 = vpop.permute.xlu0 %3125
      %3129 = vset.pattern.permute.xlu0 0
      %3130 = vperm.xlu0 %3129, %v2765
      %v3131 = vpop.permute.xlu0 %3130
      %3134 = vset.pattern.permute.xlu0 0
      %3135 = vperm.xlu0 %3134, %v2766
      %v3136 = vpop.permute.xlu0 %3135
      %3139 = vset.pattern.permute.xlu0 0
      %3140 = vperm.xlu0 %3139, %v2767
      %v3141 = vpop.permute.xlu0 %3140
      %3144 = vset.pattern.permute.xlu0 0
      %3145 = vperm.xlu0 %3144, %v2768
      %v3146 = vpop.permute.xlu0 %3145
      %3149 = vset.pattern.permute.xlu0 0
      %3150 = vperm.xlu0 %3149, %v2769
      %v3151 = vpop.permute.xlu0 %3150
      %3154 = vset.pattern.permute.xlu0 0
      %3155 = vperm.xlu0 %3154, %v2770
      %v3156 = vpop.permute.xlu0 %3155
      %3159 = vset.pattern.permute.xlu0 0
      %3160 = vperm.xlu0 %3159, %v2771
      %v3161 = vpop.permute.xlu0 %3160
      %3164 = vset.pattern.permute.xlu0 0
      %3165 = vperm.xlu0 %3164, %v2772
      %v3166 = vpop.permute.xlu0 %3165
      %3169 = vset.pattern.permute.xlu0 0
      %3170 = vperm.xlu0 %3169, %v2773
      %v3171 = vpop.permute.xlu0 %3170
      %3174 = vset.pattern.permute.xlu0 0
      %3175 = vperm.xlu0 %3174, %v2774
      %v3176 = vpop.permute.xlu0 %3175
      %3179 = vset.pattern.permute.xlu0 0
      %3180 = vperm.xlu0 %3179, %v2775
      %v3181 = vpop.permute.xlu0 %3180
      %3184 = vset.pattern.permute.xlu0 0
      %3185 = vperm.xlu0 %3184, %v2776
      %v3186 = vpop.permute.xlu0 %3185
      %3189 = vset.pattern.permute.xlu0 0
      %3190 = vperm.xlu0 %3189, %v2777
      %v3191 = vpop.permute.xlu0 %3190
      %3194 = vset.pattern.permute.xlu0 0
      %3195 = vperm.xlu0 %3194, %v2778
      %v3196 = vpop.permute.xlu0 %3195
      %3199 = vset.pattern.permute.xlu0 0
      %3200 = vperm.xlu0 %3199, %v2779
      %v3201 = vpop.permute.xlu0 %3200
      %3204 = vset.pattern.permute.xlu0 0
      %3205 = vperm.xlu0 %3204, %v2780
      %v3206 = vpop.permute.xlu0 %3205
      %3209 = vset.pattern.permute.xlu0 0
      %3210 = vperm.xlu0 %3209, %v2781
      %v3211 = vpop.permute.xlu0 %3210
      %3214 = vset.pattern.permute.xlu0 0
      %3215 = vperm.xlu0 %3214, %v2782
      %v3216 = vpop.permute.xlu0 %3215
      %3219 = vset.pattern.permute.xlu0 0
      %3220 = vperm.xlu0 %3219, %v2783
      %v3221 = vpop.permute.xlu0 %3220
      %3224 = vset.pattern.permute.xlu0 0
      %3225 = vperm.xlu0 %3224, %v2784
      %v3226 = vpop.permute.xlu0 %3225
      %3229 = vset.pattern.permute.xlu0 0
      %3230 = vperm.xlu0 %3229, %v2785
      %v3231 = vpop.permute.xlu0 %3230
      %3234 = vset.pattern.permute.xlu0 0
      %3235 = vperm.xlu0 %3234, %v2786
      %v3236 = vpop.permute.xlu0 %3235
      %3239 = vset.pattern.permute.xlu0 0
      %3240 = vperm.xlu0 %3239, %v2787
      %v3241 = vpop.permute.xlu0 %3240
      %3244 = vset.pattern.permute.xlu0 0
      %3245 = vperm.xlu0 %3244, %v2788
      %v3246 = vpop.permute.xlu0 %3245
      %3249 = vset.pattern.permute.xlu0 0
      %3250 = vperm.xlu0 %3249, %v2789
      %v3251 = vpop.permute.xlu0 %3250
      %3254 = vset.pattern.permute.xlu0 0
      %3255 = vperm.xlu0 %3254, %v2790
      %v3256 = vpop.permute.xlu0 %3255
      %3259 = vset.pattern.permute.xlu0 0
      %3260 = vperm.xlu0 %3259, %v2791
      %v3261 = vpop.permute.xlu0 %3260
      %3264 = vset.pattern.permute.xlu0 0
      %3265 = vperm.xlu0 %3264, %v2792
      %v3266 = vpop.permute.xlu0 %3265
      %3269 = vset.pattern.permute.xlu0 0
      %3270 = vperm.xlu0 %3269, %v2793
      %v3271 = vpop.permute.xlu0 %3270
      %3274 = vset.pattern.permute.xlu0 0
      %3275 = vperm.xlu0 %3274, %v2794
      %v3276 = vpop.permute.xlu0 %3275
      %3279 = vset.pattern.permute.xlu0 0
      %3280 = vperm.xlu0 %3279, %v2795
      %v3281 = vpop.permute.xlu0 %3280
      %3284 = vset.pattern.permute.xlu0 0
      %3285 = vperm.xlu0 %3284, %v2796
      %v3286 = vpop.permute.xlu0 %3285
      %3289 = vset.pattern.permute.xlu0 0
      %3290 = vperm.xlu0 %3289, %v2797
      %v3291 = vpop.permute.xlu0 %3290
      %3294 = vset.pattern.permute.xlu0 0
      %3295 = vperm.xlu0 %3294, %v2798
      %v3296 = vpop.permute.xlu0 %3295
      %3299 = vset.pattern.permute.xlu0 0
      %3300 = vperm.xlu0 %3299, %v2799
      %v3301 = vpop.permute.xlu0 %3300
      %3304 = vset.pattern.permute.xlu0 0
      %3305 = vperm.xlu0 %3304, %v2800
      %v3306 = vpop.permute.xlu0 %3305
      %3309 = vset.pattern.permute.xlu0 0
      %3310 = vperm.xlu0 %3309, %v2801
      %v3311 = vpop.permute.xlu0 %3310
      %v3313 = vperm.slane %v2802, 0
      %v3314 = vmul.f32 %v2806, %v3313
      %v3315 = vmul.f32 %v2811, %v3313
      %v3316 = vmul.f32 %v2816, %v3313
      %v3317 = vmul.f32 %v2821, %v3313
      %v3318 = vmul.f32 %v2826, %v3313
      %v3319 = vmul.f32 %v2831, %v3313
      %v3320 = vmul.f32 %v2836, %v3313
      %v3321 = vmul.f32 %v2841, %v3313
      %v3322 = vmul.f32 %v2846, %v3313
      %v3323 = vmul.f32 %v2851, %v3313
      %v3324 = vmul.f32 %v2856, %v3313
      %v3325 = vmul.f32 %v2861, %v3313
      %v3326 = vmul.f32 %v2866, %v3313
      %v3327 = vmul.f32 %v2871, %v3313
      %v3328 = vmul.f32 %v2876, %v3313
      %v3329 = vmul.f32 %v2881, %v3313
      %v3330 = vmul.f32 %v2886, %v3313
      %v3331 = vmul.f32 %v2891, %v3313
      %v3332 = vmul.f32 %v2896, %v3313
      %v3333 = vmul.f32 %v2901, %v3313
      %v3334 = vmul.f32 %v2906, %v3313
      %v3335 = vmul.f32 %v2911, %v3313
      %v3336 = vmul.f32 %v2916, %v3313
      %v3337 = vmul.f32 %v2921, %v3313
      %v3338 = vmul.f32 %v2926, %v3313
      %v3339 = vmul.f32 %v2931, %v3313
      %v3340 = vmul.f32 %v2936, %v3313
      %v3341 = vmul.f32 %v2941, %v3313
      %v3342 = vmul.f32 %v2946, %v3313
      %v3343 = vmul.f32 %v2951, %v3313
      %v3344 = vmul.f32 %v2956, %v3313
      %v3345 = vmul.f32 %v2961, %v3313
      %v3346 = vmul.f32 %v2966, %v3313
      %v3347 = vmul.f32 %v2971, %v3313
      %v3348 = vmul.f32 %v2976, %v3313
      %v3349 = vmul.f32 %v2981, %v3313
      %v3350 = vmul.f32 %v2986, %v3313
      %v3351 = vmul.f32 %v2991, %v3313
      %v3352 = vmul.f32 %v2996, %v3313
      %v3353 = vmul.f32 %v3001, %v3313
      %v3354 = vmul.f32 %v3006, %v3313
      %v3355 = vmul.f32 %v3011, %v3313
      %v3356 = vmul.f32 %v3016, %v3313
      %v3357 = vmul.f32 %v3021, %v3313
      %v3358 = vmul.f32 %v3026, %v3313
      %v3359 = vmul.f32 %v3031, %v3313
      %v3360 = vmul.f32 %v3036, %v3313
      %v3361 = vmul.f32 %v3041, %v3313
      %v3362 = vmul.f32 %v3046, %v3313
      %v3363 = vmul.f32 %v3051, %v3313
      %v3364 = vmul.f32 %v3056, %v3313
      %v3365 = vmul.f32 %v3061, %v3313
      %v3366 = vmul.f32 %v3066, %v3313
      %v3367 = vmul.f32 %v3071, %v3313
      %v3368 = vmul.f32 %v3076, %v3313
      %v3369 = vmul.f32 %v3081, %v3313
      %v3370 = vmul.f32 %v3086, %v3313
      %v3371 = vmul.f32 %v3091, %v3313
      %v3372 = vmul.f32 %v3096, %v3313
      %v3373 = vmul.f32 %v3101, %v3313
      %v3374 = vmul.f32 %v3106, %v3313
      %v3375 = vmul.f32 %v3111, %v3313
      %v3376 = vmul.f32 %v3116, %v3313
      %v3377 = vmul.f32 %v3121, %v3313
      %v3378 = vmul.f32 %v3126, %v3313
      %v3379 = vmul.f32 %v3131, %v3313
      %v3380 = vmul.f32 %v3136, %v3313
      %v3381 = vmul.f32 %v3141, %v3313
      %v3382 = vmul.f32 %v3146, %v3313
      %v3383 = vmul.f32 %v3151, %v3313
      %v3384 = vmul.f32 %v3156, %v3313
      %v3385 = vmul.f32 %v3161, %v3313
      %v3386 = vmul.f32 %v3166, %v3313
      %v3387 = vmul.f32 %v3171, %v3313
      %v3388 = vmul.f32 %v3176, %v3313
      %v3389 = vmul.f32 %v3181, %v3313
      %v3390 = vmul.f32 %v3186, %v3313
      %v3391 = vmul.f32 %v3191, %v3313
      %v3392 = vmul.f32 %v3196, %v3313
      %v3393 = vmul.f32 %v3201, %v3313
      %v3394 = vmul.f32 %v3206, %v3313
      %v3395 = vmul.f32 %v3211, %v3313
      %v3396 = vmul.f32 %v3216, %v3313
      %v3397 = vmul.f32 %v3221, %v3313
      %v3398 = vmul.f32 %v3226, %v3313
      %v3399 = vmul.f32 %v3231, %v3313
      %v3400 = vmul.f32 %v3236, %v3313
      %v3401 = vmul.f32 %v3241, %v3313
      %v3402 = vmul.f32 %v3246, %v3313
      %v3403 = vmul.f32 %v3251, %v3313
      %v3404 = vmul.f32 %v3256, %v3313
      %v3405 = vmul.f32 %v3261, %v3313
      %v3406 = vmul.f32 %v3266, %v3313
      %v3407 = vmul.f32 %v3271, %v3313
      %v3408 = vmul.f32 %v3276, %v3313
      %v3409 = vmul.f32 %v3281, %v3313
      %v3410 = vmul.f32 %v3286, %v3313
      %v3411 = vmul.f32 %v3291, %v3313
      %v3412 = vmul.f32 %v3296, %v3313
      %v3413 = vmul.f32 %v3301, %v3313
      %v3414 = vmul.f32 %v3306, %v3313
      %v3415 = vmul.f32 %v3311, %v3313
      %v3416 = vadd.f32 %v2598, %v3314
      %v3417 = vadd.f32 %v2599, %v3315
      %v3418 = vadd.f32 %v2600, %v3316
      %v3419 = vadd.f32 %v2601, %v3317
      %v3420 = vadd.f32 %v2602, %v3318
      %v3421 = vadd.f32 %v2603, %v3319
      %v3422 = vadd.f32 %v2604, %v3320
      %v3423 = vadd.f32 %v2605, %v3321
      %v3424 = vadd.f32 %v2606, %v3322
      %v3425 = vadd.f32 %v2607, %v3323
      %v3426 = vadd.f32 %v2608, %v3324
      %v3427 = vadd.f32 %v2609, %v3325
      %v3428 = vadd.f32 %v2610, %v3326
      %v3429 = vadd.f32 %v2611, %v3327
      %v3430 = vadd.f32 %v2612, %v3328
      %v3431 = vadd.f32 %v2613, %v3329
      %v3432 = vadd.f32 %v2614, %v3330
      %v3433 = vadd.f32 %v2615, %v3331
      %v3434 = vadd.f32 %v2616, %v3332
      %v3435 = vadd.f32 %v2617, %v3333
      %v3436 = vadd.f32 %v2618, %v3334
      %v3437 = vadd.f32 %v2619, %v3335
      %v3438 = vadd.f32 %v2620, %v3336
      %v3439 = vadd.f32 %v2621, %v3337
      %v3440 = vadd.f32 %v2622, %v3338
      %v3441 = vadd.f32 %v2623, %v3339
      %v3442 = vadd.f32 %v2624, %v3340
      %v3443 = vadd.f32 %v2625, %v3341
      %v3444 = vadd.f32 %v2626, %v3342
      %v3445 = vadd.f32 %v2627, %v3343
      %v3446 = vadd.f32 %v2628, %v3344
      %v3447 = vadd.f32 %v2629, %v3345
      %v3448 = vadd.f32 %v2630, %v3346
      %v3449 = vadd.f32 %v2631, %v3347
      %v3450 = vadd.f32 %v2632, %v3348
      %v3451 = vadd.f32 %v2633, %v3349
      %v3452 = vadd.f32 %v2634, %v3350
      %v3453 = vadd.f32 %v2635, %v3351
      %v3454 = vadd.f32 %v2636, %v3352
      %v3455 = vadd.f32 %v2637, %v3353
      %v3456 = vadd.f32 %v2638, %v3354
      %v3457 = vadd.f32 %v2639, %v3355
      %v3458 = vadd.f32 %v2640, %v3356
      %v3459 = vadd.f32 %v2641, %v3357
      %v3460 = vadd.f32 %v2642, %v3358
      %v3461 = vadd.f32 %v2643, %v3359
      %v3462 = vadd.f32 %v2644, %v3360
      %v3463 = vadd.f32 %v2645, %v3361
      %v3464 = vadd.f32 %v2646, %v3362
      %v3465 = vadd.f32 %v2647, %v3363
      %v3466 = vadd.f32 %v2648, %v3364
      %v3467 = vadd.f32 %v2649, %v3365
      %v3468 = vadd.f32 %v2650, %v3366
      %v3469 = vadd.f32 %v2651, %v3367
      %v3470 = vadd.f32 %v2652, %v3368
      %v3471 = vadd.f32 %v2653, %v3369
      %v3472 = vadd.f32 %v2654, %v3370
      %v3473 = vadd.f32 %v2655, %v3371
      %v3474 = vadd.f32 %v2656, %v3372
      %v3475 = vadd.f32 %v2657, %v3373
      %v3476 = vadd.f32 %v2658, %v3374
      %v3477 = vadd.f32 %v2659, %v3375
      %v3478 = vadd.f32 %v2660, %v3376
      %v3479 = vadd.f32 %v2661, %v3377
      %v3480 = vadd.f32 %v2662, %v3378
      %v3481 = vadd.f32 %v2663, %v3379
      %v3482 = vadd.f32 %v2664, %v3380
      %v3483 = vadd.f32 %v2665, %v3381
      %v3484 = vadd.f32 %v2666, %v3382
      %v3485 = vadd.f32 %v2667, %v3383
      %v3486 = vadd.f32 %v2668, %v3384
      %v3487 = vadd.f32 %v2669, %v3385
      %v3488 = vadd.f32 %v2670, %v3386
      %v3489 = vadd.f32 %v2671, %v3387
      %v3490 = vadd.f32 %v2672, %v3388
      %v3491 = vadd.f32 %v2673, %v3389
      %v3492 = vadd.f32 %v2674, %v3390
      %v3493 = vadd.f32 %v2675, %v3391
      %v3494 = vadd.f32 %v2676, %v3392
      %v3495 = vadd.f32 %v2677, %v3393
      %v3496 = vadd.f32 %v2678, %v3394
      %v3497 = vadd.f32 %v2679, %v3395
      %v3498 = vadd.f32 %v2680, %v3396
      %v3499 = vadd.f32 %v2681, %v3397
      %v3500 = vadd.f32 %v2682, %v3398
      %v3501 = vadd.f32 %v2683, %v3399
      %v3502 = vadd.f32 %v2684, %v3400
      %v3503 = vadd.f32 %v2685, %v3401
      %v3504 = vadd.f32 %v2686, %v3402
      %v3505 = vadd.f32 %v2687, %v3403
      %v3506 = vadd.f32 %v2688, %v3404
      %v3507 = vadd.f32 %v2689, %v3405
      %v3508 = vadd.f32 %v2690, %v3406
      %v3509 = vadd.f32 %v2691, %v3407
      %v3510 = vadd.f32 %v2692, %v3408
      %v3511 = vadd.f32 %v2693, %v3409
      %v3512 = vadd.f32 %v2694, %v3410
      %v3513 = vadd.f32 %v2695, %v3411
      %v3514 = vadd.f32 %v2696, %v3412
      %v3515 = vadd.f32 %v2697, %v3413
      %v3516 = vadd.f32 %v2698, %v3414
      %v3517 = vadd.f32 %v2699, %v3415
      %v3518 = vld [vmem:[%s219 + $0x3a] sm:$0xff]
      %v3519 = vld [vmem:[%s219 + $0x42] sm:$0xff]
      %v3520 = vld [vmem:[%s219 + $0x4a] sm:$0xff]
      %v3521 = vld [vmem:[%s219 + $0x52] sm:$0xff]
      %v3522 = vld [vmem:[%s219 + $0x5a] sm:$0xff]
      %v3523 = vld [vmem:[%s219 + $0x62] sm:$0xff]
      %v3524 = vld [vmem:[%s219 + $0x6a] sm:$0xff]
      %v3525 = vld [vmem:[%s219 + $0x72] sm:$0xff]
      %v3526 = vld [vmem:[%s219 + $0x7a] sm:$0xff]
      %v3527 = vld [vmem:[%s219 + $0x82] sm:$0xff]
      %v3528 = vld [vmem:[%s219 + $0x8a] sm:$0xff]
      %v3529 = vld [vmem:[%s219 + $0x92] sm:$0xff]
      %v3530 = vld [vmem:[%s219 + $0x9a] sm:$0xff]
      %v3531 = vld [vmem:[%s219 + $0xa2] sm:$0xff]
      %v3532 = vld [vmem:[%s219 + $0xaa] sm:$0xff]
      %v3533 = vld [vmem:[%s219 + $0xb2] sm:$0xff]
      %v3534 = vld [vmem:[%s219 + $0xba] sm:$0xff]
      %v3535 = vld [vmem:[%s219 + $0xc2] sm:$0xff]
      %v3536 = vld [vmem:[%s219 + $0xca] sm:$0xff]
      %v3537 = vld [vmem:[%s219 + $0xd2] sm:$0xff]
      %v3538 = vld [vmem:[%s219 + $0xda] sm:$0xff]
      %v3539 = vld [vmem:[%s219 + $0xe2] sm:$0xff]
      %v3540 = vld [vmem:[%s219 + $0xea] sm:$0xff]
      %v3541 = vld [vmem:[%s219 + $0xf2] sm:$0xff]
      %v3542 = vld [vmem:[%s219 + $0xfa] sm:$0xff]
      %v3543 = vld [vmem:[%s219 + $0x102] sm:$0xff]
      %v3544 = vld [vmem:[%s219 + $0x10a] sm:$0xff]
      %v3545 = vld [vmem:[%s219 + $0x112] sm:$0xff]
      %v3546 = vld [vmem:[%s219 + $0x11a] sm:$0xff]
      %v3547 = vld [vmem:[%s219 + $0x122] sm:$0xff]
      %v3548 = vld [vmem:[%s219 + $0x12a] sm:$0xff]
      %v3549 = vld [vmem:[%s219 + $0x132] sm:$0xff]
      %v3550 = vld [vmem:[%s219 + $0x13a] sm:$0xff]
      %v3551 = vld [vmem:[%s219 + $0x142] sm:$0xff]
      %v3552 = vld [vmem:[%s219 + $0x14a] sm:$0xff]
      %v3553 = vld [vmem:[%s219 + $0x152] sm:$0xff]
      %v3554 = vld [vmem:[%s219 + $0x15a] sm:$0xff]
      %v3555 = vld [vmem:[%s219 + $0x162] sm:$0xff]
      %v3556 = vld [vmem:[%s219 + $0x16a] sm:$0xff]
      %v3557 = vld [vmem:[%s219 + $0x172] sm:$0xff]
      %v3558 = vld [vmem:[%s219 + $0x17a] sm:$0xff]
      %v3559 = vld [vmem:[%s219 + $0x182] sm:$0xff]
      %v3560 = vld [vmem:[%s219 + $0x18a] sm:$0xff]
      %v3561 = vld [vmem:[%s219 + $0x192] sm:$0xff]
      %v3562 = vld [vmem:[%s219 + $0x19a] sm:$0xff]
      %v3563 = vld [vmem:[%s219 + $0x1a2] sm:$0xff]
      %v3564 = vld [vmem:[%s219 + $0x1aa] sm:$0xff]
      %v3565 = vld [vmem:[%s219 + $0x1b2] sm:$0xff]
      %v3566 = vld [vmem:[%s219 + $0x1ba] sm:$0xff]
      %v3567 = vld [vmem:[%s219 + $0x1c2] sm:$0xff]
      %v3568 = vld [vmem:[%s219 + $0x1ca] sm:$0xff]
      %v3569 = vld [vmem:[%s219 + $0x1d2] sm:$0xff]
      %v3570 = vld [vmem:[%s219 + $0x1da] sm:$0xff]
      %v3571 = vld [vmem:[%s219 + $0x1e2] sm:$0xff]
      %v3572 = vld [vmem:[%s219 + $0x1ea] sm:$0xff]
      %v3573 = vld [vmem:[%s219 + $0x1f2] sm:$0xff]
      %v3574 = vld [vmem:[%s219 + $0x1fa] sm:$0xff]
      %v3575 = vld [vmem:[%s219 + $0x202] sm:$0xff]
      %v3576 = vld [vmem:[%s219 + $0x20a] sm:$0xff]
      %v3577 = vld [vmem:[%s219 + $0x212] sm:$0xff]
      %v3578 = vld [vmem:[%s219 + $0x21a] sm:$0xff]
      %v3579 = vld [vmem:[%s219 + $0x222] sm:$0xff]
      %v3580 = vld [vmem:[%s219 + $0x22a] sm:$0xff]
      %v3581 = vld [vmem:[%s219 + $0x232] sm:$0xff]
      %v3582 = vld [vmem:[%s219 + $0x23a] sm:$0xff]
      %v3583 = vld [vmem:[%s219 + $0x242] sm:$0xff]
      %v3584 = vld [vmem:[%s219 + $0x24a] sm:$0xff]
      %v3585 = vld [vmem:[%s219 + $0x252] sm:$0xff]
      %v3586 = vld [vmem:[%s219 + $0x25a] sm:$0xff]
      %v3587 = vld [vmem:[%s219 + $0x262] sm:$0xff]
      %v3588 = vld [vmem:[%s219 + $0x26a] sm:$0xff]
      %v3589 = vld [vmem:[%s219 + $0x272] sm:$0xff]
      %v3590 = vld [vmem:[%s219 + $0x27a] sm:$0xff]
      %v3591 = vld [vmem:[%s219 + $0x282] sm:$0xff]
      %v3592 = vld [vmem:[%s219 + $0x28a] sm:$0xff]
      %v3593 = vld [vmem:[%s219 + $0x292] sm:$0xff]
      %v3594 = vld [vmem:[%s219 + $0x29a] sm:$0xff]
      %v3595 = vld [vmem:[%s219 + $0x2a2] sm:$0xff]
      %v3596 = vld [vmem:[%s219 + $0x2aa] sm:$0xff]
      %v3597 = vld [vmem:[%s219 + $0x2b2] sm:$0xff]
      %v3598 = vld [vmem:[%s219 + $0x2ba] sm:$0xff]
      %v3599 = vld [vmem:[%s219 + $0x2c2] sm:$0xff]
      %v3600 = vld [vmem:[%s219 + $0x2ca] sm:$0xff]
      %v3601 = vld [vmem:[%s219 + $0x2d2] sm:$0xff]
      %v3602 = vld [vmem:[%s219 + $0x2da] sm:$0xff]
      %v3603 = vld [vmem:[%s219 + $0x2e2] sm:$0xff]
      %v3604 = vld [vmem:[%s219 + $0x2ea] sm:$0xff]
      %v3605 = vld [vmem:[%s219 + $0x2f2] sm:$0xff]
      %v3606 = vld [vmem:[%s219 + $0x2fa] sm:$0xff]
      %v3607 = vld [vmem:[%s219 + $0x302] sm:$0xff]
      %v3608 = vld [vmem:[%s219 + $0x30a] sm:$0xff]
      %v3609 = vld [vmem:[%s219 + $0x312] sm:$0xff]
      %v3610 = vld [vmem:[%s219 + $0x31a] sm:$0xff]
      %v3611 = vld [vmem:[%s219 + $0x322] sm:$0xff]
      %v3612 = vld [vmem:[%s219 + $0x32a] sm:$0xff]
      %v3613 = vld [vmem:[%s219 + $0x332] sm:$0xff]
      %v3614 = vld [vmem:[%s219 + $0x33a] sm:$0xff]
      %v3615 = vld [vmem:[%s219 + $0x342] sm:$0xff]
      %v3616 = vld [vmem:[%s219 + $0x34a] sm:$0xff]
      %v3617 = vld [vmem:[%s219 + $0x352] sm:$0xff]
      %v3618 = vld [vmem:[%s219 + $0x35a] sm:$0xff]
      %v3619 = vld [vmem:[%s219 + $0x362] sm:$0xf]
      %v3620 = vld [vmem:[%s1 + $0x4] sm:$0x1]
      %3622 = vset.pattern.permute.xlu0 0
      %3623 = vperm.xlu0 %3622, %v3518
      %v3624 = vpop.permute.xlu0 %3623
      %3627 = vset.pattern.permute.xlu0 0
      %3628 = vperm.xlu0 %3627, %v3519
      %v3629 = vpop.permute.xlu0 %3628
      %3632 = vset.pattern.permute.xlu0 0
      %3633 = vperm.xlu0 %3632, %v3520
      %v3634 = vpop.permute.xlu0 %3633
      %3637 = vset.pattern.permute.xlu0 0
      %3638 = vperm.xlu0 %3637, %v3521
      %v3639 = vpop.permute.xlu0 %3638
      %3642 = vset.pattern.permute.xlu0 0
      %3643 = vperm.xlu0 %3642, %v3522
      %v3644 = vpop.permute.xlu0 %3643
      %3647 = vset.pattern.permute.xlu0 0
      %3648 = vperm.xlu0 %3647, %v3523
      %v3649 = vpop.permute.xlu0 %3648
      %3652 = vset.pattern.permute.xlu0 0
      %3653 = vperm.xlu0 %3652, %v3524
      %v3654 = vpop.permute.xlu0 %3653
      %3657 = vset.pattern.permute.xlu0 0
      %3658 = vperm.xlu0 %3657, %v3525
      %v3659 = vpop.permute.xlu0 %3658
      %3662 = vset.pattern.permute.xlu0 0
      %3663 = vperm.xlu0 %3662, %v3526
      %v3664 = vpop.permute.xlu0 %3663
      %3667 = vset.pattern.permute.xlu0 0
      %3668 = vperm.xlu0 %3667, %v3527
      %v3669 = vpop.permute.xlu0 %3668
      %3672 = vset.pattern.permute.xlu0 0
      %3673 = vperm.xlu0 %3672, %v3528
      %v3674 = vpop.permute.xlu0 %3673
      %3677 = vset.pattern.permute.xlu0 0
      %3678 = vperm.xlu0 %3677, %v3529
      %v3679 = vpop.permute.xlu0 %3678
      %3682 = vset.pattern.permute.xlu0 0
      %3683 = vperm.xlu0 %3682, %v3530
      %v3684 = vpop.permute.xlu0 %3683
      %3687 = vset.pattern.permute.xlu0 0
      %3688 = vperm.xlu0 %3687, %v3531
      %v3689 = vpop.permute.xlu0 %3688
      %3692 = vset.pattern.permute.xlu0 0
      %3693 = vperm.xlu0 %3692, %v3532
      %v3694 = vpop.permute.xlu0 %3693
      %3697 = vset.pattern.permute.xlu0 0
      %3698 = vperm.xlu0 %3697, %v3533
      %v3699 = vpop.permute.xlu0 %3698
      %3702 = vset.pattern.permute.xlu0 0
      %3703 = vperm.xlu0 %3702, %v3534
      %v3704 = vpop.permute.xlu0 %3703
      %3707 = vset.pattern.permute.xlu0 0
      %3708 = vperm.xlu0 %3707, %v3535
      %v3709 = vpop.permute.xlu0 %3708
      %3712 = vset.pattern.permute.xlu0 0
      %3713 = vperm.xlu0 %3712, %v3536
      %v3714 = vpop.permute.xlu0 %3713
      %3717 = vset.pattern.permute.xlu0 0
      %3718 = vperm.xlu0 %3717, %v3537
      %v3719 = vpop.permute.xlu0 %3718
      %3722 = vset.pattern.permute.xlu0 0
      %3723 = vperm.xlu0 %3722, %v3538
      %v3724 = vpop.permute.xlu0 %3723
      %3727 = vset.pattern.permute.xlu0 0
      %3728 = vperm.xlu0 %3727, %v3539
      %v3729 = vpop.permute.xlu0 %3728
      %3732 = vset.pattern.permute.xlu0 0
      %3733 = vperm.xlu0 %3732, %v3540
      %v3734 = vpop.permute.xlu0 %3733
      %3737 = vset.pattern.permute.xlu0 0
      %3738 = vperm.xlu0 %3737, %v3541
      %v3739 = vpop.permute.xlu0 %3738
      %3742 = vset.pattern.permute.xlu0 0
      %3743 = vperm.xlu0 %3742, %v3542
      %v3744 = vpop.permute.xlu0 %3743
      %3747 = vset.pattern.permute.xlu0 0
      %3748 = vperm.xlu0 %3747, %v3543
      %v3749 = vpop.permute.xlu0 %3748
      %3752 = vset.pattern.permute.xlu0 0
      %3753 = vperm.xlu0 %3752, %v3544
      %v3754 = vpop.permute.xlu0 %3753
      %3757 = vset.pattern.permute.xlu0 0
      %3758 = vperm.xlu0 %3757, %v3545
      %v3759 = vpop.permute.xlu0 %3758
      %3762 = vset.pattern.permute.xlu0 0
      %3763 = vperm.xlu0 %3762, %v3546
      %v3764 = vpop.permute.xlu0 %3763
      %3767 = vset.pattern.permute.xlu0 0
      %3768 = vperm.xlu0 %3767, %v3547
      %v3769 = vpop.permute.xlu0 %3768
      %3772 = vset.pattern.permute.xlu0 0
      %3773 = vperm.xlu0 %3772, %v3548
      %v3774 = vpop.permute.xlu0 %3773
      %3777 = vset.pattern.permute.xlu0 0
      %3778 = vperm.xlu0 %3777, %v3549
      %v3779 = vpop.permute.xlu0 %3778
      %3782 = vset.pattern.permute.xlu0 0
      %3783 = vperm.xlu0 %3782, %v3550
      %v3784 = vpop.permute.xlu0 %3783
      %3787 = vset.pattern.permute.xlu0 0
      %3788 = vperm.xlu0 %3787, %v3551
      %v3789 = vpop.permute.xlu0 %3788
      %3792 = vset.pattern.permute.xlu0 0
      %3793 = vperm.xlu0 %3792, %v3552
      %v3794 = vpop.permute.xlu0 %3793
      %3797 = vset.pattern.permute.xlu0 0
      %3798 = vperm.xlu0 %3797, %v3553
      %v3799 = vpop.permute.xlu0 %3798
      %3802 = vset.pattern.permute.xlu0 0
      %3803 = vperm.xlu0 %3802, %v3554
      %v3804 = vpop.permute.xlu0 %3803
      %3807 = vset.pattern.permute.xlu0 0
      %3808 = vperm.xlu0 %3807, %v3555
      %v3809 = vpop.permute.xlu0 %3808
      %3812 = vset.pattern.permute.xlu0 0
      %3813 = vperm.xlu0 %3812, %v3556
      %v3814 = vpop.permute.xlu0 %3813
      %3817 = vset.pattern.permute.xlu0 0
      %3818 = vperm.xlu0 %3817, %v3557
      %v3819 = vpop.permute.xlu0 %3818
      %3822 = vset.pattern.permute.xlu0 0
      %3823 = vperm.xlu0 %3822, %v3558
      %v3824 = vpop.permute.xlu0 %3823
      %3827 = vset.pattern.permute.xlu0 0
      %3828 = vperm.xlu0 %3827, %v3559
      %v3829 = vpop.permute.xlu0 %3828
      %3832 = vset.pattern.permute.xlu0 0
      %3833 = vperm.xlu0 %3832, %v3560
      %v3834 = vpop.permute.xlu0 %3833
      %3837 = vset.pattern.permute.xlu0 0
      %3838 = vperm.xlu0 %3837, %v3561
      %v3839 = vpop.permute.xlu0 %3838
      %3842 = vset.pattern.permute.xlu0 0
      %3843 = vperm.xlu0 %3842, %v3562
      %v3844 = vpop.permute.xlu0 %3843
      %3847 = vset.pattern.permute.xlu0 0
      %3848 = vperm.xlu0 %3847, %v3563
      %v3849 = vpop.permute.xlu0 %3848
      %3852 = vset.pattern.permute.xlu0 0
      %3853 = vperm.xlu0 %3852, %v3564
      %v3854 = vpop.permute.xlu0 %3853
      %3857 = vset.pattern.permute.xlu0 0
      %3858 = vperm.xlu0 %3857, %v3565
      %v3859 = vpop.permute.xlu0 %3858
      %3862 = vset.pattern.permute.xlu0 0
      %3863 = vperm.xlu0 %3862, %v3566
      %v3864 = vpop.permute.xlu0 %3863
      %3867 = vset.pattern.permute.xlu0 0
      %3868 = vperm.xlu0 %3867, %v3567
      %v3869 = vpop.permute.xlu0 %3868
      %3872 = vset.pattern.permute.xlu0 0
      %3873 = vperm.xlu0 %3872, %v3568
      %v3874 = vpop.permute.xlu0 %3873
      %3877 = vset.pattern.permute.xlu0 0
      %3878 = vperm.xlu0 %3877, %v3569
      %v3879 = vpop.permute.xlu0 %3878
      %3882 = vset.pattern.permute.xlu0 0
      %3883 = vperm.xlu0 %3882, %v3570
      %v3884 = vpop.permute.xlu0 %3883
      %3887 = vset.pattern.permute.xlu0 0
      %3888 = vperm.xlu0 %3887, %v3571
      %v3889 = vpop.permute.xlu0 %3888
      %3892 = vset.pattern.permute.xlu0 0
      %3893 = vperm.xlu0 %3892, %v3572
      %v3894 = vpop.permute.xlu0 %3893
      %3897 = vset.pattern.permute.xlu0 0
      %3898 = vperm.xlu0 %3897, %v3573
      %v3899 = vpop.permute.xlu0 %3898
      %3902 = vset.pattern.permute.xlu0 0
      %3903 = vperm.xlu0 %3902, %v3574
      %v3904 = vpop.permute.xlu0 %3903
      %3907 = vset.pattern.permute.xlu0 0
      %3908 = vperm.xlu0 %3907, %v3575
      %v3909 = vpop.permute.xlu0 %3908
      %3912 = vset.pattern.permute.xlu0 0
      %3913 = vperm.xlu0 %3912, %v3576
      %v3914 = vpop.permute.xlu0 %3913
      %3917 = vset.pattern.permute.xlu0 0
      %3918 = vperm.xlu0 %3917, %v3577
      %v3919 = vpop.permute.xlu0 %3918
      %3922 = vset.pattern.permute.xlu0 0
      %3923 = vperm.xlu0 %3922, %v3578
      %v3924 = vpop.permute.xlu0 %3923
      %3927 = vset.pattern.permute.xlu0 0
      %3928 = vperm.xlu0 %3927, %v3579
      %v3929 = vpop.permute.xlu0 %3928
      %3932 = vset.pattern.permute.xlu0 0
      %3933 = vperm.xlu0 %3932, %v3580
      %v3934 = vpop.permute.xlu0 %3933
      %3937 = vset.pattern.permute.xlu0 0
      %3938 = vperm.xlu0 %3937, %v3581
      %v3939 = vpop.permute.xlu0 %3938
      %3942 = vset.pattern.permute.xlu0 0
      %3943 = vperm.xlu0 %3942, %v3582
      %v3944 = vpop.permute.xlu0 %3943
      %3947 = vset.pattern.permute.xlu0 0
      %3948 = vperm.xlu0 %3947, %v3583
      %v3949 = vpop.permute.xlu0 %3948
      %3952 = vset.pattern.permute.xlu0 0
      %3953 = vperm.xlu0 %3952, %v3584
      %v3954 = vpop.permute.xlu0 %3953
      %3957 = vset.pattern.permute.xlu0 0
      %3958 = vperm.xlu0 %3957, %v3585
      %v3959 = vpop.permute.xlu0 %3958
      %3962 = vset.pattern.permute.xlu0 0
      %3963 = vperm.xlu0 %3962, %v3586
      %v3964 = vpop.permute.xlu0 %3963
      %3967 = vset.pattern.permute.xlu0 0
      %3968 = vperm.xlu0 %3967, %v3587
      %v3969 = vpop.permute.xlu0 %3968
      %3972 = vset.pattern.permute.xlu0 0
      %3973 = vperm.xlu0 %3972, %v3588
      %v3974 = vpop.permute.xlu0 %3973
      %3977 = vset.pattern.permute.xlu0 0
      %3978 = vperm.xlu0 %3977, %v3589
      %v3979 = vpop.permute.xlu0 %3978
      %3982 = vset.pattern.permute.xlu0 0
      %3983 = vperm.xlu0 %3982, %v3590
      %v3984 = vpop.permute.xlu0 %3983
      %3987 = vset.pattern.permute.xlu0 0
      %3988 = vperm.xlu0 %3987, %v3591
      %v3989 = vpop.permute.xlu0 %3988
      %3992 = vset.pattern.permute.xlu0 0
      %3993 = vperm.xlu0 %3992, %v3592
      %v3994 = vpop.permute.xlu0 %3993
      %3997 = vset.pattern.permute.xlu0 0
      %3998 = vperm.xlu0 %3997, %v3593
      %v3999 = vpop.permute.xlu0 %3998
      %4002 = vset.pattern.permute.xlu0 0
      %4003 = vperm.xlu0 %4002, %v3594
      %v4004 = vpop.permute.xlu0 %4003
      %4007 = vset.pattern.permute.xlu0 0
      %4008 = vperm.xlu0 %4007, %v3595
      %v4009 = vpop.permute.xlu0 %4008
      %4012 = vset.pattern.permute.xlu0 0
      %4013 = vperm.xlu0 %4012, %v3596
      %v4014 = vpop.permute.xlu0 %4013
      %4017 = vset.pattern.permute.xlu0 0
      %4018 = vperm.xlu0 %4017, %v3597
      %v4019 = vpop.permute.xlu0 %4018
      %4022 = vset.pattern.permute.xlu0 0
      %4023 = vperm.xlu0 %4022, %v3598
      %v4024 = vpop.permute.xlu0 %4023
      %4027 = vset.pattern.permute.xlu0 0
      %4028 = vperm.xlu0 %4027, %v3599
      %v4029 = vpop.permute.xlu0 %4028
      %4032 = vset.pattern.permute.xlu0 0
      %4033 = vperm.xlu0 %4032, %v3600
      %v4034 = vpop.permute.xlu0 %4033
      %4037 = vset.pattern.permute.xlu0 0
      %4038 = vperm.xlu0 %4037, %v3601
      %v4039 = vpop.permute.xlu0 %4038
      %4042 = vset.pattern.permute.xlu0 0
      %4043 = vperm.xlu0 %4042, %v3602
      %v4044 = vpop.permute.xlu0 %4043
      %4047 = vset.pattern.permute.xlu0 0
      %4048 = vperm.xlu0 %4047, %v3603
      %v4049 = vpop.permute.xlu0 %4048
      %4052 = vset.pattern.permute.xlu0 0
      %4053 = vperm.xlu0 %4052, %v3604
      %v4054 = vpop.permute.xlu0 %4053
      %4057 = vset.pattern.permute.xlu0 0
      %4058 = vperm.xlu0 %4057, %v3605
      %v4059 = vpop.permute.xlu0 %4058
      %4062 = vset.pattern.permute.xlu0 0
      %4063 = vperm.xlu0 %4062, %v3606
      %v4064 = vpop.permute.xlu0 %4063
      %4067 = vset.pattern.permute.xlu0 0
      %4068 = vperm.xlu0 %4067, %v3607
      %v4069 = vpop.permute.xlu0 %4068
      %4072 = vset.pattern.permute.xlu0 0
      %4073 = vperm.xlu0 %4072, %v3608
      %v4074 = vpop.permute.xlu0 %4073
      %4077 = vset.pattern.permute.xlu0 0
      %4078 = vperm.xlu0 %4077, %v3609
      %v4079 = vpop.permute.xlu0 %4078
      %4082 = vset.pattern.permute.xlu0 0
      %4083 = vperm.xlu0 %4082, %v3610
      %v4084 = vpop.permute.xlu0 %4083
      %4087 = vset.pattern.permute.xlu0 0
      %4088 = vperm.xlu0 %4087, %v3611
      %v4089 = vpop.permute.xlu0 %4088
      %4092 = vset.pattern.permute.xlu0 0
      %4093 = vperm.xlu0 %4092, %v3612
      %v4094 = vpop.permute.xlu0 %4093
      %4097 = vset.pattern.permute.xlu0 0
      %4098 = vperm.xlu0 %4097, %v3613
      %v4099 = vpop.permute.xlu0 %4098
      %4102 = vset.pattern.permute.xlu0 0
      %4103 = vperm.xlu0 %4102, %v3614
      %v4104 = vpop.permute.xlu0 %4103
      %4107 = vset.pattern.permute.xlu0 0
      %4108 = vperm.xlu0 %4107, %v3615
      %v4109 = vpop.permute.xlu0 %4108
      %4112 = vset.pattern.permute.xlu0 0
      %4113 = vperm.xlu0 %4112, %v3616
      %v4114 = vpop.permute.xlu0 %4113
      %4117 = vset.pattern.permute.xlu0 0
      %4118 = vperm.xlu0 %4117, %v3617
      %v4119 = vpop.permute.xlu0 %4118
      %4122 = vset.pattern.permute.xlu0 0
      %4123 = vperm.xlu0 %4122, %v3618
      %v4124 = vpop.permute.xlu0 %4123
      %4127 = vset.pattern.permute.xlu0 0
      %4128 = vperm.xlu0 %4127, %v3619
      %v4129 = vpop.permute.xlu0 %4128
      %v4131 = vperm.slane %v3620, 0
      %v4132 = vmul.f32 %v3624, %v4131
      %v4133 = vmul.f32 %v3629, %v4131
      %v4134 = vmul.f32 %v3634, %v4131
      %v4135 = vmul.f32 %v3639, %v4131
      %v4136 = vmul.f32 %v3644, %v4131
      %v4137 = vmul.f32 %v3649, %v4131
      %v4138 = vmul.f32 %v3654, %v4131
      %v4139 = vmul.f32 %v3659, %v4131
      %v4140 = vmul.f32 %v3664, %v4131
      %v4141 = vmul.f32 %v3669, %v4131
      %v4142 = vmul.f32 %v3674, %v4131
      %v4143 = vmul.f32 %v3679, %v4131
      %v4144 = vmul.f32 %v3684, %v4131
      %v4145 = vmul.f32 %v3689, %v4131
      %v4146 = vmul.f32 %v3694, %v4131
      %v4147 = vmul.f32 %v3699, %v4131
      %v4148 = vmul.f32 %v3704, %v4131
      %v4149 = vmul.f32 %v3709, %v4131
      %v4150 = vmul.f32 %v3714, %v4131
      %v4151 = vmul.f32 %v3719, %v4131
      %v4152 = vmul.f32 %v3724, %v4131
      %v4153 = vmul.f32 %v3729, %v4131
      %v4154 = vmul.f32 %v3734, %v4131
      %v4155 = vmul.f32 %v3739, %v4131
      %v4156 = vmul.f32 %v3744, %v4131
      %v4157 = vmul.f32 %v3749, %v4131
      %v4158 = vmul.f32 %v3754, %v4131
      %v4159 = vmul.f32 %v3759, %v4131
      %v4160 = vmul.f32 %v3764, %v4131
      %v4161 = vmul.f32 %v3769, %v4131
      %v4162 = vmul.f32 %v3774, %v4131
      %v4163 = vmul.f32 %v3779, %v4131
      %v4164 = vmul.f32 %v3784, %v4131
      %v4165 = vmul.f32 %v3789, %v4131
      %v4166 = vmul.f32 %v3794, %v4131
      %v4167 = vmul.f32 %v3799, %v4131
      %v4168 = vmul.f32 %v3804, %v4131
      %v4169 = vmul.f32 %v3809, %v4131
      %v4170 = vmul.f32 %v3814, %v4131
      %v4171 = vmul.f32 %v3819, %v4131
      %v4172 = vmul.f32 %v3824, %v4131
      %v4173 = vmul.f32 %v3829, %v4131
      %v4174 = vmul.f32 %v3834, %v4131
      %v4175 = vmul.f32 %v3839, %v4131
      %v4176 = vmul.f32 %v3844, %v4131
      %v4177 = vmul.f32 %v3849, %v4131
      %v4178 = vmul.f32 %v3854, %v4131
      %v4179 = vmul.f32 %v3859, %v4131
      %v4180 = vmul.f32 %v3864, %v4131
      %v4181 = vmul.f32 %v3869, %v4131
      %v4182 = vmul.f32 %v3874, %v4131
      %v4183 = vmul.f32 %v3879, %v4131
      %v4184 = vmul.f32 %v3884, %v4131
      %v4185 = vmul.f32 %v3889, %v4131
      %v4186 = vmul.f32 %v3894, %v4131
      %v4187 = vmul.f32 %v3899, %v4131
      %v4188 = vmul.f32 %v3904, %v4131
      %v4189 = vmul.f32 %v3909, %v4131
      %v4190 = vmul.f32 %v3914, %v4131
      %v4191 = vmul.f32 %v3919, %v4131
      %v4192 = vmul.f32 %v3924, %v4131
      %v4193 = vmul.f32 %v3929, %v4131
      %v4194 = vmul.f32 %v3934, %v4131
      %v4195 = vmul.f32 %v3939, %v4131
      %v4196 = vmul.f32 %v3944, %v4131
      %v4197 = vmul.f32 %v3949, %v4131
      %v4198 = vmul.f32 %v3954, %v4131
      %v4199 = vmul.f32 %v3959, %v4131
      %v4200 = vmul.f32 %v3964, %v4131
      %v4201 = vmul.f32 %v3969, %v4131
      %v4202 = vmul.f32 %v3974, %v4131
      %v4203 = vmul.f32 %v3979, %v4131
      %v4204 = vmul.f32 %v3984, %v4131
      %v4205 = vmul.f32 %v3989, %v4131
      %v4206 = vmul.f32 %v3994, %v4131
      %v4207 = vmul.f32 %v3999, %v4131
      %v4208 = vmul.f32 %v4004, %v4131
      %v4209 = vmul.f32 %v4009, %v4131
      %v4210 = vmul.f32 %v4014, %v4131
      %v4211 = vmul.f32 %v4019, %v4131
      %v4212 = vmul.f32 %v4024, %v4131
      %v4213 = vmul.f32 %v4029, %v4131
      %v4214 = vmul.f32 %v4034, %v4131
      %v4215 = vmul.f32 %v4039, %v4131
      %v4216 = vmul.f32 %v4044, %v4131
      %v4217 = vmul.f32 %v4049, %v4131
      %v4218 = vmul.f32 %v4054, %v4131
      %v4219 = vmul.f32 %v4059, %v4131
      %v4220 = vmul.f32 %v4064, %v4131
      %v4221 = vmul.f32 %v4069, %v4131
      %v4222 = vmul.f32 %v4074, %v4131
      %v4223 = vmul.f32 %v4079, %v4131
      %v4224 = vmul.f32 %v4084, %v4131
      %v4225 = vmul.f32 %v4089, %v4131
      %v4226 = vmul.f32 %v4094, %v4131
      %v4227 = vmul.f32 %v4099, %v4131
      %v4228 = vmul.f32 %v4104, %v4131
      %v4229 = vmul.f32 %v4109, %v4131
      %v4230 = vmul.f32 %v4114, %v4131
      %v4231 = vmul.f32 %v4119, %v4131
      %v4232 = vmul.f32 %v4124, %v4131
      %v4233 = vmul.f32 %v4129, %v4131
      %v4234 = vadd.f32 %v3416, %v4132
      %v4235 = vadd.f32 %v3417, %v4133
      %v4236 = vadd.f32 %v3418, %v4134
      %v4237 = vadd.f32 %v3419, %v4135
      %v4238 = vadd.f32 %v3420, %v4136
      %v4239 = vadd.f32 %v3421, %v4137
      %v4240 = vadd.f32 %v3422, %v4138
      %v4241 = vadd.f32 %v3423, %v4139
      %v4242 = vadd.f32 %v3424, %v4140
      %v4243 = vadd.f32 %v3425, %v4141
      %v4244 = vadd.f32 %v3426, %v4142
      %v4245 = vadd.f32 %v3427, %v4143
      %v4246 = vadd.f32 %v3428, %v4144
      %v4247 = vadd.f32 %v3429, %v4145
      %v4248 = vadd.f32 %v3430, %v4146
      %v4249 = vadd.f32 %v3431, %v4147
      %v4250 = vadd.f32 %v3432, %v4148
      %v4251 = vadd.f32 %v3433, %v4149
      %v4252 = vadd.f32 %v3434, %v4150
      %v4253 = vadd.f32 %v3435, %v4151
      %v4254 = vadd.f32 %v3436, %v4152
      %v4255 = vadd.f32 %v3437, %v4153
      %v4256 = vadd.f32 %v3438, %v4154
      %v4257 = vadd.f32 %v3439, %v4155
      %v4258 = vadd.f32 %v3440, %v4156
      %v4259 = vadd.f32 %v3441, %v4157
      %v4260 = vadd.f32 %v3442, %v4158
      %v4261 = vadd.f32 %v3443, %v4159
      %v4262 = vadd.f32 %v3444, %v4160
      %v4263 = vadd.f32 %v3445, %v4161
      %v4264 = vadd.f32 %v3446, %v4162
      %v4265 = vadd.f32 %v3447, %v4163
      %v4266 = vadd.f32 %v3448, %v4164
      %v4267 = vadd.f32 %v3449, %v4165
      %v4268 = vadd.f32 %v3450, %v4166
      %v4269 = vadd.f32 %v3451, %v4167
      %v4270 = vadd.f32 %v3452, %v4168
      %v4271 = vadd.f32 %v3453, %v4169
      %v4272 = vadd.f32 %v3454, %v4170
      %v4273 = vadd.f32 %v3455, %v4171
      %v4274 = vadd.f32 %v3456, %v4172
      %v4275 = vadd.f32 %v3457, %v4173
      %v4276 = vadd.f32 %v3458, %v4174
      %v4277 = vadd.f32 %v3459, %v4175
      %v4278 = vadd.f32 %v3460, %v4176
      %v4279 = vadd.f32 %v3461, %v4177
      %v4280 = vadd.f32 %v3462, %v4178
      %v4281 = vadd.f32 %v3463, %v4179
      %v4282 = vadd.f32 %v3464, %v4180
      %v4283 = vadd.f32 %v3465, %v4181
      %v4284 = vadd.f32 %v3466, %v4182
      %v4285 = vadd.f32 %v3467, %v4183
      %v4286 = vadd.f32 %v3468, %v4184
      %v4287 = vadd.f32 %v3469, %v4185
      %v4288 = vadd.f32 %v3470, %v4186
      %v4289 = vadd.f32 %v3471, %v4187
      %v4290 = vadd.f32 %v3472, %v4188
      %v4291 = vadd.f32 %v3473, %v4189
      %v4292 = vadd.f32 %v3474, %v4190
      %v4293 = vadd.f32 %v3475, %v4191
      %v4294 = vadd.f32 %v3476, %v4192
      %v4295 = vadd.f32 %v3477, %v4193
      %v4296 = vadd.f32 %v3478, %v4194
      %v4297 = vadd.f32 %v3479, %v4195
      %v4298 = vadd.f32 %v3480, %v4196
      %v4299 = vadd.f32 %v3481, %v4197
      %v4300 = vadd.f32 %v3482, %v4198
      %v4301 = vadd.f32 %v3483, %v4199
      %v4302 = vadd.f32 %v3484, %v4200
      %v4303 = vadd.f32 %v3485, %v4201
      %v4304 = vadd.f32 %v3486, %v4202
      %v4305 = vadd.f32 %v3487, %v4203
      %v4306 = vadd.f32 %v3488, %v4204
      %v4307 = vadd.f32 %v3489, %v4205
      %v4308 = vadd.f32 %v3490, %v4206
      %v4309 = vadd.f32 %v3491, %v4207
      %v4310 = vadd.f32 %v3492, %v4208
      %v4311 = vadd.f32 %v3493, %v4209
      %v4312 = vadd.f32 %v3494, %v4210
      %v4313 = vadd.f32 %v3495, %v4211
      %v4314 = vadd.f32 %v3496, %v4212
      %v4315 = vadd.f32 %v3497, %v4213
      %v4316 = vadd.f32 %v3498, %v4214
      %v4317 = vadd.f32 %v3499, %v4215
      %v4318 = vadd.f32 %v3500, %v4216
      %v4319 = vadd.f32 %v3501, %v4217
      %v4320 = vadd.f32 %v3502, %v4218
      %v4321 = vadd.f32 %v3503, %v4219
      %v4322 = vadd.f32 %v3504, %v4220
      %v4323 = vadd.f32 %v3505, %v4221
      %v4324 = vadd.f32 %v3506, %v4222
      %v4325 = vadd.f32 %v3507, %v4223
      %v4326 = vadd.f32 %v3508, %v4224
      %v4327 = vadd.f32 %v3509, %v4225
      %v4328 = vadd.f32 %v3510, %v4226
      %v4329 = vadd.f32 %v3511, %v4227
      %v4330 = vadd.f32 %v3512, %v4228
      %v4331 = vadd.f32 %v3513, %v4229
      %v4332 = vadd.f32 %v3514, %v4230
      %v4333 = vadd.f32 %v3515, %v4231
      %v4334 = vadd.f32 %v3516, %v4232
      %v4335 = vadd.f32 %v3517, %v4233
      %v4336 = vld [vmem:[%s219 + $0x3b] sm:$0xff]
      %v4337 = vld [vmem:[%s219 + $0x43] sm:$0xff]
      %v4338 = vld [vmem:[%s219 + $0x4b] sm:$0xff]
      %v4339 = vld [vmem:[%s219 + $0x53] sm:$0xff]
      %v4340 = vld [vmem:[%s219 + $0x5b] sm:$0xff]
      %v4341 = vld [vmem:[%s219 + $0x63] sm:$0xff]
      %v4342 = vld [vmem:[%s219 + $0x6b] sm:$0xff]
      %v4343 = vld [vmem:[%s219 + $0x73] sm:$0xff]
      %v4344 = vld [vmem:[%s219 + $0x7b] sm:$0xff]
      %v4345 = vld [vmem:[%s219 + $0x83] sm:$0xff]
      %v4346 = vld [vmem:[%s219 + $0x8b] sm:$0xff]
      %v4347 = vld [vmem:[%s219 + $0x93] sm:$0xff]
      %v4348 = vld [vmem:[%s219 + $0x9b] sm:$0xff]
      %v4349 = vld [vmem:[%s219 + $0xa3] sm:$0xff]
      %v4350 = vld [vmem:[%s219 + $0xab] sm:$0xff]
      %v4351 = vld [vmem:[%s219 + $0xb3] sm:$0xff]
      %v4352 = vld [vmem:[%s219 + $0xbb] sm:$0xff]
      %v4353 = vld [vmem:[%s219 + $0xc3] sm:$0xff]
      %v4354 = vld [vmem:[%s219 + $0xcb] sm:$0xff]
      %v4355 = vld [vmem:[%s219 + $0xd3] sm:$0xff]
      %v4356 = vld [vmem:[%s219 + $0xdb] sm:$0xff]
      %v4357 = vld [vmem:[%s219 + $0xe3] sm:$0xff]
      %v4358 = vld [vmem:[%s219 + $0xeb] sm:$0xff]
      %v4359 = vld [vmem:[%s219 + $0xf3] sm:$0xff]
      %v4360 = vld [vmem:[%s219 + $0xfb] sm:$0xff]
      %v4361 = vld [vmem:[%s219 + $0x103] sm:$0xff]
      %v4362 = vld [vmem:[%s219 + $0x10b] sm:$0xff]
      %v4363 = vld [vmem:[%s219 + $0x113] sm:$0xff]
      %v4364 = vld [vmem:[%s219 + $0x11b] sm:$0xff]
      %v4365 = vld [vmem:[%s219 + $0x123] sm:$0xff]
      %v4366 = vld [vmem:[%s219 + $0x12b] sm:$0xff]
      %v4367 = vld [vmem:[%s219 + $0x133] sm:$0xff]
      %v4368 = vld [vmem:[%s219 + $0x13b] sm:$0xff]
      %v4369 = vld [vmem:[%s219 + $0x143] sm:$0xff]
      %v4370 = vld [vmem:[%s219 + $0x14b] sm:$0xff]
      %v4371 = vld [vmem:[%s219 + $0x153] sm:$0xff]
      %v4372 = vld [vmem:[%s219 + $0x15b] sm:$0xff]
      %v4373 = vld [vmem:[%s219 + $0x163] sm:$0xff]
      %v4374 = vld [vmem:[%s219 + $0x16b] sm:$0xff]
      %v4375 = vld [vmem:[%s219 + $0x173] sm:$0xff]
      %v4376 = vld [vmem:[%s219 + $0x17b] sm:$0xff]
      %v4377 = vld [vmem:[%s219 + $0x183] sm:$0xff]
      %v4378 = vld [vmem:[%s219 + $0x18b] sm:$0xff]
      %v4379 = vld [vmem:[%s219 + $0x193] sm:$0xff]
      %v4380 = vld [vmem:[%s219 + $0x19b] sm:$0xff]
      %v4381 = vld [vmem:[%s219 + $0x1a3] sm:$0xff]
      %v4382 = vld [vmem:[%s219 + $0x1ab] sm:$0xff]
      %v4383 = vld [vmem:[%s219 + $0x1b3] sm:$0xff]
      %v4384 = vld [vmem:[%s219 + $0x1bb] sm:$0xff]
      %v4385 = vld [vmem:[%s219 + $0x1c3] sm:$0xff]
      %v4386 = vld [vmem:[%s219 + $0x1cb] sm:$0xff]
      %v4387 = vld [vmem:[%s219 + $0x1d3] sm:$0xff]
      %v4388 = vld [vmem:[%s219 + $0x1db] sm:$0xff]
      %v4389 = vld [vmem:[%s219 + $0x1e3] sm:$0xff]
      %v4390 = vld [vmem:[%s219 + $0x1eb] sm:$0xff]
      %v4391 = vld [vmem:[%s219 + $0x1f3] sm:$0xff]
      %v4392 = vld [vmem:[%s219 + $0x1fb] sm:$0xff]
      %v4393 = vld [vmem:[%s219 + $0x203] sm:$0xff]
      %v4394 = vld [vmem:[%s219 + $0x20b] sm:$0xff]
      %v4395 = vld [vmem:[%s219 + $0x213] sm:$0xff]
      %v4396 = vld [vmem:[%s219 + $0x21b] sm:$0xff]
      %v4397 = vld [vmem:[%s219 + $0x223] sm:$0xff]
      %v4398 = vld [vmem:[%s219 + $0x22b] sm:$0xff]
      %v4399 = vld [vmem:[%s219 + $0x233] sm:$0xff]
      %v4400 = vld [vmem:[%s219 + $0x23b] sm:$0xff]
      %v4401 = vld [vmem:[%s219 + $0x243] sm:$0xff]
      %v4402 = vld [vmem:[%s219 + $0x24b] sm:$0xff]
      %v4403 = vld [vmem:[%s219 + $0x253] sm:$0xff]
      %v4404 = vld [vmem:[%s219 + $0x25b] sm:$0xff]
      %v4405 = vld [vmem:[%s219 + $0x263] sm:$0xff]
      %v4406 = vld [vmem:[%s219 + $0x26b] sm:$0xff]
      %v4407 = vld [vmem:[%s219 + $0x273] sm:$0xff]
      %v4408 = vld [vmem:[%s219 + $0x27b] sm:$0xff]
      %v4409 = vld [vmem:[%s219 + $0x283] sm:$0xff]
      %v4410 = vld [vmem:[%s219 + $0x28b] sm:$0xff]
      %v4411 = vld [vmem:[%s219 + $0x293] sm:$0xff]
      %v4412 = vld [vmem:[%s219 + $0x29b] sm:$0xff]
      %v4413 = vld [vmem:[%s219 + $0x2a3] sm:$0xff]
      %v4414 = vld [vmem:[%s219 + $0x2ab] sm:$0xff]
      %v4415 = vld [vmem:[%s219 + $0x2b3] sm:$0xff]
      %v4416 = vld [vmem:[%s219 + $0x2bb] sm:$0xff]
      %v4417 = vld [vmem:[%s219 + $0x2c3] sm:$0xff]
      %v4418 = vld [vmem:[%s219 + $0x2cb] sm:$0xff]
      %v4419 = vld [vmem:[%s219 + $0x2d3] sm:$0xff]
      %v4420 = vld [vmem:[%s219 + $0x2db] sm:$0xff]
      %v4421 = vld [vmem:[%s219 + $0x2e3] sm:$0xff]
      %v4422 = vld [vmem:[%s219 + $0x2eb] sm:$0xff]
      %v4423 = vld [vmem:[%s219 + $0x2f3] sm:$0xff]
      %v4424 = vld [vmem:[%s219 + $0x2fb] sm:$0xff]
      %v4425 = vld [vmem:[%s219 + $0x303] sm:$0xff]
      %v4426 = vld [vmem:[%s219 + $0x30b] sm:$0xff]
      %v4427 = vld [vmem:[%s219 + $0x313] sm:$0xff]
      %v4428 = vld [vmem:[%s219 + $0x31b] sm:$0xff]
      %v4429 = vld [vmem:[%s219 + $0x323] sm:$0xff]
      %v4430 = vld [vmem:[%s219 + $0x32b] sm:$0xff]
      %v4431 = vld [vmem:[%s219 + $0x333] sm:$0xff]
      %v4432 = vld [vmem:[%s219 + $0x33b] sm:$0xff]
      %v4433 = vld [vmem:[%s219 + $0x343] sm:$0xff]
      %v4434 = vld [vmem:[%s219 + $0x34b] sm:$0xff]
      %v4435 = vld [vmem:[%s219 + $0x353] sm:$0xff]
      %v4436 = vld [vmem:[%s219 + $0x35b] sm:$0xff]
      %v4437 = vld [vmem:[%s219 + $0x363] sm:$0xf]
      %v4438 = vld [vmem:[%s1 + $0x5] sm:$0x1]
      %4440 = vset.pattern.permute.xlu0 0
      %4441 = vperm.xlu0 %4440, %v4336
      %v4442 = vpop.permute.xlu0 %4441
      %4445 = vset.pattern.permute.xlu0 0
      %4446 = vperm.xlu0 %4445, %v4337
      %v4447 = vpop.permute.xlu0 %4446
      %4450 = vset.pattern.permute.xlu0 0
      %4451 = vperm.xlu0 %4450, %v4338
      %v4452 = vpop.permute.xlu0 %4451
      %4455 = vset.pattern.permute.xlu0 0
      %4456 = vperm.xlu0 %4455, %v4339
      %v4457 = vpop.permute.xlu0 %4456
      %4460 = vset.pattern.permute.xlu0 0
      %4461 = vperm.xlu0 %4460, %v4340
      %v4462 = vpop.permute.xlu0 %4461
      %4465 = vset.pattern.permute.xlu0 0
      %4466 = vperm.xlu0 %4465, %v4341
      %v4467 = vpop.permute.xlu0 %4466
      %4470 = vset.pattern.permute.xlu0 0
      %4471 = vperm.xlu0 %4470, %v4342
      %v4472 = vpop.permute.xlu0 %4471
      %4475 = vset.pattern.permute.xlu0 0
      %4476 = vperm.xlu0 %4475, %v4343
      %v4477 = vpop.permute.xlu0 %4476
      %4480 = vset.pattern.permute.xlu0 0
      %4481 = vperm.xlu0 %4480, %v4344
      %v4482 = vpop.permute.xlu0 %4481
      %4485 = vset.pattern.permute.xlu0 0
      %4486 = vperm.xlu0 %4485, %v4345
      %v4487 = vpop.permute.xlu0 %4486
      %4490 = vset.pattern.permute.xlu0 0
      %4491 = vperm.xlu0 %4490, %v4346
      %v4492 = vpop.permute.xlu0 %4491
      %4495 = vset.pattern.permute.xlu0 0
      %4496 = vperm.xlu0 %4495, %v4347
      %v4497 = vpop.permute.xlu0 %4496
      %4500 = vset.pattern.permute.xlu0 0
      %4501 = vperm.xlu0 %4500, %v4348
      %v4502 = vpop.permute.xlu0 %4501
      %4505 = vset.pattern.permute.xlu0 0
      %4506 = vperm.xlu0 %4505, %v4349
      %v4507 = vpop.permute.xlu0 %4506
      %4510 = vset.pattern.permute.xlu0 0
      %4511 = vperm.xlu0 %4510, %v4350
      %v4512 = vpop.permute.xlu0 %4511
      %4515 = vset.pattern.permute.xlu0 0
      %4516 = vperm.xlu0 %4515, %v4351
      %v4517 = vpop.permute.xlu0 %4516
      %4520 = vset.pattern.permute.xlu0 0
      %4521 = vperm.xlu0 %4520, %v4352
      %v4522 = vpop.permute.xlu0 %4521
      %4525 = vset.pattern.permute.xlu0 0
      %4526 = vperm.xlu0 %4525, %v4353
      %v4527 = vpop.permute.xlu0 %4526
      %4530 = vset.pattern.permute.xlu0 0
      %4531 = vperm.xlu0 %4530, %v4354
      %v4532 = vpop.permute.xlu0 %4531
      %4535 = vset.pattern.permute.xlu0 0
      %4536 = vperm.xlu0 %4535, %v4355
      %v4537 = vpop.permute.xlu0 %4536
      %4540 = vset.pattern.permute.xlu0 0
      %4541 = vperm.xlu0 %4540, %v4356
      %v4542 = vpop.permute.xlu0 %4541
      %4545 = vset.pattern.permute.xlu0 0
      %4546 = vperm.xlu0 %4545, %v4357
      %v4547 = vpop.permute.xlu0 %4546
      %4550 = vset.pattern.permute.xlu0 0
      %4551 = vperm.xlu0 %4550, %v4358
      %v4552 = vpop.permute.xlu0 %4551
      %4555 = vset.pattern.permute.xlu0 0
      %4556 = vperm.xlu0 %4555, %v4359
      %v4557 = vpop.permute.xlu0 %4556
      %4560 = vset.pattern.permute.xlu0 0
      %4561 = vperm.xlu0 %4560, %v4360
      %v4562 = vpop.permute.xlu0 %4561
      %4565 = vset.pattern.permute.xlu0 0
      %4566 = vperm.xlu0 %4565, %v4361
      %v4567 = vpop.permute.xlu0 %4566
      %4570 = vset.pattern.permute.xlu0 0
      %4571 = vperm.xlu0 %4570, %v4362
      %v4572 = vpop.permute.xlu0 %4571
      %4575 = vset.pattern.permute.xlu0 0
      %4576 = vperm.xlu0 %4575, %v4363
      %v4577 = vpop.permute.xlu0 %4576
      %4580 = vset.pattern.permute.xlu0 0
      %4581 = vperm.xlu0 %4580, %v4364
      %v4582 = vpop.permute.xlu0 %4581
      %4585 = vset.pattern.permute.xlu0 0
      %4586 = vperm.xlu0 %4585, %v4365
      %v4587 = vpop.permute.xlu0 %4586
      %4590 = vset.pattern.permute.xlu0 0
      %4591 = vperm.xlu0 %4590, %v4366
      %v4592 = vpop.permute.xlu0 %4591
      %4595 = vset.pattern.permute.xlu0 0
      %4596 = vperm.xlu0 %4595, %v4367
      %v4597 = vpop.permute.xlu0 %4596
      %4600 = vset.pattern.permute.xlu0 0
      %4601 = vperm.xlu0 %4600, %v4368
      %v4602 = vpop.permute.xlu0 %4601
      %4605 = vset.pattern.permute.xlu0 0
      %4606 = vperm.xlu0 %4605, %v4369
      %v4607 = vpop.permute.xlu0 %4606
      %4610 = vset.pattern.permute.xlu0 0
      %4611 = vperm.xlu0 %4610, %v4370
      %v4612 = vpop.permute.xlu0 %4611
      %4615 = vset.pattern.permute.xlu0 0
      %4616 = vperm.xlu0 %4615, %v4371
      %v4617 = vpop.permute.xlu0 %4616
      %4620 = vset.pattern.permute.xlu0 0
      %4621 = vperm.xlu0 %4620, %v4372
      %v4622 = vpop.permute.xlu0 %4621
      %4625 = vset.pattern.permute.xlu0 0
      %4626 = vperm.xlu0 %4625, %v4373
      %v4627 = vpop.permute.xlu0 %4626
      %4630 = vset.pattern.permute.xlu0 0
      %4631 = vperm.xlu0 %4630, %v4374
      %v4632 = vpop.permute.xlu0 %4631
      %4635 = vset.pattern.permute.xlu0 0
      %4636 = vperm.xlu0 %4635, %v4375
      %v4637 = vpop.permute.xlu0 %4636
      %4640 = vset.pattern.permute.xlu0 0
      %4641 = vperm.xlu0 %4640, %v4376
      %v4642 = vpop.permute.xlu0 %4641
      %4645 = vset.pattern.permute.xlu0 0
      %4646 = vperm.xlu0 %4645, %v4377
      %v4647 = vpop.permute.xlu0 %4646
      %4650 = vset.pattern.permute.xlu0 0
      %4651 = vperm.xlu0 %4650, %v4378
      %v4652 = vpop.permute.xlu0 %4651
      %4655 = vset.pattern.permute.xlu0 0
      %4656 = vperm.xlu0 %4655, %v4379
      %v4657 = vpop.permute.xlu0 %4656
      %4660 = vset.pattern.permute.xlu0 0
      %4661 = vperm.xlu0 %4660, %v4380
      %v4662 = vpop.permute.xlu0 %4661
      %4665 = vset.pattern.permute.xlu0 0
      %4666 = vperm.xlu0 %4665, %v4381
      %v4667 = vpop.permute.xlu0 %4666
      %4670 = vset.pattern.permute.xlu0 0
      %4671 = vperm.xlu0 %4670, %v4382
      %v4672 = vpop.permute.xlu0 %4671
      %4675 = vset.pattern.permute.xlu0 0
      %4676 = vperm.xlu0 %4675, %v4383
      %v4677 = vpop.permute.xlu0 %4676
      %4680 = vset.pattern.permute.xlu0 0
      %4681 = vperm.xlu0 %4680, %v4384
      %v4682 = vpop.permute.xlu0 %4681
      %4685 = vset.pattern.permute.xlu0 0
      %4686 = vperm.xlu0 %4685, %v4385
      %v4687 = vpop.permute.xlu0 %4686
      %4690 = vset.pattern.permute.xlu0 0
      %4691 = vperm.xlu0 %4690, %v4386
      %v4692 = vpop.permute.xlu0 %4691
      %4695 = vset.pattern.permute.xlu0 0
      %4696 = vperm.xlu0 %4695, %v4387
      %v4697 = vpop.permute.xlu0 %4696
      %4700 = vset.pattern.permute.xlu0 0
      %4701 = vperm.xlu0 %4700, %v4388
      %v4702 = vpop.permute.xlu0 %4701
      %4705 = vset.pattern.permute.xlu0 0
      %4706 = vperm.xlu0 %4705, %v4389
      %v4707 = vpop.permute.xlu0 %4706
      %4710 = vset.pattern.permute.xlu0 0
      %4711 = vperm.xlu0 %4710, %v4390
      %v4712 = vpop.permute.xlu0 %4711
      %4715 = vset.pattern.permute.xlu0 0
      %4716 = vperm.xlu0 %4715, %v4391
      %v4717 = vpop.permute.xlu0 %4716
      %4720 = vset.pattern.permute.xlu0 0
      %4721 = vperm.xlu0 %4720, %v4392
      %v4722 = vpop.permute.xlu0 %4721
      %4725 = vset.pattern.permute.xlu0 0
      %4726 = vperm.xlu0 %4725, %v4393
      %v4727 = vpop.permute.xlu0 %4726
      %4730 = vset.pattern.permute.xlu0 0
      %4731 = vperm.xlu0 %4730, %v4394
      %v4732 = vpop.permute.xlu0 %4731
      %4735 = vset.pattern.permute.xlu0 0
      %4736 = vperm.xlu0 %4735, %v4395
      %v4737 = vpop.permute.xlu0 %4736
      %4740 = vset.pattern.permute.xlu0 0
      %4741 = vperm.xlu0 %4740, %v4396
      %v4742 = vpop.permute.xlu0 %4741
      %4745 = vset.pattern.permute.xlu0 0
      %4746 = vperm.xlu0 %4745, %v4397
      %v4747 = vpop.permute.xlu0 %4746
      %4750 = vset.pattern.permute.xlu0 0
      %4751 = vperm.xlu0 %4750, %v4398
      %v4752 = vpop.permute.xlu0 %4751
      %4755 = vset.pattern.permute.xlu0 0
      %4756 = vperm.xlu0 %4755, %v4399
      %v4757 = vpop.permute.xlu0 %4756
      %4760 = vset.pattern.permute.xlu0 0
      %4761 = vperm.xlu0 %4760, %v4400
      %v4762 = vpop.permute.xlu0 %4761
      %4765 = vset.pattern.permute.xlu0 0
      %4766 = vperm.xlu0 %4765, %v4401
      %v4767 = vpop.permute.xlu0 %4766
      %4770 = vset.pattern.permute.xlu0 0
      %4771 = vperm.xlu0 %4770, %v4402
      %v4772 = vpop.permute.xlu0 %4771
      %4775 = vset.pattern.permute.xlu0 0
      %4776 = vperm.xlu0 %4775, %v4403
      %v4777 = vpop.permute.xlu0 %4776
      %4780 = vset.pattern.permute.xlu0 0
      %4781 = vperm.xlu0 %4780, %v4404
      %v4782 = vpop.permute.xlu0 %4781
      %4785 = vset.pattern.permute.xlu0 0
      %4786 = vperm.xlu0 %4785, %v4405
      %v4787 = vpop.permute.xlu0 %4786
      %4790 = vset.pattern.permute.xlu0 0
      %4791 = vperm.xlu0 %4790, %v4406
      %v4792 = vpop.permute.xlu0 %4791
      %4795 = vset.pattern.permute.xlu0 0
      %4796 = vperm.xlu0 %4795, %v4407
      %v4797 = vpop.permute.xlu0 %4796
      %4800 = vset.pattern.permute.xlu0 0
      %4801 = vperm.xlu0 %4800, %v4408
      %v4802 = vpop.permute.xlu0 %4801
      %4805 = vset.pattern.permute.xlu0 0
      %4806 = vperm.xlu0 %4805, %v4409
      %v4807 = vpop.permute.xlu0 %4806
      %4810 = vset.pattern.permute.xlu0 0
      %4811 = vperm.xlu0 %4810, %v4410
      %v4812 = vpop.permute.xlu0 %4811
      %4815 = vset.pattern.permute.xlu0 0
      %4816 = vperm.xlu0 %4815, %v4411
      %v4817 = vpop.permute.xlu0 %4816
      %4820 = vset.pattern.permute.xlu0 0
      %4821 = vperm.xlu0 %4820, %v4412
      %v4822 = vpop.permute.xlu0 %4821
      %4825 = vset.pattern.permute.xlu0 0
      %4826 = vperm.xlu0 %4825, %v4413
      %v4827 = vpop.permute.xlu0 %4826
      %4830 = vset.pattern.permute.xlu0 0
      %4831 = vperm.xlu0 %4830, %v4414
      %v4832 = vpop.permute.xlu0 %4831
      %4835 = vset.pattern.permute.xlu0 0
      %4836 = vperm.xlu0 %4835, %v4415
      %v4837 = vpop.permute.xlu0 %4836
      %4840 = vset.pattern.permute.xlu0 0
      %4841 = vperm.xlu0 %4840, %v4416
      %v4842 = vpop.permute.xlu0 %4841
      %4845 = vset.pattern.permute.xlu0 0
      %4846 = vperm.xlu0 %4845, %v4417
      %v4847 = vpop.permute.xlu0 %4846
      %4850 = vset.pattern.permute.xlu0 0
      %4851 = vperm.xlu0 %4850, %v4418
      %v4852 = vpop.permute.xlu0 %4851
      %4855 = vset.pattern.permute.xlu0 0
      %4856 = vperm.xlu0 %4855, %v4419
      %v4857 = vpop.permute.xlu0 %4856
      %4860 = vset.pattern.permute.xlu0 0
      %4861 = vperm.xlu0 %4860, %v4420
      %v4862 = vpop.permute.xlu0 %4861
      %4865 = vset.pattern.permute.xlu0 0
      %4866 = vperm.xlu0 %4865, %v4421
      %v4867 = vpop.permute.xlu0 %4866
      %4870 = vset.pattern.permute.xlu0 0
      %4871 = vperm.xlu0 %4870, %v4422
      %v4872 = vpop.permute.xlu0 %4871
      %4875 = vset.pattern.permute.xlu0 0
      %4876 = vperm.xlu0 %4875, %v4423
      %v4877 = vpop.permute.xlu0 %4876
      %4880 = vset.pattern.permute.xlu0 0
      %4881 = vperm.xlu0 %4880, %v4424
      %v4882 = vpop.permute.xlu0 %4881
      %4885 = vset.pattern.permute.xlu0 0
      %4886 = vperm.xlu0 %4885, %v4425
      %v4887 = vpop.permute.xlu0 %4886
      %4890 = vset.pattern.permute.xlu0 0
      %4891 = vperm.xlu0 %4890, %v4426
      %v4892 = vpop.permute.xlu0 %4891
      %4895 = vset.pattern.permute.xlu0 0
      %4896 = vperm.xlu0 %4895, %v4427
      %v4897 = vpop.permute.xlu0 %4896
      %4900 = vset.pattern.permute.xlu0 0
      %4901 = vperm.xlu0 %4900, %v4428
      %v4902 = vpop.permute.xlu0 %4901
      %4905 = vset.pattern.permute.xlu0 0
      %4906 = vperm.xlu0 %4905, %v4429
      %v4907 = vpop.permute.xlu0 %4906
      %4910 = vset.pattern.permute.xlu0 0
      %4911 = vperm.xlu0 %4910, %v4430
      %v4912 = vpop.permute.xlu0 %4911
      %4915 = vset.pattern.permute.xlu0 0
      %4916 = vperm.xlu0 %4915, %v4431
      %v4917 = vpop.permute.xlu0 %4916
      %4920 = vset.pattern.permute.xlu0 0
      %4921 = vperm.xlu0 %4920, %v4432
      %v4922 = vpop.permute.xlu0 %4921
      %4925 = vset.pattern.permute.xlu0 0
      %4926 = vperm.xlu0 %4925, %v4433
      %v4927 = vpop.permute.xlu0 %4926
      %4930 = vset.pattern.permute.xlu0 0
      %4931 = vperm.xlu0 %4930, %v4434
      %v4932 = vpop.permute.xlu0 %4931
      %4935 = vset.pattern.permute.xlu0 0
      %4936 = vperm.xlu0 %4935, %v4435
      %v4937 = vpop.permute.xlu0 %4936
      %4940 = vset.pattern.permute.xlu0 0
      %4941 = vperm.xlu0 %4940, %v4436
      %v4942 = vpop.permute.xlu0 %4941
      %4945 = vset.pattern.permute.xlu0 0
      %4946 = vperm.xlu0 %4945, %v4437
      %v4947 = vpop.permute.xlu0 %4946
      %v4949 = vperm.slane %v4438, 0
      %v4950 = vmul.f32 %v4442, %v4949
      %v4951 = vmul.f32 %v4447, %v4949
      %v4952 = vmul.f32 %v4452, %v4949
      %v4953 = vmul.f32 %v4457, %v4949
      %v4954 = vmul.f32 %v4462, %v4949
      %v4955 = vmul.f32 %v4467, %v4949
      %v4956 = vmul.f32 %v4472, %v4949
      %v4957 = vmul.f32 %v4477, %v4949
      %v4958 = vmul.f32 %v4482, %v4949
      %v4959 = vmul.f32 %v4487, %v4949
      %v4960 = vmul.f32 %v4492, %v4949
      %v4961 = vmul.f32 %v4497, %v4949
      %v4962 = vmul.f32 %v4502, %v4949
      %v4963 = vmul.f32 %v4507, %v4949
      %v4964 = vmul.f32 %v4512, %v4949
      %v4965 = vmul.f32 %v4517, %v4949
      %v4966 = vmul.f32 %v4522, %v4949
      %v4967 = vmul.f32 %v4527, %v4949
      %v4968 = vmul.f32 %v4532, %v4949
      %v4969 = vmul.f32 %v4537, %v4949
      %v4970 = vmul.f32 %v4542, %v4949
      %v4971 = vmul.f32 %v4547, %v4949
      %v4972 = vmul.f32 %v4552, %v4949
      %v4973 = vmul.f32 %v4557, %v4949
      %v4974 = vmul.f32 %v4562, %v4949
      %v4975 = vmul.f32 %v4567, %v4949
      %v4976 = vmul.f32 %v4572, %v4949
      %v4977 = vmul.f32 %v4577, %v4949
      %v4978 = vmul.f32 %v4582, %v4949
      %v4979 = vmul.f32 %v4587, %v4949
      %v4980 = vmul.f32 %v4592, %v4949
      %v4981 = vmul.f32 %v4597, %v4949
      %v4982 = vmul.f32 %v4602, %v4949
      %v4983 = vmul.f32 %v4607, %v4949
      %v4984 = vmul.f32 %v4612, %v4949
      %v4985 = vmul.f32 %v4617, %v4949
      %v4986 = vmul.f32 %v4622, %v4949
      %v4987 = vmul.f32 %v4627, %v4949
      %v4988 = vmul.f32 %v4632, %v4949
      %v4989 = vmul.f32 %v4637, %v4949
      %v4990 = vmul.f32 %v4642, %v4949
      %v4991 = vmul.f32 %v4647, %v4949
      %v4992 = vmul.f32 %v4652, %v4949
      %v4993 = vmul.f32 %v4657, %v4949
      %v4994 = vmul.f32 %v4662, %v4949
      %v4995 = vmul.f32 %v4667, %v4949
      %v4996 = vmul.f32 %v4672, %v4949
      %v4997 = vmul.f32 %v4677, %v4949
      %v4998 = vmul.f32 %v4682, %v4949
      %v4999 = vmul.f32 %v4687, %v4949
      %v5000 = vmul.f32 %v4692, %v4949
      %v5001 = vmul.f32 %v4697, %v4949
      %v5002 = vmul.f32 %v4702, %v4949
      %v5003 = vmul.f32 %v4707, %v4949
      %v5004 = vmul.f32 %v4712, %v4949
      %v5005 = vmul.f32 %v4717, %v4949
      %v5006 = vmul.f32 %v4722, %v4949
      %v5007 = vmul.f32 %v4727, %v4949
      %v5008 = vmul.f32 %v4732, %v4949
      %v5009 = vmul.f32 %v4737, %v4949
      %v5010 = vmul.f32 %v4742, %v4949
      %v5011 = vmul.f32 %v4747, %v4949
      %v5012 = vmul.f32 %v4752, %v4949
      %v5013 = vmul.f32 %v4757, %v4949
      %v5014 = vmul.f32 %v4762, %v4949
      %v5015 = vmul.f32 %v4767, %v4949
      %v5016 = vmul.f32 %v4772, %v4949
      %v5017 = vmul.f32 %v4777, %v4949
      %v5018 = vmul.f32 %v4782, %v4949
      %v5019 = vmul.f32 %v4787, %v4949
      %v5020 = vmul.f32 %v4792, %v4949
      %v5021 = vmul.f32 %v4797, %v4949
      %v5022 = vmul.f32 %v4802, %v4949
      %v5023 = vmul.f32 %v4807, %v4949
      %v5024 = vmul.f32 %v4812, %v4949
      %v5025 = vmul.f32 %v4817, %v4949
      %v5026 = vmul.f32 %v4822, %v4949
      %v5027 = vmul.f32 %v4827, %v4949
      %v5028 = vmul.f32 %v4832, %v4949
      %v5029 = vmul.f32 %v4837, %v4949
      %v5030 = vmul.f32 %v4842, %v4949
      %v5031 = vmul.f32 %v4847, %v4949
      %v5032 = vmul.f32 %v4852, %v4949
      %v5033 = vmul.f32 %v4857, %v4949
      %v5034 = vmul.f32 %v4862, %v4949
      %v5035 = vmul.f32 %v4867, %v4949
      %v5036 = vmul.f32 %v4872, %v4949
      %v5037 = vmul.f32 %v4877, %v4949
      %v5038 = vmul.f32 %v4882, %v4949
      %v5039 = vmul.f32 %v4887, %v4949
      %v5040 = vmul.f32 %v4892, %v4949
      %v5041 = vmul.f32 %v4897, %v4949
      %v5042 = vmul.f32 %v4902, %v4949
      %v5043 = vmul.f32 %v4907, %v4949
      %v5044 = vmul.f32 %v4912, %v4949
      %v5045 = vmul.f32 %v4917, %v4949
      %v5046 = vmul.f32 %v4922, %v4949
      %v5047 = vmul.f32 %v4927, %v4949
      %v5048 = vmul.f32 %v4932, %v4949
      %v5049 = vmul.f32 %v4937, %v4949
      %v5050 = vmul.f32 %v4942, %v4949
      %v5051 = vmul.f32 %v4947, %v4949
      %v5052 = vadd.f32 %v4234, %v4950
      %v5053 = vadd.f32 %v4235, %v4951
      %v5054 = vadd.f32 %v4236, %v4952
      %v5055 = vadd.f32 %v4237, %v4953
      %v5056 = vadd.f32 %v4238, %v4954
      %v5057 = vadd.f32 %v4239, %v4955
      %v5058 = vadd.f32 %v4240, %v4956
      %v5059 = vadd.f32 %v4241, %v4957
      %v5060 = vadd.f32 %v4242, %v4958
      %v5061 = vadd.f32 %v4243, %v4959
      %v5062 = vadd.f32 %v4244, %v4960
      %v5063 = vadd.f32 %v4245, %v4961
      %v5064 = vadd.f32 %v4246, %v4962
      %v5065 = vadd.f32 %v4247, %v4963
      %v5066 = vadd.f32 %v4248, %v4964
      %v5067 = vadd.f32 %v4249, %v4965
      %v5068 = vadd.f32 %v4250, %v4966
      %v5069 = vadd.f32 %v4251, %v4967
      %v5070 = vadd.f32 %v4252, %v4968
      %v5071 = vadd.f32 %v4253, %v4969
      %v5072 = vadd.f32 %v4254, %v4970
      %v5073 = vadd.f32 %v4255, %v4971
      %v5074 = vadd.f32 %v4256, %v4972
      %v5075 = vadd.f32 %v4257, %v4973
      %v5076 = vadd.f32 %v4258, %v4974
      %v5077 = vadd.f32 %v4259, %v4975
      %v5078 = vadd.f32 %v4260, %v4976
      %v5079 = vadd.f32 %v4261, %v4977
      %v5080 = vadd.f32 %v4262, %v4978
      %v5081 = vadd.f32 %v4263, %v4979
      %v5082 = vadd.f32 %v4264, %v4980
      %v5083 = vadd.f32 %v4265, %v4981
      %v5084 = vadd.f32 %v4266, %v4982
      %v5085 = vadd.f32 %v4267, %v4983
      %v5086 = vadd.f32 %v4268, %v4984
      %v5087 = vadd.f32 %v4269, %v4985
      %v5088 = vadd.f32 %v4270, %v4986
      %v5089 = vadd.f32 %v4271, %v4987
      %v5090 = vadd.f32 %v4272, %v4988
      %v5091 = vadd.f32 %v4273, %v4989
      %v5092 = vadd.f32 %v4274, %v4990
      %v5093 = vadd.f32 %v4275, %v4991
      %v5094 = vadd.f32 %v4276, %v4992
      %v5095 = vadd.f32 %v4277, %v4993
      %v5096 = vadd.f32 %v4278, %v4994
      %v5097 = vadd.f32 %v4279, %v4995
      %v5098 = vadd.f32 %v4280, %v4996
      %v5099 = vadd.f32 %v4281, %v4997
      %v5100 = vadd.f32 %v4282, %v4998
      %v5101 = vadd.f32 %v4283, %v4999
      %v5102 = vadd.f32 %v4284, %v5000
      %v5103 = vadd.f32 %v4285, %v5001
      %v5104 = vadd.f32 %v4286, %v5002
      %v5105 = vadd.f32 %v4287, %v5003
      %v5106 = vadd.f32 %v4288, %v5004
      %v5107 = vadd.f32 %v4289, %v5005
      %v5108 = vadd.f32 %v4290, %v5006
      %v5109 = vadd.f32 %v4291, %v5007
      %v5110 = vadd.f32 %v4292, %v5008
      %v5111 = vadd.f32 %v4293, %v5009
      %v5112 = vadd.f32 %v4294, %v5010
      %v5113 = vadd.f32 %v4295, %v5011
      %v5114 = vadd.f32 %v4296, %v5012
      %v5115 = vadd.f32 %v4297, %v5013
      %v5116 = vadd.f32 %v4298, %v5014
      %v5117 = vadd.f32 %v4299, %v5015
      %v5118 = vadd.f32 %v4300, %v5016
      %v5119 = vadd.f32 %v4301, %v5017
      %v5120 = vadd.f32 %v4302, %v5018
      %v5121 = vadd.f32 %v4303, %v5019
      %v5122 = vadd.f32 %v4304, %v5020
      %v5123 = vadd.f32 %v4305, %v5021
      %v5124 = vadd.f32 %v4306, %v5022
      %v5125 = vadd.f32 %v4307, %v5023
      %v5126 = vadd.f32 %v4308, %v5024
      %v5127 = vadd.f32 %v4309, %v5025
      %v5128 = vadd.f32 %v4310, %v5026
      %v5129 = vadd.f32 %v4311, %v5027
      %v5130 = vadd.f32 %v4312, %v5028
      %v5131 = vadd.f32 %v4313, %v5029
      %v5132 = vadd.f32 %v4314, %v5030
      %v5133 = vadd.f32 %v4315, %v5031
      %v5134 = vadd.f32 %v4316, %v5032
      %v5135 = vadd.f32 %v4317, %v5033
      %v5136 = vadd.f32 %v4318, %v5034
      %v5137 = vadd.f32 %v4319, %v5035
      %v5138 = vadd.f32 %v4320, %v5036
      %v5139 = vadd.f32 %v4321, %v5037
      %v5140 = vadd.f32 %v4322, %v5038
      %v5141 = vadd.f32 %v4323, %v5039
      %v5142 = vadd.f32 %v4324, %v5040
      %v5143 = vadd.f32 %v4325, %v5041
      %v5144 = vadd.f32 %v4326, %v5042
      %v5145 = vadd.f32 %v4327, %v5043
      %v5146 = vadd.f32 %v4328, %v5044
      %v5147 = vadd.f32 %v4329, %v5045
      %v5148 = vadd.f32 %v4330, %v5046
      %v5149 = vadd.f32 %v4331, %v5047
      %v5150 = vadd.f32 %v4332, %v5048
      %v5151 = vadd.f32 %v4333, %v5049
      %v5152 = vadd.f32 %v4334, %v5050
      %v5153 = vadd.f32 %v4335, %v5051
      %v5154 = vld [vmem:[%s219 + $0x56] sm:$0xff]
      %v5155 = vld [vmem:[%s219 + $0x5e] sm:$0xff]
      %v5156 = vld [vmem:[%s219 + $0x66] sm:$0xff]
      %v5157 = vld [vmem:[%s219 + $0x6e] sm:$0xff]
      %v5158 = vld [vmem:[%s219 + $0x76] sm:$0xff]
      %v5159 = vld [vmem:[%s219 + $0x7e] sm:$0xff]
      %v5160 = vld [vmem:[%s219 + $0x86] sm:$0xff]
      %v5161 = vld [vmem:[%s219 + $0x8e] sm:$0xff]
      %v5162 = vld [vmem:[%s219 + $0x96] sm:$0xff]
      %v5163 = vld [vmem:[%s219 + $0x9e] sm:$0xff]
      %v5164 = vld [vmem:[%s219 + $0xa6] sm:$0xff]
      %v5165 = vld [vmem:[%s219 + $0xae] sm:$0xff]
      %v5166 = vld [vmem:[%s219 + $0xb6] sm:$0xff]
      %v5167 = vld [vmem:[%s219 + $0xbe] sm:$0xff]
      %v5168 = vld [vmem:[%s219 + $0xc6] sm:$0xff]
      %v5169 = vld [vmem:[%s219 + $0xce] sm:$0xff]
      %v5170 = vld [vmem:[%s219 + $0xd6] sm:$0xff]
      %v5171 = vld [vmem:[%s219 + $0xde] sm:$0xff]
      %v5172 = vld [vmem:[%s219 + $0xe6] sm:$0xff]
      %v5173 = vld [vmem:[%s219 + $0xee] sm:$0xff]
      %v5174 = vld [vmem:[%s219 + $0xf6] sm:$0xff]
      %v5175 = vld [vmem:[%s219 + $0xfe] sm:$0xff]
      %v5176 = vld [vmem:[%s219 + $0x106] sm:$0xff]
      %v5177 = vld [vmem:[%s219 + $0x10e] sm:$0xff]
      %v5178 = vld [vmem:[%s219 + $0x116] sm:$0xff]
      %v5179 = vld [vmem:[%s219 + $0x11e] sm:$0xff]
      %v5180 = vld [vmem:[%s219 + $0x126] sm:$0xff]
      %v5181 = vld [vmem:[%s219 + $0x12e] sm:$0xff]
      %v5182 = vld [vmem:[%s219 + $0x136] sm:$0xff]
      %v5183 = vld [vmem:[%s219 + $0x13e] sm:$0xff]
      %v5184 = vld [vmem:[%s219 + $0x146] sm:$0xff]
      %v5185 = vld [vmem:[%s219 + $0x14e] sm:$0xff]
      %v5186 = vld [vmem:[%s219 + $0x156] sm:$0xff]
      %v5187 = vld [vmem:[%s219 + $0x15e] sm:$0xff]
      %v5188 = vld [vmem:[%s219 + $0x166] sm:$0xff]
      %v5189 = vld [vmem:[%s219 + $0x16e] sm:$0xff]
      %v5190 = vld [vmem:[%s219 + $0x176] sm:$0xff]
      %v5191 = vld [vmem:[%s219 + $0x17e] sm:$0xff]
      %v5192 = vld [vmem:[%s219 + $0x186] sm:$0xff]
      %v5193 = vld [vmem:[%s219 + $0x18e] sm:$0xff]
      %v5194 = vld [vmem:[%s219 + $0x196] sm:$0xff]
      %v5195 = vld [vmem:[%s219 + $0x19e] sm:$0xff]
      %v5196 = vld [vmem:[%s219 + $0x1a6] sm:$0xff]
      %v5197 = vld [vmem:[%s219 + $0x1ae] sm:$0xff]
      %v5198 = vld [vmem:[%s219 + $0x1b6] sm:$0xff]
      %v5199 = vld [vmem:[%s219 + $0x1be] sm:$0xff]
      %v5200 = vld [vmem:[%s219 + $0x1c6] sm:$0xff]
      %v5201 = vld [vmem:[%s219 + $0x1ce] sm:$0xff]
      %v5202 = vld [vmem:[%s219 + $0x1d6] sm:$0xff]
      %v5203 = vld [vmem:[%s219 + $0x1de] sm:$0xff]
      %v5204 = vld [vmem:[%s219 + $0x1e6] sm:$0xff]
      %v5205 = vld [vmem:[%s219 + $0x1ee] sm:$0xff]
      %v5206 = vld [vmem:[%s219 + $0x1f6] sm:$0xff]
      %v5207 = vld [vmem:[%s219 + $0x1fe] sm:$0xff]
      %v5208 = vld [vmem:[%s219 + $0x206] sm:$0xff]
      %v5209 = vld [vmem:[%s219 + $0x20e] sm:$0xff]
      %v5210 = vld [vmem:[%s219 + $0x216] sm:$0xff]
      %v5211 = vld [vmem:[%s219 + $0x21e] sm:$0xff]
      %v5212 = vld [vmem:[%s219 + $0x226] sm:$0xff]
      %v5213 = vld [vmem:[%s219 + $0x22e] sm:$0xff]
      %v5214 = vld [vmem:[%s219 + $0x236] sm:$0xff]
      %v5215 = vld [vmem:[%s219 + $0x23e] sm:$0xff]
      %v5216 = vld [vmem:[%s219 + $0x246] sm:$0xff]
      %v5217 = vld [vmem:[%s219 + $0x24e] sm:$0xff]
      %v5218 = vld [vmem:[%s219 + $0x256] sm:$0xff]
      %v5219 = vld [vmem:[%s219 + $0x25e] sm:$0xff]
      %v5220 = vld [vmem:[%s219 + $0x266] sm:$0xff]
      %v5221 = vld [vmem:[%s219 + $0x26e] sm:$0xff]
      %v5222 = vld [vmem:[%s219 + $0x276] sm:$0xff]
      %v5223 = vld [vmem:[%s219 + $0x27e] sm:$0xff]
      %v5224 = vld [vmem:[%s219 + $0x286] sm:$0xff]
      %v5225 = vld [vmem:[%s219 + $0x28e] sm:$0xff]
      %v5226 = vld [vmem:[%s219 + $0x296] sm:$0xff]
      %v5227 = vld [vmem:[%s219 + $0x29e] sm:$0xff]
      %v5228 = vld [vmem:[%s219 + $0x2a6] sm:$0xff]
      %v5229 = vld [vmem:[%s219 + $0x2ae] sm:$0xff]
      %v5230 = vld [vmem:[%s219 + $0x2b6] sm:$0xff]
      %v5231 = vld [vmem:[%s219 + $0x2be] sm:$0xff]
      %v5232 = vld [vmem:[%s219 + $0x2c6] sm:$0xff]
      %v5233 = vld [vmem:[%s219 + $0x2ce] sm:$0xff]
      %v5234 = vld [vmem:[%s219 + $0x2d6] sm:$0xff]
      %v5235 = vld [vmem:[%s219 + $0x2de] sm:$0xff]
      %v5236 = vld [vmem:[%s219 + $0x2e6] sm:$0xff]
      %v5237 = vld [vmem:[%s219 + $0x2ee] sm:$0xff]
      %v5238 = vld [vmem:[%s219 + $0x2f6] sm:$0xff]
      %v5239 = vld [vmem:[%s219 + $0x2fe] sm:$0xff]
      %v5240 = vld [vmem:[%s219 + $0x306] sm:$0xff]
      %v5241 = vld [vmem:[%s219 + $0x30e] sm:$0xff]
      %v5242 = vld [vmem:[%s219 + $0x316] sm:$0xff]
      %v5243 = vld [vmem:[%s219 + $0x31e] sm:$0xff]
      %v5244 = vld [vmem:[%s219 + $0x326] sm:$0xff]
      %v5245 = vld [vmem:[%s219 + $0x32e] sm:$0xff]
      %v5246 = vld [vmem:[%s219 + $0x336] sm:$0xff]
      %v5247 = vld [vmem:[%s219 + $0x33e] sm:$0xff]
      %v5248 = vld [vmem:[%s219 + $0x346] sm:$0xff]
      %v5249 = vld [vmem:[%s219 + $0x34e] sm:$0xff]
      %v5250 = vld [vmem:[%s219 + $0x356] sm:$0xff]
      %v5251 = vld [vmem:[%s219 + $0x35e] sm:$0xff]
      %v5252 = vld [vmem:[%s219 + $0x366] sm:$0xff]
      %v5253 = vld [vmem:[%s219 + $0x36e] sm:$0xff]
      %v5254 = vld [vmem:[%s219 + $0x376] sm:$0xff]
      %v5255 = vld [vmem:[%s219 + $0x37e] sm:$0xf]
      %v5256 = vld [vmem:[%s1 + $0x6] sm:$0x1]
      %5258 = vset.pattern.permute.xlu0 0
      %5259 = vperm.xlu0 %5258, %v5154
      %v5260 = vpop.permute.xlu0 %5259
      %5263 = vset.pattern.permute.xlu0 0
      %5264 = vperm.xlu0 %5263, %v5155
      %v5265 = vpop.permute.xlu0 %5264
      %5268 = vset.pattern.permute.xlu0 0
      %5269 = vperm.xlu0 %5268, %v5156
      %v5270 = vpop.permute.xlu0 %5269
      %5273 = vset.pattern.permute.xlu0 0
      %5274 = vperm.xlu0 %5273, %v5157
      %v5275 = vpop.permute.xlu0 %5274
      %5278 = vset.pattern.permute.xlu0 0
      %5279 = vperm.xlu0 %5278, %v5158
      %v5280 = vpop.permute.xlu0 %5279
      %5283 = vset.pattern.permute.xlu0 0
      %5284 = vperm.xlu0 %5283, %v5159
      %v5285 = vpop.permute.xlu0 %5284
      %5288 = vset.pattern.permute.xlu0 0
      %5289 = vperm.xlu0 %5288, %v5160
      %v5290 = vpop.permute.xlu0 %5289
      %5293 = vset.pattern.permute.xlu0 0
      %5294 = vperm.xlu0 %5293, %v5161
      %v5295 = vpop.permute.xlu0 %5294
      %5298 = vset.pattern.permute.xlu0 0
      %5299 = vperm.xlu0 %5298, %v5162
      %v5300 = vpop.permute.xlu0 %5299
      %5303 = vset.pattern.permute.xlu0 0
      %5304 = vperm.xlu0 %5303, %v5163
      %v5305 = vpop.permute.xlu0 %5304
      %5308 = vset.pattern.permute.xlu0 0
      %5309 = vperm.xlu0 %5308, %v5164
      %v5310 = vpop.permute.xlu0 %5309
      %5313 = vset.pattern.permute.xlu0 0
      %5314 = vperm.xlu0 %5313, %v5165
      %v5315 = vpop.permute.xlu0 %5314
      %5318 = vset.pattern.permute.xlu0 0
      %5319 = vperm.xlu0 %5318, %v5166
      %v5320 = vpop.permute.xlu0 %5319
      %5323 = vset.pattern.permute.xlu0 0
      %5324 = vperm.xlu0 %5323, %v5167
      %v5325 = vpop.permute.xlu0 %5324
      %5328 = vset.pattern.permute.xlu0 0
      %5329 = vperm.xlu0 %5328, %v5168
      %v5330 = vpop.permute.xlu0 %5329
      %5333 = vset.pattern.permute.xlu0 0
      %5334 = vperm.xlu0 %5333, %v5169
      %v5335 = vpop.permute.xlu0 %5334
      %5338 = vset.pattern.permute.xlu0 0
      %5339 = vperm.xlu0 %5338, %v5170
      %v5340 = vpop.permute.xlu0 %5339
      %5343 = vset.pattern.permute.xlu0 0
      %5344 = vperm.xlu0 %5343, %v5171
      %v5345 = vpop.permute.xlu0 %5344
      %5348 = vset.pattern.permute.xlu0 0
      %5349 = vperm.xlu0 %5348, %v5172
      %v5350 = vpop.permute.xlu0 %5349
      %5353 = vset.pattern.permute.xlu0 0
      %5354 = vperm.xlu0 %5353, %v5173
      %v5355 = vpop.permute.xlu0 %5354
      %5358 = vset.pattern.permute.xlu0 0
      %5359 = vperm.xlu0 %5358, %v5174
      %v5360 = vpop.permute.xlu0 %5359
      %5363 = vset.pattern.permute.xlu0 0
      %5364 = vperm.xlu0 %5363, %v5175
      %v5365 = vpop.permute.xlu0 %5364
      %5368 = vset.pattern.permute.xlu0 0
      %5369 = vperm.xlu0 %5368, %v5176
      %v5370 = vpop.permute.xlu0 %5369
      %5373 = vset.pattern.permute.xlu0 0
      %5374 = vperm.xlu0 %5373, %v5177
      %v5375 = vpop.permute.xlu0 %5374
      %5378 = vset.pattern.permute.xlu0 0
      %5379 = vperm.xlu0 %5378, %v5178
      %v5380 = vpop.permute.xlu0 %5379
      %5383 = vset.pattern.permute.xlu0 0
      %5384 = vperm.xlu0 %5383, %v5179
      %v5385 = vpop.permute.xlu0 %5384
      %5388 = vset.pattern.permute.xlu0 0
      %5389 = vperm.xlu0 %5388, %v5180
      %v5390 = vpop.permute.xlu0 %5389
      %5393 = vset.pattern.permute.xlu0 0
      %5394 = vperm.xlu0 %5393, %v5181
      %v5395 = vpop.permute.xlu0 %5394
      %5398 = vset.pattern.permute.xlu0 0
      %5399 = vperm.xlu0 %5398, %v5182
      %v5400 = vpop.permute.xlu0 %5399
      %5403 = vset.pattern.permute.xlu0 0
      %5404 = vperm.xlu0 %5403, %v5183
      %v5405 = vpop.permute.xlu0 %5404
      %5408 = vset.pattern.permute.xlu0 0
      %5409 = vperm.xlu0 %5408, %v5184
      %v5410 = vpop.permute.xlu0 %5409
      %5413 = vset.pattern.permute.xlu0 0
      %5414 = vperm.xlu0 %5413, %v5185
      %v5415 = vpop.permute.xlu0 %5414
      %5418 = vset.pattern.permute.xlu0 0
      %5419 = vperm.xlu0 %5418, %v5186
      %v5420 = vpop.permute.xlu0 %5419
      %5423 = vset.pattern.permute.xlu0 0
      %5424 = vperm.xlu0 %5423, %v5187
      %v5425 = vpop.permute.xlu0 %5424
      %5428 = vset.pattern.permute.xlu0 0
      %5429 = vperm.xlu0 %5428, %v5188
      %v5430 = vpop.permute.xlu0 %5429
      %5433 = vset.pattern.permute.xlu0 0
      %5434 = vperm.xlu0 %5433, %v5189
      %v5435 = vpop.permute.xlu0 %5434
      %5438 = vset.pattern.permute.xlu0 0
      %5439 = vperm.xlu0 %5438, %v5190
      %v5440 = vpop.permute.xlu0 %5439
      %5443 = vset.pattern.permute.xlu0 0
      %5444 = vperm.xlu0 %5443, %v5191
      %v5445 = vpop.permute.xlu0 %5444
      %5448 = vset.pattern.permute.xlu0 0
      %5449 = vperm.xlu0 %5448, %v5192
      %v5450 = vpop.permute.xlu0 %5449
      %5453 = vset.pattern.permute.xlu0 0
      %5454 = vperm.xlu0 %5453, %v5193
      %v5455 = vpop.permute.xlu0 %5454
      %5458 = vset.pattern.permute.xlu0 0
      %5459 = vperm.xlu0 %5458, %v5194
      %v5460 = vpop.permute.xlu0 %5459
      %5463 = vset.pattern.permute.xlu0 0
      %5464 = vperm.xlu0 %5463, %v5195
      %v5465 = vpop.permute.xlu0 %5464
      %5468 = vset.pattern.permute.xlu0 0
      %5469 = vperm.xlu0 %5468, %v5196
      %v5470 = vpop.permute.xlu0 %5469
      %5473 = vset.pattern.permute.xlu0 0
      %5474 = vperm.xlu0 %5473, %v5197
      %v5475 = vpop.permute.xlu0 %5474
      %5478 = vset.pattern.permute.xlu0 0
      %5479 = vperm.xlu0 %5478, %v5198
      %v5480 = vpop.permute.xlu0 %5479
      %5483 = vset.pattern.permute.xlu0 0
      %5484 = vperm.xlu0 %5483, %v5199
      %v5485 = vpop.permute.xlu0 %5484
      %5488 = vset.pattern.permute.xlu0 0
      %5489 = vperm.xlu0 %5488, %v5200
      %v5490 = vpop.permute.xlu0 %5489
      %5493 = vset.pattern.permute.xlu0 0
      %5494 = vperm.xlu0 %5493, %v5201
      %v5495 = vpop.permute.xlu0 %5494
      %5498 = vset.pattern.permute.xlu0 0
      %5499 = vperm.xlu0 %5498, %v5202
      %v5500 = vpop.permute.xlu0 %5499
      %5503 = vset.pattern.permute.xlu0 0
      %5504 = vperm.xlu0 %5503, %v5203
      %v5505 = vpop.permute.xlu0 %5504
      %5508 = vset.pattern.permute.xlu0 0
      %5509 = vperm.xlu0 %5508, %v5204
      %v5510 = vpop.permute.xlu0 %5509
      %5513 = vset.pattern.permute.xlu0 0
      %5514 = vperm.xlu0 %5513, %v5205
      %v5515 = vpop.permute.xlu0 %5514
      %5518 = vset.pattern.permute.xlu0 0
      %5519 = vperm.xlu0 %5518, %v5206
      %v5520 = vpop.permute.xlu0 %5519
      %5523 = vset.pattern.permute.xlu0 0
      %5524 = vperm.xlu0 %5523, %v5207
      %v5525 = vpop.permute.xlu0 %5524
      %5528 = vset.pattern.permute.xlu0 0
      %5529 = vperm.xlu0 %5528, %v5208
      %v5530 = vpop.permute.xlu0 %5529
      %5533 = vset.pattern.permute.xlu0 0
      %5534 = vperm.xlu0 %5533, %v5209
      %v5535 = vpop.permute.xlu0 %5534
      %5538 = vset.pattern.permute.xlu0 0
      %5539 = vperm.xlu0 %5538, %v5210
      %v5540 = vpop.permute.xlu0 %5539
      %5543 = vset.pattern.permute.xlu0 0
      %5544 = vperm.xlu0 %5543, %v5211
      %v5545 = vpop.permute.xlu0 %5544
      %5548 = vset.pattern.permute.xlu0 0
      %5549 = vperm.xlu0 %5548, %v5212
      %v5550 = vpop.permute.xlu0 %5549
      %5553 = vset.pattern.permute.xlu0 0
      %5554 = vperm.xlu0 %5553, %v5213
      %v5555 = vpop.permute.xlu0 %5554
      %5558 = vset.pattern.permute.xlu0 0
      %5559 = vperm.xlu0 %5558, %v5214
      %v5560 = vpop.permute.xlu0 %5559
      %5563 = vset.pattern.permute.xlu0 0
      %5564 = vperm.xlu0 %5563, %v5215
      %v5565 = vpop.permute.xlu0 %5564
      %5568 = vset.pattern.permute.xlu0 0
      %5569 = vperm.xlu0 %5568, %v5216
      %v5570 = vpop.permute.xlu0 %5569
      %5573 = vset.pattern.permute.xlu0 0
      %5574 = vperm.xlu0 %5573, %v5217
      %v5575 = vpop.permute.xlu0 %5574
      %5578 = vset.pattern.permute.xlu0 0
      %5579 = vperm.xlu0 %5578, %v5218
      %v5580 = vpop.permute.xlu0 %5579
      %5583 = vset.pattern.permute.xlu0 0
      %5584 = vperm.xlu0 %5583, %v5219
      %v5585 = vpop.permute.xlu0 %5584
      %5588 = vset.pattern.permute.xlu0 0
      %5589 = vperm.xlu0 %5588, %v5220
      %v5590 = vpop.permute.xlu0 %5589
      %5593 = vset.pattern.permute.xlu0 0
      %5594 = vperm.xlu0 %5593, %v5221
      %v5595 = vpop.permute.xlu0 %5594
      %5598 = vset.pattern.permute.xlu0 0
      %5599 = vperm.xlu0 %5598, %v5222
      %v5600 = vpop.permute.xlu0 %5599
      %5603 = vset.pattern.permute.xlu0 0
      %5604 = vperm.xlu0 %5603, %v5223
      %v5605 = vpop.permute.xlu0 %5604
      %5608 = vset.pattern.permute.xlu0 0
      %5609 = vperm.xlu0 %5608, %v5224
      %v5610 = vpop.permute.xlu0 %5609
      %5613 = vset.pattern.permute.xlu0 0
      %5614 = vperm.xlu0 %5613, %v5225
      %v5615 = vpop.permute.xlu0 %5614
      %5618 = vset.pattern.permute.xlu0 0
      %5619 = vperm.xlu0 %5618, %v5226
      %v5620 = vpop.permute.xlu0 %5619
      %5623 = vset.pattern.permute.xlu0 0
      %5624 = vperm.xlu0 %5623, %v5227
      %v5625 = vpop.permute.xlu0 %5624
      %5628 = vset.pattern.permute.xlu0 0
      %5629 = vperm.xlu0 %5628, %v5228
      %v5630 = vpop.permute.xlu0 %5629
      %5633 = vset.pattern.permute.xlu0 0
      %5634 = vperm.xlu0 %5633, %v5229
      %v5635 = vpop.permute.xlu0 %5634
      %5638 = vset.pattern.permute.xlu0 0
      %5639 = vperm.xlu0 %5638, %v5230
      %v5640 = vpop.permute.xlu0 %5639
      %5643 = vset.pattern.permute.xlu0 0
      %5644 = vperm.xlu0 %5643, %v5231
      %v5645 = vpop.permute.xlu0 %5644
      %5648 = vset.pattern.permute.xlu0 0
      %5649 = vperm.xlu0 %5648, %v5232
      %v5650 = vpop.permute.xlu0 %5649
      %5653 = vset.pattern.permute.xlu0 0
      %5654 = vperm.xlu0 %5653, %v5233
      %v5655 = vpop.permute.xlu0 %5654
      %5658 = vset.pattern.permute.xlu0 0
      %5659 = vperm.xlu0 %5658, %v5234
      %v5660 = vpop.permute.xlu0 %5659
      %5663 = vset.pattern.permute.xlu0 0
      %5664 = vperm.xlu0 %5663, %v5235
      %v5665 = vpop.permute.xlu0 %5664
      %5668 = vset.pattern.permute.xlu0 0
      %5669 = vperm.xlu0 %5668, %v5236
      %v5670 = vpop.permute.xlu0 %5669
      %5673 = vset.pattern.permute.xlu0 0
      %5674 = vperm.xlu0 %5673, %v5237
      %v5675 = vpop.permute.xlu0 %5674
      %5678 = vset.pattern.permute.xlu0 0
      %5679 = vperm.xlu0 %5678, %v5238
      %v5680 = vpop.permute.xlu0 %5679
      %5683 = vset.pattern.permute.xlu0 0
      %5684 = vperm.xlu0 %5683, %v5239
      %v5685 = vpop.permute.xlu0 %5684
      %5688 = vset.pattern.permute.xlu0 0
      %5689 = vperm.xlu0 %5688, %v5240
      %v5690 = vpop.permute.xlu0 %5689
      %5693 = vset.pattern.permute.xlu0 0
      %5694 = vperm.xlu0 %5693, %v5241
      %v5695 = vpop.permute.xlu0 %5694
      %5698 = vset.pattern.permute.xlu0 0
      %5699 = vperm.xlu0 %5698, %v5242
      %v5700 = vpop.permute.xlu0 %5699
      %5703 = vset.pattern.permute.xlu0 0
      %5704 = vperm.xlu0 %5703, %v5243
      %v5705 = vpop.permute.xlu0 %5704
      %5708 = vset.pattern.permute.xlu0 0
      %5709 = vperm.xlu0 %5708, %v5244
      %v5710 = vpop.permute.xlu0 %5709
      %5713 = vset.pattern.permute.xlu0 0
      %5714 = vperm.xlu0 %5713, %v5245
      %v5715 = vpop.permute.xlu0 %5714
      %5718 = vset.pattern.permute.xlu0 0
      %5719 = vperm.xlu0 %5718, %v5246
      %v5720 = vpop.permute.xlu0 %5719
      %5723 = vset.pattern.permute.xlu0 0
      %5724 = vperm.xlu0 %5723, %v5247
      %v5725 = vpop.permute.xlu0 %5724
      %5728 = vset.pattern.permute.xlu0 0
      %5729 = vperm.xlu0 %5728, %v5248
      %v5730 = vpop.permute.xlu0 %5729
      %5733 = vset.pattern.permute.xlu0 0
      %5734 = vperm.xlu0 %5733, %v5249
      %v5735 = vpop.permute.xlu0 %5734
      %5738 = vset.pattern.permute.xlu0 0
      %5739 = vperm.xlu0 %5738, %v5250
      %v5740 = vpop.permute.xlu0 %5739
      %5743 = vset.pattern.permute.xlu0 0
      %5744 = vperm.xlu0 %5743, %v5251
      %v5745 = vpop.permute.xlu0 %5744
      %5748 = vset.pattern.permute.xlu0 0
      %5749 = vperm.xlu0 %5748, %v5252
      %v5750 = vpop.permute.xlu0 %5749
      %5753 = vset.pattern.permute.xlu0 0
      %5754 = vperm.xlu0 %5753, %v5253
      %v5755 = vpop.permute.xlu0 %5754
      %5758 = vset.pattern.permute.xlu0 0
      %5759 = vperm.xlu0 %5758, %v5254
      %v5760 = vpop.permute.xlu0 %5759
      %5763 = vset.pattern.permute.xlu0 0
      %5764 = vperm.xlu0 %5763, %v5255
      %v5765 = vpop.permute.xlu0 %5764
      %v5767 = vperm.slane %v5256, 0
      %v5768 = vmul.f32 %v5260, %v5767
      %v5769 = vmul.f32 %v5265, %v5767
      %v5770 = vmul.f32 %v5270, %v5767
      %v5771 = vmul.f32 %v5275, %v5767
      %v5772 = vmul.f32 %v5280, %v5767
      %v5773 = vmul.f32 %v5285, %v5767
      %v5774 = vmul.f32 %v5290, %v5767
      %v5775 = vmul.f32 %v5295, %v5767
      %v5776 = vmul.f32 %v5300, %v5767
      %v5777 = vmul.f32 %v5305, %v5767
      %v5778 = vmul.f32 %v5310, %v5767
      %v5779 = vmul.f32 %v5315, %v5767
      %v5780 = vmul.f32 %v5320, %v5767
      %v5781 = vmul.f32 %v5325, %v5767
      %v5782 = vmul.f32 %v5330, %v5767
      %v5783 = vmul.f32 %v5335, %v5767
      %v5784 = vmul.f32 %v5340, %v5767
      %v5785 = vmul.f32 %v5345, %v5767
      %v5786 = vmul.f32 %v5350, %v5767
      %v5787 = vmul.f32 %v5355, %v5767
      %v5788 = vmul.f32 %v5360, %v5767
      %v5789 = vmul.f32 %v5365, %v5767
      %v5790 = vmul.f32 %v5370, %v5767
      %v5791 = vmul.f32 %v5375, %v5767
      %v5792 = vmul.f32 %v5380, %v5767
      %v5793 = vmul.f32 %v5385, %v5767
      %v5794 = vmul.f32 %v5390, %v5767
      %v5795 = vmul.f32 %v5395, %v5767
      %v5796 = vmul.f32 %v5400, %v5767
      %v5797 = vmul.f32 %v5405, %v5767
      %v5798 = vmul.f32 %v5410, %v5767
      %v5799 = vmul.f32 %v5415, %v5767
      %v5800 = vmul.f32 %v5420, %v5767
      %v5801 = vmul.f32 %v5425, %v5767
      %v5802 = vmul.f32 %v5430, %v5767
      %v5803 = vmul.f32 %v5435, %v5767
      %v5804 = vmul.f32 %v5440, %v5767
      %v5805 = vmul.f32 %v5445, %v5767
      %v5806 = vmul.f32 %v5450, %v5767
      %v5807 = vmul.f32 %v5455, %v5767
      %v5808 = vmul.f32 %v5460, %v5767
      %v5809 = vmul.f32 %v5465, %v5767
      %v5810 = vmul.f32 %v5470, %v5767
      %v5811 = vmul.f32 %v5475, %v5767
      %v5812 = vmul.f32 %v5480, %v5767
      %v5813 = vmul.f32 %v5485, %v5767
      %v5814 = vmul.f32 %v5490, %v5767
      %v5815 = vmul.f32 %v5495, %v5767
      %v5816 = vmul.f32 %v5500, %v5767
      %v5817 = vmul.f32 %v5505, %v5767
      %v5818 = vmul.f32 %v5510, %v5767
      %v5819 = vmul.f32 %v5515, %v5767
      %v5820 = vmul.f32 %v5520, %v5767
      %v5821 = vmul.f32 %v5525, %v5767
      %v5822 = vmul.f32 %v5530, %v5767
      %v5823 = vmul.f32 %v5535, %v5767
      %v5824 = vmul.f32 %v5540, %v5767
      %v5825 = vmul.f32 %v5545, %v5767
      %v5826 = vmul.f32 %v5550, %v5767
      %v5827 = vmul.f32 %v5555, %v5767
      %v5828 = vmul.f32 %v5560, %v5767
      %v5829 = vmul.f32 %v5565, %v5767
      %v5830 = vmul.f32 %v5570, %v5767
      %v5831 = vmul.f32 %v5575, %v5767
      %v5832 = vmul.f32 %v5580, %v5767
      %v5833 = vmul.f32 %v5585, %v5767
      %v5834 = vmul.f32 %v5590, %v5767
      %v5835 = vmul.f32 %v5595, %v5767
      %v5836 = vmul.f32 %v5600, %v5767
      %v5837 = vmul.f32 %v5605, %v5767
      %v5838 = vmul.f32 %v5610, %v5767
      %v5839 = vmul.f32 %v5615, %v5767
      %v5840 = vmul.f32 %v5620, %v5767
      %v5841 = vmul.f32 %v5625, %v5767
      %v5842 = vmul.f32 %v5630, %v5767
      %v5843 = vmul.f32 %v5635, %v5767
      %v5844 = vmul.f32 %v5640, %v5767
      %v5845 = vmul.f32 %v5645, %v5767
      %v5846 = vmul.f32 %v5650, %v5767
      %v5847 = vmul.f32 %v5655, %v5767
      %v5848 = vmul.f32 %v5660, %v5767
      %v5849 = vmul.f32 %v5665, %v5767
      %v5850 = vmul.f32 %v5670, %v5767
      %v5851 = vmul.f32 %v5675, %v5767
      %v5852 = vmul.f32 %v5680, %v5767
      %v5853 = vmul.f32 %v5685, %v5767
      %v5854 = vmul.f32 %v5690, %v5767
      %v5855 = vmul.f32 %v5695, %v5767
      %v5856 = vmul.f32 %v5700, %v5767
      %v5857 = vmul.f32 %v5705, %v5767
      %v5858 = vmul.f32 %v5710, %v5767
      %v5859 = vmul.f32 %v5715, %v5767
      %v5860 = vmul.f32 %v5720, %v5767
      %v5861 = vmul.f32 %v5725, %v5767
      %v5862 = vmul.f32 %v5730, %v5767
      %v5863 = vmul.f32 %v5735, %v5767
      %v5864 = vmul.f32 %v5740, %v5767
      %v5865 = vmul.f32 %v5745, %v5767
      %v5866 = vmul.f32 %v5750, %v5767
      %v5867 = vmul.f32 %v5755, %v5767
      %v5868 = vmul.f32 %v5760, %v5767
      %v5869 = vmul.f32 %v5765, %v5767
      %v5870 = vadd.f32 %v5052, %v5768
      %v5871 = vadd.f32 %v5053, %v5769
      %v5872 = vadd.f32 %v5054, %v5770
      %v5873 = vadd.f32 %v5055, %v5771
      %v5874 = vadd.f32 %v5056, %v5772
      %v5875 = vadd.f32 %v5057, %v5773
      %v5876 = vadd.f32 %v5058, %v5774
      %v5877 = vadd.f32 %v5059, %v5775
      %v5878 = vadd.f32 %v5060, %v5776
      %v5879 = vadd.f32 %v5061, %v5777
      %v5880 = vadd.f32 %v5062, %v5778
      %v5881 = vadd.f32 %v5063, %v5779
      %v5882 = vadd.f32 %v5064, %v5780
      %v5883 = vadd.f32 %v5065, %v5781
      %v5884 = vadd.f32 %v5066, %v5782
      %v5885 = vadd.f32 %v5067, %v5783
      %v5886 = vadd.f32 %v5068, %v5784
      %v5887 = vadd.f32 %v5069, %v5785
      %v5888 = vadd.f32 %v5070, %v5786
      %v5889 = vadd.f32 %v5071, %v5787
      %v5890 = vadd.f32 %v5072, %v5788
      %v5891 = vadd.f32 %v5073, %v5789
      %v5892 = vadd.f32 %v5074, %v5790
      %v5893 = vadd.f32 %v5075, %v5791
      %v5894 = vadd.f32 %v5076, %v5792
      %v5895 = vadd.f32 %v5077, %v5793
      %v5896 = vadd.f32 %v5078, %v5794
      %v5897 = vadd.f32 %v5079, %v5795
      %v5898 = vadd.f32 %v5080, %v5796
      %v5899 = vadd.f32 %v5081, %v5797
      %v5900 = vadd.f32 %v5082, %v5798
      %v5901 = vadd.f32 %v5083, %v5799
      %v5902 = vadd.f32 %v5084, %v5800
      %v5903 = vadd.f32 %v5085, %v5801
      %v5904 = vadd.f32 %v5086, %v5802
      %v5905 = vadd.f32 %v5087, %v5803
      %v5906 = vadd.f32 %v5088, %v5804
      %v5907 = vadd.f32 %v5089, %v5805
      %v5908 = vadd.f32 %v5090, %v5806
      %v5909 = vadd.f32 %v5091, %v5807
      %v5910 = vadd.f32 %v5092, %v5808
      %v5911 = vadd.f32 %v5093, %v5809
      %v5912 = vadd.f32 %v5094, %v5810
      %v5913 = vadd.f32 %v5095, %v5811
      %v5914 = vadd.f32 %v5096, %v5812
      %v5915 = vadd.f32 %v5097, %v5813
      %v5916 = vadd.f32 %v5098, %v5814
      %v5917 = vadd.f32 %v5099, %v5815
      %v5918 = vadd.f32 %v5100, %v5816
      %v5919 = vadd.f32 %v5101, %v5817
      %v5920 = vadd.f32 %v5102, %v5818
      %v5921 = vadd.f32 %v5103, %v5819
      %v5922 = vadd.f32 %v5104, %v5820
      %v5923 = vadd.f32 %v5105, %v5821
      %v5924 = vadd.f32 %v5106, %v5822
      %v5925 = vadd.f32 %v5107, %v5823
      %v5926 = vadd.f32 %v5108, %v5824
      %v5927 = vadd.f32 %v5109, %v5825
      %v5928 = vadd.f32 %v5110, %v5826
      %v5929 = vadd.f32 %v5111, %v5827
      %v5930 = vadd.f32 %v5112, %v5828
      %v5931 = vadd.f32 %v5113, %v5829
      %v5932 = vadd.f32 %v5114, %v5830
      %v5933 = vadd.f32 %v5115, %v5831
      %v5934 = vadd.f32 %v5116, %v5832
      %v5935 = vadd.f32 %v5117, %v5833
      %v5936 = vadd.f32 %v5118, %v5834
      %v5937 = vadd.f32 %v5119, %v5835
      %v5938 = vadd.f32 %v5120, %v5836
      %v5939 = vadd.f32 %v5121, %v5837
      %v5940 = vadd.f32 %v5122, %v5838
      %v5941 = vadd.f32 %v5123, %v5839
      %v5942 = vadd.f32 %v5124, %v5840
      %v5943 = vadd.f32 %v5125, %v5841
      %v5944 = vadd.f32 %v5126, %v5842
      %v5945 = vadd.f32 %v5127, %v5843
      %v5946 = vadd.f32 %v5128, %v5844
      %v5947 = vadd.f32 %v5129, %v5845
      %v5948 = vadd.f32 %v5130, %v5846
      %v5949 = vadd.f32 %v5131, %v5847
      %v5950 = vadd.f32 %v5132, %v5848
      %v5951 = vadd.f32 %v5133, %v5849
      %v5952 = vadd.f32 %v5134, %v5850
      %v5953 = vadd.f32 %v5135, %v5851
      %v5954 = vadd.f32 %v5136, %v5852
      %v5955 = vadd.f32 %v5137, %v5853
      %v5956 = vadd.f32 %v5138, %v5854
      %v5957 = vadd.f32 %v5139, %v5855
      %v5958 = vadd.f32 %v5140, %v5856
      %v5959 = vadd.f32 %v5141, %v5857
      %v5960 = vadd.f32 %v5142, %v5858
      %v5961 = vadd.f32 %v5143, %v5859
      %v5962 = vadd.f32 %v5144, %v5860
      %v5963 = vadd.f32 %v5145, %v5861
      %v5964 = vadd.f32 %v5146, %v5862
      %v5965 = vadd.f32 %v5147, %v5863
      %v5966 = vadd.f32 %v5148, %v5864
      %v5967 = vadd.f32 %v5149, %v5865
      %v5968 = vadd.f32 %v5150, %v5866
      %v5969 = vadd.f32 %v5151, %v5867
      %v5970 = vadd.f32 %v5152, %v5868
      %v5971 = vadd.f32 %v5153, %v5869
      %v5972 = vld [vmem:[%s219 + $0x57] sm:$0xff]
      %v5973 = vld [vmem:[%s219 + $0x5f] sm:$0xff]
      %v5974 = vld [vmem:[%s219 + $0x67] sm:$0xff]
      %v5975 = vld [vmem:[%s219 + $0x6f] sm:$0xff]
      %v5976 = vld [vmem:[%s219 + $0x77] sm:$0xff]
      %v5977 = vld [vmem:[%s219 + $0x7f] sm:$0xff]
      %v5978 = vld [vmem:[%s219 + $0x87] sm:$0xff]
      %v5979 = vld [vmem:[%s219 + $0x8f] sm:$0xff]
      %v5980 = vld [vmem:[%s219 + $0x97] sm:$0xff]
      %v5981 = vld [vmem:[%s219 + $0x9f] sm:$0xff]
      %v5982 = vld [vmem:[%s219 + $0xa7] sm:$0xff]
      %v5983 = vld [vmem:[%s219 + $0xaf] sm:$0xff]
      %v5984 = vld [vmem:[%s219 + $0xb7] sm:$0xff]
      %v5985 = vld [vmem:[%s219 + $0xbf] sm:$0xff]
      %v5986 = vld [vmem:[%s219 + $0xc7] sm:$0xff]
      %v5987 = vld [vmem:[%s219 + $0xcf] sm:$0xff]
      %v5988 = vld [vmem:[%s219 + $0xd7] sm:$0xff]
      %v5989 = vld [vmem:[%s219 + $0xdf] sm:$0xff]
      %v5990 = vld [vmem:[%s219 + $0xe7] sm:$0xff]
      %v5991 = vld [vmem:[%s219 + $0xef] sm:$0xff]
      %v5992 = vld [vmem:[%s219 + $0xf7] sm:$0xff]
      %v5993 = vld [vmem:[%s219 + $0xff] sm:$0xff]
      %v5994 = vld [vmem:[%s219 + $0x107] sm:$0xff]
      %v5995 = vld [vmem:[%s219 + $0x10f] sm:$0xff]
      %v5996 = vld [vmem:[%s219 + $0x117] sm:$0xff]
      %v5997 = vld [vmem:[%s219 + $0x11f] sm:$0xff]
      %v5998 = vld [vmem:[%s219 + $0x127] sm:$0xff]
      %v5999 = vld [vmem:[%s219 + $0x12f] sm:$0xff]
      %v6000 = vld [vmem:[%s219 + $0x137] sm:$0xff]
      %v6001 = vld [vmem:[%s219 + $0x13f] sm:$0xff]
      %v6002 = vld [vmem:[%s219 + $0x147] sm:$0xff]
      %v6003 = vld [vmem:[%s219 + $0x14f] sm:$0xff]
      %v6004 = vld [vmem:[%s219 + $0x157] sm:$0xff]
      %v6005 = vld [vmem:[%s219 + $0x15f] sm:$0xff]
      %v6006 = vld [vmem:[%s219 + $0x167] sm:$0xff]
      %v6007 = vld [vmem:[%s219 + $0x16f] sm:$0xff]
      %v6008 = vld [vmem:[%s219 + $0x177] sm:$0xff]
      %v6009 = vld [vmem:[%s219 + $0x17f] sm:$0xff]
      %v6010 = vld [vmem:[%s219 + $0x187] sm:$0xff]
      %v6011 = vld [vmem:[%s219 + $0x18f] sm:$0xff]
      %v6012 = vld [vmem:[%s219 + $0x197] sm:$0xff]
      %v6013 = vld [vmem:[%s219 + $0x19f] sm:$0xff]
      %v6014 = vld [vmem:[%s219 + $0x1a7] sm:$0xff]
      %v6015 = vld [vmem:[%s219 + $0x1af] sm:$0xff]
      %v6016 = vld [vmem:[%s219 + $0x1b7] sm:$0xff]
      %v6017 = vld [vmem:[%s219 + $0x1bf] sm:$0xff]
      %v6018 = vld [vmem:[%s219 + $0x1c7] sm:$0xff]
      %v6019 = vld [vmem:[%s219 + $0x1cf] sm:$0xff]
      %v6020 = vld [vmem:[%s219 + $0x1d7] sm:$0xff]
      %v6021 = vld [vmem:[%s219 + $0x1df] sm:$0xff]
      %v6022 = vld [vmem:[%s219 + $0x1e7] sm:$0xff]
      %v6023 = vld [vmem:[%s219 + $0x1ef] sm:$0xff]
      %v6024 = vld [vmem:[%s219 + $0x1f7] sm:$0xff]
      %v6025 = vld [vmem:[%s219 + $0x1ff] sm:$0xff]
      %v6026 = vld [vmem:[%s219 + $0x207] sm:$0xff]
      %v6027 = vld [vmem:[%s219 + $0x20f] sm:$0xff]
      %v6028 = vld [vmem:[%s219 + $0x217] sm:$0xff]
      %v6029 = vld [vmem:[%s219 + $0x21f] sm:$0xff]
      %v6030 = vld [vmem:[%s219 + $0x227] sm:$0xff]
      %v6031 = vld [vmem:[%s219 + $0x22f] sm:$0xff]
      %v6032 = vld [vmem:[%s219 + $0x237] sm:$0xff]
      %v6033 = vld [vmem:[%s219 + $0x23f] sm:$0xff]
      %v6034 = vld [vmem:[%s219 + $0x247] sm:$0xff]
      %v6035 = vld [vmem:[%s219 + $0x24f] sm:$0xff]
      %v6036 = vld [vmem:[%s219 + $0x257] sm:$0xff]
      %v6037 = vld [vmem:[%s219 + $0x25f] sm:$0xff]
      %v6038 = vld [vmem:[%s219 + $0x267] sm:$0xff]
      %v6039 = vld [vmem:[%s219 + $0x26f] sm:$0xff]
      %v6040 = vld [vmem:[%s219 + $0x277] sm:$0xff]
      %v6041 = vld [vmem:[%s219 + $0x27f] sm:$0xff]
      %v6042 = vld [vmem:[%s219 + $0x287] sm:$0xff]
      %v6043 = vld [vmem:[%s219 + $0x28f] sm:$0xff]
      %v6044 = vld [vmem:[%s219 + $0x297] sm:$0xff]
      %v6045 = vld [vmem:[%s219 + $0x29f] sm:$0xff]
      %v6046 = vld [vmem:[%s219 + $0x2a7] sm:$0xff]
      %v6047 = vld [vmem:[%s219 + $0x2af] sm:$0xff]
      %v6048 = vld [vmem:[%s219 + $0x2b7] sm:$0xff]
      %v6049 = vld [vmem:[%s219 + $0x2bf] sm:$0xff]
      %v6050 = vld [vmem:[%s219 + $0x2c7] sm:$0xff]
      %v6051 = vld [vmem:[%s219 + $0x2cf] sm:$0xff]
      %v6052 = vld [vmem:[%s219 + $0x2d7] sm:$0xff]
      %v6053 = vld [vmem:[%s219 + $0x2df] sm:$0xff]
      %v6054 = vld [vmem:[%s219 + $0x2e7] sm:$0xff]
      %v6055 = vld [vmem:[%s219 + $0x2ef] sm:$0xff]
      %v6056 = vld [vmem:[%s219 + $0x2f7] sm:$0xff]
      %v6057 = vld [vmem:[%s219 + $0x2ff] sm:$0xff]
      %v6058 = vld [vmem:[%s219 + $0x307] sm:$0xff]
      %v6059 = vld [vmem:[%s219 + $0x30f] sm:$0xff]
      %v6060 = vld [vmem:[%s219 + $0x317] sm:$0xff]
      %v6061 = vld [vmem:[%s219 + $0x31f] sm:$0xff]
      %v6062 = vld [vmem:[%s219 + $0x327] sm:$0xff]
      %v6063 = vld [vmem:[%s219 + $0x32f] sm:$0xff]
      %v6064 = vld [vmem:[%s219 + $0x337] sm:$0xff]
      %v6065 = vld [vmem:[%s219 + $0x33f] sm:$0xff]
      %v6066 = vld [vmem:[%s219 + $0x347] sm:$0xff]
      %v6067 = vld [vmem:[%s219 + $0x34f] sm:$0xff]
      %v6068 = vld [vmem:[%s219 + $0x357] sm:$0xff]
      %v6069 = vld [vmem:[%s219 + $0x35f] sm:$0xff]
      %v6070 = vld [vmem:[%s219 + $0x367] sm:$0xff]
      %v6071 = vld [vmem:[%s219 + $0x36f] sm:$0xff]
      %v6072 = vld [vmem:[%s219 + $0x377] sm:$0xff]
      %v6073 = vld [vmem:[%s219 + $0x37f] sm:$0xf]
      %v6074 = vld [vmem:[%s1 + $0x7] sm:$0x1]
      %6076 = vset.pattern.permute.xlu0 0
      %6077 = vperm.xlu0 %6076, %v5972
      %v6078 = vpop.permute.xlu0 %6077
      %6081 = vset.pattern.permute.xlu0 0
      %6082 = vperm.xlu0 %6081, %v5973
      %v6083 = vpop.permute.xlu0 %6082
      %6086 = vset.pattern.permute.xlu0 0
      %6087 = vperm.xlu0 %6086, %v5974
      %v6088 = vpop.permute.xlu0 %6087
      %6091 = vset.pattern.permute.xlu0 0
      %6092 = vperm.xlu0 %6091, %v5975
      %v6093 = vpop.permute.xlu0 %6092
      %6096 = vset.pattern.permute.xlu0 0
      %6097 = vperm.xlu0 %6096, %v5976
      %v6098 = vpop.permute.xlu0 %6097
      %6101 = vset.pattern.permute.xlu0 0
      %6102 = vperm.xlu0 %6101, %v5977
      %v6103 = vpop.permute.xlu0 %6102
      %6106 = vset.pattern.permute.xlu0 0
      %6107 = vperm.xlu0 %6106, %v5978
      %v6108 = vpop.permute.xlu0 %6107
      %6111 = vset.pattern.permute.xlu0 0
      %6112 = vperm.xlu0 %6111, %v5979
      %v6113 = vpop.permute.xlu0 %6112
      %6116 = vset.pattern.permute.xlu0 0
      %6117 = vperm.xlu0 %6116, %v5980
      %v6118 = vpop.permute.xlu0 %6117
      %6121 = vset.pattern.permute.xlu0 0
      %6122 = vperm.xlu0 %6121, %v5981
      %v6123 = vpop.permute.xlu0 %6122
      %6126 = vset.pattern.permute.xlu0 0
      %6127 = vperm.xlu0 %6126, %v5982
      %v6128 = vpop.permute.xlu0 %6127
      %6131 = vset.pattern.permute.xlu0 0
      %6132 = vperm.xlu0 %6131, %v5983
      %v6133 = vpop.permute.xlu0 %6132
      %6136 = vset.pattern.permute.xlu0 0
      %6137 = vperm.xlu0 %6136, %v5984
      %v6138 = vpop.permute.xlu0 %6137
      %6141 = vset.pattern.permute.xlu0 0
      %6142 = vperm.xlu0 %6141, %v5985
      %v6143 = vpop.permute.xlu0 %6142
      %6146 = vset.pattern.permute.xlu0 0
      %6147 = vperm.xlu0 %6146, %v5986
      %v6148 = vpop.permute.xlu0 %6147
      %6151 = vset.pattern.permute.xlu0 0
      %6152 = vperm.xlu0 %6151, %v5987
      %v6153 = vpop.permute.xlu0 %6152
      %6156 = vset.pattern.permute.xlu0 0
      %6157 = vperm.xlu0 %6156, %v5988
      %v6158 = vpop.permute.xlu0 %6157
      %6161 = vset.pattern.permute.xlu0 0
      %6162 = vperm.xlu0 %6161, %v5989
      %v6163 = vpop.permute.xlu0 %6162
      %6166 = vset.pattern.permute.xlu0 0
      %6167 = vperm.xlu0 %6166, %v5990
      %v6168 = vpop.permute.xlu0 %6167
      %6171 = vset.pattern.permute.xlu0 0
      %6172 = vperm.xlu0 %6171, %v5991
      %v6173 = vpop.permute.xlu0 %6172
      %6176 = vset.pattern.permute.xlu0 0
      %6177 = vperm.xlu0 %6176, %v5992
      %v6178 = vpop.permute.xlu0 %6177
      %6181 = vset.pattern.permute.xlu0 0
      %6182 = vperm.xlu0 %6181, %v5993
      %v6183 = vpop.permute.xlu0 %6182
      %6186 = vset.pattern.permute.xlu0 0
      %6187 = vperm.xlu0 %6186, %v5994
      %v6188 = vpop.permute.xlu0 %6187
      %6191 = vset.pattern.permute.xlu0 0
      %6192 = vperm.xlu0 %6191, %v5995
      %v6193 = vpop.permute.xlu0 %6192
      %6196 = vset.pattern.permute.xlu0 0
      %6197 = vperm.xlu0 %6196, %v5996
      %v6198 = vpop.permute.xlu0 %6197
      %6201 = vset.pattern.permute.xlu0 0
      %6202 = vperm.xlu0 %6201, %v5997
      %v6203 = vpop.permute.xlu0 %6202
      %6206 = vset.pattern.permute.xlu0 0
      %6207 = vperm.xlu0 %6206, %v5998
      %v6208 = vpop.permute.xlu0 %6207
      %6211 = vset.pattern.permute.xlu0 0
      %6212 = vperm.xlu0 %6211, %v5999
      %v6213 = vpop.permute.xlu0 %6212
      %6216 = vset.pattern.permute.xlu0 0
      %6217 = vperm.xlu0 %6216, %v6000
      %v6218 = vpop.permute.xlu0 %6217
      %6221 = vset.pattern.permute.xlu0 0
      %6222 = vperm.xlu0 %6221, %v6001
      %v6223 = vpop.permute.xlu0 %6222
      %6226 = vset.pattern.permute.xlu0 0
      %6227 = vperm.xlu0 %6226, %v6002
      %v6228 = vpop.permute.xlu0 %6227
      %6231 = vset.pattern.permute.xlu0 0
      %6232 = vperm.xlu0 %6231, %v6003
      %v6233 = vpop.permute.xlu0 %6232
      %6236 = vset.pattern.permute.xlu0 0
      %6237 = vperm.xlu0 %6236, %v6004
      %v6238 = vpop.permute.xlu0 %6237
      %6241 = vset.pattern.permute.xlu0 0
      %6242 = vperm.xlu0 %6241, %v6005
      %v6243 = vpop.permute.xlu0 %6242
      %6246 = vset.pattern.permute.xlu0 0
      %6247 = vperm.xlu0 %6246, %v6006
      %v6248 = vpop.permute.xlu0 %6247
      %6251 = vset.pattern.permute.xlu0 0
      %6252 = vperm.xlu0 %6251, %v6007
      %v6253 = vpop.permute.xlu0 %6252
      %6256 = vset.pattern.permute.xlu0 0
      %6257 = vperm.xlu0 %6256, %v6008
      %v6258 = vpop.permute.xlu0 %6257
      %6261 = vset.pattern.permute.xlu0 0
      %6262 = vperm.xlu0 %6261, %v6009
      %v6263 = vpop.permute.xlu0 %6262
      %6266 = vset.pattern.permute.xlu0 0
      %6267 = vperm.xlu0 %6266, %v6010
      %v6268 = vpop.permute.xlu0 %6267
      %6271 = vset.pattern.permute.xlu0 0
      %6272 = vperm.xlu0 %6271, %v6011
      %v6273 = vpop.permute.xlu0 %6272
      %6276 = vset.pattern.permute.xlu0 0
      %6277 = vperm.xlu0 %6276, %v6012
      %v6278 = vpop.permute.xlu0 %6277
      %6281 = vset.pattern.permute.xlu0 0
      %6282 = vperm.xlu0 %6281, %v6013
      %v6283 = vpop.permute.xlu0 %6282
      %6286 = vset.pattern.permute.xlu0 0
      %6287 = vperm.xlu0 %6286, %v6014
      %v6288 = vpop.permute.xlu0 %6287
      %6291 = vset.pattern.permute.xlu0 0
      %6292 = vperm.xlu0 %6291, %v6015
      %v6293 = vpop.permute.xlu0 %6292
      %6296 = vset.pattern.permute.xlu0 0
      %6297 = vperm.xlu0 %6296, %v6016
      %v6298 = vpop.permute.xlu0 %6297
      %6301 = vset.pattern.permute.xlu0 0
      %6302 = vperm.xlu0 %6301, %v6017
      %v6303 = vpop.permute.xlu0 %6302
      %6306 = vset.pattern.permute.xlu0 0
      %6307 = vperm.xlu0 %6306, %v6018
      %v6308 = vpop.permute.xlu0 %6307
      %6311 = vset.pattern.permute.xlu0 0
      %6312 = vperm.xlu0 %6311, %v6019
      %v6313 = vpop.permute.xlu0 %6312
      %6316 = vset.pattern.permute.xlu0 0
      %6317 = vperm.xlu0 %6316, %v6020
      %v6318 = vpop.permute.xlu0 %6317
      %6321 = vset.pattern.permute.xlu0 0
      %6322 = vperm.xlu0 %6321, %v6021
      %v6323 = vpop.permute.xlu0 %6322
      %6326 = vset.pattern.permute.xlu0 0
      %6327 = vperm.xlu0 %6326, %v6022
      %v6328 = vpop.permute.xlu0 %6327
      %6331 = vset.pattern.permute.xlu0 0
      %6332 = vperm.xlu0 %6331, %v6023
      %v6333 = vpop.permute.xlu0 %6332
      %6336 = vset.pattern.permute.xlu0 0
      %6337 = vperm.xlu0 %6336, %v6024
      %v6338 = vpop.permute.xlu0 %6337
      %6341 = vset.pattern.permute.xlu0 0
      %6342 = vperm.xlu0 %6341, %v6025
      %v6343 = vpop.permute.xlu0 %6342
      %6346 = vset.pattern.permute.xlu0 0
      %6347 = vperm.xlu0 %6346, %v6026
      %v6348 = vpop.permute.xlu0 %6347
      %6351 = vset.pattern.permute.xlu0 0
      %6352 = vperm.xlu0 %6351, %v6027
      %v6353 = vpop.permute.xlu0 %6352
      %6356 = vset.pattern.permute.xlu0 0
      %6357 = vperm.xlu0 %6356, %v6028
      %v6358 = vpop.permute.xlu0 %6357
      %6361 = vset.pattern.permute.xlu0 0
      %6362 = vperm.xlu0 %6361, %v6029
      %v6363 = vpop.permute.xlu0 %6362
      %6366 = vset.pattern.permute.xlu0 0
      %6367 = vperm.xlu0 %6366, %v6030
      %v6368 = vpop.permute.xlu0 %6367
      %6371 = vset.pattern.permute.xlu0 0
      %6372 = vperm.xlu0 %6371, %v6031
      %v6373 = vpop.permute.xlu0 %6372
      %6376 = vset.pattern.permute.xlu0 0
      %6377 = vperm.xlu0 %6376, %v6032
      %v6378 = vpop.permute.xlu0 %6377
      %6381 = vset.pattern.permute.xlu0 0
      %6382 = vperm.xlu0 %6381, %v6033
      %v6383 = vpop.permute.xlu0 %6382
      %6386 = vset.pattern.permute.xlu0 0
      %6387 = vperm.xlu0 %6386, %v6034
      %v6388 = vpop.permute.xlu0 %6387
      %6391 = vset.pattern.permute.xlu0 0
      %6392 = vperm.xlu0 %6391, %v6035
      %v6393 = vpop.permute.xlu0 %6392
      %6396 = vset.pattern.permute.xlu0 0
      %6397 = vperm.xlu0 %6396, %v6036
      %v6398 = vpop.permute.xlu0 %6397
      %6401 = vset.pattern.permute.xlu0 0
      %6402 = vperm.xlu0 %6401, %v6037
      %v6403 = vpop.permute.xlu0 %6402
      %6406 = vset.pattern.permute.xlu0 0
      %6407 = vperm.xlu0 %6406, %v6038
      %v6408 = vpop.permute.xlu0 %6407
      %6411 = vset.pattern.permute.xlu0 0
      %6412 = vperm.xlu0 %6411, %v6039
      %v6413 = vpop.permute.xlu0 %6412
      %6416 = vset.pattern.permute.xlu0 0
      %6417 = vperm.xlu0 %6416, %v6040
      %v6418 = vpop.permute.xlu0 %6417
      %6421 = vset.pattern.permute.xlu0 0
      %6422 = vperm.xlu0 %6421, %v6041
      %v6423 = vpop.permute.xlu0 %6422
      %6426 = vset.pattern.permute.xlu0 0
      %6427 = vperm.xlu0 %6426, %v6042
      %v6428 = vpop.permute.xlu0 %6427
      %6431 = vset.pattern.permute.xlu0 0
      %6432 = vperm.xlu0 %6431, %v6043
      %v6433 = vpop.permute.xlu0 %6432
      %6436 = vset.pattern.permute.xlu0 0
      %6437 = vperm.xlu0 %6436, %v6044
      %v6438 = vpop.permute.xlu0 %6437
      %6441 = vset.pattern.permute.xlu0 0
      %6442 = vperm.xlu0 %6441, %v6045
      %v6443 = vpop.permute.xlu0 %6442
      %6446 = vset.pattern.permute.xlu0 0
      %6447 = vperm.xlu0 %6446, %v6046
      %v6448 = vpop.permute.xlu0 %6447
      %6451 = vset.pattern.permute.xlu0 0
      %6452 = vperm.xlu0 %6451, %v6047
      %v6453 = vpop.permute.xlu0 %6452
      %6456 = vset.pattern.permute.xlu0 0
      %6457 = vperm.xlu0 %6456, %v6048
      %v6458 = vpop.permute.xlu0 %6457
      %6461 = vset.pattern.permute.xlu0 0
      %6462 = vperm.xlu0 %6461, %v6049
      %v6463 = vpop.permute.xlu0 %6462
      %6466 = vset.pattern.permute.xlu0 0
      %6467 = vperm.xlu0 %6466, %v6050
      %v6468 = vpop.permute.xlu0 %6467
      %6471 = vset.pattern.permute.xlu0 0
      %6472 = vperm.xlu0 %6471, %v6051
      %v6473 = vpop.permute.xlu0 %6472
      %6476 = vset.pattern.permute.xlu0 0
      %6477 = vperm.xlu0 %6476, %v6052
      %v6478 = vpop.permute.xlu0 %6477
      %6481 = vset.pattern.permute.xlu0 0
      %6482 = vperm.xlu0 %6481, %v6053
      %v6483 = vpop.permute.xlu0 %6482
      %6486 = vset.pattern.permute.xlu0 0
      %6487 = vperm.xlu0 %6486, %v6054
      %v6488 = vpop.permute.xlu0 %6487
      %6491 = vset.pattern.permute.xlu0 0
      %6492 = vperm.xlu0 %6491, %v6055
      %v6493 = vpop.permute.xlu0 %6492
      %6496 = vset.pattern.permute.xlu0 0
      %6497 = vperm.xlu0 %6496, %v6056
      %v6498 = vpop.permute.xlu0 %6497
      %6501 = vset.pattern.permute.xlu0 0
      %6502 = vperm.xlu0 %6501, %v6057
      %v6503 = vpop.permute.xlu0 %6502
      %6506 = vset.pattern.permute.xlu0 0
      %6507 = vperm.xlu0 %6506, %v6058
      %v6508 = vpop.permute.xlu0 %6507
      %6511 = vset.pattern.permute.xlu0 0
      %6512 = vperm.xlu0 %6511, %v6059
      %v6513 = vpop.permute.xlu0 %6512
      %6516 = vset.pattern.permute.xlu0 0
      %6517 = vperm.xlu0 %6516, %v6060
      %v6518 = vpop.permute.xlu0 %6517
      %6521 = vset.pattern.permute.xlu0 0
      %6522 = vperm.xlu0 %6521, %v6061
      %v6523 = vpop.permute.xlu0 %6522
      %6526 = vset.pattern.permute.xlu0 0
      %6527 = vperm.xlu0 %6526, %v6062
      %v6528 = vpop.permute.xlu0 %6527
      %6531 = vset.pattern.permute.xlu0 0
      %6532 = vperm.xlu0 %6531, %v6063
      %v6533 = vpop.permute.xlu0 %6532
      %6536 = vset.pattern.permute.xlu0 0
      %6537 = vperm.xlu0 %6536, %v6064
      %v6538 = vpop.permute.xlu0 %6537
      %6541 = vset.pattern.permute.xlu0 0
      %6542 = vperm.xlu0 %6541, %v6065
      %v6543 = vpop.permute.xlu0 %6542
      %6546 = vset.pattern.permute.xlu0 0
      %6547 = vperm.xlu0 %6546, %v6066
      %v6548 = vpop.permute.xlu0 %6547
      %6551 = vset.pattern.permute.xlu0 0
      %6552 = vperm.xlu0 %6551, %v6067
      %v6553 = vpop.permute.xlu0 %6552
      %6556 = vset.pattern.permute.xlu0 0
      %6557 = vperm.xlu0 %6556, %v6068
      %v6558 = vpop.permute.xlu0 %6557
      %6561 = vset.pattern.permute.xlu0 0
      %6562 = vperm.xlu0 %6561, %v6069
      %v6563 = vpop.permute.xlu0 %6562
      %6566 = vset.pattern.permute.xlu0 0
      %6567 = vperm.xlu0 %6566, %v6070
      %v6568 = vpop.permute.xlu0 %6567
      %6571 = vset.pattern.permute.xlu0 0
      %6572 = vperm.xlu0 %6571, %v6071
      %v6573 = vpop.permute.xlu0 %6572
      %6576 = vset.pattern.permute.xlu0 0
      %6577 = vperm.xlu0 %6576, %v6072
      %v6578 = vpop.permute.xlu0 %6577
      %6581 = vset.pattern.permute.xlu0 0
      %6582 = vperm.xlu0 %6581, %v6073
      %v6583 = vpop.permute.xlu0 %6582
      %v6585 = vperm.slane %v6074, 0
      %v6586 = vmul.f32 %v6078, %v6585
      %v6587 = vmul.f32 %v6083, %v6585
      %v6588 = vmul.f32 %v6088, %v6585
      %v6589 = vmul.f32 %v6093, %v6585
      %v6590 = vmul.f32 %v6098, %v6585
      %v6591 = vmul.f32 %v6103, %v6585
      %v6592 = vmul.f32 %v6108, %v6585
      %v6593 = vmul.f32 %v6113, %v6585
      %v6594 = vmul.f32 %v6118, %v6585
      %v6595 = vmul.f32 %v6123, %v6585
      %v6596 = vmul.f32 %v6128, %v6585
      %v6597 = vmul.f32 %v6133, %v6585
      %v6598 = vmul.f32 %v6138, %v6585
      %v6599 = vmul.f32 %v6143, %v6585
      %v6600 = vmul.f32 %v6148, %v6585
      %v6601 = vmul.f32 %v6153, %v6585
      %v6602 = vmul.f32 %v6158, %v6585
      %v6603 = vmul.f32 %v6163, %v6585
      %v6604 = vmul.f32 %v6168, %v6585
      %v6605 = vmul.f32 %v6173, %v6585
      %v6606 = vmul.f32 %v6178, %v6585
      %v6607 = vmul.f32 %v6183, %v6585
      %v6608 = vmul.f32 %v6188, %v6585
      %v6609 = vmul.f32 %v6193, %v6585
      %v6610 = vmul.f32 %v6198, %v6585
      %v6611 = vmul.f32 %v6203, %v6585
      %v6612 = vmul.f32 %v6208, %v6585
      %v6613 = vmul.f32 %v6213, %v6585
      %v6614 = vmul.f32 %v6218, %v6585
      %v6615 = vmul.f32 %v6223, %v6585
      %v6616 = vmul.f32 %v6228, %v6585
      %v6617 = vmul.f32 %v6233, %v6585
      %v6618 = vmul.f32 %v6238, %v6585
      %v6619 = vmul.f32 %v6243, %v6585
      %v6620 = vmul.f32 %v6248, %v6585
      %v6621 = vmul.f32 %v6253, %v6585
      %v6622 = vmul.f32 %v6258, %v6585
      %v6623 = vmul.f32 %v6263, %v6585
      %v6624 = vmul.f32 %v6268, %v6585
      %v6625 = vmul.f32 %v6273, %v6585
      %v6626 = vmul.f32 %v6278, %v6585
      %v6627 = vmul.f32 %v6283, %v6585
      %v6628 = vmul.f32 %v6288, %v6585
      %v6629 = vmul.f32 %v6293, %v6585
      %v6630 = vmul.f32 %v6298, %v6585
      %v6631 = vmul.f32 %v6303, %v6585
      %v6632 = vmul.f32 %v6308, %v6585
      %v6633 = vmul.f32 %v6313, %v6585
      %v6634 = vmul.f32 %v6318, %v6585
      %v6635 = vmul.f32 %v6323, %v6585
      %v6636 = vmul.f32 %v6328, %v6585
      %v6637 = vmul.f32 %v6333, %v6585
      %v6638 = vmul.f32 %v6338, %v6585
      %v6639 = vmul.f32 %v6343, %v6585
      %v6640 = vmul.f32 %v6348, %v6585
      %v6641 = vmul.f32 %v6353, %v6585
      %v6642 = vmul.f32 %v6358, %v6585
      %v6643 = vmul.f32 %v6363, %v6585
      %v6644 = vmul.f32 %v6368, %v6585
      %v6645 = vmul.f32 %v6373, %v6585
      %v6646 = vmul.f32 %v6378, %v6585
      %v6647 = vmul.f32 %v6383, %v6585
      %v6648 = vmul.f32 %v6388, %v6585
      %v6649 = vmul.f32 %v6393, %v6585
      %v6650 = vmul.f32 %v6398, %v6585
      %v6651 = vmul.f32 %v6403, %v6585
      %v6652 = vmul.f32 %v6408, %v6585
      %v6653 = vmul.f32 %v6413, %v6585
      %v6654 = vmul.f32 %v6418, %v6585
      %v6655 = vmul.f32 %v6423, %v6585
      %v6656 = vmul.f32 %v6428, %v6585
      %v6657 = vmul.f32 %v6433, %v6585
      %v6658 = vmul.f32 %v6438, %v6585
      %v6659 = vmul.f32 %v6443, %v6585
      %v6660 = vmul.f32 %v6448, %v6585
      %v6661 = vmul.f32 %v6453, %v6585
      %v6662 = vmul.f32 %v6458, %v6585
      %v6663 = vmul.f32 %v6463, %v6585
      %v6664 = vmul.f32 %v6468, %v6585
      %v6665 = vmul.f32 %v6473, %v6585
      %v6666 = vmul.f32 %v6478, %v6585
      %v6667 = vmul.f32 %v6483, %v6585
      %v6668 = vmul.f32 %v6488, %v6585
      %v6669 = vmul.f32 %v6493, %v6585
      %v6670 = vmul.f32 %v6498, %v6585
      %v6671 = vmul.f32 %v6503, %v6585
      %v6672 = vmul.f32 %v6508, %v6585
      %v6673 = vmul.f32 %v6513, %v6585
      %v6674 = vmul.f32 %v6518, %v6585
      %v6675 = vmul.f32 %v6523, %v6585
      %v6676 = vmul.f32 %v6528, %v6585
      %v6677 = vmul.f32 %v6533, %v6585
      %v6678 = vmul.f32 %v6538, %v6585
      %v6679 = vmul.f32 %v6543, %v6585
      %v6680 = vmul.f32 %v6548, %v6585
      %v6681 = vmul.f32 %v6553, %v6585
      %v6682 = vmul.f32 %v6558, %v6585
      %v6683 = vmul.f32 %v6563, %v6585
      %v6684 = vmul.f32 %v6568, %v6585
      %v6685 = vmul.f32 %v6573, %v6585
      %v6686 = vmul.f32 %v6578, %v6585
      %v6687 = vmul.f32 %v6583, %v6585
      %v6688 = vadd.f32 %v5870, %v6586
      %v6689 = vadd.f32 %v5871, %v6587
      %v6690 = vadd.f32 %v5872, %v6588
      %v6691 = vadd.f32 %v5873, %v6589
      %v6692 = vadd.f32 %v5874, %v6590
      %v6693 = vadd.f32 %v5875, %v6591
      %v6694 = vadd.f32 %v5876, %v6592
      %v6695 = vadd.f32 %v5877, %v6593
      %v6696 = vadd.f32 %v5878, %v6594
      %v6697 = vadd.f32 %v5879, %v6595
      %v6698 = vadd.f32 %v5880, %v6596
      %v6699 = vadd.f32 %v5881, %v6597
      %v6700 = vadd.f32 %v5882, %v6598
      %v6701 = vadd.f32 %v5883, %v6599
      %v6702 = vadd.f32 %v5884, %v6600
      %v6703 = vadd.f32 %v5885, %v6601
      %v6704 = vadd.f32 %v5886, %v6602
      %v6705 = vadd.f32 %v5887, %v6603
      %v6706 = vadd.f32 %v5888, %v6604
      %v6707 = vadd.f32 %v5889, %v6605
      %v6708 = vadd.f32 %v5890, %v6606
      %v6709 = vadd.f32 %v5891, %v6607
      %v6710 = vadd.f32 %v5892, %v6608
      %v6711 = vadd.f32 %v5893, %v6609
      %v6712 = vadd.f32 %v5894, %v6610
      %v6713 = vadd.f32 %v5895, %v6611
      %v6714 = vadd.f32 %v5896, %v6612
      %v6715 = vadd.f32 %v5897, %v6613
      %v6716 = vadd.f32 %v5898, %v6614
      %v6717 = vadd.f32 %v5899, %v6615
      %v6718 = vadd.f32 %v5900, %v6616
      %v6719 = vadd.f32 %v5901, %v6617
      %v6720 = vadd.f32 %v5902, %v6618
      %v6721 = vadd.f32 %v5903, %v6619
      %v6722 = vadd.f32 %v5904, %v6620
      %v6723 = vadd.f32 %v5905, %v6621
      %v6724 = vadd.f32 %v5906, %v6622
      %v6725 = vadd.f32 %v5907, %v6623
      %v6726 = vadd.f32 %v5908, %v6624
      %v6727 = vadd.f32 %v5909, %v6625
      %v6728 = vadd.f32 %v5910, %v6626
      %v6729 = vadd.f32 %v5911, %v6627
      %v6730 = vadd.f32 %v5912, %v6628
      %v6731 = vadd.f32 %v5913, %v6629
      %v6732 = vadd.f32 %v5914, %v6630
      %v6733 = vadd.f32 %v5915, %v6631
      %v6734 = vadd.f32 %v5916, %v6632
      %v6735 = vadd.f32 %v5917, %v6633
      %v6736 = vadd.f32 %v5918, %v6634
      %v6737 = vadd.f32 %v5919, %v6635
      %v6738 = vadd.f32 %v5920, %v6636
      %v6739 = vadd.f32 %v5921, %v6637
      %v6740 = vadd.f32 %v5922, %v6638
      %v6741 = vadd.f32 %v5923, %v6639
      %v6742 = vadd.f32 %v5924, %v6640
      %v6743 = vadd.f32 %v5925, %v6641
      %v6744 = vadd.f32 %v5926, %v6642
      %v6745 = vadd.f32 %v5927, %v6643
      %v6746 = vadd.f32 %v5928, %v6644
      %v6747 = vadd.f32 %v5929, %v6645
      %v6748 = vadd.f32 %v5930, %v6646
      %v6749 = vadd.f32 %v5931, %v6647
      %v6750 = vadd.f32 %v5932, %v6648
      %v6751 = vadd.f32 %v5933, %v6649
      %v6752 = vadd.f32 %v5934, %v6650
      %v6753 = vadd.f32 %v5935, %v6651
      %v6754 = vadd.f32 %v5936, %v6652
      %v6755 = vadd.f32 %v5937, %v6653
      %v6756 = vadd.f32 %v5938, %v6654
      %v6757 = vadd.f32 %v5939, %v6655
      %v6758 = vadd.f32 %v5940, %v6656
      %v6759 = vadd.f32 %v5941, %v6657
      %v6760 = vadd.f32 %v5942, %v6658
      %v6761 = vadd.f32 %v5943, %v6659
      %v6762 = vadd.f32 %v5944, %v6660
      %v6763 = vadd.f32 %v5945, %v6661
      %v6764 = vadd.f32 %v5946, %v6662
      %v6765 = vadd.f32 %v5947, %v6663
      %v6766 = vadd.f32 %v5948, %v6664
      %v6767 = vadd.f32 %v5949, %v6665
      %v6768 = vadd.f32 %v5950, %v6666
      %v6769 = vadd.f32 %v5951, %v6667
      %v6770 = vadd.f32 %v5952, %v6668
      %v6771 = vadd.f32 %v5953, %v6669
      %v6772 = vadd.f32 %v5954, %v6670
      %v6773 = vadd.f32 %v5955, %v6671
      %v6774 = vadd.f32 %v5956, %v6672
      %v6775 = vadd.f32 %v5957, %v6673
      %v6776 = vadd.f32 %v5958, %v6674
      %v6777 = vadd.f32 %v5959, %v6675
      %v6778 = vadd.f32 %v5960, %v6676
      %v6779 = vadd.f32 %v5961, %v6677
      %v6780 = vadd.f32 %v5962, %v6678
      %v6781 = vadd.f32 %v5963, %v6679
      %v6782 = vadd.f32 %v5964, %v6680
      %v6783 = vadd.f32 %v5965, %v6681
      %v6784 = vadd.f32 %v5966, %v6682
      %v6785 = vadd.f32 %v5967, %v6683
      %v6786 = vadd.f32 %v5968, %v6684
      %v6787 = vadd.f32 %v5969, %v6685
      %v6788 = vadd.f32 %v5970, %v6686
      %v6789 = vadd.f32 %v5971, %v6687
      %v6790 = vld [vmem:[%s219 + $0x58] sm:$0xff]
      %v6791 = vld [vmem:[%s219 + $0x60] sm:$0xff]
      %v6792 = vld [vmem:[%s219 + $0x68] sm:$0xff]
      %v6793 = vld [vmem:[%s219 + $0x70] sm:$0xff]
      %v6794 = vld [vmem:[%s219 + $0x78] sm:$0xff]
      %v6795 = vld [vmem:[%s219 + $0x80] sm:$0xff]
      %v6796 = vld [vmem:[%s219 + $0x88] sm:$0xff]
      %v6797 = vld [vmem:[%s219 + $0x90] sm:$0xff]
      %v6798 = vld [vmem:[%s219 + $0x98] sm:$0xff]
      %v6799 = vld [vmem:[%s219 + $0xa0] sm:$0xff]
      %v6800 = vld [vmem:[%s219 + $0xa8] sm:$0xff]
      %v6801 = vld [vmem:[%s219 + $0xb0] sm:$0xff]
      %v6802 = vld [vmem:[%s219 + $0xb8] sm:$0xff]
      %v6803 = vld [vmem:[%s219 + $0xc0] sm:$0xff]
      %v6804 = vld [vmem:[%s219 + $0xc8] sm:$0xff]
      %v6805 = vld [vmem:[%s219 + $0xd0] sm:$0xff]
      %v6806 = vld [vmem:[%s219 + $0xd8] sm:$0xff]
      %v6807 = vld [vmem:[%s219 + $0xe0] sm:$0xff]
      %v6808 = vld [vmem:[%s219 + $0xe8] sm:$0xff]
      %v6809 = vld [vmem:[%s219 + $0xf0] sm:$0xff]
      %v6810 = vld [vmem:[%s219 + $0xf8] sm:$0xff]
      %v6811 = vld [vmem:[%s219 + $0x100] sm:$0xff]
      %v6812 = vld [vmem:[%s219 + $0x108] sm:$0xff]
      %v6813 = vld [vmem:[%s219 + $0x110] sm:$0xff]
      %v6814 = vld [vmem:[%s219 + $0x118] sm:$0xff]
      %v6815 = vld [vmem:[%s219 + $0x120] sm:$0xff]
      %v6816 = vld [vmem:[%s219 + $0x128] sm:$0xff]
      %v6817 = vld [vmem:[%s219 + $0x130] sm:$0xff]
      %v6818 = vld [vmem:[%s219 + $0x138] sm:$0xff]
      %v6819 = vld [vmem:[%s219 + $0x140] sm:$0xff]
      %v6820 = vld [vmem:[%s219 + $0x148] sm:$0xff]
      %v6821 = vld [vmem:[%s219 + $0x150] sm:$0xff]
      %v6822 = vld [vmem:[%s219 + $0x158] sm:$0xff]
      %v6823 = vld [vmem:[%s219 + $0x160] sm:$0xff]
      %v6824 = vld [vmem:[%s219 + $0x168] sm:$0xff]
      %v6825 = vld [vmem:[%s219 + $0x170] sm:$0xff]
      %v6826 = vld [vmem:[%s219 + $0x178] sm:$0xff]
      %v6827 = vld [vmem:[%s219 + $0x180] sm:$0xff]
      %v6828 = vld [vmem:[%s219 + $0x188] sm:$0xff]
      %v6829 = vld [vmem:[%s219 + $0x190] sm:$0xff]
      %v6830 = vld [vmem:[%s219 + $0x198] sm:$0xff]
      %v6831 = vld [vmem:[%s219 + $0x1a0] sm:$0xff]
      %v6832 = vld [vmem:[%s219 + $0x1a8] sm:$0xff]
      %v6833 = vld [vmem:[%s219 + $0x1b0] sm:$0xff]
      %v6834 = vld [vmem:[%s219 + $0x1b8] sm:$0xff]
      %v6835 = vld [vmem:[%s219 + $0x1c0] sm:$0xff]
      %v6836 = vld [vmem:[%s219 + $0x1c8] sm:$0xff]
      %v6837 = vld [vmem:[%s219 + $0x1d0] sm:$0xff]
      %v6838 = vld [vmem:[%s219 + $0x1d8] sm:$0xff]
      %v6839 = vld [vmem:[%s219 + $0x1e0] sm:$0xff]
      %v6840 = vld [vmem:[%s219 + $0x1e8] sm:$0xff]
      %v6841 = vld [vmem:[%s219 + $0x1f0] sm:$0xff]
      %v6842 = vld [vmem:[%s219 + $0x1f8] sm:$0xff]
      %v6843 = vld [vmem:[%s219 + $0x200] sm:$0xff]
      %v6844 = vld [vmem:[%s219 + $0x208] sm:$0xff]
      %v6845 = vld [vmem:[%s219 + $0x210] sm:$0xff]
      %v6846 = vld [vmem:[%s219 + $0x218] sm:$0xff]
      %v6847 = vld [vmem:[%s219 + $0x220] sm:$0xff]
      %v6848 = vld [vmem:[%s219 + $0x228] sm:$0xff]
      %v6849 = vld [vmem:[%s219 + $0x230] sm:$0xff]
      %v6850 = vld [vmem:[%s219 + $0x238] sm:$0xff]
      %v6851 = vld [vmem:[%s219 + $0x240] sm:$0xff]
      %v6852 = vld [vmem:[%s219 + $0x248] sm:$0xff]
      %v6853 = vld [vmem:[%s219 + $0x250] sm:$0xff]
      %v6854 = vld [vmem:[%s219 + $0x258] sm:$0xff]
      %v6855 = vld [vmem:[%s219 + $0x260] sm:$0xff]
      %v6856 = vld [vmem:[%s219 + $0x268] sm:$0xff]
      %v6857 = vld [vmem:[%s219 + $0x270] sm:$0xff]
      %v6858 = vld [vmem:[%s219 + $0x278] sm:$0xff]
      %v6859 = vld [vmem:[%s219 + $0x280] sm:$0xff]
      %v6860 = vld [vmem:[%s219 + $0x288] sm:$0xff]
      %v6861 = vld [vmem:[%s219 + $0x290] sm:$0xff]
      %v6862 = vld [vmem:[%s219 + $0x298] sm:$0xff]
      %v6863 = vld [vmem:[%s219 + $0x2a0] sm:$0xff]
      %v6864 = vld [vmem:[%s219 + $0x2a8] sm:$0xff]
      %v6865 = vld [vmem:[%s219 + $0x2b0] sm:$0xff]
      %v6866 = vld [vmem:[%s219 + $0x2b8] sm:$0xff]
      %v6867 = vld [vmem:[%s219 + $0x2c0] sm:$0xff]
      %v6868 = vld [vmem:[%s219 + $0x2c8] sm:$0xff]
      %v6869 = vld [vmem:[%s219 + $0x2d0] sm:$0xff]
      %v6870 = vld [vmem:[%s219 + $0x2d8] sm:$0xff]
      %v6871 = vld [vmem:[%s219 + $0x2e0] sm:$0xff]
      %v6872 = vld [vmem:[%s219 + $0x2e8] sm:$0xff]
      %v6873 = vld [vmem:[%s219 + $0x2f0] sm:$0xff]
      %v6874 = vld [vmem:[%s219 + $0x2f8] sm:$0xff]
      %v6875 = vld [vmem:[%s219 + $0x300] sm:$0xff]
      %v6876 = vld [vmem:[%s219 + $0x308] sm:$0xff]
      %v6877 = vld [vmem:[%s219 + $0x310] sm:$0xff]
      %v6878 = vld [vmem:[%s219 + $0x318] sm:$0xff]
      %v6879 = vld [vmem:[%s219 + $0x320] sm:$0xff]
      %v6880 = vld [vmem:[%s219 + $0x328] sm:$0xff]
      %v6881 = vld [vmem:[%s219 + $0x330] sm:$0xff]
      %v6882 = vld [vmem:[%s219 + $0x338] sm:$0xff]
      %v6883 = vld [vmem:[%s219 + $0x340] sm:$0xff]
      %v6884 = vld [vmem:[%s219 + $0x348] sm:$0xff]
      %v6885 = vld [vmem:[%s219 + $0x350] sm:$0xff]
      %v6886 = vld [vmem:[%s219 + $0x358] sm:$0xff]
      %v6887 = vld [vmem:[%s219 + $0x360] sm:$0xff]
      %v6888 = vld [vmem:[%s219 + $0x368] sm:$0xff]
      %v6889 = vld [vmem:[%s219 + $0x370] sm:$0xff]
      %v6890 = vld [vmem:[%s219 + $0x378] sm:$0xff]
      %v6891 = vld [vmem:[%s219 + $0x380] sm:$0xf]
      %v6892 = vld [vmem:[%s1 + $0x8] sm:$0x1]
      %6894 = vset.pattern.permute.xlu0 0
      %6895 = vperm.xlu0 %6894, %v6790
      %v6896 = vpop.permute.xlu0 %6895
      %6899 = vset.pattern.permute.xlu0 0
      %6900 = vperm.xlu0 %6899, %v6791
      %v6901 = vpop.permute.xlu0 %6900
      %6904 = vset.pattern.permute.xlu0 0
      %6905 = vperm.xlu0 %6904, %v6792
      %v6906 = vpop.permute.xlu0 %6905
      %6909 = vset.pattern.permute.xlu0 0
      %6910 = vperm.xlu0 %6909, %v6793
      %v6911 = vpop.permute.xlu0 %6910
      %6914 = vset.pattern.permute.xlu0 0
      %6915 = vperm.xlu0 %6914, %v6794
      %v6916 = vpop.permute.xlu0 %6915
      %6919 = vset.pattern.permute.xlu0 0
      %6920 = vperm.xlu0 %6919, %v6795
      %v6921 = vpop.permute.xlu0 %6920
      %6924 = vset.pattern.permute.xlu0 0
      %6925 = vperm.xlu0 %6924, %v6796
      %v6926 = vpop.permute.xlu0 %6925
      %6929 = vset.pattern.permute.xlu0 0
      %6930 = vperm.xlu0 %6929, %v6797
      %v6931 = vpop.permute.xlu0 %6930
      %6934 = vset.pattern.permute.xlu0 0
      %6935 = vperm.xlu0 %6934, %v6798
      %v6936 = vpop.permute.xlu0 %6935
      %6939 = vset.pattern.permute.xlu0 0
      %6940 = vperm.xlu0 %6939, %v6799
      %v6941 = vpop.permute.xlu0 %6940
      %6944 = vset.pattern.permute.xlu0 0
      %6945 = vperm.xlu0 %6944, %v6800
      %v6946 = vpop.permute.xlu0 %6945
      %6949 = vset.pattern.permute.xlu0 0
      %6950 = vperm.xlu0 %6949, %v6801
      %v6951 = vpop.permute.xlu0 %6950
      %6954 = vset.pattern.permute.xlu0 0
      %6955 = vperm.xlu0 %6954, %v6802
      %v6956 = vpop.permute.xlu0 %6955
      %6959 = vset.pattern.permute.xlu0 0
      %6960 = vperm.xlu0 %6959, %v6803
      %v6961 = vpop.permute.xlu0 %6960
      %6964 = vset.pattern.permute.xlu0 0
      %6965 = vperm.xlu0 %6964, %v6804
      %v6966 = vpop.permute.xlu0 %6965
      %6969 = vset.pattern.permute.xlu0 0
      %6970 = vperm.xlu0 %6969, %v6805
      %v6971 = vpop.permute.xlu0 %6970
      %6974 = vset.pattern.permute.xlu0 0
      %6975 = vperm.xlu0 %6974, %v6806
      %v6976 = vpop.permute.xlu0 %6975
      %6979 = vset.pattern.permute.xlu0 0
      %6980 = vperm.xlu0 %6979, %v6807
      %v6981 = vpop.permute.xlu0 %6980
      %6984 = vset.pattern.permute.xlu0 0
      %6985 = vperm.xlu0 %6984, %v6808
      %v6986 = vpop.permute.xlu0 %6985
      %6989 = vset.pattern.permute.xlu0 0
      %6990 = vperm.xlu0 %6989, %v6809
      %v6991 = vpop.permute.xlu0 %6990
      %6994 = vset.pattern.permute.xlu0 0
      %6995 = vperm.xlu0 %6994, %v6810
      %v6996 = vpop.permute.xlu0 %6995
      %6999 = vset.pattern.permute.xlu0 0
      %7000 = vperm.xlu0 %6999, %v6811
      %v7001 = vpop.permute.xlu0 %7000
      %7004 = vset.pattern.permute.xlu0 0
      %7005 = vperm.xlu0 %7004, %v6812
      %v7006 = vpop.permute.xlu0 %7005
      %7009 = vset.pattern.permute.xlu0 0
      %7010 = vperm.xlu0 %7009, %v6813
      %v7011 = vpop.permute.xlu0 %7010
      %7014 = vset.pattern.permute.xlu0 0
      %7015 = vperm.xlu0 %7014, %v6814
      %v7016 = vpop.permute.xlu0 %7015
      %7019 = vset.pattern.permute.xlu0 0
      %7020 = vperm.xlu0 %7019, %v6815
      %v7021 = vpop.permute.xlu0 %7020
      %7024 = vset.pattern.permute.xlu0 0
      %7025 = vperm.xlu0 %7024, %v6816
      %v7026 = vpop.permute.xlu0 %7025
      %7029 = vset.pattern.permute.xlu0 0
      %7030 = vperm.xlu0 %7029, %v6817
      %v7031 = vpop.permute.xlu0 %7030
      %7034 = vset.pattern.permute.xlu0 0
      %7035 = vperm.xlu0 %7034, %v6818
      %v7036 = vpop.permute.xlu0 %7035
      %7039 = vset.pattern.permute.xlu0 0
      %7040 = vperm.xlu0 %7039, %v6819
      %v7041 = vpop.permute.xlu0 %7040
      %7044 = vset.pattern.permute.xlu0 0
      %7045 = vperm.xlu0 %7044, %v6820
      %v7046 = vpop.permute.xlu0 %7045
      %7049 = vset.pattern.permute.xlu0 0
      %7050 = vperm.xlu0 %7049, %v6821
      %v7051 = vpop.permute.xlu0 %7050
      %7054 = vset.pattern.permute.xlu0 0
      %7055 = vperm.xlu0 %7054, %v6822
      %v7056 = vpop.permute.xlu0 %7055
      %7059 = vset.pattern.permute.xlu0 0
      %7060 = vperm.xlu0 %7059, %v6823
      %v7061 = vpop.permute.xlu0 %7060
      %7064 = vset.pattern.permute.xlu0 0
      %7065 = vperm.xlu0 %7064, %v6824
      %v7066 = vpop.permute.xlu0 %7065
      %7069 = vset.pattern.permute.xlu0 0
      %7070 = vperm.xlu0 %7069, %v6825
      %v7071 = vpop.permute.xlu0 %7070
      %7074 = vset.pattern.permute.xlu0 0
      %7075 = vperm.xlu0 %7074, %v6826
      %v7076 = vpop.permute.xlu0 %7075
      %7079 = vset.pattern.permute.xlu0 0
      %7080 = vperm.xlu0 %7079, %v6827
      %v7081 = vpop.permute.xlu0 %7080
      %7084 = vset.pattern.permute.xlu0 0
      %7085 = vperm.xlu0 %7084, %v6828
      %v7086 = vpop.permute.xlu0 %7085
      %7089 = vset.pattern.permute.xlu0 0
      %7090 = vperm.xlu0 %7089, %v6829
      %v7091 = vpop.permute.xlu0 %7090
      %7094 = vset.pattern.permute.xlu0 0
      %7095 = vperm.xlu0 %7094, %v6830
      %v7096 = vpop.permute.xlu0 %7095
      %7099 = vset.pattern.permute.xlu0 0
      %7100 = vperm.xlu0 %7099, %v6831
      %v7101 = vpop.permute.xlu0 %7100
      %7104 = vset.pattern.permute.xlu0 0
      %7105 = vperm.xlu0 %7104, %v6832
      %v7106 = vpop.permute.xlu0 %7105
      %7109 = vset.pattern.permute.xlu0 0
      %7110 = vperm.xlu0 %7109, %v6833
      %v7111 = vpop.permute.xlu0 %7110
      %7114 = vset.pattern.permute.xlu0 0
      %7115 = vperm.xlu0 %7114, %v6834
      %v7116 = vpop.permute.xlu0 %7115
      %7119 = vset.pattern.permute.xlu0 0
      %7120 = vperm.xlu0 %7119, %v6835
      %v7121 = vpop.permute.xlu0 %7120
      %7124 = vset.pattern.permute.xlu0 0
      %7125 = vperm.xlu0 %7124, %v6836
      %v7126 = vpop.permute.xlu0 %7125
      %7129 = vset.pattern.permute.xlu0 0
      %7130 = vperm.xlu0 %7129, %v6837
      %v7131 = vpop.permute.xlu0 %7130
      %7134 = vset.pattern.permute.xlu0 0
      %7135 = vperm.xlu0 %7134, %v6838
      %v7136 = vpop.permute.xlu0 %7135
      %7139 = vset.pattern.permute.xlu0 0
      %7140 = vperm.xlu0 %7139, %v6839
      %v7141 = vpop.permute.xlu0 %7140
      %7144 = vset.pattern.permute.xlu0 0
      %7145 = vperm.xlu0 %7144, %v6840
      %v7146 = vpop.permute.xlu0 %7145
      %7149 = vset.pattern.permute.xlu0 0
      %7150 = vperm.xlu0 %7149, %v6841
      %v7151 = vpop.permute.xlu0 %7150
      %7154 = vset.pattern.permute.xlu0 0
      %7155 = vperm.xlu0 %7154, %v6842
      %v7156 = vpop.permute.xlu0 %7155
      %7159 = vset.pattern.permute.xlu0 0
      %7160 = vperm.xlu0 %7159, %v6843
      %v7161 = vpop.permute.xlu0 %7160
      %7164 = vset.pattern.permute.xlu0 0
      %7165 = vperm.xlu0 %7164, %v6844
      %v7166 = vpop.permute.xlu0 %7165
      %7169 = vset.pattern.permute.xlu0 0
      %7170 = vperm.xlu0 %7169, %v6845
      %v7171 = vpop.permute.xlu0 %7170
      %7174 = vset.pattern.permute.xlu0 0
      %7175 = vperm.xlu0 %7174, %v6846
      %v7176 = vpop.permute.xlu0 %7175
      %7179 = vset.pattern.permute.xlu0 0
      %7180 = vperm.xlu0 %7179, %v6847
      %v7181 = vpop.permute.xlu0 %7180
      %7184 = vset.pattern.permute.xlu0 0
      %7185 = vperm.xlu0 %7184, %v6848
      %v7186 = vpop.permute.xlu0 %7185
      %7189 = vset.pattern.permute.xlu0 0
      %7190 = vperm.xlu0 %7189, %v6849
      %v7191 = vpop.permute.xlu0 %7190
      %7194 = vset.pattern.permute.xlu0 0
      %7195 = vperm.xlu0 %7194, %v6850
      %v7196 = vpop.permute.xlu0 %7195
      %7199 = vset.pattern.permute.xlu0 0
      %7200 = vperm.xlu0 %7199, %v6851
      %v7201 = vpop.permute.xlu0 %7200
      %7204 = vset.pattern.permute.xlu0 0
      %7205 = vperm.xlu0 %7204, %v6852
      %v7206 = vpop.permute.xlu0 %7205
      %7209 = vset.pattern.permute.xlu0 0
      %7210 = vperm.xlu0 %7209, %v6853
      %v7211 = vpop.permute.xlu0 %7210
      %7214 = vset.pattern.permute.xlu0 0
      %7215 = vperm.xlu0 %7214, %v6854
      %v7216 = vpop.permute.xlu0 %7215
      %7219 = vset.pattern.permute.xlu0 0
      %7220 = vperm.xlu0 %7219, %v6855
      %v7221 = vpop.permute.xlu0 %7220
      %7224 = vset.pattern.permute.xlu0 0
      %7225 = vperm.xlu0 %7224, %v6856
      %v7226 = vpop.permute.xlu0 %7225
      %7229 = vset.pattern.permute.xlu0 0
      %7230 = vperm.xlu0 %7229, %v6857
      %v7231 = vpop.permute.xlu0 %7230
      %7234 = vset.pattern.permute.xlu0 0
      %7235 = vperm.xlu0 %7234, %v6858
      %v7236 = vpop.permute.xlu0 %7235
      %7239 = vset.pattern.permute.xlu0 0
      %7240 = vperm.xlu0 %7239, %v6859
      %v7241 = vpop.permute.xlu0 %7240
      %7244 = vset.pattern.permute.xlu0 0
      %7245 = vperm.xlu0 %7244, %v6860
      %v7246 = vpop.permute.xlu0 %7245
      %7249 = vset.pattern.permute.xlu0 0
      %7250 = vperm.xlu0 %7249, %v6861
      %v7251 = vpop.permute.xlu0 %7250
      %7254 = vset.pattern.permute.xlu0 0
      %7255 = vperm.xlu0 %7254, %v6862
      %v7256 = vpop.permute.xlu0 %7255
      %7259 = vset.pattern.permute.xlu0 0
      %7260 = vperm.xlu0 %7259, %v6863
      %v7261 = vpop.permute.xlu0 %7260
      %7264 = vset.pattern.permute.xlu0 0
      %7265 = vperm.xlu0 %7264, %v6864
      %v7266 = vpop.permute.xlu0 %7265
      %7269 = vset.pattern.permute.xlu0 0
      %7270 = vperm.xlu0 %7269, %v6865
      %v7271 = vpop.permute.xlu0 %7270
      %7274 = vset.pattern.permute.xlu0 0
      %7275 = vperm.xlu0 %7274, %v6866
      %v7276 = vpop.permute.xlu0 %7275
      %7279 = vset.pattern.permute.xlu0 0
      %7280 = vperm.xlu0 %7279, %v6867
      %v7281 = vpop.permute.xlu0 %7280
      %7284 = vset.pattern.permute.xlu0 0
      %7285 = vperm.xlu0 %7284, %v6868
      %v7286 = vpop.permute.xlu0 %7285
      %7289 = vset.pattern.permute.xlu0 0
      %7290 = vperm.xlu0 %7289, %v6869
      %v7291 = vpop.permute.xlu0 %7290
      %7294 = vset.pattern.permute.xlu0 0
      %7295 = vperm.xlu0 %7294, %v6870
      %v7296 = vpop.permute.xlu0 %7295
      %7299 = vset.pattern.permute.xlu0 0
      %7300 = vperm.xlu0 %7299, %v6871
      %v7301 = vpop.permute.xlu0 %7300
      %7304 = vset.pattern.permute.xlu0 0
      %7305 = vperm.xlu0 %7304, %v6872
      %v7306 = vpop.permute.xlu0 %7305
      %7309 = vset.pattern.permute.xlu0 0
      %7310 = vperm.xlu0 %7309, %v6873
      %v7311 = vpop.permute.xlu0 %7310
      %7314 = vset.pattern.permute.xlu0 0
      %7315 = vperm.xlu0 %7314, %v6874
      %v7316 = vpop.permute.xlu0 %7315
      %7319 = vset.pattern.permute.xlu0 0
      %7320 = vperm.xlu0 %7319, %v6875
      %v7321 = vpop.permute.xlu0 %7320
      %7324 = vset.pattern.permute.xlu0 0
      %7325 = vperm.xlu0 %7324, %v6876
      %v7326 = vpop.permute.xlu0 %7325
      %7329 = vset.pattern.permute.xlu0 0
      %7330 = vperm.xlu0 %7329, %v6877
      %v7331 = vpop.permute.xlu0 %7330
      %7334 = vset.pattern.permute.xlu0 0
      %7335 = vperm.xlu0 %7334, %v6878
      %v7336 = vpop.permute.xlu0 %7335
      %7339 = vset.pattern.permute.xlu0 0
      %7340 = vperm.xlu0 %7339, %v6879
      %v7341 = vpop.permute.xlu0 %7340
      %7344 = vset.pattern.permute.xlu0 0
      %7345 = vperm.xlu0 %7344, %v6880
      %v7346 = vpop.permute.xlu0 %7345
      %7349 = vset.pattern.permute.xlu0 0
      %7350 = vperm.xlu0 %7349, %v6881
      %v7351 = vpop.permute.xlu0 %7350
      %7354 = vset.pattern.permute.xlu0 0
      %7355 = vperm.xlu0 %7354, %v6882
      %v7356 = vpop.permute.xlu0 %7355
      %7359 = vset.pattern.permute.xlu0 0
      %7360 = vperm.xlu0 %7359, %v6883
      %v7361 = vpop.permute.xlu0 %7360
      %7364 = vset.pattern.permute.xlu0 0
      %7365 = vperm.xlu0 %7364, %v6884
      %v7366 = vpop.permute.xlu0 %7365
      %7369 = vset.pattern.permute.xlu0 0
      %7370 = vperm.xlu0 %7369, %v6885
      %v7371 = vpop.permute.xlu0 %7370
      %7374 = vset.pattern.permute.xlu0 0
      %7375 = vperm.xlu0 %7374, %v6886
      %v7376 = vpop.permute.xlu0 %7375
      %7379 = vset.pattern.permute.xlu0 0
      %7380 = vperm.xlu0 %7379, %v6887
      %v7381 = vpop.permute.xlu0 %7380
      %7384 = vset.pattern.permute.xlu0 0
      %7385 = vperm.xlu0 %7384, %v6888
      %v7386 = vpop.permute.xlu0 %7385
      %7389 = vset.pattern.permute.xlu0 0
      %7390 = vperm.xlu0 %7389, %v6889
      %v7391 = vpop.permute.xlu0 %7390
      %7394 = vset.pattern.permute.xlu0 0
      %7395 = vperm.xlu0 %7394, %v6890
      %v7396 = vpop.permute.xlu0 %7395
      %7399 = vset.pattern.permute.xlu0 0
      %7400 = vperm.xlu0 %7399, %v6891
      %v7401 = vpop.permute.xlu0 %7400
      %v7403 = vperm.slane %v6892, 0
      %v7404 = vmul.f32 %v6896, %v7403
      %v7405 = vmul.f32 %v6901, %v7403
      %v7406 = vmul.f32 %v6906, %v7403
      %v7407 = vmul.f32 %v6911, %v7403
      %v7408 = vmul.f32 %v6916, %v7403
      %v7409 = vmul.f32 %v6921, %v7403
      %v7410 = vmul.f32 %v6926, %v7403
      %v7411 = vmul.f32 %v6931, %v7403
      %v7412 = vmul.f32 %v6936, %v7403
      %v7413 = vmul.f32 %v6941, %v7403
      %v7414 = vmul.f32 %v6946, %v7403
      %v7415 = vmul.f32 %v6951, %v7403
      %v7416 = vmul.f32 %v6956, %v7403
      %v7417 = vmul.f32 %v6961, %v7403
      %v7418 = vmul.f32 %v6966, %v7403
      %v7419 = vmul.f32 %v6971, %v7403
      %v7420 = vmul.f32 %v6976, %v7403
      %v7421 = vmul.f32 %v6981, %v7403
      %v7422 = vmul.f32 %v6986, %v7403
      %v7423 = vmul.f32 %v6991, %v7403
      %v7424 = vmul.f32 %v6996, %v7403
      %v7425 = vmul.f32 %v7001, %v7403
      %v7426 = vmul.f32 %v7006, %v7403
      %v7427 = vmul.f32 %v7011, %v7403
      %v7428 = vmul.f32 %v7016, %v7403
      %v7429 = vmul.f32 %v7021, %v7403
      %v7430 = vmul.f32 %v7026, %v7403
      %v7431 = vmul.f32 %v7031, %v7403
      %v7432 = vmul.f32 %v7036, %v7403
      %v7433 = vmul.f32 %v7041, %v7403
      %v7434 = vmul.f32 %v7046, %v7403
      %v7435 = vmul.f32 %v7051, %v7403
      %v7436 = vmul.f32 %v7056, %v7403
      %v7437 = vmul.f32 %v7061, %v7403
      %v7438 = vmul.f32 %v7066, %v7403
      %v7439 = vmul.f32 %v7071, %v7403
      %v7440 = vmul.f32 %v7076, %v7403
      %v7441 = vmul.f32 %v7081, %v7403
      %v7442 = vmul.f32 %v7086, %v7403
      %v7443 = vmul.f32 %v7091, %v7403
      %v7444 = vmul.f32 %v7096, %v7403
      %v7445 = vmul.f32 %v7101, %v7403
      %v7446 = vmul.f32 %v7106, %v7403
      %v7447 = vmul.f32 %v7111, %v7403
      %v7448 = vmul.f32 %v7116, %v7403
      %v7449 = vmul.f32 %v7121, %v7403
      %v7450 = vmul.f32 %v7126, %v7403
      %v7451 = vmul.f32 %v7131, %v7403
      %v7452 = vmul.f32 %v7136, %v7403
      %v7453 = vmul.f32 %v7141, %v7403
      %v7454 = vmul.f32 %v7146, %v7403
      %v7455 = vmul.f32 %v7151, %v7403
      %v7456 = vmul.f32 %v7156, %v7403
      %v7457 = vmul.f32 %v7161, %v7403
      %v7458 = vmul.f32 %v7166, %v7403
      %v7459 = vmul.f32 %v7171, %v7403
      %v7460 = vmul.f32 %v7176, %v7403
      %v7461 = vmul.f32 %v7181, %v7403
      %v7462 = vmul.f32 %v7186, %v7403
      %v7463 = vmul.f32 %v7191, %v7403
      %v7464 = vmul.f32 %v7196, %v7403
      %v7465 = vmul.f32 %v7201, %v7403
      %v7466 = vmul.f32 %v7206, %v7403
      %v7467 = vmul.f32 %v7211, %v7403
      %v7468 = vmul.f32 %v7216, %v7403
      %v7469 = vmul.f32 %v7221, %v7403
      %v7470 = vmul.f32 %v7226, %v7403
      %v7471 = vmul.f32 %v7231, %v7403
      %v7472 = vmul.f32 %v7236, %v7403
      %v7473 = vmul.f32 %v7241, %v7403
      %v7474 = vmul.f32 %v7246, %v7403
      %v7475 = vmul.f32 %v7251, %v7403
      %v7476 = vmul.f32 %v7256, %v7403
      %v7477 = vmul.f32 %v7261, %v7403
      %v7478 = vmul.f32 %v7266, %v7403
      %v7479 = vmul.f32 %v7271, %v7403
      %v7480 = vmul.f32 %v7276, %v7403
      %v7481 = vmul.f32 %v7281, %v7403
      %v7482 = vmul.f32 %v7286, %v7403
      %v7483 = vmul.f32 %v7291, %v7403
      %v7484 = vmul.f32 %v7296, %v7403
      %v7485 = vmul.f32 %v7301, %v7403
      %v7486 = vmul.f32 %v7306, %v7403
      %v7487 = vmul.f32 %v7311, %v7403
      %v7488 = vmul.f32 %v7316, %v7403
      %v7489 = vmul.f32 %v7321, %v7403
      %v7490 = vmul.f32 %v7326, %v7403
      %v7491 = vmul.f32 %v7331, %v7403
      %v7492 = vmul.f32 %v7336, %v7403
      %v7493 = vmul.f32 %v7341, %v7403
      %v7494 = vmul.f32 %v7346, %v7403
      %v7495 = vmul.f32 %v7351, %v7403
      %v7496 = vmul.f32 %v7356, %v7403
      %v7497 = vmul.f32 %v7361, %v7403
      %v7498 = vmul.f32 %v7366, %v7403
      %v7499 = vmul.f32 %v7371, %v7403
      %v7500 = vmul.f32 %v7376, %v7403
      %v7501 = vmul.f32 %v7381, %v7403
      %v7502 = vmul.f32 %v7386, %v7403
      %v7503 = vmul.f32 %v7391, %v7403
      %v7504 = vmul.f32 %v7396, %v7403
      %v7505 = vmul.f32 %v7401, %v7403
      %v7506 = vadd.f32 %v6688, %v7404
      %v7507 = vadd.f32 %v6689, %v7405
      %v7508 = vadd.f32 %v6690, %v7406
      %v7509 = vadd.f32 %v6691, %v7407
      %v7510 = vadd.f32 %v6692, %v7408
      %v7511 = vadd.f32 %v6693, %v7409
      %v7512 = vadd.f32 %v6694, %v7410
      %v7513 = vadd.f32 %v6695, %v7411
      %v7514 = vadd.f32 %v6696, %v7412
      %v7515 = vadd.f32 %v6697, %v7413
      %v7516 = vadd.f32 %v6698, %v7414
      %v7517 = vadd.f32 %v6699, %v7415
      %v7518 = vadd.f32 %v6700, %v7416
      %v7519 = vadd.f32 %v6701, %v7417
      %v7520 = vadd.f32 %v6702, %v7418
      %v7521 = vadd.f32 %v6703, %v7419
      %v7522 = vadd.f32 %v6704, %v7420
      %v7523 = vadd.f32 %v6705, %v7421
      %v7524 = vadd.f32 %v6706, %v7422
      %v7525 = vadd.f32 %v6707, %v7423
      %v7526 = vadd.f32 %v6708, %v7424
      %v7527 = vadd.f32 %v6709, %v7425
      %v7528 = vadd.f32 %v6710, %v7426
      %v7529 = vadd.f32 %v6711, %v7427
      %v7530 = vadd.f32 %v6712, %v7428
      %v7531 = vadd.f32 %v6713, %v7429
      %v7532 = vadd.f32 %v6714, %v7430
      %v7533 = vadd.f32 %v6715, %v7431
      %v7534 = vadd.f32 %v6716, %v7432
      %v7535 = vadd.f32 %v6717, %v7433
      %v7536 = vadd.f32 %v6718, %v7434
      %v7537 = vadd.f32 %v6719, %v7435
      %v7538 = vadd.f32 %v6720, %v7436
      %v7539 = vadd.f32 %v6721, %v7437
      %v7540 = vadd.f32 %v6722, %v7438
      %v7541 = vadd.f32 %v6723, %v7439
      %v7542 = vadd.f32 %v6724, %v7440
      %v7543 = vadd.f32 %v6725, %v7441
      %v7544 = vadd.f32 %v6726, %v7442
      %v7545 = vadd.f32 %v6727, %v7443
      %v7546 = vadd.f32 %v6728, %v7444
      %v7547 = vadd.f32 %v6729, %v7445
      %v7548 = vadd.f32 %v6730, %v7446
      %v7549 = vadd.f32 %v6731, %v7447
      %v7550 = vadd.f32 %v6732, %v7448
      %v7551 = vadd.f32 %v6733, %v7449
      %v7552 = vadd.f32 %v6734, %v7450
      %v7553 = vadd.f32 %v6735, %v7451
      %v7554 = vadd.f32 %v6736, %v7452
      %v7555 = vadd.f32 %v6737, %v7453
      %v7556 = vadd.f32 %v6738, %v7454
      %v7557 = vadd.f32 %v6739, %v7455
      %v7558 = vadd.f32 %v6740, %v7456
      %v7559 = vadd.f32 %v6741, %v7457
      %v7560 = vadd.f32 %v6742, %v7458
      %v7561 = vadd.f32 %v6743, %v7459
      %v7562 = vadd.f32 %v6744, %v7460
      %v7563 = vadd.f32 %v6745, %v7461
      %v7564 = vadd.f32 %v6746, %v7462
      %v7565 = vadd.f32 %v6747, %v7463
      %v7566 = vadd.f32 %v6748, %v7464
      %v7567 = vadd.f32 %v6749, %v7465
      %v7568 = vadd.f32 %v6750, %v7466
      %v7569 = vadd.f32 %v6751, %v7467
      %v7570 = vadd.f32 %v6752, %v7468
      %v7571 = vadd.f32 %v6753, %v7469
      %v7572 = vadd.f32 %v6754, %v7470
      %v7573 = vadd.f32 %v6755, %v7471
      %v7574 = vadd.f32 %v6756, %v7472
      %v7575 = vadd.f32 %v6757, %v7473
      %v7576 = vadd.f32 %v6758, %v7474
      %v7577 = vadd.f32 %v6759, %v7475
      %v7578 = vadd.f32 %v6760, %v7476
      %v7579 = vadd.f32 %v6761, %v7477
      %v7580 = vadd.f32 %v6762, %v7478
      %v7581 = vadd.f32 %v6763, %v7479
      %v7582 = vadd.f32 %v6764, %v7480
      %v7583 = vadd.f32 %v6765, %v7481
      %v7584 = vadd.f32 %v6766, %v7482
      %v7585 = vadd.f32 %v6767, %v7483
      %v7586 = vadd.f32 %v6768, %v7484
      %v7587 = vadd.f32 %v6769, %v7485
      %v7588 = vadd.f32 %v6770, %v7486
      %v7589 = vadd.f32 %v6771, %v7487
      %v7590 = vadd.f32 %v6772, %v7488
      %v7591 = vadd.f32 %v6773, %v7489
      %v7592 = vadd.f32 %v6774, %v7490
      %v7593 = vadd.f32 %v6775, %v7491
      %v7594 = vadd.f32 %v6776, %v7492
      %v7595 = vadd.f32 %v6777, %v7493
      %v7596 = vadd.f32 %v6778, %v7494
      %v7597 = vadd.f32 %v6779, %v7495
      %v7598 = vadd.f32 %v6780, %v7496
      %v7599 = vadd.f32 %v6781, %v7497
      %v7600 = vadd.f32 %v6782, %v7498
      %v7601 = vadd.f32 %v6783, %v7499
      %v7602 = vadd.f32 %v6784, %v7500
      %v7603 = vadd.f32 %v6785, %v7501
      %v7604 = vadd.f32 %v6786, %v7502
      %v7605 = vadd.f32 %v6787, %v7503
      %v7606 = vadd.f32 %v6788, %v7504
      %v7607 = vadd.f32 %v6789, %v7505
      %v7608 = vmax.f32 %v7506, 0.0
      %v7609 = vmax.f32 %v7507, 0.0
      %v7610 = vmax.f32 %v7508, 0.0
      %v7611 = vmax.f32 %v7509, 0.0
      %v7612 = vmax.f32 %v7510, 0.0
      %v7613 = vmax.f32 %v7511, 0.0
      %v7614 = vmax.f32 %v7512, 0.0
      %v7615 = vmax.f32 %v7513, 0.0
      %v7616 = vmax.f32 %v7514, 0.0
      %v7617 = vmax.f32 %v7515, 0.0
      %v7618 = vmax.f32 %v7516, 0.0
      %v7619 = vmax.f32 %v7517, 0.0
      %v7620 = vmax.f32 %v7518, 0.0
      %v7621 = vmax.f32 %v7519, 0.0
      %v7622 = vmax.f32 %v7520, 0.0
      %v7623 = vmax.f32 %v7521, 0.0
      %v7624 = vmax.f32 %v7522, 0.0
      %v7625 = vmax.f32 %v7523, 0.0
      %v7626 = vmax.f32 %v7524, 0.0
      %v7627 = vmax.f32 %v7525, 0.0
      %v7628 = vmax.f32 %v7526, 0.0
      %v7629 = vmax.f32 %v7527, 0.0
      %v7630 = vmax.f32 %v7528, 0.0
      %v7631 = vmax.f32 %v7529, 0.0
      %v7632 = vmax.f32 %v7530, 0.0
      %v7633 = vmax.f32 %v7531, 0.0
      %v7634 = vmax.f32 %v7532, 0.0
      %v7635 = vmax.f32 %v7533, 0.0
      %v7636 = vmax.f32 %v7534, 0.0
      %v7637 = vmax.f32 %v7535, 0.0
      %v7638 = vmax.f32 %v7536, 0.0
      %v7639 = vmax.f32 %v7537, 0.0
      %v7640 = vmax.f32 %v7538, 0.0
      %v7641 = vmax.f32 %v7539, 0.0
      %v7642 = vmax.f32 %v7540, 0.0
      %v7643 = vmax.f32 %v7541, 0.0
      %v7644 = vmax.f32 %v7542, 0.0
      %v7645 = vmax.f32 %v7543, 0.0
      %v7646 = vmax.f32 %v7544, 0.0
      %v7647 = vmax.f32 %v7545, 0.0
      %v7648 = vmax.f32 %v7546, 0.0
      %v7649 = vmax.f32 %v7547, 0.0
      %v7650 = vmax.f32 %v7548, 0.0
      %v7651 = vmax.f32 %v7549, 0.0
      %v7652 = vmax.f32 %v7550, 0.0
      %v7653 = vmax.f32 %v7551, 0.0
      %v7654 = vmax.f32 %v7552, 0.0
      %v7655 = vmax.f32 %v7553, 0.0
      %v7656 = vmax.f32 %v7554, 0.0
      %v7657 = vmax.f32 %v7555, 0.0
      %v7658 = vmax.f32 %v7556, 0.0
      %v7659 = vmax.f32 %v7557, 0.0
      %v7660 = vmax.f32 %v7558, 0.0
      %v7661 = vmax.f32 %v7559, 0.0
      %v7662 = vmax.f32 %v7560, 0.0
      %v7663 = vmax.f32 %v7561, 0.0
      %v7664 = vmax.f32 %v7562, 0.0
      %v7665 = vmax.f32 %v7563, 0.0
      %v7666 = vmax.f32 %v7564, 0.0
      %v7667 = vmax.f32 %v7565, 0.0
      %v7668 = vmax.f32 %v7566, 0.0
      %v7669 = vmax.f32 %v7567, 0.0
      %v7670 = vmax.f32 %v7568, 0.0
      %v7671 = vmax.f32 %v7569, 0.0
      %v7672 = vmax.f32 %v7570, 0.0
      %v7673 = vmax.f32 %v7571, 0.0
      %v7674 = vmax.f32 %v7572, 0.0
      %v7675 = vmax.f32 %v7573, 0.0
      %v7676 = vmax.f32 %v7574, 0.0
      %v7677 = vmax.f32 %v7575, 0.0
      %v7678 = vmax.f32 %v7576, 0.0
      %v7679 = vmax.f32 %v7577, 0.0
      %v7680 = vmax.f32 %v7578, 0.0
      %v7681 = vmax.f32 %v7579, 0.0
      %v7682 = vmax.f32 %v7580, 0.0
      %v7683 = vmax.f32 %v7581, 0.0
      %v7684 = vmax.f32 %v7582, 0.0
      %v7685 = vmax.f32 %v7583, 0.0
      %v7686 = vmax.f32 %v7584, 0.0
      %v7687 = vmax.f32 %v7585, 0.0
      %v7688 = vmax.f32 %v7586, 0.0
      %v7689 = vmax.f32 %v7587, 0.0
      %v7690 = vmax.f32 %v7588, 0.0
      %v7691 = vmax.f32 %v7589, 0.0
      %v7692 = vmax.f32 %v7590, 0.0
      %v7693 = vmax.f32 %v7591, 0.0
      %v7694 = vmax.f32 %v7592, 0.0
      %v7695 = vmax.f32 %v7593, 0.0
      %v7696 = vmax.f32 %v7594, 0.0
      %v7697 = vmax.f32 %v7595, 0.0
      %v7698 = vmax.f32 %v7596, 0.0
      %v7699 = vmax.f32 %v7597, 0.0
      %v7700 = vmax.f32 %v7598, 0.0
      %v7701 = vmax.f32 %v7599, 0.0
      %v7702 = vmax.f32 %v7600, 0.0
      %v7703 = vmax.f32 %v7601, 0.0
      %v7704 = vmax.f32 %v7602, 0.0
      %v7705 = vmax.f32 %v7603, 0.0
      %v7706 = vmax.f32 %v7604, 0.0
      %v7707 = vmax.f32 %v7605, 0.0
      %v7708 = vmax.f32 %v7606, 0.0
      %v7709 = vmax.f32 %v7607, 0.0
      %vm7710 = vcmask 130048
      %7711 = vst.msk [vmem:[#allocation2] sm:$0xff] %vm7710, 0.0
      %7712 = vst.msk [vmem:[#allocation2 + $0x8] sm:$0xff] %vm7710, 0.0
      %7713 = vst.msk [vmem:[#allocation2 + $0x10] sm:$0xff] %vm7710, 0.0
      %7714 = vst.msk [vmem:[#allocation2 + $0x18] sm:$0xff] %vm7710, 0.0
      %7715 = vst.msk [vmem:[#allocation2 + $0x20] sm:$0xff] %vm7710, 0.0
      %7716 = vst.msk [vmem:[#allocation2 + $0x28] sm:$0xff] %vm7710, 0.0
      %7717 = vst.msk [vmem:[#allocation2 + $0x30] sm:$0xff] %vm7710, 0.0
      %7718 = vst.msk [vmem:[#allocation2 + $0x38] sm:$0xff] %vm7710, 0.0
      %7719 = vst.msk [vmem:[#allocation2 + $0x40] sm:$0xff] %vm7710, 0.0
      %7720 = vst.msk [vmem:[#allocation2 + $0x48] sm:$0xff] %vm7710, 0.0
      %7721 = vst.msk [vmem:[#allocation2 + $0x50] sm:$0xff] %vm7710, 0.0
      %7722 = vst.msk [vmem:[#allocation2 + $0x58] sm:$0xff] %vm7710, 0.0
      %7723 = vst.msk [vmem:[#allocation2 + $0x60] sm:$0xff] %vm7710, 0.0
      %7724 = vst.msk [vmem:[#allocation2 + $0x68] sm:$0xff] %vm7710, 0.0
      %7725 = vst.msk [vmem:[#allocation2 + $0x70] sm:$0xff] %vm7710, 0.0
      %7726 = vst.msk [vmem:[#allocation2 + $0x78] sm:$0xff] %vm7710, 0.0
      %7727 = vst.msk [vmem:[#allocation2 + $0x80] sm:$0xff] %vm7710, 0.0
      %7728 = vst.msk [vmem:[#allocation2 + $0x88] sm:$0xff] %vm7710, 0.0
      %7729 = vst.msk [vmem:[#allocation2 + $0x90] sm:$0xff] %vm7710, 0.0
      %7730 = vst.msk [vmem:[#allocation2 + $0x98] sm:$0xff] %vm7710, 0.0
      %7731 = vst.msk [vmem:[#allocation2 + $0xa0] sm:$0xff] %vm7710, 0.0
      %7732 = vst.msk [vmem:[#allocation2 + $0xa8] sm:$0xff] %vm7710, 0.0
      %7733 = vst.msk [vmem:[#allocation2 + $0xb0] sm:$0xff] %vm7710, 0.0
      %7734 = vst.msk [vmem:[#allocation2 + $0xb8] sm:$0xff] %vm7710, 0.0
      %7735 = vst.msk [vmem:[#allocation2 + $0xc0] sm:$0xff] %vm7710, 0.0
      %7736 = vst.msk [vmem:[#allocation2 + $0xc8] sm:$0xff] %vm7710, 0.0
      %7737 = vst.msk [vmem:[#allocation2 + $0xd0] sm:$0xff] %vm7710, 0.0
      %7738 = vst.msk [vmem:[#allocation2 + $0xd8] sm:$0xff] %vm7710, 0.0
      %7739 = vst.msk [vmem:[#allocation2 + $0xe0] sm:$0xff] %vm7710, 0.0
      %7740 = vst.msk [vmem:[#allocation2 + $0xe8] sm:$0xff] %vm7710, 0.0
      %7741 = vst.msk [vmem:[#allocation2 + $0xf0] sm:$0xff] %vm7710, 0.0
      %7742 = vst.msk [vmem:[#allocation2 + $0xf8] sm:$0xff] %vm7710, 0.0
      %7743 = vst.msk [vmem:[#allocation2 + $0x100] sm:$0xff] %vm7710, 0.0
      %vm7744 = vcmask 128000
      %7745 = vst.msk [vmem:[#allocation2 + $0x108] sm:$0x3f] %vm7744, 0.0
      %vm7751 = vcmask 1042432
      %v7752 = vrot.slane %v7611, 5
      %v7753 = vrot.slane %v7612, 5
      %v7754 = vsel %vm7751, %v7752, %v7753
      %v7755 = vrot.slane %v7613, 5
      %v7756 = vsel %vm7751, %v7753, %v7755
      %v7757 = vrot.slane %v7614, 5
      %v7758 = vsel %vm7751, %v7755, %v7757
      %v7759 = vrot.slane %v7615, 5
      %v7760 = vsel %vm7751, %v7757, %v7759
      %v7765 = vmax.f32 %v7608, %v7754
      %v7766 = vmax.f32 %v7609, %v7756
      %v7767 = vmax.f32 %v7610, %v7758
      %v7768 = vmax.f32 %v7611, %v7760
      %vm7769 = vcmask 236544
      %v7771 = vsel %vm7769, %v234, 0
      %v7774 = vsel %vm7769, %v235, 0
      %vm7776 = vcmask 1044480
      %v7778 = vsel %vm7776, %v7768, 0
      %7780 = vmatpush.msra.mxu0 0.0
      %7781 = vmatpush.msra.mxu0 0.0
      %7782 = vmatpush.msra.mxu0 0.0
      %7783 = vmatpush.msra.mxu0 0.0
      %7784 = vmatpush.msra.mxu0 0.0
      %7785 = vmatpush.msra.mxu0 0.0
      %7786 = vmatpush.msra.mxu0 0.0
      %7787 = vmatpush.msra.mxu0 0.0
      %7788 = vmatpush.msra.mxu0 0.0
      %7789 = vmatpush.msra.mxu0 0.0
      %7790 = vmatpush.msra.mxu0 0.0
      %7791 = vmatpush.msra.mxu0 0.0
      %7792 = vmatpush.msra.mxu0 %v7778
      %7793 = vmatpush.msra.mxu0 %v7767
      %7794 = vmatpush.msra.mxu0 %v7766
      %7795 = vmatpush.msra.mxu0 %v7765
      %7796 = vmatmul.f32.gmra.mxu0 %v7771
      %v7797 = vpop.f32.mrf.mxu0
      %v7798 = vadd.f32 0.0, %v7797
      %7799 = vmatmul.f32.gmra.mxu0 %v7774
      %v7800 = vpop.f32.mrf.mxu0
      %v7801 = vadd.f32 0.0, %v7800
      %7802 = vdwg.mxu0
      %v7804 = vsel %vm7769, %v240, 0
      %v7807 = vsel %vm7769, %v241, 0
      %7809 = vmatpush.msra.mxu0 0.0
      %7810 = vmatpush.msra.mxu0 0.0
      %7811 = vmatpush.msra.mxu0 0.0
      %7812 = vmatpush.msra.mxu0 0.0
      %7813 = vmatpush.msra.mxu0 0.0
      %7814 = vmatpush.msra.mxu0 0.0
      %7815 = vmatpush.msra.mxu0 0.0
      %7816 = vmatpush.msra.mxu0 0.0
      %7817 = vmatpush.msra.mxu0 0.0
      %7818 = vmatpush.msra.mxu0 0.0
      %7819 = vmatpush.msra.mxu0 0.0
      %7820 = vmatpush.msra.mxu0 0.0
      %7821 = vmatpush.msra.mxu0 %v7778
      %7822 = vmatpush.msra.mxu0 %v7767
      %7823 = vmatpush.msra.mxu0 %v7766
      %7824 = vmatpush.msra.mxu0 %v7765
      %7825 = vmatmul.f32.gmra.mxu0 %v7804
      %v7826 = vpop.f32.mrf.mxu0
      %v7827 = vadd.f32 0.0, %v7826
      %7828 = vmatmul.f32.gmra.mxu0 %v7807
      %v7829 = vpop.f32.mrf.mxu0
      %v7830 = vadd.f32 0.0, %v7829
      %7831 = vdwg.mxu0
      %v7832 = vmax.f32 %v7798, %v7827
      %v7833 = vmax.f32 %v7801, %v7830
      %7834 = vst.msk [vmem:[#allocation2 + $0x1e] sm:$0xff] %vm7710, %v7832
      %7835 = vst.msk [vmem:[#allocation2 + $0x26] sm:$0x3f] %vm7744, %v7833
      %v7841 = vrot.slane %v7618, 5
      %v7842 = vrot.slane %v7619, 5
      %v7843 = vsel %vm7751, %v7841, %v7842
      %v7844 = vrot.slane %v7620, 5
      %v7845 = vsel %vm7751, %v7842, %v7844
      %v7846 = vrot.slane %v7621, 5
      %v7847 = vsel %vm7751, %v7844, %v7846
      %v7848 = vrot.slane %v7622, 5
      %v7849 = vsel %vm7751, %v7846, %v7848
      %v7854 = vmax.f32 %v7615, %v7843
      %v7855 = vmax.f32 %v7616, %v7845
      %v7856 = vmax.f32 %v7617, %v7847
      %v7857 = vmax.f32 %v7618, %v7849
      %vm7862 = vcmask 1045504
      %v7863 = vrot.slane %v7854, 2
      %v7864 = vrot.slane %v7855, 2
      %v7865 = vsel %vm7862, %v7863, %v7864
      %v7866 = vrot.slane %v7856, 2
      %v7867 = vsel %vm7862, %v7864, %v7866
      %v7868 = vrot.slane %v7857, 2
      %v7869 = vsel %vm7862, %v7866, %v7868
      %v7873 = vsel %vm7776, %v7868, 0
      %7875 = vmatpush.msra.mxu0 0.0
      %7876 = vmatpush.msra.mxu0 0.0
      %7877 = vmatpush.msra.mxu0 0.0
      %7878 = vmatpush.msra.mxu0 0.0
      %7879 = vmatpush.msra.mxu0 0.0
      %7880 = vmatpush.msra.mxu0 0.0
      %7881 = vmatpush.msra.mxu0 0.0
      %7882 = vmatpush.msra.mxu0 0.0
      %7883 = vmatpush.msra.mxu0 0.0
      %7884 = vmatpush.msra.mxu0 0.0
      %7885 = vmatpush.msra.mxu0 0.0
      %7886 = vmatpush.msra.mxu0 0.0
      %7887 = vmatpush.msra.mxu0 %v7873
      %7888 = vmatpush.msra.mxu0 %v7869
      %7889 = vmatpush.msra.mxu0 %v7867
      %7890 = vmatpush.msra.mxu0 %v7865
      %7891 = vmatmul.f32.gmra.mxu0 %v7771
      %v7892 = vpop.f32.mrf.mxu0
      %v7893 = vadd.f32 0.0, %v7892
      %7894 = vmatmul.f32.gmra.mxu0 %v7774
      %v7895 = vpop.f32.mrf.mxu0
      %v7896 = vadd.f32 0.0, %v7895
      %7897 = vdwg.mxu0
      %7898 = vmatpush.msra.mxu0 0.0
      %7899 = vmatpush.msra.mxu0 0.0
      %7900 = vmatpush.msra.mxu0 0.0
      %7901 = vmatpush.msra.mxu0 0.0
      %7902 = vmatpush.msra.mxu0 0.0
      %7903 = vmatpush.msra.mxu0 0.0
      %7904 = vmatpush.msra.mxu0 0.0
      %7905 = vmatpush.msra.mxu0 0.0
      %7906 = vmatpush.msra.mxu0 0.0
      %7907 = vmatpush.msra.mxu0 0.0
      %7908 = vmatpush.msra.mxu0 0.0
      %7909 = vmatpush.msra.mxu0 0.0
      %7910 = vmatpush.msra.mxu0 %v7873
      %7911 = vmatpush.msra.mxu0 %v7869
      %7912 = vmatpush.msra.mxu0 %v7867
      %7913 = vmatpush.msra.mxu0 %v7865
      %7914 = vmatmul.f32.gmra.mxu0 %v7804
      %v7915 = vpop.f32.mrf.mxu0
      %v7916 = vadd.f32 0.0, %v7915
      %7917 = vmatmul.f32.gmra.mxu0 %v7807
      %v7918 = vpop.f32.mrf.mxu0
      %v7919 = vadd.f32 0.0, %v7918
      %7920 = vdwg.mxu0
      %v7921 = vmax.f32 %v7893, %v7916
      %v7922 = vmax.f32 %v7896, %v7919
      %7923 = vst.msk [vmem:[#allocation2 + $0x2d] sm:$0xff] %vm7710, %v7921
      %7924 = vst.msk [vmem:[#allocation2 + $0x35] sm:$0x3f] %vm7744, %v7922
      %v7929 = vrot.slane %v7626, 5
      %v7930 = vrot.slane %v7627, 5
      %v7931 = vsel %vm7751, %v7929, %v7930
      %v7932 = vrot.slane %v7628, 5
      %v7933 = vsel %vm7751, %v7930, %v7932
      %v7934 = vrot.slane %v7629, 5
      %v7935 = vsel %vm7751, %v7932, %v7934
      %v7941 = vmax.f32 %v7622, %v7929
      %v7942 = vmax.f32 %v7623, %v7931
      %v7943 = vmax.f32 %v7624, %v7933
      %v7944 = vmax.f32 %v7625, %v7935
      %v7945 = vmax.f32 %v7626, %v7934
      %vm7951 = vcmask 1043456
      %v7952 = vrot.slane %v7941, 4
      %v7953 = vrot.slane %v7942, 4
      %v7954 = vsel %vm7951, %v7952, %v7953
      %v7955 = vrot.slane %v7943, 4
      %v7956 = vsel %vm7951, %v7953, %v7955
      %v7957 = vrot.slane %v7944, 4
      %v7958 = vsel %vm7951, %v7955, %v7957
      %v7959 = vrot.slane %v7945, 4
      %v7960 = vsel %vm7951, %v7957, %v7959
      %v7964 = vsel %vm7776, %v7960, 0
      %7966 = vmatpush.msra.mxu0 0.0
      %7967 = vmatpush.msra.mxu0 0.0
      %7968 = vmatpush.msra.mxu0 0.0
      %7969 = vmatpush.msra.mxu0 0.0
      %7970 = vmatpush.msra.mxu0 0.0
      %7971 = vmatpush.msra.mxu0 0.0
      %7972 = vmatpush.msra.mxu0 0.0
      %7973 = vmatpush.msra.mxu0 0.0
      %7974 = vmatpush.msra.mxu0 0.0
      %7975 = vmatpush.msra.mxu0 0.0
      %7976 = vmatpush.msra.mxu0 0.0
      %7977 = vmatpush.msra.mxu0 0.0
      %7978 = vmatpush.msra.mxu0 %v7964
      %7979 = vmatpush.msra.mxu0 %v7958
      %7980 = vmatpush.msra.mxu0 %v7956
      %7981 = vmatpush.msra.mxu0 %v7954
      %7982 = vmatmul.f32.gmra.mxu0 %v7771
      %v7983 = vpop.f32.mrf.mxu0
      %v7984 = vadd.f32 0.0, %v7983
      %7985 = vmatmul.f32.gmra.mxu0 %v7774
      %v7986 = vpop.f32.mrf.mxu0
      %v7987 = vadd.f32 0.0, %v7986
      %7988 = vdwg.mxu0
      %7989 = vmatpush.msra.mxu0 0.0
      %7990 = vmatpush.msra.mxu0 0.0
      %7991 = vmatpush.msra.mxu0 0.0
      %7992 = vmatpush.msra.mxu0 0.0
      %7993 = vmatpush.msra.mxu0 0.0
      %7994 = vmatpush.msra.mxu0 0.0
      %7995 = vmatpush.msra.mxu0 0.0
      %7996 = vmatpush.msra.mxu0 0.0
      %7997 = vmatpush.msra.mxu0 0.0
      %7998 = vmatpush.msra.mxu0 0.0
      %7999 = vmatpush.msra.mxu0 0.0
      %8000 = vmatpush.msra.mxu0 0.0
      %8001 = vmatpush.msra.mxu0 %v7964
      %8002 = vmatpush.msra.mxu0 %v7958
      %8003 = vmatpush.msra.mxu0 %v7956
      %8004 = vmatpush.msra.mxu0 %v7954
      %8005 = vmatmul.f32.gmra.mxu0 %v7804
      %v8006 = vpop.f32.mrf.mxu0
      %v8007 = vadd.f32 0.0, %v8006
      %8008 = vmatmul.f32.gmra.mxu0 %v7807
      %v8009 = vpop.f32.mrf.mxu0
      %v8010 = vadd.f32 0.0, %v8009
      %8011 = vdwg.mxu0
      %v8012 = vmax.f32 %v7984, %v8007
      %v8013 = vmax.f32 %v7987, %v8010
      %8014 = vst.msk [vmem:[#allocation2 + $0x3c] sm:$0xff] %vm7710, %v8012
      %8015 = vst.msk [vmem:[#allocation2 + $0x44] sm:$0x3f] %vm7744, %v8013
      %v8020 = vrot.slane %v7633, 5
      %v8021 = vrot.slane %v7634, 5
      %v8022 = vsel %vm7751, %v8020, %v8021
      %v8023 = vrot.slane %v7635, 5
      %v8024 = vsel %vm7751, %v8021, %v8023
      %v8025 = vrot.slane %v7636, 5
      %v8026 = vsel %vm7751, %v8023, %v8025
      %v8032 = vmax.f32 %v7629, %v8020
      %v8033 = vmax.f32 %v7630, %v8022
      %v8034 = vmax.f32 %v7631, %v8024
      %v8035 = vmax.f32 %v7632, %v8026
      %v8036 = vmax.f32 %v7633, %v8025
      %vm8042 = vcmask 1041408
      %v8043 = vrot.slane %v8032, 6
      %v8044 = vrot.slane %v8033, 6
      %v8045 = vsel %vm8042, %v8043, %v8044
      %v8046 = vrot.slane %v8034, 6
      %v8047 = vsel %vm8042, %v8044, %v8046
      %v8048 = vrot.slane %v8035, 6
      %v8049 = vsel %vm8042, %v8046, %v8048
      %v8050 = vrot.slane %v8036, 6
      %v8051 = vsel %vm8042, %v8048, %v8050
      %v8055 = vsel %vm7776, %v8051, 0
      %8057 = vmatpush.msra.mxu0 0.0
      %8058 = vmatpush.msra.mxu0 0.0
      %8059 = vmatpush.msra.mxu0 0.0
      %8060 = vmatpush.msra.mxu0 0.0
      %8061 = vmatpush.msra.mxu0 0.0
      %8062 = vmatpush.msra.mxu0 0.0
      %8063 = vmatpush.msra.mxu0 0.0
      %8064 = vmatpush.msra.mxu0 0.0
      %8065 = vmatpush.msra.mxu0 0.0
      %8066 = vmatpush.msra.mxu0 0.0
      %8067 = vmatpush.msra.mxu0 0.0
      %8068 = vmatpush.msra.mxu0 0.0
      %8069 = vmatpush.msra.mxu0 %v8055
      %8070 = vmatpush.msra.mxu0 %v8049
      %8071 = vmatpush.msra.mxu0 %v8047
      %8072 = vmatpush.msra.mxu0 %v8045
      %8073 = vmatmul.f32.gmra.mxu0 %v7771
      %v8074 = vpop.f32.mrf.mxu0
      %v8075 = vadd.f32 0.0, %v8074
      %8076 = vmatmul.f32.gmra.mxu0 %v7774
      %v8077 = vpop.f32.mrf.mxu0
      %v8078 = vadd.f32 0.0, %v8077
      %8079 = vdwg.mxu0
      %8080 = vmatpush.msra.mxu0 0.0
      %8081 = vmatpush.msra.mxu0 0.0
      %8082 = vmatpush.msra.mxu0 0.0
      %8083 = vmatpush.msra.mxu0 0.0
      %8084 = vmatpush.msra.mxu0 0.0
      %8085 = vmatpush.msra.mxu0 0.0
      %8086 = vmatpush.msra.mxu0 0.0
      %8087 = vmatpush.msra.mxu0 0.0
      %8088 = vmatpush.msra.mxu0 0.0
      %8089 = vmatpush.msra.mxu0 0.0
      %8090 = vmatpush.msra.mxu0 0.0
      %8091 = vmatpush.msra.mxu0 0.0
      %8092 = vmatpush.msra.mxu0 %v8055
      %8093 = vmatpush.msra.mxu0 %v8049
      %8094 = vmatpush.msra.mxu0 %v8047
      %8095 = vmatpush.msra.mxu0 %v8045
      %8096 = vmatmul.f32.gmra.mxu0 %v7804
      %v8097 = vpop.f32.mrf.mxu0
      %v8098 = vadd.f32 0.0, %v8097
      %8099 = vmatmul.f32.gmra.mxu0 %v7807
      %v8100 = vpop.f32.mrf.mxu0
      %v8101 = vadd.f32 0.0, %v8100
      %8102 = vdwg.mxu0
      %v8103 = vmax.f32 %v8075, %v8098
      %v8104 = vmax.f32 %v8078, %v8101
      %8105 = vst.msk [vmem:[#allocation2 + $0x4b] sm:$0xff] %vm7710, %v8103
      %8106 = vst.msk [vmem:[#allocation2 + $0x53] sm:$0x3f] %vm7744, %v8104
      %v8112 = vrot.slane %v7640, 5
      %v8113 = vrot.slane %v7641, 5
      %v8114 = vsel %vm7751, %v8112, %v8113
      %v8115 = vrot.slane %v7642, 5
      %v8116 = vsel %vm7751, %v8113, %v8115
      %v8117 = vrot.slane %v7643, 5
      %v8118 = vsel %vm7751, %v8115, %v8117
      %v8119 = vrot.slane %v7644, 5
      %v8120 = vsel %vm7751, %v8117, %v8119
      %v8125 = vmax.f32 %v7637, %v8114
      %v8126 = vmax.f32 %v7638, %v8116
      %v8127 = vmax.f32 %v7639, %v8118
      %v8128 = vmax.f32 %v7640, %v8120
      %v8130 = vsel %vm7776, %v8128, 0
      %8132 = vmatpush.msra.mxu0 0.0
      %8133 = vmatpush.msra.mxu0 0.0
      %8134 = vmatpush.msra.mxu0 0.0
      %8135 = vmatpush.msra.mxu0 0.0
      %8136 = vmatpush.msra.mxu0 0.0
      %8137 = vmatpush.msra.mxu0 0.0
      %8138 = vmatpush.msra.mxu0 0.0
      %8139 = vmatpush.msra.mxu0 0.0
      %8140 = vmatpush.msra.mxu0 0.0
      %8141 = vmatpush.msra.mxu0 0.0
      %8142 = vmatpush.msra.mxu0 0.0
      %8143 = vmatpush.msra.mxu0 0.0
      %8144 = vmatpush.msra.mxu0 %v8130
      %8145 = vmatpush.msra.mxu0 %v8127
      %8146 = vmatpush.msra.mxu0 %v8126
      %8147 = vmatpush.msra.mxu0 %v8125
      %8148 = vmatmul.f32.gmra.mxu0 %v7771
      %v8149 = vpop.f32.mrf.mxu0
      %v8150 = vadd.f32 0.0, %v8149
      %8151 = vmatmul.f32.gmra.mxu0 %v7774
      %v8152 = vpop.f32.mrf.mxu0
      %v8153 = vadd.f32 0.0, %v8152
      %8154 = vdwg.mxu0
      %8155 = vmatpush.msra.mxu0 0.0
      %8156 = vmatpush.msra.mxu0 0.0
      %8157 = vmatpush.msra.mxu0 0.0
      %8158 = vmatpush.msra.mxu0 0.0
      %8159 = vmatpush.msra.mxu0 0.0
      %8160 = vmatpush.msra.mxu0 0.0
      %8161 = vmatpush.msra.mxu0 0.0
      %8162 = vmatpush.msra.mxu0 0.0
      %8163 = vmatpush.msra.mxu0 0.0
      %8164 = vmatpush.msra.mxu0 0.0
      %8165 = vmatpush.msra.mxu0 0.0
      %8166 = vmatpush.msra.mxu0 0.0
      %8167 = vmatpush.msra.mxu0 %v8130
      %8168 = vmatpush.msra.mxu0 %v8127
      %8169 = vmatpush.msra.mxu0 %v8126
      %8170 = vmatpush.msra.mxu0 %v8125
      %8171 = vmatmul.f32.gmra.mxu0 %v7804
      %v8172 = vpop.f32.mrf.mxu0
      %v8173 = vadd.f32 0.0, %v8172
      %8174 = vmatmul.f32.gmra.mxu0 %v7807
      %v8175 = vpop.f32.mrf.mxu0
      %v8176 = vadd.f32 0.0, %v8175
      %8177 = vdwg.mxu0
      %v8178 = vmax.f32 %v8150, %v8173
      %v8179 = vmax.f32 %v8153, %v8176
      %8180 = vst.msk [vmem:[#allocation2 + $0x5a] sm:$0xff] %vm7710, %v8178
      %8181 = vst.msk [vmem:[#allocation2 + $0x62] sm:$0x3f] %vm7744, %v8179
      %v8187 = vrot.slane %v7647, 5
      %v8188 = vrot.slane %v7648, 5
      %v8189 = vsel %vm7751, %v8187, %v8188
      %v8190 = vrot.slane %v7649, 5
      %v8191 = vsel %vm7751, %v8188, %v8190
      %v8192 = vrot.slane %v7650, 5
      %v8193 = vsel %vm7751, %v8190, %v8192
      %v8194 = vrot.slane %v7651, 5
      %v8195 = vsel %vm7751, %v8192, %v8194
      %v8200 = vmax.f32 %v7644, %v8189
      %v8201 = vmax.f32 %v7645, %v8191
      %v8202 = vmax.f32 %v7646, %v8193
      %v8203 = vmax.f32 %v7647, %v8195
      %v8208 = vrot.slane %v8200, 2
      %v8209 = vrot.slane %v8201, 2
      %v8210 = vsel %vm7862, %v8208, %v8209
      %v8211 = vrot.slane %v8202, 2
      %v8212 = vsel %vm7862, %v8209, %v8211
      %v8213 = vrot.slane %v8203, 2
      %v8214 = vsel %vm7862, %v8211, %v8213
      %v8218 = vsel %vm7776, %v8213, 0
      %8220 = vmatpush.msra.mxu0 0.0
      %8221 = vmatpush.msra.mxu0 0.0
      %8222 = vmatpush.msra.mxu0 0.0
      %8223 = vmatpush.msra.mxu0 0.0
      %8224 = vmatpush.msra.mxu0 0.0
      %8225 = vmatpush.msra.mxu0 0.0
      %8226 = vmatpush.msra.mxu0 0.0
      %8227 = vmatpush.msra.mxu0 0.0
      %8228 = vmatpush.msra.mxu0 0.0
      %8229 = vmatpush.msra.mxu0 0.0
      %8230 = vmatpush.msra.mxu0 0.0
      %8231 = vmatpush.msra.mxu0 0.0
      %8232 = vmatpush.msra.mxu0 %v8218
      %8233 = vmatpush.msra.mxu0 %v8214
      %8234 = vmatpush.msra.mxu0 %v8212
      %8235 = vmatpush.msra.mxu0 %v8210
      %8236 = vmatmul.f32.gmra.mxu0 %v7771
      %v8237 = vpop.f32.mrf.mxu0
      %v8238 = vadd.f32 0.0, %v8237
      %8239 = vmatmul.f32.gmra.mxu0 %v7774
      %v8240 = vpop.f32.mrf.mxu0
      %v8241 = vadd.f32 0.0, %v8240
      %8242 = vdwg.mxu0
      %8243 = vmatpush.msra.mxu0 0.0
      %8244 = vmatpush.msra.mxu0 0.0
      %8245 = vmatpush.msra.mxu0 0.0
      %8246 = vmatpush.msra.mxu0 0.0
      %8247 = vmatpush.msra.mxu0 0.0
      %8248 = vmatpush.msra.mxu0 0.0
      %8249 = vmatpush.msra.mxu0 0.0
      %8250 = vmatpush.msra.mxu0 0.0
      %8251 = vmatpush.msra.mxu0 0.0
      %8252 = vmatpush.msra.mxu0 0.0
      %8253 = vmatpush.msra.mxu0 0.0
      %8254 = vmatpush.msra.mxu0 0.0
      %8255 = vmatpush.msra.mxu0 %v8218
      %8256 = vmatpush.msra.mxu0 %v8214
      %8257 = vmatpush.msra.mxu0 %v8212
      %8258 = vmatpush.msra.mxu0 %v8210
      %8259 = vmatmul.f32.gmra.mxu0 %v7804
      %v8260 = vpop.f32.mrf.mxu0
      %v8261 = vadd.f32 0.0, %v8260
      %8262 = vmatmul.f32.gmra.mxu0 %v7807
      %v8263 = vpop.f32.mrf.mxu0
      %v8264 = vadd.f32 0.0, %v8263
      %8265 = vdwg.mxu0
      %v8266 = vmax.f32 %v8238, %v8261
      %v8267 = vmax.f32 %v8241, %v8264
      %8268 = vst.msk [vmem:[#allocation2 + $0x69] sm:$0xff] %vm7710, %v8266
      %8269 = vst.msk [vmem:[#allocation2 + $0x71] sm:$0x3f] %vm7744, %v8267
      %v8274 = vrot.slane %v7655, 5
      %v8275 = vrot.slane %v7656, 5
      %v8276 = vsel %vm7751, %v8274, %v8275
      %v8277 = vrot.slane %v7657, 5
      %v8278 = vsel %vm7751, %v8275, %v8277
      %v8279 = vrot.slane %v7658, 5
      %v8280 = vsel %vm7751, %v8277, %v8279
      %v8286 = vmax.f32 %v7651, %v8274
      %v8287 = vmax.f32 %v7652, %v8276
      %v8288 = vmax.f32 %v7653, %v8278
      %v8289 = vmax.f32 %v7654, %v8280
      %v8290 = vmax.f32 %v7655, %v8279
      %v8296 = vrot.slane %v8286, 4
      %v8297 = vrot.slane %v8287, 4
      %v8298 = vsel %vm7951, %v8296, %v8297
      %v8299 = vrot.slane %v8288, 4
      %v8300 = vsel %vm7951, %v8297, %v8299
      %v8301 = vrot.slane %v8289, 4
      %v8302 = vsel %vm7951, %v8299, %v8301
      %v8303 = vrot.slane %v8290, 4
      %v8304 = vsel %vm7951, %v8301, %v8303
      %v8308 = vsel %vm7776, %v8304, 0
      %8310 = vmatpush.msra.mxu0 0.0
      %8311 = vmatpush.msra.mxu0 0.0
      %8312 = vmatpush.msra.mxu0 0.0
      %8313 = vmatpush.msra.mxu0 0.0
      %8314 = vmatpush.msra.mxu0 0.0
      %8315 = vmatpush.msra.mxu0 0.0
      %8316 = vmatpush.msra.mxu0 0.0
      %8317 = vmatpush.msra.mxu0 0.0
      %8318 = vmatpush.msra.mxu0 0.0
      %8319 = vmatpush.msra.mxu0 0.0
      %8320 = vmatpush.msra.mxu0 0.0
      %8321 = vmatpush.msra.mxu0 0.0
      %8322 = vmatpush.msra.mxu0 %v8308
      %8323 = vmatpush.msra.mxu0 %v8302
      %8324 = vmatpush.msra.mxu0 %v8300
      %8325 = vmatpush.msra.mxu0 %v8298
      %8326 = vmatmul.f32.gmra.mxu0 %v7771
      %v8327 = vpop.f32.mrf.mxu0
      %v8328 = vadd.f32 0.0, %v8327
      %8329 = vmatmul.f32.gmra.mxu0 %v7774
      %v8330 = vpop.f32.mrf.mxu0
      %v8331 = vadd.f32 0.0, %v8330
      %8332 = vdwg.mxu0
      %8333 = vmatpush.msra.mxu0 0.0
      %8334 = vmatpush.msra.mxu0 0.0
      %8335 = vmatpush.msra.mxu0 0.0
      %8336 = vmatpush.msra.mxu0 0.0
      %8337 = vmatpush.msra.mxu0 0.0
      %8338 = vmatpush.msra.mxu0 0.0
      %8339 = vmatpush.msra.mxu0 0.0
      %8340 = vmatpush.msra.mxu0 0.0
      %8341 = vmatpush.msra.mxu0 0.0
      %8342 = vmatpush.msra.mxu0 0.0
      %8343 = vmatpush.msra.mxu0 0.0
      %8344 = vmatpush.msra.mxu0 0.0
      %8345 = vmatpush.msra.mxu0 %v8308
      %8346 = vmatpush.msra.mxu0 %v8302
      %8347 = vmatpush.msra.mxu0 %v8300
      %8348 = vmatpush.msra.mxu0 %v8298
      %8349 = vmatmul.f32.gmra.mxu0 %v7804
      %v8350 = vpop.f32.mrf.mxu0
      %v8351 = vadd.f32 0.0, %v8350
      %8352 = vmatmul.f32.gmra.mxu0 %v7807
      %v8353 = vpop.f32.mrf.mxu0
      %v8354 = vadd.f32 0.0, %v8353
      %8355 = vdwg.mxu0
      %v8356 = vmax.f32 %v8328, %v8351
      %v8357 = vmax.f32 %v8331, %v8354
      %8358 = vst.msk [vmem:[#allocation2 + $0x78] sm:$0xff] %vm7710, %v8356
      %8359 = vst.msk [vmem:[#allocation2 + $0x80] sm:$0x3f] %vm7744, %v8357
      %v8364 = vrot.slane %v7662, 5
      %v8365 = vrot.slane %v7663, 5
      %v8366 = vsel %vm7751, %v8364, %v8365
      %v8367 = vrot.slane %v7664, 5
      %v8368 = vsel %vm7751, %v8365, %v8367
      %v8369 = vrot.slane %v7665, 5
      %v8370 = vsel %vm7751, %v8367, %v8369
      %v8376 = vmax.f32 %v7658, %v8364
      %v8377 = vmax.f32 %v7659, %v8366
      %v8378 = vmax.f32 %v7660, %v8368
      %v8379 = vmax.f32 %v7661, %v8370
      %v8380 = vmax.f32 %v7662, %v8369
      %v8386 = vrot.slane %v8376, 6
      %v8387 = vrot.slane %v8377, 6
      %v8388 = vsel %vm8042, %v8386, %v8387
      %v8389 = vrot.slane %v8378, 6
      %v8390 = vsel %vm8042, %v8387, %v8389
      %v8391 = vrot.slane %v8379, 6
      %v8392 = vsel %vm8042, %v8389, %v8391
      %v8393 = vrot.slane %v8380, 6
      %v8394 = vsel %vm8042, %v8391, %v8393
      %v8398 = vsel %vm7776, %v8394, 0
      %8400 = vmatpush.msra.mxu0 0.0
      %8401 = vmatpush.msra.mxu0 0.0
      %8402 = vmatpush.msra.mxu0 0.0
      %8403 = vmatpush.msra.mxu0 0.0
      %8404 = vmatpush.msra.mxu0 0.0
      %8405 = vmatpush.msra.mxu0 0.0
      %8406 = vmatpush.msra.mxu0 0.0
      %8407 = vmatpush.msra.mxu0 0.0
      %8408 = vmatpush.msra.mxu0 0.0
      %8409 = vmatpush.msra.mxu0 0.0
      %8410 = vmatpush.msra.mxu0 0.0
      %8411 = vmatpush.msra.mxu0 0.0
      %8412 = vmatpush.msra.mxu0 %v8398
      %8413 = vmatpush.msra.mxu0 %v8392
      %8414 = vmatpush.msra.mxu0 %v8390
      %8415 = vmatpush.msra.mxu0 %v8388
      %8416 = vmatmul.f32.gmra.mxu0 %v7771
      %v8417 = vpop.f32.mrf.mxu0
      %v8418 = vadd.f32 0.0, %v8417
      %8419 = vmatmul.f32.gmra.mxu0 %v7774
      %v8420 = vpop.f32.mrf.mxu0
      %v8421 = vadd.f32 0.0, %v8420
      %8422 = vdwg.mxu0
      %8423 = vmatpush.msra.mxu0 0.0
      %8424 = vmatpush.msra.mxu0 0.0
      %8425 = vmatpush.msra.mxu0 0.0
      %8426 = vmatpush.msra.mxu0 0.0
      %8427 = vmatpush.msra.mxu0 0.0
      %8428 = vmatpush.msra.mxu0 0.0
      %8429 = vmatpush.msra.mxu0 0.0
      %8430 = vmatpush.msra.mxu0 0.0
      %8431 = vmatpush.msra.mxu0 0.0
      %8432 = vmatpush.msra.mxu0 0.0
      %8433 = vmatpush.msra.mxu0 0.0
      %8434 = vmatpush.msra.mxu0 0.0
      %8435 = vmatpush.msra.mxu0 %v8398
      %8436 = vmatpush.msra.mxu0 %v8392
      %8437 = vmatpush.msra.mxu0 %v8390
      %8438 = vmatpush.msra.mxu0 %v8388
      %8439 = vmatmul.f32.gmra.mxu0 %v7804
      %v8440 = vpop.f32.mrf.mxu0
      %v8441 = vadd.f32 0.0, %v8440
      %8442 = vmatmul.f32.gmra.mxu0 %v7807
      %v8443 = vpop.f32.mrf.mxu0
      %v8444 = vadd.f32 0.0, %v8443
      %8445 = vdwg.mxu0
      %v8446 = vmax.f32 %v8418, %v8441
      %v8447 = vmax.f32 %v8421, %v8444
      %8448 = vst.msk [vmem:[#allocation2 + $0x87] sm:$0xff] %vm7710, %v8446
      %8449 = vst.msk [vmem:[#allocation2 + $0x8f] sm:$0x3f] %vm7744, %v8447
      %v8455 = vrot.slane %v7669, 5
      %v8456 = vrot.slane %v7670, 5
      %v8457 = vsel %vm7751, %v8455, %v8456
      %v8458 = vrot.slane %v7671, 5
      %v8459 = vsel %vm7751, %v8456, %v8458
      %v8460 = vrot.slane %v7672, 5
      %v8461 = vsel %vm7751, %v8458, %v8460
      %v8462 = vrot.slane %v7673, 5
      %v8463 = vsel %vm7751, %v8460, %v8462
      %v8468 = vmax.f32 %v7666, %v8457
      %v8469 = vmax.f32 %v7667, %v8459
      %v8470 = vmax.f32 %v7668, %v8461
      %v8471 = vmax.f32 %v7669, %v8463
      %v8473 = vsel %vm7776, %v8471, 0
      %8475 = vmatpush.msra.mxu0 0.0
      %8476 = vmatpush.msra.mxu0 0.0
      %8477 = vmatpush.msra.mxu0 0.0
      %8478 = vmatpush.msra.mxu0 0.0
      %8479 = vmatpush.msra.mxu0 0.0
      %8480 = vmatpush.msra.mxu0 0.0
      %8481 = vmatpush.msra.mxu0 0.0
      %8482 = vmatpush.msra.mxu0 0.0
      %8483 = vmatpush.msra.mxu0 0.0
      %8484 = vmatpush.msra.mxu0 0.0
      %8485 = vmatpush.msra.mxu0 0.0
      %8486 = vmatpush.msra.mxu0 0.0
      %8487 = vmatpush.msra.mxu0 %v8473
      %8488 = vmatpush.msra.mxu0 %v8470
      %8489 = vmatpush.msra.mxu0 %v8469
      %8490 = vmatpush.msra.mxu0 %v8468
      %8491 = vmatmul.f32.gmra.mxu0 %v7771
      %v8492 = vpop.f32.mrf.mxu0
      %v8493 = vadd.f32 0.0, %v8492
      %8494 = vmatmul.f32.gmra.mxu0 %v7774
      %v8495 = vpop.f32.mrf.mxu0
      %v8496 = vadd.f32 0.0, %v8495
      %8497 = vdwg.mxu0
      %8498 = vmatpush.msra.mxu0 0.0
      %8499 = vmatpush.msra.mxu0 0.0
      %8500 = vmatpush.msra.mxu0 0.0
      %8501 = vmatpush.msra.mxu0 0.0
      %8502 = vmatpush.msra.mxu0 0.0
      %8503 = vmatpush.msra.mxu0 0.0
      %8504 = vmatpush.msra.mxu0 0.0
      %8505 = vmatpush.msra.mxu0 0.0
      %8506 = vmatpush.msra.mxu0 0.0
      %8507 = vmatpush.msra.mxu0 0.0
      %8508 = vmatpush.msra.mxu0 0.0
      %8509 = vmatpush.msra.mxu0 0.0
      %8510 = vmatpush.msra.mxu0 %v8473
      %8511 = vmatpush.msra.mxu0 %v8470
      %8512 = vmatpush.msra.mxu0 %v8469
      %8513 = vmatpush.msra.mxu0 %v8468
      %8514 = vmatmul.f32.gmra.mxu0 %v7804
      %v8515 = vpop.f32.mrf.mxu0
      %v8516 = vadd.f32 0.0, %v8515
      %8517 = vmatmul.f32.gmra.mxu0 %v7807
      %v8518 = vpop.f32.mrf.mxu0
      %v8519 = vadd.f32 0.0, %v8518
      %8520 = vdwg.mxu0
      %v8521 = vmax.f32 %v8493, %v8516
      %v8522 = vmax.f32 %v8496, %v8519
      %8523 = vst.msk [vmem:[#allocation2 + $0x96] sm:$0xff] %vm7710, %v8521
      %8524 = vst.msk [vmem:[#allocation2 + $0x9e] sm:$0x3f] %vm7744, %v8522
      %v8530 = vrot.slane %v7676, 5
      %v8531 = vrot.slane %v7677, 5
      %v8532 = vsel %vm7751, %v8530, %v8531
      %v8533 = vrot.slane %v7678, 5
      %v8534 = vsel %vm7751, %v8531, %v8533
      %v8535 = vrot.slane %v7679, 5
      %v8536 = vsel %vm7751, %v8533, %v8535
      %v8537 = vrot.slane %v7680, 5
      %v8538 = vsel %vm7751, %v8535, %v8537
      %v8543 = vmax.f32 %v7673, %v8532
      %v8544 = vmax.f32 %v7674, %v8534
      %v8545 = vmax.f32 %v7675, %v8536
      %v8546 = vmax.f32 %v7676, %v8538
      %v8551 = vrot.slane %v8543, 2
      %v8552 = vrot.slane %v8544, 2
      %v8553 = vsel %vm7862, %v8551, %v8552
      %v8554 = vrot.slane %v8545, 2
      %v8555 = vsel %vm7862, %v8552, %v8554
      %v8556 = vrot.slane %v8546, 2
      %v8557 = vsel %vm7862, %v8554, %v8556
      %v8561 = vsel %vm7776, %v8556, 0
      %8563 = vmatpush.msra.mxu0 0.0
      %8564 = vmatpush.msra.mxu0 0.0
      %8565 = vmatpush.msra.mxu0 0.0
      %8566 = vmatpush.msra.mxu0 0.0
      %8567 = vmatpush.msra.mxu0 0.0
      %8568 = vmatpush.msra.mxu0 0.0
      %8569 = vmatpush.msra.mxu0 0.0
      %8570 = vmatpush.msra.mxu0 0.0
      %8571 = vmatpush.msra.mxu0 0.0
      %8572 = vmatpush.msra.mxu0 0.0
      %8573 = vmatpush.msra.mxu0 0.0
      %8574 = vmatpush.msra.mxu0 0.0
      %8575 = vmatpush.msra.mxu0 %v8561
      %8576 = vmatpush.msra.mxu0 %v8557
      %8577 = vmatpush.msra.mxu0 %v8555
      %8578 = vmatpush.msra.mxu0 %v8553
      %8579 = vmatmul.f32.gmra.mxu0 %v7771
      %v8580 = vpop.f32.mrf.mxu0
      %v8581 = vadd.f32 0.0, %v8580
      %8582 = vmatmul.f32.gmra.mxu0 %v7774
      %v8583 = vpop.f32.mrf.mxu0
      %v8584 = vadd.f32 0.0, %v8583
      %8585 = vdwg.mxu0
      %8586 = vmatpush.msra.mxu0 0.0
      %8587 = vmatpush.msra.mxu0 0.0
      %8588 = vmatpush.msra.mxu0 0.0
      %8589 = vmatpush.msra.mxu0 0.0
      %8590 = vmatpush.msra.mxu0 0.0
      %8591 = vmatpush.msra.mxu0 0.0
      %8592 = vmatpush.msra.mxu0 0.0
      %8593 = vmatpush.msra.mxu0 0.0
      %8594 = vmatpush.msra.mxu0 0.0
      %8595 = vmatpush.msra.mxu0 0.0
      %8596 = vmatpush.msra.mxu0 0.0
      %8597 = vmatpush.msra.mxu0 0.0
      %8598 = vmatpush.msra.mxu0 %v8561
      %8599 = vmatpush.msra.mxu0 %v8557
      %8600 = vmatpush.msra.mxu0 %v8555
      %8601 = vmatpush.msra.mxu0 %v8553
      %8602 = vmatmul.f32.gmra.mxu0 %v7804
      %v8603 = vpop.f32.mrf.mxu0
      %v8604 = vadd.f32 0.0, %v8603
      %8605 = vmatmul.f32.gmra.mxu0 %v7807
      %v8606 = vpop.f32.mrf.mxu0
      %v8607 = vadd.f32 0.0, %v8606
      %8608 = vdwg.mxu0
      %v8609 = vmax.f32 %v8581, %v8604
      %v8610 = vmax.f32 %v8584, %v8607
      %8611 = vst.msk [vmem:[#allocation2 + $0xa5] sm:$0xff] %vm7710, %v8609
      %8612 = vst.msk [vmem:[#allocation2 + $0xad] sm:$0x3f] %vm7744, %v8610
      %v8617 = vrot.slane %v7684, 5
      %v8618 = vrot.slane %v7685, 5
      %v8619 = vsel %vm7751, %v8617, %v8618
      %v8620 = vrot.slane %v7686, 5
      %v8621 = vsel %vm7751, %v8618, %v8620
      %v8622 = vrot.slane %v7687, 5
      %v8623 = vsel %vm7751, %v8620, %v8622
      %v8629 = vmax.f32 %v7680, %v8617
      %v8630 = vmax.f32 %v7681, %v8619
      %v8631 = vmax.f32 %v7682, %v8621
      %v8632 = vmax.f32 %v7683, %v8623
      %v8633 = vmax.f32 %v7684, %v8622
      %v8639 = vrot.slane %v8629, 4
      %v8640 = vrot.slane %v8630, 4
      %v8641 = vsel %vm7951, %v8639, %v8640
      %v8642 = vrot.slane %v8631, 4
      %v8643 = vsel %vm7951, %v8640, %v8642
      %v8644 = vrot.slane %v8632, 4
      %v8645 = vsel %vm7951, %v8642, %v8644
      %v8646 = vrot.slane %v8633, 4
      %v8647 = vsel %vm7951, %v8644, %v8646
      %v8651 = vsel %vm7776, %v8647, 0
      %8653 = vmatpush.msra.mxu0 0.0
      %8654 = vmatpush.msra.mxu0 0.0
      %8655 = vmatpush.msra.mxu0 0.0
      %8656 = vmatpush.msra.mxu0 0.0
      %8657 = vmatpush.msra.mxu0 0.0
      %8658 = vmatpush.msra.mxu0 0.0
      %8659 = vmatpush.msra.mxu0 0.0
      %8660 = vmatpush.msra.mxu0 0.0
      %8661 = vmatpush.msra.mxu0 0.0
      %8662 = vmatpush.msra.mxu0 0.0
      %8663 = vmatpush.msra.mxu0 0.0
      %8664 = vmatpush.msra.mxu0 0.0
      %8665 = vmatpush.msra.mxu0 %v8651
      %8666 = vmatpush.msra.mxu0 %v8645
      %8667 = vmatpush.msra.mxu0 %v8643
      %8668 = vmatpush.msra.mxu0 %v8641
      %8669 = vmatmul.f32.gmra.mxu0 %v7771
      %v8670 = vpop.f32.mrf.mxu0
      %v8671 = vadd.f32 0.0, %v8670
      %8672 = vmatmul.f32.gmra.mxu0 %v7774
      %v8673 = vpop.f32.mrf.mxu0
      %v8674 = vadd.f32 0.0, %v8673
      %8675 = vdwg.mxu0
      %8676 = vmatpush.msra.mxu0 0.0
      %8677 = vmatpush.msra.mxu0 0.0
      %8678 = vmatpush.msra.mxu0 0.0
      %8679 = vmatpush.msra.mxu0 0.0
      %8680 = vmatpush.msra.mxu0 0.0
      %8681 = vmatpush.msra.mxu0 0.0
      %8682 = vmatpush.msra.mxu0 0.0
      %8683 = vmatpush.msra.mxu0 0.0
      %8684 = vmatpush.msra.mxu0 0.0
      %8685 = vmatpush.msra.mxu0 0.0
      %8686 = vmatpush.msra.mxu0 0.0
      %8687 = vmatpush.msra.mxu0 0.0
      %8688 = vmatpush.msra.mxu0 %v8651
      %8689 = vmatpush.msra.mxu0 %v8645
      %8690 = vmatpush.msra.mxu0 %v8643
      %8691 = vmatpush.msra.mxu0 %v8641
      %8692 = vmatmul.f32.gmra.mxu0 %v7804
      %v8693 = vpop.f32.mrf.mxu0
      %v8694 = vadd.f32 0.0, %v8693
      %8695 = vmatmul.f32.gmra.mxu0 %v7807
      %v8696 = vpop.f32.mrf.mxu0
      %v8697 = vadd.f32 0.0, %v8696
      %8698 = vdwg.mxu0
      %v8699 = vmax.f32 %v8671, %v8694
      %v8700 = vmax.f32 %v8674, %v8697
      %8701 = vst.msk [vmem:[#allocation2 + $0xb4] sm:$0xff] %vm7710, %v8699
      %8702 = vst.msk [vmem:[#allocation2 + $0xbc] sm:$0x3f] %vm7744, %v8700
      %v8707 = vrot.slane %v7691, 5
      %v8708 = vrot.slane %v7692, 5
      %v8709 = vsel %vm7751, %v8707, %v8708
      %v8710 = vrot.slane %v7693, 5
      %v8711 = vsel %vm7751, %v8708, %v8710
      %v8712 = vrot.slane %v7694, 5
      %v8713 = vsel %vm7751, %v8710, %v8712
      %v8719 = vmax.f32 %v7687, %v8707
      %v8720 = vmax.f32 %v7688, %v8709
      %v8721 = vmax.f32 %v7689, %v8711
      %v8722 = vmax.f32 %v7690, %v8713
      %v8723 = vmax.f32 %v7691, %v8712
      %v8729 = vrot.slane %v8719, 6
      %v8730 = vrot.slane %v8720, 6
      %v8731 = vsel %vm8042, %v8729, %v8730
      %v8732 = vrot.slane %v8721, 6
      %v8733 = vsel %vm8042, %v8730, %v8732
      %v8734 = vrot.slane %v8722, 6
      %v8735 = vsel %vm8042, %v8732, %v8734
      %v8736 = vrot.slane %v8723, 6
      %v8737 = vsel %vm8042, %v8734, %v8736
      %v8741 = vsel %vm7776, %v8737, 0
      %8743 = vmatpush.msra.mxu0 0.0
      %8744 = vmatpush.msra.mxu0 0.0
      %8745 = vmatpush.msra.mxu0 0.0
      %8746 = vmatpush.msra.mxu0 0.0
      %8747 = vmatpush.msra.mxu0 0.0
      %8748 = vmatpush.msra.mxu0 0.0
      %8749 = vmatpush.msra.mxu0 0.0
      %8750 = vmatpush.msra.mxu0 0.0
      %8751 = vmatpush.msra.mxu0 0.0
      %8752 = vmatpush.msra.mxu0 0.0
      %8753 = vmatpush.msra.mxu0 0.0
      %8754 = vmatpush.msra.mxu0 0.0
      %8755 = vmatpush.msra.mxu0 %v8741
      %8756 = vmatpush.msra.mxu0 %v8735
      %8757 = vmatpush.msra.mxu0 %v8733
      %8758 = vmatpush.msra.mxu0 %v8731
      %8759 = vmatmul.f32.gmra.mxu0 %v7771
      %v8760 = vpop.f32.mrf.mxu0
      %v8761 = vadd.f32 0.0, %v8760
      %8762 = vmatmul.f32.gmra.mxu0 %v7774
      %v8763 = vpop.f32.mrf.mxu0
      %v8764 = vadd.f32 0.0, %v8763
      %8765 = vdwg.mxu0
      %8766 = vmatpush.msra.mxu0 0.0
      %8767 = vmatpush.msra.mxu0 0.0
      %8768 = vmatpush.msra.mxu0 0.0
      %8769 = vmatpush.msra.mxu0 0.0
      %8770 = vmatpush.msra.mxu0 0.0
      %8771 = vmatpush.msra.mxu0 0.0
      %8772 = vmatpush.msra.mxu0 0.0
      %8773 = vmatpush.msra.mxu0 0.0
      %8774 = vmatpush.msra.mxu0 0.0
      %8775 = vmatpush.msra.mxu0 0.0
      %8776 = vmatpush.msra.mxu0 0.0
      %8777 = vmatpush.msra.mxu0 0.0
      %8778 = vmatpush.msra.mxu0 %v8741
      %8779 = vmatpush.msra.mxu0 %v8735
      %8780 = vmatpush.msra.mxu0 %v8733
      %8781 = vmatpush.msra.mxu0 %v8731
      %8782 = vmatmul.f32.gmra.mxu0 %v7804
      %v8783 = vpop.f32.mrf.mxu0
      %v8784 = vadd.f32 0.0, %v8783
      %8785 = vmatmul.f32.gmra.mxu0 %v7807
      %v8786 = vpop.f32.mrf.mxu0
      %v8787 = vadd.f32 0.0, %v8786
      %8788 = vdwg.mxu0
      %v8789 = vmax.f32 %v8761, %v8784
      %v8790 = vmax.f32 %v8764, %v8787
      %8791 = vst.msk [vmem:[#allocation2 + $0xc3] sm:$0xff] %vm7710, %v8789
      %8792 = vst.msk [vmem:[#allocation2 + $0xcb] sm:$0x3f] %vm7744, %v8790
      %v8798 = vrot.slane %v7698, 5
      %v8799 = vrot.slane %v7699, 5
      %v8800 = vsel %vm7751, %v8798, %v8799
      %v8801 = vrot.slane %v7700, 5
      %v8802 = vsel %vm7751, %v8799, %v8801
      %v8803 = vrot.slane %v7701, 5
      %v8804 = vsel %vm7751, %v8801, %v8803
      %v8805 = vrot.slane %v7702, 5
      %v8806 = vsel %vm7751, %v8803, %v8805
      %v8811 = vmax.f32 %v7695, %v8800
      %v8812 = vmax.f32 %v7696, %v8802
      %v8813 = vmax.f32 %v7697, %v8804
      %v8814 = vmax.f32 %v7698, %v8806
      %v8816 = vsel %vm7776, %v8814, 0
      %8818 = vmatpush.msra.mxu0 0.0
      %8819 = vmatpush.msra.mxu0 0.0
      %8820 = vmatpush.msra.mxu0 0.0
      %8821 = vmatpush.msra.mxu0 0.0
      %8822 = vmatpush.msra.mxu0 0.0
      %8823 = vmatpush.msra.mxu0 0.0
      %8824 = vmatpush.msra.mxu0 0.0
      %8825 = vmatpush.msra.mxu0 0.0
      %8826 = vmatpush.msra.mxu0 0.0
      %8827 = vmatpush.msra.mxu0 0.0
      %8828 = vmatpush.msra.mxu0 0.0
      %8829 = vmatpush.msra.mxu0 0.0
      %8830 = vmatpush.msra.mxu0 %v8816
      %8831 = vmatpush.msra.mxu0 %v8813
      %8832 = vmatpush.msra.mxu0 %v8812
      %8833 = vmatpush.msra.mxu0 %v8811
      %8834 = vmatmul.f32.gmra.mxu0 %v7771
      %v8835 = vpop.f32.mrf.mxu0
      %v8836 = vadd.f32 0.0, %v8835
      %8837 = vmatmul.f32.gmra.mxu0 %v7774
      %v8838 = vpop.f32.mrf.mxu0
      %v8839 = vadd.f32 0.0, %v8838
      %8840 = vdwg.mxu0
      %8841 = vmatpush.msra.mxu0 0.0
      %8842 = vmatpush.msra.mxu0 0.0
      %8843 = vmatpush.msra.mxu0 0.0
      %8844 = vmatpush.msra.mxu0 0.0
      %8845 = vmatpush.msra.mxu0 0.0
      %8846 = vmatpush.msra.mxu0 0.0
      %8847 = vmatpush.msra.mxu0 0.0
      %8848 = vmatpush.msra.mxu0 0.0
      %8849 = vmatpush.msra.mxu0 0.0
      %8850 = vmatpush.msra.mxu0 0.0
      %8851 = vmatpush.msra.mxu0 0.0
      %8852 = vmatpush.msra.mxu0 0.0
      %8853 = vmatpush.msra.mxu0 %v8816
      %8854 = vmatpush.msra.mxu0 %v8813
      %8855 = vmatpush.msra.mxu0 %v8812
      %8856 = vmatpush.msra.mxu0 %v8811
      %8857 = vmatmul.f32.gmra.mxu0 %v7804
      %v8858 = vpop.f32.mrf.mxu0
      %v8859 = vadd.f32 0.0, %v8858
      %8860 = vmatmul.f32.gmra.mxu0 %v7807
      %v8861 = vpop.f32.mrf.mxu0
      %v8862 = vadd.f32 0.0, %v8861
      %8863 = vdwg.mxu0
      %v8864 = vmax.f32 %v8836, %v8859
      %v8865 = vmax.f32 %v8839, %v8862
      %8866 = vst.msk [vmem:[#allocation2 + $0xd2] sm:$0xff] %vm7710, %v8864
      %8867 = vst.msk [vmem:[#allocation2 + $0xda] sm:$0x3f] %vm7744, %v8865
      %v8873 = vrot.slane %v7705, 5
      %v8874 = vrot.slane %v7706, 5
      %v8875 = vsel %vm7751, %v8873, %v8874
      %v8876 = vrot.slane %v7707, 5
      %v8877 = vsel %vm7751, %v8874, %v8876
      %v8878 = vrot.slane %v7708, 5
      %v8879 = vsel %vm7751, %v8876, %v8878
      %v8880 = vrot.slane %v7709, 5
      %v8881 = vsel %vm7751, %v8878, %v8880
      %v8886 = vmax.f32 %v7702, %v8875
      %v8887 = vmax.f32 %v7703, %v8877
      %v8888 = vmax.f32 %v7704, %v8879
      %v8889 = vmax.f32 %v7705, %v8881
      %v8894 = vrot.slane %v8886, 2
      %v8895 = vrot.slane %v8887, 2
      %v8896 = vsel %vm7862, %v8894, %v8895
      %v8897 = vrot.slane %v8888, 2
      %v8898 = vsel %vm7862, %v8895, %v8897
      %v8899 = vrot.slane %v8889, 2
      %v8900 = vsel %vm7862, %v8897, %v8899
      %v8904 = vsel %vm7776, %v8899, 0
      %8906 = vmatpush.msra.mxu0 0.0
      %8907 = vmatpush.msra.mxu0 0.0
      %8908 = vmatpush.msra.mxu0 0.0
      %8909 = vmatpush.msra.mxu0 0.0
      %8910 = vmatpush.msra.mxu0 0.0
      %8911 = vmatpush.msra.mxu0 0.0
      %8912 = vmatpush.msra.mxu0 0.0
      %8913 = vmatpush.msra.mxu0 0.0
      %8914 = vmatpush.msra.mxu0 0.0
      %8915 = vmatpush.msra.mxu0 0.0
      %8916 = vmatpush.msra.mxu0 0.0
      %8917 = vmatpush.msra.mxu0 0.0
      %8918 = vmatpush.msra.mxu0 %v8904
      %8919 = vmatpush.msra.mxu0 %v8900
      %8920 = vmatpush.msra.mxu0 %v8898
      %8921 = vmatpush.msra.mxu0 %v8896
      %8922 = vmatmul.f32.gmra.mxu0 %v7771
      %v8923 = vpop.f32.mrf.mxu0
      %v8924 = vadd.f32 0.0, %v8923
      %8925 = vmatmul.f32.gmra.mxu0 %v7774
      %v8926 = vpop.f32.mrf.mxu0
      %v8927 = vadd.f32 0.0, %v8926
      %8928 = vdwg.mxu0
      %8929 = vmatpush.msra.mxu0 0.0
      %8930 = vmatpush.msra.mxu0 0.0
      %8931 = vmatpush.msra.mxu0 0.0
      %8932 = vmatpush.msra.mxu0 0.0
      %8933 = vmatpush.msra.mxu0 0.0
      %8934 = vmatpush.msra.mxu0 0.0
      %8935 = vmatpush.msra.mxu0 0.0
      %8936 = vmatpush.msra.mxu0 0.0
      %8937 = vmatpush.msra.mxu0 0.0
      %8938 = vmatpush.msra.mxu0 0.0
      %8939 = vmatpush.msra.mxu0 0.0
      %8940 = vmatpush.msra.mxu0 0.0
      %8941 = vmatpush.msra.mxu0 %v8904
      %8942 = vmatpush.msra.mxu0 %v8900
      %8943 = vmatpush.msra.mxu0 %v8898
      %8944 = vmatpush.msra.mxu0 %v8896
      %8945 = vmatmul.f32.gmra.mxu0 %v7804
      %v8946 = vpop.f32.mrf.mxu0
      %v8947 = vadd.f32 0.0, %v8946
      %8948 = vmatmul.f32.gmra.mxu0 %v7807
      %v8949 = vpop.f32.mrf.mxu0
      %v8950 = vadd.f32 0.0, %v8949
      %8951 = vdwg.mxu0
      %v8952 = vmax.f32 %v8924, %v8947
      %v8953 = vmax.f32 %v8927, %v8950
      %8954 = vst.msk [vmem:[#allocation2 + $0xe1] sm:$0xff] %vm7710, %v8952
      %8955 = vst.msk [vmem:[#allocation2 + $0xe9] sm:$0x3f] %vm7744, %v8953
      %v8956 = vld [vmem:[%s4] sm:$0x1]
      %v8958 = vperm.slane %v8956, 0
      %v8960 = vld [vmem:[#allocation2 + $0xe] sm:$0xff]
      %v8961 = vld [vmem:[#allocation2 + $0x16] sm:$0xff]
      %v8962 = vld [vmem:[#allocation2 + $0x1e] sm:$0xff]
      %v8963 = vld [vmem:[#allocation2 + $0x26] sm:$0xff]
      %v8964 = vld [vmem:[#allocation2 + $0x2e] sm:$0xff]
      %v8965 = vld [vmem:[#allocation2 + $0x36] sm:$0xff]
      %v8966 = vld [vmem:[#allocation2 + $0x3e] sm:$0xff]
      %v8967 = vld [vmem:[#allocation2 + $0x46] sm:$0xff]
      %v8968 = vld [vmem:[#allocation2 + $0x4e] sm:$0xff]
      %v8969 = vld [vmem:[#allocation2 + $0x56] sm:$0xff]
      %v8970 = vld [vmem:[#allocation2 + $0x5e] sm:$0xff]
      %v8971 = vld [vmem:[#allocation2 + $0x66] sm:$0xff]
      %v8972 = vld [vmem:[#allocation2 + $0x6e] sm:$0xff]
      %v8973 = vld [vmem:[#allocation2 + $0x76] sm:$0xff]
      %v8974 = vld [vmem:[#allocation2 + $0x7e] sm:$0xff]
      %v8975 = vld [vmem:[#allocation2 + $0x86] sm:$0xff]
      %v8976 = vld [vmem:[#allocation2 + $0x8e] sm:$0xff]
      %v8977 = vld [vmem:[#allocation2 + $0x96] sm:$0xff]
      %v8978 = vld [vmem:[#allocation2 + $0x9e] sm:$0xff]
      %v8979 = vld [vmem:[#allocation2 + $0xa6] sm:$0xff]
      %v8980 = vld [vmem:[#allocation2 + $0xae] sm:$0xff]
      %v8981 = vld [vmem:[#allocation2 + $0xb6] sm:$0xff]
      %v8982 = vld [vmem:[#allocation2 + $0xbe] sm:$0xff]
      %v8983 = vld [vmem:[#allocation2 + $0xc6] sm:$0xff]
      %v8984 = vld [vmem:[#allocation2 + $0xce] sm:$0xff]
      %v8985 = vld [vmem:[#allocation2 + $0xd6] sm:$0xff]
      %v8986 = vld [vmem:[#allocation2 + $0xde] sm:$0x3]
      %v8987 = vld [vmem:[%s3] sm:$0xff]
      %v8988 = vld [vmem:[%s3 + $0x8] sm:$0xff]
      %v8990 = vsel %vm7710, %v8960, 0
      %v8993 = vsel %vm7710, %v8961, 0
      %v8996 = vsel %vm7710, %v8962, 0
      %v8999 = vsel %vm7710, %v8963, 0
      %v9002 = vsel %vm7710, %v8964, 0
      %v9005 = vsel %vm7710, %v8965, 0
      %v9008 = vsel %vm7710, %v8966, 0
      %v9011 = vsel %vm7710, %v8967, 0
      %v9014 = vsel %vm7710, %v8968, 0
      %v9017 = vsel %vm7710, %v8969, 0
      %v9020 = vsel %vm7710, %v8970, 0
      %v9023 = vsel %vm7710, %v8971, 0
      %v9026 = vsel %vm7710, %v8972, 0
      %v9029 = vsel %vm7710, %v8973, 0
      %v9032 = vsel %vm7710, %v8974, 0
      %v9035 = vsel %vm7710, %v8975, 0
      %v9038 = vsel %vm7710, %v8976, 0
      %v9041 = vsel %vm7710, %v8977, 0
      %v9044 = vsel %vm7710, %v8978, 0
      %v9047 = vsel %vm7710, %v8979, 0
      %v9050 = vsel %vm7710, %v8980, 0
      %v9053 = vsel %vm7710, %v8981, 0
      %v9056 = vsel %vm7710, %v8982, 0
      %v9059 = vsel %vm7710, %v8983, 0
      %v9062 = vsel %vm7710, %v8984, 0
      %v9065 = vsel %vm7710, %v8985, 0
      %v9068 = vsel %vm7710, %v8986, 0
      %9070 = vmatpush.msra.mxu0 0.0
      %9071 = vmatpush.msra.mxu0 0.0
      %9072 = vmatpush.msra.mxu0 0.0
      %9073 = vmatpush.msra.mxu0 0.0
      %9074 = vmatpush.msra.mxu0 0.0
      %9075 = vmatpush.msra.mxu0 0.0
      %9076 = vmatpush.msra.mxu0 0.0
      %9077 = vmatpush.msra.mxu0 0.0
      %9078 = vmatpush.msra.mxu0 0.0
      %9079 = vmatpush.msra.mxu0 0.0
      %9080 = vmatpush.msra.mxu0 0.0
      %9081 = vmatpush.msra.mxu0 0.0
      %9082 = vmatpush.msra.mxu0 0.0
      %9083 = vmatpush.msra.mxu0 0.0
      %9084 = vmatpush.msra.mxu0 %v8988
      %9085 = vmatpush.msra.mxu0 %v8987
      %9086 = vmatmul.f32.gmra.mxu0 %v8990
      %v9087 = vpop.f32.mrf.mxu0
      %v9088 = vadd.f32 0.0, %v9087
      %9089 = vmatmul.f32.gmra.mxu0 %v8993
      %v9090 = vpop.f32.mrf.mxu0
      %v9091 = vadd.f32 0.0, %v9090
      %9092 = vmatmul.f32.gmra.mxu0 %v8996
      %v9093 = vpop.f32.mrf.mxu0
      %v9094 = vadd.f32 0.0, %v9093
      %9095 = vmatmul.f32.gmra.mxu0 %v8999
      %v9096 = vpop.f32.mrf.mxu0
      %v9097 = vadd.f32 0.0, %v9096
      %9098 = vmatmul.f32.gmra.mxu0 %v9002
      %v9099 = vpop.f32.mrf.mxu0
      %v9100 = vadd.f32 0.0, %v9099
      %9101 = vmatmul.f32.gmra.mxu0 %v9005
      %v9102 = vpop.f32.mrf.mxu0
      %v9103 = vadd.f32 0.0, %v9102
      %9104 = vmatmul.f32.gmra.mxu0 %v9008
      %v9105 = vpop.f32.mrf.mxu0
      %v9106 = vadd.f32 0.0, %v9105
      %9107 = vmatmul.f32.gmra.mxu0 %v9011
      %v9108 = vpop.f32.mrf.mxu0
      %v9109 = vadd.f32 0.0, %v9108
      %9110 = vmatmul.f32.gmra.mxu0 %v9014
      %v9111 = vpop.f32.mrf.mxu0
      %v9112 = vadd.f32 0.0, %v9111
      %9113 = vmatmul.f32.gmra.mxu0 %v9017
      %v9114 = vpop.f32.mrf.mxu0
      %v9115 = vadd.f32 0.0, %v9114
      %9116 = vmatmul.f32.gmra.mxu0 %v9020
      %v9117 = vpop.f32.mrf.mxu0
      %v9118 = vadd.f32 0.0, %v9117
      %9119 = vmatmul.f32.gmra.mxu0 %v9023
      %v9120 = vpop.f32.mrf.mxu0
      %v9121 = vadd.f32 0.0, %v9120
      %9122 = vmatmul.f32.gmra.mxu0 %v9026
      %v9123 = vpop.f32.mrf.mxu0
      %v9124 = vadd.f32 0.0, %v9123
      %9125 = vmatmul.f32.gmra.mxu0 %v9029
      %v9126 = vpop.f32.mrf.mxu0
      %v9127 = vadd.f32 0.0, %v9126
      %9128 = vmatmul.f32.gmra.mxu0 %v9032
      %v9129 = vpop.f32.mrf.mxu0
      %v9130 = vadd.f32 0.0, %v9129
      %9131 = vmatmul.f32.gmra.mxu0 %v9035
      %v9132 = vpop.f32.mrf.mxu0
      %v9133 = vadd.f32 0.0, %v9132
      %9134 = vmatmul.f32.gmra.mxu0 %v9038
      %v9135 = vpop.f32.mrf.mxu0
      %v9136 = vadd.f32 0.0, %v9135
      %9137 = vmatmul.f32.gmra.mxu0 %v9041
      %v9138 = vpop.f32.mrf.mxu0
      %v9139 = vadd.f32 0.0, %v9138
      %9140 = vmatmul.f32.gmra.mxu0 %v9044
      %v9141 = vpop.f32.mrf.mxu0
      %v9142 = vadd.f32 0.0, %v9141
      %9143 = vmatmul.f32.gmra.mxu0 %v9047
      %v9144 = vpop.f32.mrf.mxu0
      %v9145 = vadd.f32 0.0, %v9144
      %9146 = vmatmul.f32.gmra.mxu0 %v9050
      %v9147 = vpop.f32.mrf.mxu0
      %v9148 = vadd.f32 0.0, %v9147
      %9149 = vmatmul.f32.gmra.mxu0 %v9053
      %v9150 = vpop.f32.mrf.mxu0
      %v9151 = vadd.f32 0.0, %v9150
      %9152 = vmatmul.f32.gmra.mxu0 %v9056
      %v9153 = vpop.f32.mrf.mxu0
      %v9154 = vadd.f32 0.0, %v9153
      %9155 = vmatmul.f32.gmra.mxu0 %v9059
      %v9156 = vpop.f32.mrf.mxu0
      %v9157 = vadd.f32 0.0, %v9156
      %9158 = vmatmul.f32.gmra.mxu0 %v9062
      %v9159 = vpop.f32.mrf.mxu0
      %v9160 = vadd.f32 0.0, %v9159
      %9161 = vmatmul.f32.gmra.mxu0 %v9065
      %v9162 = vpop.f32.mrf.mxu0
      %v9163 = vadd.f32 0.0, %v9162
      %9164 = vmatmul.f32.gmra.mxu0 %v9068
      %v9165 = vpop.f32.mrf.mxu0
      %v9166 = vadd.f32 0.0, %v9165
      %9167 = vdwg.mxu0
      %v9168 = vadd.f32 %v8958, %v9088
      %v9169 = vadd.f32 %v8958, %v9091
      %v9170 = vadd.f32 %v8958, %v9094
      %v9171 = vadd.f32 %v8958, %v9097
      %v9172 = vadd.f32 %v8958, %v9100
      %v9173 = vadd.f32 %v8958, %v9103
      %v9174 = vadd.f32 %v8958, %v9106
      %v9175 = vadd.f32 %v8958, %v9109
      %v9176 = vadd.f32 %v8958, %v9112
      %v9177 = vadd.f32 %v8958, %v9115
      %v9178 = vadd.f32 %v8958, %v9118
      %v9179 = vadd.f32 %v8958, %v9121
      %v9180 = vadd.f32 %v8958, %v9124
      %v9181 = vadd.f32 %v8958, %v9127
      %v9182 = vadd.f32 %v8958, %v9130
      %v9183 = vadd.f32 %v8958, %v9133
      %v9184 = vadd.f32 %v8958, %v9136
      %v9185 = vadd.f32 %v8958, %v9139
      %v9186 = vadd.f32 %v8958, %v9142
      %v9187 = vadd.f32 %v8958, %v9145
      %v9188 = vadd.f32 %v8958, %v9148
      %v9189 = vadd.f32 %v8958, %v9151
      %v9190 = vadd.f32 %v8958, %v9154
      %v9191 = vadd.f32 %v8958, %v9157
      %v9192 = vadd.f32 %v8958, %v9160
      %v9193 = vadd.f32 %v8958, %v9163
      %v9194 = vadd.f32 %v8958, %v9166
      %v9195 = vld [vmem:[#allocation2 + $0xf] sm:$0xff]
      %v9196 = vld [vmem:[#allocation2 + $0x17] sm:$0xff]
      %v9197 = vld [vmem:[#allocation2 + $0x1f] sm:$0xff]
      %v9198 = vld [vmem:[#allocation2 + $0x27] sm:$0xff]
      %v9199 = vld [vmem:[#allocation2 + $0x2f] sm:$0xff]
      %v9200 = vld [vmem:[#allocation2 + $0x37] sm:$0xff]
      %v9201 = vld [vmem:[#allocation2 + $0x3f] sm:$0xff]
      %v9202 = vld [vmem:[#allocation2 + $0x47] sm:$0xff]
      %v9203 = vld [vmem:[#allocation2 + $0x4f] sm:$0xff]
      %v9204 = vld [vmem:[#allocation2 + $0x57] sm:$0xff]
      %v9205 = vld [vmem:[#allocation2 + $0x5f] sm:$0xff]
      %v9206 = vld [vmem:[#allocation2 + $0x67] sm:$0xff]
      %v9207 = vld [vmem:[#allocation2 + $0x6f] sm:$0xff]
      %v9208 = vld [vmem:[#allocation2 + $0x77] sm:$0xff]
      %v9209 = vld [vmem:[#allocation2 + $0x7f] sm:$0xff]
      %v9210 = vld [vmem:[#allocation2 + $0x87] sm:$0xff]
      %v9211 = vld [vmem:[#allocation2 + $0x8f] sm:$0xff]
      %v9212 = vld [vmem:[#allocation2 + $0x97] sm:$0xff]
      %v9213 = vld [vmem:[#allocation2 + $0x9f] sm:$0xff]
      %v9214 = vld [vmem:[#allocation2 + $0xa7] sm:$0xff]
      %v9215 = vld [vmem:[#allocation2 + $0xaf] sm:$0xff]
      %v9216 = vld [vmem:[#allocation2 + $0xb7] sm:$0xff]
      %v9217 = vld [vmem:[#allocation2 + $0xbf] sm:$0xff]
      %v9218 = vld [vmem:[#allocation2 + $0xc7] sm:$0xff]
      %v9219 = vld [vmem:[#allocation2 + $0xcf] sm:$0xff]
      %v9220 = vld [vmem:[#allocation2 + $0xd7] sm:$0xff]
      %v9221 = vld [vmem:[#allocation2 + $0xdf] sm:$0x3]
      %s9222 = scalar_lea.vmem %s3, 16
      %v9223 = vld [vmem:[%s9222] sm:$0xff]
      %v9224 = vld [vmem:[%s9222 + $0x8] sm:$0xff]
      %v9226 = vsel %vm7710, %v9195, 0
      %v9229 = vsel %vm7710, %v9196, 0
      %v9232 = vsel %vm7710, %v9197, 0
      %v9235 = vsel %vm7710, %v9198, 0
      %v9238 = vsel %vm7710, %v9199, 0
      %v9241 = vsel %vm7710, %v9200, 0
      %v9244 = vsel %vm7710, %v9201, 0
      %v9247 = vsel %vm7710, %v9202, 0
      %v9250 = vsel %vm7710, %v9203, 0
      %v9253 = vsel %vm7710, %v9204, 0
      %v9256 = vsel %vm7710, %v9205, 0
      %v9259 = vsel %vm7710, %v9206, 0
      %v9262 = vsel %vm7710, %v9207, 0
      %v9265 = vsel %vm7710, %v9208, 0
      %v9268 = vsel %vm7710, %v9209, 0
      %v9271 = vsel %vm7710, %v9210, 0
      %v9274 = vsel %vm7710, %v9211, 0
      %v9277 = vsel %vm7710, %v9212, 0
      %v9280 = vsel %vm7710, %v9213, 0
      %v9283 = vsel %vm7710, %v9214, 0
      %v9286 = vsel %vm7710, %v9215, 0
      %v9289 = vsel %vm7710, %v9216, 0
      %v9292 = vsel %vm7710, %v9217, 0
      %v9295 = vsel %vm7710, %v9218, 0
      %v9298 = vsel %vm7710, %v9219, 0
      %v9301 = vsel %vm7710, %v9220, 0
      %v9304 = vsel %vm7710, %v9221, 0
      %9306 = vmatpush.msra.mxu0 0.0
      %9307 = vmatpush.msra.mxu0 0.0
      %9308 = vmatpush.msra.mxu0 0.0
      %9309 = vmatpush.msra.mxu0 0.0
      %9310 = vmatpush.msra.mxu0 0.0
      %9311 = vmatpush.msra.mxu0 0.0
      %9312 = vmatpush.msra.mxu0 0.0
      %9313 = vmatpush.msra.mxu0 0.0
      %9314 = vmatpush.msra.mxu0 0.0
      %9315 = vmatpush.msra.mxu0 0.0
      %9316 = vmatpush.msra.mxu0 0.0
      %9317 = vmatpush.msra.mxu0 0.0
      %9318 = vmatpush.msra.mxu0 0.0
      %9319 = vmatpush.msra.mxu0 0.0
      %9320 = vmatpush.msra.mxu0 %v9224
      %9321 = vmatpush.msra.mxu0 %v9223
      %9322 = vmatmul.f32.gmra.mxu0 %v9226
      %v9323 = vpop.f32.mrf.mxu0
      %v9324 = vadd.f32 0.0, %v9323
      %9325 = vmatmul.f32.gmra.mxu0 %v9229
      %v9326 = vpop.f32.mrf.mxu0
      %v9327 = vadd.f32 0.0, %v9326
      %9328 = vmatmul.f32.gmra.mxu0 %v9232
      %v9329 = vpop.f32.mrf.mxu0
      %v9330 = vadd.f32 0.0, %v9329
      %9331 = vmatmul.f32.gmra.mxu0 %v9235
      %v9332 = vpop.f32.mrf.mxu0
      %v9333 = vadd.f32 0.0, %v9332
      %9334 = vmatmul.f32.gmra.mxu0 %v9238
      %v9335 = vpop.f32.mrf.mxu0
      %v9336 = vadd.f32 0.0, %v9335
      %9337 = vmatmul.f32.gmra.mxu0 %v9241
      %v9338 = vpop.f32.mrf.mxu0
      %v9339 = vadd.f32 0.0, %v9338
      %9340 = vmatmul.f32.gmra.mxu0 %v9244
      %v9341 = vpop.f32.mrf.mxu0
      %v9342 = vadd.f32 0.0, %v9341
      %9343 = vmatmul.f32.gmra.mxu0 %v9247
      %v9344 = vpop.f32.mrf.mxu0
      %v9345 = vadd.f32 0.0, %v9344
      %9346 = vmatmul.f32.gmra.mxu0 %v9250
      %v9347 = vpop.f32.mrf.mxu0
      %v9348 = vadd.f32 0.0, %v9347
      %9349 = vmatmul.f32.gmra.mxu0 %v9253
      %v9350 = vpop.f32.mrf.mxu0
      %v9351 = vadd.f32 0.0, %v9350
      %9352 = vmatmul.f32.gmra.mxu0 %v9256
      %v9353 = vpop.f32.mrf.mxu0
      %v9354 = vadd.f32 0.0, %v9353
      %9355 = vmatmul.f32.gmra.mxu0 %v9259
      %v9356 = vpop.f32.mrf.mxu0
      %v9357 = vadd.f32 0.0, %v9356
      %9358 = vmatmul.f32.gmra.mxu0 %v9262
      %v9359 = vpop.f32.mrf.mxu0
      %v9360 = vadd.f32 0.0, %v9359
      %9361 = vmatmul.f32.gmra.mxu0 %v9265
      %v9362 = vpop.f32.mrf.mxu0
      %v9363 = vadd.f32 0.0, %v9362
      %9364 = vmatmul.f32.gmra.mxu0 %v9268
      %v9365 = vpop.f32.mrf.mxu0
      %v9366 = vadd.f32 0.0, %v9365
      %9367 = vmatmul.f32.gmra.mxu0 %v9271
      %v9368 = vpop.f32.mrf.mxu0
      %v9369 = vadd.f32 0.0, %v9368
      %9370 = vmatmul.f32.gmra.mxu0 %v9274
      %v9371 = vpop.f32.mrf.mxu0
      %v9372 = vadd.f32 0.0, %v9371
      %9373 = vmatmul.f32.gmra.mxu0 %v9277
      %v9374 = vpop.f32.mrf.mxu0
      %v9375 = vadd.f32 0.0, %v9374
      %9376 = vmatmul.f32.gmra.mxu0 %v9280
      %v9377 = vpop.f32.mrf.mxu0
      %v9378 = vadd.f32 0.0, %v9377
      %9379 = vmatmul.f32.gmra.mxu0 %v9283
      %v9380 = vpop.f32.mrf.mxu0
      %v9381 = vadd.f32 0.0, %v9380
      %9382 = vmatmul.f32.gmra.mxu0 %v9286
      %v9383 = vpop.f32.mrf.mxu0
      %v9384 = vadd.f32 0.0, %v9383
      %9385 = vmatmul.f32.gmra.mxu0 %v9289
      %v9386 = vpop.f32.mrf.mxu0
      %v9387 = vadd.f32 0.0, %v9386
      %9388 = vmatmul.f32.gmra.mxu0 %v9292
      %v9389 = vpop.f32.mrf.mxu0
      %v9390 = vadd.f32 0.0, %v9389
      %9391 = vmatmul.f32.gmra.mxu0 %v9295
      %v9392 = vpop.f32.mrf.mxu0
      %v9393 = vadd.f32 0.0, %v9392
      %9394 = vmatmul.f32.gmra.mxu0 %v9298
      %v9395 = vpop.f32.mrf.mxu0
      %v9396 = vadd.f32 0.0, %v9395
      %9397 = vmatmul.f32.gmra.mxu0 %v9301
      %v9398 = vpop.f32.mrf.mxu0
      %v9399 = vadd.f32 0.0, %v9398
      %9400 = vmatmul.f32.gmra.mxu0 %v9304
      %v9401 = vpop.f32.mrf.mxu0
      %v9402 = vadd.f32 0.0, %v9401
      %9403 = vdwg.mxu0
      %v9404 = vadd.f32 %v9168, %v9324
      %v9405 = vadd.f32 %v9169, %v9327
      %v9406 = vadd.f32 %v9170, %v9330
      %v9407 = vadd.f32 %v9171, %v9333
      %v9408 = vadd.f32 %v9172, %v9336
      %v9409 = vadd.f32 %v9173, %v9339
      %v9410 = vadd.f32 %v9174, %v9342
      %v9411 = vadd.f32 %v9175, %v9345
      %v9412 = vadd.f32 %v9176, %v9348
      %v9413 = vadd.f32 %v9177, %v9351
      %v9414 = vadd.f32 %v9178, %v9354
      %v9415 = vadd.f32 %v9179, %v9357
      %v9416 = vadd.f32 %v9180, %v9360
      %v9417 = vadd.f32 %v9181, %v9363
      %v9418 = vadd.f32 %v9182, %v9366
      %v9419 = vadd.f32 %v9183, %v9369
      %v9420 = vadd.f32 %v9184, %v9372
      %v9421 = vadd.f32 %v9185, %v9375
      %v9422 = vadd.f32 %v9186, %v9378
      %v9423 = vadd.f32 %v9187, %v9381
      %v9424 = vadd.f32 %v9188, %v9384
      %v9425 = vadd.f32 %v9189, %v9387
      %v9426 = vadd.f32 %v9190, %v9390
      %v9427 = vadd.f32 %v9191, %v9393
      %v9428 = vadd.f32 %v9192, %v9396
      %v9429 = vadd.f32 %v9193, %v9399
      %v9430 = vadd.f32 %v9194, %v9402
      %v9431 = vld [vmem:[#allocation2 + $0x10] sm:$0xff]
      %v9432 = vld [vmem:[#allocation2 + $0x18] sm:$0xff]
      %v9433 = vld [vmem:[#allocation2 + $0x20] sm:$0xff]
      %v9434 = vld [vmem:[#allocation2 + $0x28] sm:$0xff]
      %v9435 = vld [vmem:[#allocation2 + $0x30] sm:$0xff]
      %v9436 = vld [vmem:[#allocation2 + $0x38] sm:$0xff]
      %v9437 = vld [vmem:[#allocation2 + $0x40] sm:$0xff]
      %v9438 = vld [vmem:[#allocation2 + $0x48] sm:$0xff]
      %v9439 = vld [vmem:[#allocation2 + $0x50] sm:$0xff]
      %v9440 = vld [vmem:[#allocation2 + $0x58] sm:$0xff]
      %v9441 = vld [vmem:[#allocation2 + $0x60] sm:$0xff]
      %v9442 = vld [vmem:[#allocation2 + $0x68] sm:$0xff]
      %v9443 = vld [vmem:[#allocation2 + $0x70] sm:$0xff]
      %v9444 = vld [vmem:[#allocation2 + $0x78] sm:$0xff]
      %v9445 = vld [vmem:[#allocation2 + $0x80] sm:$0xff]
      %v9446 = vld [vmem:[#allocation2 + $0x88] sm:$0xff]
      %v9447 = vld [vmem:[#allocation2 + $0x90] sm:$0xff]
      %v9448 = vld [vmem:[#allocation2 + $0x98] sm:$0xff]
      %v9449 = vld [vmem:[#allocation2 + $0xa0] sm:$0xff]
      %v9450 = vld [vmem:[#allocation2 + $0xa8] sm:$0xff]
      %v9451 = vld [vmem:[#allocation2 + $0xb0] sm:$0xff]
      %v9452 = vld [vmem:[#allocation2 + $0xb8] sm:$0xff]
      %v9453 = vld [vmem:[#allocation2 + $0xc0] sm:$0xff]
      %v9454 = vld [vmem:[#allocation2 + $0xc8] sm:$0xff]
      %v9455 = vld [vmem:[#allocation2 + $0xd0] sm:$0xff]
      %v9456 = vld [vmem:[#allocation2 + $0xd8] sm:$0xff]
      %v9457 = vld [vmem:[#allocation2 + $0xe0] sm:$0x3]
      %s9458 = scalar_lea.vmem %s3, 32
      %v9459 = vld [vmem:[%s9458] sm:$0xff]
      %v9460 = vld [vmem:[%s9458 + $0x8] sm:$0xff]
      %v9462 = vsel %vm7710, %v9431, 0
      %v9465 = vsel %vm7710, %v9432, 0
      %v9468 = vsel %vm7710, %v9433, 0
      %v9471 = vsel %vm7710, %v9434, 0
      %v9474 = vsel %vm7710, %v9435, 0
      %v9477 = vsel %vm7710, %v9436, 0
      %v9480 = vsel %vm7710, %v9437, 0
      %v9483 = vsel %vm7710, %v9438, 0
      %v9486 = vsel %vm7710, %v9439, 0
      %v9489 = vsel %vm7710, %v9440, 0
      %v9492 = vsel %vm7710, %v9441, 0
      %v9495 = vsel %vm7710, %v9442, 0
      %v9498 = vsel %vm7710, %v9443, 0
      %v9501 = vsel %vm7710, %v9444, 0
      %v9504 = vsel %vm7710, %v9445, 0
      %v9507 = vsel %vm7710, %v9446, 0
      %v9510 = vsel %vm7710, %v9447, 0
      %v9513 = vsel %vm7710, %v9448, 0
      %v9516 = vsel %vm7710, %v9449, 0
      %v9519 = vsel %vm7710, %v9450, 0
      %v9522 = vsel %vm7710, %v9451, 0
      %v9525 = vsel %vm7710, %v9452, 0
      %v9528 = vsel %vm7710, %v9453, 0
      %v9531 = vsel %vm7710, %v9454, 0
      %v9534 = vsel %vm7710, %v9455, 0
      %v9537 = vsel %vm7710, %v9456, 0
      %v9540 = vsel %vm7710, %v9457, 0
      %9542 = vmatpush.msra.mxu0 0.0
      %9543 = vmatpush.msra.mxu0 0.0
      %9544 = vmatpush.msra.mxu0 0.0
      %9545 = vmatpush.msra.mxu0 0.0
      %9546 = vmatpush.msra.mxu0 0.0
      %9547 = vmatpush.msra.mxu0 0.0
      %9548 = vmatpush.msra.mxu0 0.0
      %9549 = vmatpush.msra.mxu0 0.0
      %9550 = vmatpush.msra.mxu0 0.0
      %9551 = vmatpush.msra.mxu0 0.0
      %9552 = vmatpush.msra.mxu0 0.0
      %9553 = vmatpush.msra.mxu0 0.0
      %9554 = vmatpush.msra.mxu0 0.0
      %9555 = vmatpush.msra.mxu0 0.0
      %9556 = vmatpush.msra.mxu0 %v9460
      %9557 = vmatpush.msra.mxu0 %v9459
      %9558 = vmatmul.f32.gmra.mxu0 %v9462
      %v9559 = vpop.f32.mrf.mxu0
      %v9560 = vadd.f32 0.0, %v9559
      %9561 = vmatmul.f32.gmra.mxu0 %v9465
      %v9562 = vpop.f32.mrf.mxu0
      %v9563 = vadd.f32 0.0, %v9562
      %9564 = vmatmul.f32.gmra.mxu0 %v9468
      %v9565 = vpop.f32.mrf.mxu0
      %v9566 = vadd.f32 0.0, %v9565
      %9567 = vmatmul.f32.gmra.mxu0 %v9471
      %v9568 = vpop.f32.mrf.mxu0
      %v9569 = vadd.f32 0.0, %v9568
      %9570 = vmatmul.f32.gmra.mxu0 %v9474
      %v9571 = vpop.f32.mrf.mxu0
      %v9572 = vadd.f32 0.0, %v9571
      %9573 = vmatmul.f32.gmra.mxu0 %v9477
      %v9574 = vpop.f32.mrf.mxu0
      %v9575 = vadd.f32 0.0, %v9574
      %9576 = vmatmul.f32.gmra.mxu0 %v9480
      %v9577 = vpop.f32.mrf.mxu0
      %v9578 = vadd.f32 0.0, %v9577
      %9579 = vmatmul.f32.gmra.mxu0 %v9483
      %v9580 = vpop.f32.mrf.mxu0
      %v9581 = vadd.f32 0.0, %v9580
      %9582 = vmatmul.f32.gmra.mxu0 %v9486
      %v9583 = vpop.f32.mrf.mxu0
      %v9584 = vadd.f32 0.0, %v9583
      %9585 = vmatmul.f32.gmra.mxu0 %v9489
      %v9586 = vpop.f32.mrf.mxu0
      %v9587 = vadd.f32 0.0, %v9586
      %9588 = vmatmul.f32.gmra.mxu0 %v9492
      %v9589 = vpop.f32.mrf.mxu0
      %v9590 = vadd.f32 0.0, %v9589
      %9591 = vmatmul.f32.gmra.mxu0 %v9495
      %v9592 = vpop.f32.mrf.mxu0
      %v9593 = vadd.f32 0.0, %v9592
      %9594 = vmatmul.f32.gmra.mxu0 %v9498
      %v9595 = vpop.f32.mrf.mxu0
      %v9596 = vadd.f32 0.0, %v9595
      %9597 = vmatmul.f32.gmra.mxu0 %v9501
      %v9598 = vpop.f32.mrf.mxu0
      %v9599 = vadd.f32 0.0, %v9598
      %9600 = vmatmul.f32.gmra.mxu0 %v9504
      %v9601 = vpop.f32.mrf.mxu0
      %v9602 = vadd.f32 0.0, %v9601
      %9603 = vmatmul.f32.gmra.mxu0 %v9507
      %v9604 = vpop.f32.mrf.mxu0
      %v9605 = vadd.f32 0.0, %v9604
      %9606 = vmatmul.f32.gmra.mxu0 %v9510
      %v9607 = vpop.f32.mrf.mxu0
      %v9608 = vadd.f32 0.0, %v9607
      %9609 = vmatmul.f32.gmra.mxu0 %v9513
      %v9610 = vpop.f32.mrf.mxu0
      %v9611 = vadd.f32 0.0, %v9610
      %9612 = vmatmul.f32.gmra.mxu0 %v9516
      %v9613 = vpop.f32.mrf.mxu0
      %v9614 = vadd.f32 0.0, %v9613
      %9615 = vmatmul.f32.gmra.mxu0 %v9519
      %v9616 = vpop.f32.mrf.mxu0
      %v9617 = vadd.f32 0.0, %v9616
      %9618 = vmatmul.f32.gmra.mxu0 %v9522
      %v9619 = vpop.f32.mrf.mxu0
      %v9620 = vadd.f32 0.0, %v9619
      %9621 = vmatmul.f32.gmra.mxu0 %v9525
      %v9622 = vpop.f32.mrf.mxu0
      %v9623 = vadd.f32 0.0, %v9622
      %9624 = vmatmul.f32.gmra.mxu0 %v9528
      %v9625 = vpop.f32.mrf.mxu0
      %v9626 = vadd.f32 0.0, %v9625
      %9627 = vmatmul.f32.gmra.mxu0 %v9531
      %v9628 = vpop.f32.mrf.mxu0
      %v9629 = vadd.f32 0.0, %v9628
      %9630 = vmatmul.f32.gmra.mxu0 %v9534
      %v9631 = vpop.f32.mrf.mxu0
      %v9632 = vadd.f32 0.0, %v9631
      %9633 = vmatmul.f32.gmra.mxu0 %v9537
      %v9634 = vpop.f32.mrf.mxu0
      %v9635 = vadd.f32 0.0, %v9634
      %9636 = vmatmul.f32.gmra.mxu0 %v9540
      %v9637 = vpop.f32.mrf.mxu0
      %v9638 = vadd.f32 0.0, %v9637
      %9639 = vdwg.mxu0
      %v9640 = vadd.f32 %v9404, %v9560
      %v9641 = vadd.f32 %v9405, %v9563
      %v9642 = vadd.f32 %v9406, %v9566
      %v9643 = vadd.f32 %v9407, %v9569
      %v9644 = vadd.f32 %v9408, %v9572
      %v9645 = vadd.f32 %v9409, %v9575
      %v9646 = vadd.f32 %v9410, %v9578
      %v9647 = vadd.f32 %v9411, %v9581
      %v9648 = vadd.f32 %v9412, %v9584
      %v9649 = vadd.f32 %v9413, %v9587
      %v9650 = vadd.f32 %v9414, %v9590
      %v9651 = vadd.f32 %v9415, %v9593
      %v9652 = vadd.f32 %v9416, %v9596
      %v9653 = vadd.f32 %v9417, %v9599
      %v9654 = vadd.f32 %v9418, %v9602
      %v9655 = vadd.f32 %v9419, %v9605
      %v9656 = vadd.f32 %v9420, %v9608
      %v9657 = vadd.f32 %v9421, %v9611
      %v9658 = vadd.f32 %v9422, %v9614
      %v9659 = vadd.f32 %v9423, %v9617
      %v9660 = vadd.f32 %v9424, %v9620
      %v9661 = vadd.f32 %v9425, %v9623
      %v9662 = vadd.f32 %v9426, %v9626
      %v9663 = vadd.f32 %v9427, %v9629
      %v9664 = vadd.f32 %v9428, %v9632
      %v9665 = vadd.f32 %v9429, %v9635
      %v9666 = vadd.f32 %v9430, %v9638
      %v9667 = vld [vmem:[#allocation2 + $0x1d] sm:$0xff]
      %v9668 = vld [vmem:[#allocation2 + $0x25] sm:$0xff]
      %v9669 = vld [vmem:[#allocation2 + $0x2d] sm:$0xff]
      %v9670 = vld [vmem:[#allocation2 + $0x35] sm:$0xff]
      %v9671 = vld [vmem:[#allocation2 + $0x3d] sm:$0xff]
      %v9672 = vld [vmem:[#allocation2 + $0x45] sm:$0xff]
      %v9673 = vld [vmem:[#allocation2 + $0x4d] sm:$0xff]
      %v9674 = vld [vmem:[#allocation2 + $0x55] sm:$0xff]
      %v9675 = vld [vmem:[#allocation2 + $0x5d] sm:$0xff]
      %v9676 = vld [vmem:[#allocation2 + $0x65] sm:$0xff]
      %v9677 = vld [vmem:[#allocation2 + $0x6d] sm:$0xff]
      %v9678 = vld [vmem:[#allocation2 + $0x75] sm:$0xff]
      %v9679 = vld [vmem:[#allocation2 + $0x7d] sm:$0xff]
      %v9680 = vld [vmem:[#allocation2 + $0x85] sm:$0xff]
      %v9681 = vld [vmem:[#allocation2 + $0x8d] sm:$0xff]
      %v9682 = vld [vmem:[#allocation2 + $0x95] sm:$0xff]
      %v9683 = vld [vmem:[#allocation2 + $0x9d] sm:$0xff]
      %v9684 = vld [vmem:[#allocation2 + $0xa5] sm:$0xff]
      %v9685 = vld [vmem:[#allocation2 + $0xad] sm:$0xff]
      %v9686 = vld [vmem:[#allocation2 + $0xb5] sm:$0xff]
      %v9687 = vld [vmem:[#allocation2 + $0xbd] sm:$0xff]
      %v9688 = vld [vmem:[#allocation2 + $0xc5] sm:$0xff]
      %v9689 = vld [vmem:[#allocation2 + $0xcd] sm:$0xff]
      %v9690 = vld [vmem:[#allocation2 + $0xd5] sm:$0xff]
      %v9691 = vld [vmem:[#allocation2 + $0xdd] sm:$0xff]
      %v9692 = vld [vmem:[#allocation2 + $0xe5] sm:$0xff]
      %v9693 = vld [vmem:[#allocation2 + $0xed] sm:$0x3]
      %s9694 = scalar_lea.vmem %s3, 48
      %v9695 = vld [vmem:[%s9694] sm:$0xff]
      %v9696 = vld [vmem:[%s9694 + $0x8] sm:$0xff]
      %v9698 = vsel %vm7710, %v9667, 0
      %v9701 = vsel %vm7710, %v9668, 0
      %v9704 = vsel %vm7710, %v9669, 0
      %v9707 = vsel %vm7710, %v9670, 0
      %v9710 = vsel %vm7710, %v9671, 0
      %v9713 = vsel %vm7710, %v9672, 0
      %v9716 = vsel %vm7710, %v9673, 0
      %v9719 = vsel %vm7710, %v9674, 0
      %v9722 = vsel %vm7710, %v9675, 0
      %v9725 = vsel %vm7710, %v9676, 0
      %v9728 = vsel %vm7710, %v9677, 0
      %v9731 = vsel %vm7710, %v9678, 0
      %v9734 = vsel %vm7710, %v9679, 0
      %v9737 = vsel %vm7710, %v9680, 0
      %v9740 = vsel %vm7710, %v9681, 0
      %v9743 = vsel %vm7710, %v9682, 0
      %v9746 = vsel %vm7710, %v9683, 0
      %v9749 = vsel %vm7710, %v9684, 0
      %v9752 = vsel %vm7710, %v9685, 0
      %v9755 = vsel %vm7710, %v9686, 0
      %v9758 = vsel %vm7710, %v9687, 0
      %v9761 = vsel %vm7710, %v9688, 0
      %v9764 = vsel %vm7710, %v9689, 0
      %v9767 = vsel %vm7710, %v9690, 0
      %v9770 = vsel %vm7710, %v9691, 0
      %v9773 = vsel %vm7710, %v9692, 0
      %v9776 = vsel %vm7710, %v9693, 0
      %9778 = vmatpush.msra.mxu0 0.0
      %9779 = vmatpush.msra.mxu0 0.0
      %9780 = vmatpush.msra.mxu0 0.0
      %9781 = vmatpush.msra.mxu0 0.0
      %9782 = vmatpush.msra.mxu0 0.0
      %9783 = vmatpush.msra.mxu0 0.0
      %9784 = vmatpush.msra.mxu0 0.0
      %9785 = vmatpush.msra.mxu0 0.0
      %9786 = vmatpush.msra.mxu0 0.0
      %9787 = vmatpush.msra.mxu0 0.0
      %9788 = vmatpush.msra.mxu0 0.0
      %9789 = vmatpush.msra.mxu0 0.0
      %9790 = vmatpush.msra.mxu0 0.0
      %9791 = vmatpush.msra.mxu0 0.0
      %9792 = vmatpush.msra.mxu0 %v9696
      %9793 = vmatpush.msra.mxu0 %v9695
      %9794 = vmatmul.f32.gmra.mxu0 %v9698
      %v9795 = vpop.f32.mrf.mxu0
      %v9796 = vadd.f32 0.0, %v9795
      %9797 = vmatmul.f32.gmra.mxu0 %v9701
      %v9798 = vpop.f32.mrf.mxu0
      %v9799 = vadd.f32 0.0, %v9798
      %9800 = vmatmul.f32.gmra.mxu0 %v9704
      %v9801 = vpop.f32.mrf.mxu0
      %v9802 = vadd.f32 0.0, %v9801
      %9803 = vmatmul.f32.gmra.mxu0 %v9707
      %v9804 = vpop.f32.mrf.mxu0
      %v9805 = vadd.f32 0.0, %v9804
      %9806 = vmatmul.f32.gmra.mxu0 %v9710
      %v9807 = vpop.f32.mrf.mxu0
      %v9808 = vadd.f32 0.0, %v9807
      %9809 = vmatmul.f32.gmra.mxu0 %v9713
      %v9810 = vpop.f32.mrf.mxu0
      %v9811 = vadd.f32 0.0, %v9810
      %9812 = vmatmul.f32.gmra.mxu0 %v9716
      %v9813 = vpop.f32.mrf.mxu0
      %v9814 = vadd.f32 0.0, %v9813
      %9815 = vmatmul.f32.gmra.mxu0 %v9719
      %v9816 = vpop.f32.mrf.mxu0
      %v9817 = vadd.f32 0.0, %v9816
      %9818 = vmatmul.f32.gmra.mxu0 %v9722
      %v9819 = vpop.f32.mrf.mxu0
      %v9820 = vadd.f32 0.0, %v9819
      %9821 = vmatmul.f32.gmra.mxu0 %v9725
      %v9822 = vpop.f32.mrf.mxu0
      %v9823 = vadd.f32 0.0, %v9822
      %9824 = vmatmul.f32.gmra.mxu0 %v9728
      %v9825 = vpop.f32.mrf.mxu0
      %v9826 = vadd.f32 0.0, %v9825
      %9827 = vmatmul.f32.gmra.mxu0 %v9731
      %v9828 = vpop.f32.mrf.mxu0
      %v9829 = vadd.f32 0.0, %v9828
      %9830 = vmatmul.f32.gmra.mxu0 %v9734
      %v9831 = vpop.f32.mrf.mxu0
      %v9832 = vadd.f32 0.0, %v9831
      %9833 = vmatmul.f32.gmra.mxu0 %v9737
      %v9834 = vpop.f32.mrf.mxu0
      %v9835 = vadd.f32 0.0, %v9834
      %9836 = vmatmul.f32.gmra.mxu0 %v9740
      %v9837 = vpop.f32.mrf.mxu0
      %v9838 = vadd.f32 0.0, %v9837
      %9839 = vmatmul.f32.gmra.mxu0 %v9743
      %v9840 = vpop.f32.mrf.mxu0
      %v9841 = vadd.f32 0.0, %v9840
      %9842 = vmatmul.f32.gmra.mxu0 %v9746
      %v9843 = vpop.f32.mrf.mxu0
      %v9844 = vadd.f32 0.0, %v9843
      %9845 = vmatmul.f32.gmra.mxu0 %v9749
      %v9846 = vpop.f32.mrf.mxu0
      %v9847 = vadd.f32 0.0, %v9846
      %9848 = vmatmul.f32.gmra.mxu0 %v9752
      %v9849 = vpop.f32.mrf.mxu0
      %v9850 = vadd.f32 0.0, %v9849
      %9851 = vmatmul.f32.gmra.mxu0 %v9755
      %v9852 = vpop.f32.mrf.mxu0
      %v9853 = vadd.f32 0.0, %v9852
      %9854 = vmatmul.f32.gmra.mxu0 %v9758
      %v9855 = vpop.f32.mrf.mxu0
      %v9856 = vadd.f32 0.0, %v9855
      %9857 = vmatmul.f32.gmra.mxu0 %v9761
      %v9858 = vpop.f32.mrf.mxu0
      %v9859 = vadd.f32 0.0, %v9858
      %9860 = vmatmul.f32.gmra.mxu0 %v9764
      %v9861 = vpop.f32.mrf.mxu0
      %v9862 = vadd.f32 0.0, %v9861
      %9863 = vmatmul.f32.gmra.mxu0 %v9767
      %v9864 = vpop.f32.mrf.mxu0
      %v9865 = vadd.f32 0.0, %v9864
      %9866 = vmatmul.f32.gmra.mxu0 %v9770
      %v9867 = vpop.f32.mrf.mxu0
      %v9868 = vadd.f32 0.0, %v9867
      %9869 = vmatmul.f32.gmra.mxu0 %v9773
      %v9870 = vpop.f32.mrf.mxu0
      %v9871 = vadd.f32 0.0, %v9870
      %9872 = vmatmul.f32.gmra.mxu0 %v9776
      %v9873 = vpop.f32.mrf.mxu0
      %v9874 = vadd.f32 0.0, %v9873
      %9875 = vdwg.mxu0
      %v9876 = vadd.f32 %v9640, %v9796
      %v9877 = vadd.f32 %v9641, %v9799
      %v9878 = vadd.f32 %v9642, %v9802
      %v9879 = vadd.f32 %v9643, %v9805
      %v9880 = vadd.f32 %v9644, %v9808
      %v9881 = vadd.f32 %v9645, %v9811
      %v9882 = vadd.f32 %v9646, %v9814
      %v9883 = vadd.f32 %v9647, %v9817
      %v9884 = vadd.f32 %v9648, %v9820
      %v9885 = vadd.f32 %v9649, %v9823
      %v9886 = vadd.f32 %v9650, %v9826
      %v9887 = vadd.f32 %v9651, %v9829
      %v9888 = vadd.f32 %v9652, %v9832
      %v9889 = vadd.f32 %v9653, %v9835
      %v9890 = vadd.f32 %v9654, %v9838
      %v9891 = vadd.f32 %v9655, %v9841
      %v9892 = vadd.f32 %v9656, %v9844
      %v9893 = vadd.f32 %v9657, %v9847
      %v9894 = vadd.f32 %v9658, %v9850
      %v9895 = vadd.f32 %v9659, %v9853
      %v9896 = vadd.f32 %v9660, %v9856
      %v9897 = vadd.f32 %v9661, %v9859
      %v9898 = vadd.f32 %v9662, %v9862
      %v9899 = vadd.f32 %v9663, %v9865
      %v9900 = vadd.f32 %v9664, %v9868
      %v9901 = vadd.f32 %v9665, %v9871
      %v9902 = vadd.f32 %v9666, %v9874
      %v9903 = vld [vmem:[#allocation2 + $0x1e] sm:$0xff]
      %v9904 = vld [vmem:[#allocation2 + $0x26] sm:$0xff]
      %v9905 = vld [vmem:[#allocation2 + $0x2e] sm:$0xff]
      %v9906 = vld [vmem:[#allocation2 + $0x36] sm:$0xff]
      %v9907 = vld [vmem:[#allocation2 + $0x3e] sm:$0xff]
      %v9908 = vld [vmem:[#allocation2 + $0x46] sm:$0xff]
      %v9909 = vld [vmem:[#allocation2 + $0x4e] sm:$0xff]
      %v9910 = vld [vmem:[#allocation2 + $0x56] sm:$0xff]
      %v9911 = vld [vmem:[#allocation2 + $0x5e] sm:$0xff]
      %v9912 = vld [vmem:[#allocation2 + $0x66] sm:$0xff]
      %v9913 = vld [vmem:[#allocation2 + $0x6e] sm:$0xff]
      %v9914 = vld [vmem:[#allocation2 + $0x76] sm:$0xff]
      %v9915 = vld [vmem:[#allocation2 + $0x7e] sm:$0xff]
      %v9916 = vld [vmem:[#allocation2 + $0x86] sm:$0xff]
      %v9917 = vld [vmem:[#allocation2 + $0x8e] sm:$0xff]
      %v9918 = vld [vmem:[#allocation2 + $0x96] sm:$0xff]
      %v9919 = vld [vmem:[#allocation2 + $0x9e] sm:$0xff]
      %v9920 = vld [vmem:[#allocation2 + $0xa6] sm:$0xff]
      %v9921 = vld [vmem:[#allocation2 + $0xae] sm:$0xff]
      %v9922 = vld [vmem:[#allocation2 + $0xb6] sm:$0xff]
      %v9923 = vld [vmem:[#allocation2 + $0xbe] sm:$0xff]
      %v9924 = vld [vmem:[#allocation2 + $0xc6] sm:$0xff]
      %v9925 = vld [vmem:[#allocation2 + $0xce] sm:$0xff]
      %v9926 = vld [vmem:[#allocation2 + $0xd6] sm:$0xff]
      %v9927 = vld [vmem:[#allocation2 + $0xde] sm:$0xff]
      %v9928 = vld [vmem:[#allocation2 + $0xe6] sm:$0xff]
      %v9929 = vld [vmem:[#allocation2 + $0xee] sm:$0x3]
      %s9930 = scalar_lea.vmem %s3, 64
      %v9931 = vld [vmem:[%s9930] sm:$0xff]
      %v9932 = vld [vmem:[%s9930 + $0x8] sm:$0xff]
      %v9934 = vsel %vm7710, %v9903, 0
      %v9937 = vsel %vm7710, %v9904, 0
      %v9940 = vsel %vm7710, %v9905, 0
      %v9943 = vsel %vm7710, %v9906, 0
      %v9946 = vsel %vm7710, %v9907, 0
      %v9949 = vsel %vm7710, %v9908, 0
      %v9952 = vsel %vm7710, %v9909, 0
      %v9955 = vsel %vm7710, %v9910, 0
      %v9958 = vsel %vm7710, %v9911, 0
      %v9961 = vsel %vm7710, %v9912, 0
      %v9964 = vsel %vm7710, %v9913, 0
      %v9967 = vsel %vm7710, %v9914, 0
      %v9970 = vsel %vm7710, %v9915, 0
      %v9973 = vsel %vm7710, %v9916, 0
      %v9976 = vsel %vm7710, %v9917, 0
      %v9979 = vsel %vm7710, %v9918, 0
      %v9982 = vsel %vm7710, %v9919, 0
      %v9985 = vsel %vm7710, %v9920, 0
      %v9988 = vsel %vm7710, %v9921, 0
      %v9991 = vsel %vm7710, %v9922, 0
      %v9994 = vsel %vm7710, %v9923, 0
      %v9997 = vsel %vm7710, %v9924, 0
      %v10000 = vsel %vm7710, %v9925, 0
      %v10003 = vsel %vm7710, %v9926, 0
      %v10006 = vsel %vm7710, %v9927, 0
      %v10009 = vsel %vm7710, %v9928, 0
      %v10012 = vsel %vm7710, %v9929, 0
      %10014 = vmatpush.msra.mxu0 0.0
      %10015 = vmatpush.msra.mxu0 0.0
      %10016 = vmatpush.msra.mxu0 0.0
      %10017 = vmatpush.msra.mxu0 0.0
      %10018 = vmatpush.msra.mxu0 0.0
      %10019 = vmatpush.msra.mxu0 0.0
      %10020 = vmatpush.msra.mxu0 0.0
      %10021 = vmatpush.msra.mxu0 0.0
      %10022 = vmatpush.msra.mxu0 0.0
      %10023 = vmatpush.msra.mxu0 0.0
      %10024 = vmatpush.msra.mxu0 0.0
      %10025 = vmatpush.msra.mxu0 0.0
      %10026 = vmatpush.msra.mxu0 0.0
      %10027 = vmatpush.msra.mxu0 0.0
      %10028 = vmatpush.msra.mxu0 %v9932
      %10029 = vmatpush.msra.mxu0 %v9931
      %10030 = vmatmul.f32.gmra.mxu0 %v9934
      %v10031 = vpop.f32.mrf.mxu0
      %v10032 = vadd.f32 0.0, %v10031
      %10033 = vmatmul.f32.gmra.mxu0 %v9937
      %v10034 = vpop.f32.mrf.mxu0
      %v10035 = vadd.f32 0.0, %v10034
      %10036 = vmatmul.f32.gmra.mxu0 %v9940
      %v10037 = vpop.f32.mrf.mxu0
      %v10038 = vadd.f32 0.0, %v10037
      %10039 = vmatmul.f32.gmra.mxu0 %v9943
      %v10040 = vpop.f32.mrf.mxu0
      %v10041 = vadd.f32 0.0, %v10040
      %10042 = vmatmul.f32.gmra.mxu0 %v9946
      %v10043 = vpop.f32.mrf.mxu0
      %v10044 = vadd.f32 0.0, %v10043
      %10045 = vmatmul.f32.gmra.mxu0 %v9949
      %v10046 = vpop.f32.mrf.mxu0
      %v10047 = vadd.f32 0.0, %v10046
      %10048 = vmatmul.f32.gmra.mxu0 %v9952
      %v10049 = vpop.f32.mrf.mxu0
      %v10050 = vadd.f32 0.0, %v10049
      %10051 = vmatmul.f32.gmra.mxu0 %v9955
      %v10052 = vpop.f32.mrf.mxu0
      %v10053 = vadd.f32 0.0, %v10052
      %10054 = vmatmul.f32.gmra.mxu0 %v9958
      %v10055 = vpop.f32.mrf.mxu0
      %v10056 = vadd.f32 0.0, %v10055
      %10057 = vmatmul.f32.gmra.mxu0 %v9961
      %v10058 = vpop.f32.mrf.mxu0
      %v10059 = vadd.f32 0.0, %v10058
      %10060 = vmatmul.f32.gmra.mxu0 %v9964
      %v10061 = vpop.f32.mrf.mxu0
      %v10062 = vadd.f32 0.0, %v10061
      %10063 = vmatmul.f32.gmra.mxu0 %v9967
      %v10064 = vpop.f32.mrf.mxu0
      %v10065 = vadd.f32 0.0, %v10064
      %10066 = vmatmul.f32.gmra.mxu0 %v9970
      %v10067 = vpop.f32.mrf.mxu0
      %v10068 = vadd.f32 0.0, %v10067
      %10069 = vmatmul.f32.gmra.mxu0 %v9973
      %v10070 = vpop.f32.mrf.mxu0
      %v10071 = vadd.f32 0.0, %v10070
      %10072 = vmatmul.f32.gmra.mxu0 %v9976
      %v10073 = vpop.f32.mrf.mxu0
      %v10074 = vadd.f32 0.0, %v10073
      %10075 = vmatmul.f32.gmra.mxu0 %v9979
      %v10076 = vpop.f32.mrf.mxu0
      %v10077 = vadd.f32 0.0, %v10076
      %10078 = vmatmul.f32.gmra.mxu0 %v9982
      %v10079 = vpop.f32.mrf.mxu0
      %v10080 = vadd.f32 0.0, %v10079
      %10081 = vmatmul.f32.gmra.mxu0 %v9985
      %v10082 = vpop.f32.mrf.mxu0
      %v10083 = vadd.f32 0.0, %v10082
      %10084 = vmatmul.f32.gmra.mxu0 %v9988
      %v10085 = vpop.f32.mrf.mxu0
      %v10086 = vadd.f32 0.0, %v10085
      %10087 = vmatmul.f32.gmra.mxu0 %v9991
      %v10088 = vpop.f32.mrf.mxu0
      %v10089 = vadd.f32 0.0, %v10088
      %10090 = vmatmul.f32.gmra.mxu0 %v9994
      %v10091 = vpop.f32.mrf.mxu0
      %v10092 = vadd.f32 0.0, %v10091
      %10093 = vmatmul.f32.gmra.mxu0 %v9997
      %v10094 = vpop.f32.mrf.mxu0
      %v10095 = vadd.f32 0.0, %v10094
      %10096 = vmatmul.f32.gmra.mxu0 %v10000
      %v10097 = vpop.f32.mrf.mxu0
      %v10098 = vadd.f32 0.0, %v10097
      %10099 = vmatmul.f32.gmra.mxu0 %v10003
      %v10100 = vpop.f32.mrf.mxu0
      %v10101 = vadd.f32 0.0, %v10100
      %10102 = vmatmul.f32.gmra.mxu0 %v10006
      %v10103 = vpop.f32.mrf.mxu0
      %v10104 = vadd.f32 0.0, %v10103
      %10105 = vmatmul.f32.gmra.mxu0 %v10009
      %v10106 = vpop.f32.mrf.mxu0
      %v10107 = vadd.f32 0.0, %v10106
      %10108 = vmatmul.f32.gmra.mxu0 %v10012
      %v10109 = vpop.f32.mrf.mxu0
      %v10110 = vadd.f32 0.0, %v10109
      %10111 = vdwg.mxu0
      %v10112 = vadd.f32 %v9876, %v10032
      %v10113 = vadd.f32 %v9877, %v10035
      %v10114 = vadd.f32 %v9878, %v10038
      %v10115 = vadd.f32 %v9879, %v10041
      %v10116 = vadd.f32 %v9880, %v10044
      %v10117 = vadd.f32 %v9881, %v10047
      %v10118 = vadd.f32 %v9882, %v10050
      %v10119 = vadd.f32 %v9883, %v10053
      %v10120 = vadd.f32 %v9884, %v10056
      %v10121 = vadd.f32 %v9885, %v10059
      %v10122 = vadd.f32 %v9886, %v10062
      %v10123 = vadd.f32 %v9887, %v10065
      %v10124 = vadd.f32 %v9888, %v10068
      %v10125 = vadd.f32 %v9889, %v10071
      %v10126 = vadd.f32 %v9890, %v10074
      %v10127 = vadd.f32 %v9891, %v10077
      %v10128 = vadd.f32 %v9892, %v10080
      %v10129 = vadd.f32 %v9893, %v10083
      %v10130 = vadd.f32 %v9894, %v10086
      %v10131 = vadd.f32 %v9895, %v10089
      %v10132 = vadd.f32 %v9896, %v10092
      %v10133 = vadd.f32 %v9897, %v10095
      %v10134 = vadd.f32 %v9898, %v10098
      %v10135 = vadd.f32 %v9899, %v10101
      %v10136 = vadd.f32 %v9900, %v10104
      %v10137 = vadd.f32 %v9901, %v10107
      %v10138 = vadd.f32 %v9902, %v10110
      %v10139 = vld [vmem:[#allocation2 + $0x1f] sm:$0xff]
      %v10140 = vld [vmem:[#allocation2 + $0x27] sm:$0xff]
      %v10141 = vld [vmem:[#allocation2 + $0x2f] sm:$0xff]
      %v10142 = vld [vmem:[#allocation2 + $0x37] sm:$0xff]
      %v10143 = vld [vmem:[#allocation2 + $0x3f] sm:$0xff]
      %v10144 = vld [vmem:[#allocation2 + $0x47] sm:$0xff]
      %v10145 = vld [vmem:[#allocation2 + $0x4f] sm:$0xff]
      %v10146 = vld [vmem:[#allocation2 + $0x57] sm:$0xff]
      %v10147 = vld [vmem:[#allocation2 + $0x5f] sm:$0xff]
      %v10148 = vld [vmem:[#allocation2 + $0x67] sm:$0xff]
      %v10149 = vld [vmem:[#allocation2 + $0x6f] sm:$0xff]
      %v10150 = vld [vmem:[#allocation2 + $0x77] sm:$0xff]
      %v10151 = vld [vmem:[#allocation2 + $0x7f] sm:$0xff]
      %v10152 = vld [vmem:[#allocation2 + $0x87] sm:$0xff]
      %v10153 = vld [vmem:[#allocation2 + $0x8f] sm:$0xff]
      %v10154 = vld [vmem:[#allocation2 + $0x97] sm:$0xff]
      %v10155 = vld [vmem:[#allocation2 + $0x9f] sm:$0xff]
      %v10156 = vld [vmem:[#allocation2 + $0xa7] sm:$0xff]
      %v10157 = vld [vmem:[#allocation2 + $0xaf] sm:$0xff]
      %v10158 = vld [vmem:[#allocation2 + $0xb7] sm:$0xff]
      %v10159 = vld [vmem:[#allocation2 + $0xbf] sm:$0xff]
      %v10160 = vld [vmem:[#allocation2 + $0xc7] sm:$0xff]
      %v10161 = vld [vmem:[#allocation2 + $0xcf] sm:$0xff]
      %v10162 = vld [vmem:[#allocation2 + $0xd7] sm:$0xff]
      %v10163 = vld [vmem:[#allocation2 + $0xdf] sm:$0xff]
      %v10164 = vld [vmem:[#allocation2 + $0xe7] sm:$0xff]
      %v10165 = vld [vmem:[#allocation2 + $0xef] sm:$0x3]
      %s10166 = scalar_lea.vmem %s3, 80
      %v10167 = vld [vmem:[%s10166] sm:$0xff]
      %v10168 = vld [vmem:[%s10166 + $0x8] sm:$0xff]
      %v10170 = vsel %vm7710, %v10139, 0
      %v10173 = vsel %vm7710, %v10140, 0
      %v10176 = vsel %vm7710, %v10141, 0
      %v10179 = vsel %vm7710, %v10142, 0
      %v10182 = vsel %vm7710, %v10143, 0
      %v10185 = vsel %vm7710, %v10144, 0
      %v10188 = vsel %vm7710, %v10145, 0
      %v10191 = vsel %vm7710, %v10146, 0
      %v10194 = vsel %vm7710, %v10147, 0
      %v10197 = vsel %vm7710, %v10148, 0
      %v10200 = vsel %vm7710, %v10149, 0
      %v10203 = vsel %vm7710, %v10150, 0
      %v10206 = vsel %vm7710, %v10151, 0
      %v10209 = vsel %vm7710, %v10152, 0
      %v10212 = vsel %vm7710, %v10153, 0
      %v10215 = vsel %vm7710, %v10154, 0
      %v10218 = vsel %vm7710, %v10155, 0
      %v10221 = vsel %vm7710, %v10156, 0
      %v10224 = vsel %vm7710, %v10157, 0
      %v10227 = vsel %vm7710, %v10158, 0
      %v10230 = vsel %vm7710, %v10159, 0
      %v10233 = vsel %vm7710, %v10160, 0
      %v10236 = vsel %vm7710, %v10161, 0
      %v10239 = vsel %vm7710, %v10162, 0
      %v10242 = vsel %vm7710, %v10163, 0
      %v10245 = vsel %vm7710, %v10164, 0
      %v10248 = vsel %vm7710, %v10165, 0
      %10250 = vmatpush.msra.mxu0 0.0
      %10251 = vmatpush.msra.mxu0 0.0
      %10252 = vmatpush.msra.mxu0 0.0
      %10253 = vmatpush.msra.mxu0 0.0
      %10254 = vmatpush.msra.mxu0 0.0
      %10255 = vmatpush.msra.mxu0 0.0
      %10256 = vmatpush.msra.mxu0 0.0
      %10257 = vmatpush.msra.mxu0 0.0
      %10258 = vmatpush.msra.mxu0 0.0
      %10259 = vmatpush.msra.mxu0 0.0
      %10260 = vmatpush.msra.mxu0 0.0
      %10261 = vmatpush.msra.mxu0 0.0
      %10262 = vmatpush.msra.mxu0 0.0
      %10263 = vmatpush.msra.mxu0 0.0
      %10264 = vmatpush.msra.mxu0 %v10168
      %10265 = vmatpush.msra.mxu0 %v10167
      %10266 = vmatmul.f32.gmra.mxu0 %v10170
      %v10267 = vpop.f32.mrf.mxu0
      %v10268 = vadd.f32 0.0, %v10267
      %10269 = vmatmul.f32.gmra.mxu0 %v10173
      %v10270 = vpop.f32.mrf.mxu0
      %v10271 = vadd.f32 0.0, %v10270
      %10272 = vmatmul.f32.gmra.mxu0 %v10176
      %v10273 = vpop.f32.mrf.mxu0
      %v10274 = vadd.f32 0.0, %v10273
      %10275 = vmatmul.f32.gmra.mxu0 %v10179
      %v10276 = vpop.f32.mrf.mxu0
      %v10277 = vadd.f32 0.0, %v10276
      %10278 = vmatmul.f32.gmra.mxu0 %v10182
      %v10279 = vpop.f32.mrf.mxu0
      %v10280 = vadd.f32 0.0, %v10279
      %10281 = vmatmul.f32.gmra.mxu0 %v10185
      %v10282 = vpop.f32.mrf.mxu0
      %v10283 = vadd.f32 0.0, %v10282
      %10284 = vmatmul.f32.gmra.mxu0 %v10188
      %v10285 = vpop.f32.mrf.mxu0
      %v10286 = vadd.f32 0.0, %v10285
      %10287 = vmatmul.f32.gmra.mxu0 %v10191
      %v10288 = vpop.f32.mrf.mxu0
      %v10289 = vadd.f32 0.0, %v10288
      %10290 = vmatmul.f32.gmra.mxu0 %v10194
      %v10291 = vpop.f32.mrf.mxu0
      %v10292 = vadd.f32 0.0, %v10291
      %10293 = vmatmul.f32.gmra.mxu0 %v10197
      %v10294 = vpop.f32.mrf.mxu0
      %v10295 = vadd.f32 0.0, %v10294
      %10296 = vmatmul.f32.gmra.mxu0 %v10200
      %v10297 = vpop.f32.mrf.mxu0
      %v10298 = vadd.f32 0.0, %v10297
      %10299 = vmatmul.f32.gmra.mxu0 %v10203
      %v10300 = vpop.f32.mrf.mxu0
      %v10301 = vadd.f32 0.0, %v10300
      %10302 = vmatmul.f32.gmra.mxu0 %v10206
      %v10303 = vpop.f32.mrf.mxu0
      %v10304 = vadd.f32 0.0, %v10303
      %10305 = vmatmul.f32.gmra.mxu0 %v10209
      %v10306 = vpop.f32.mrf.mxu0
      %v10307 = vadd.f32 0.0, %v10306
      %10308 = vmatmul.f32.gmra.mxu0 %v10212
      %v10309 = vpop.f32.mrf.mxu0
      %v10310 = vadd.f32 0.0, %v10309
      %10311 = vmatmul.f32.gmra.mxu0 %v10215
      %v10312 = vpop.f32.mrf.mxu0
      %v10313 = vadd.f32 0.0, %v10312
      %10314 = vmatmul.f32.gmra.mxu0 %v10218
      %v10315 = vpop.f32.mrf.mxu0
      %v10316 = vadd.f32 0.0, %v10315
      %10317 = vmatmul.f32.gmra.mxu0 %v10221
      %v10318 = vpop.f32.mrf.mxu0
      %v10319 = vadd.f32 0.0, %v10318
      %10320 = vmatmul.f32.gmra.mxu0 %v10224
      %v10321 = vpop.f32.mrf.mxu0
      %v10322 = vadd.f32 0.0, %v10321
      %10323 = vmatmul.f32.gmra.mxu0 %v10227
      %v10324 = vpop.f32.mrf.mxu0
      %v10325 = vadd.f32 0.0, %v10324
      %10326 = vmatmul.f32.gmra.mxu0 %v10230
      %v10327 = vpop.f32.mrf.mxu0
      %v10328 = vadd.f32 0.0, %v10327
      %10329 = vmatmul.f32.gmra.mxu0 %v10233
      %v10330 = vpop.f32.mrf.mxu0
      %v10331 = vadd.f32 0.0, %v10330
      %10332 = vmatmul.f32.gmra.mxu0 %v10236
      %v10333 = vpop.f32.mrf.mxu0
      %v10334 = vadd.f32 0.0, %v10333
      %10335 = vmatmul.f32.gmra.mxu0 %v10239
      %v10336 = vpop.f32.mrf.mxu0
      %v10337 = vadd.f32 0.0, %v10336
      %10338 = vmatmul.f32.gmra.mxu0 %v10242
      %v10339 = vpop.f32.mrf.mxu0
      %v10340 = vadd.f32 0.0, %v10339
      %10341 = vmatmul.f32.gmra.mxu0 %v10245
      %v10342 = vpop.f32.mrf.mxu0
      %v10343 = vadd.f32 0.0, %v10342
      %10344 = vmatmul.f32.gmra.mxu0 %v10248
      %v10345 = vpop.f32.mrf.mxu0
      %v10346 = vadd.f32 0.0, %v10345
      %10347 = vdwg.mxu0
      %v10348 = vadd.f32 %v10112, %v10268
      %v10349 = vadd.f32 %v10113, %v10271
      %v10350 = vadd.f32 %v10114, %v10274
      %v10351 = vadd.f32 %v10115, %v10277
      %v10352 = vadd.f32 %v10116, %v10280
      %v10353 = vadd.f32 %v10117, %v10283
      %v10354 = vadd.f32 %v10118, %v10286
      %v10355 = vadd.f32 %v10119, %v10289
      %v10356 = vadd.f32 %v10120, %v10292
      %v10357 = vadd.f32 %v10121, %v10295
      %v10358 = vadd.f32 %v10122, %v10298
      %v10359 = vadd.f32 %v10123, %v10301
      %v10360 = vadd.f32 %v10124, %v10304
      %v10361 = vadd.f32 %v10125, %v10307
      %v10362 = vadd.f32 %v10126, %v10310
      %v10363 = vadd.f32 %v10127, %v10313
      %v10364 = vadd.f32 %v10128, %v10316
      %v10365 = vadd.f32 %v10129, %v10319
      %v10366 = vadd.f32 %v10130, %v10322
      %v10367 = vadd.f32 %v10131, %v10325
      %v10368 = vadd.f32 %v10132, %v10328
      %v10369 = vadd.f32 %v10133, %v10331
      %v10370 = vadd.f32 %v10134, %v10334
      %v10371 = vadd.f32 %v10135, %v10337
      %v10372 = vadd.f32 %v10136, %v10340
      %v10373 = vadd.f32 %v10137, %v10343
      %v10374 = vadd.f32 %v10138, %v10346
      %v10375 = vld [vmem:[#allocation2 + $0x2c] sm:$0xff]
      %v10376 = vld [vmem:[#allocation2 + $0x34] sm:$0xff]
      %v10377 = vld [vmem:[#allocation2 + $0x3c] sm:$0xff]
      %v10378 = vld [vmem:[#allocation2 + $0x44] sm:$0xff]
      %v10379 = vld [vmem:[#allocation2 + $0x4c] sm:$0xff]
      %v10380 = vld [vmem:[#allocation2 + $0x54] sm:$0xff]
      %v10381 = vld [vmem:[#allocation2 + $0x5c] sm:$0xff]
      %v10382 = vld [vmem:[#allocation2 + $0x64] sm:$0xff]
      %v10383 = vld [vmem:[#allocation2 + $0x6c] sm:$0xff]
      %v10384 = vld [vmem:[#allocation2 + $0x74] sm:$0xff]
      %v10385 = vld [vmem:[#allocation2 + $0x7c] sm:$0xff]
      %v10386 = vld [vmem:[#allocation2 + $0x84] sm:$0xff]
      %v10387 = vld [vmem:[#allocation2 + $0x8c] sm:$0xff]
      %v10388 = vld [vmem:[#allocation2 + $0x94] sm:$0xff]
      %v10389 = vld [vmem:[#allocation2 + $0x9c] sm:$0xff]
      %v10390 = vld [vmem:[#allocation2 + $0xa4] sm:$0xff]
      %v10391 = vld [vmem:[#allocation2 + $0xac] sm:$0xff]
      %v10392 = vld [vmem:[#allocation2 + $0xb4] sm:$0xff]
      %v10393 = vld [vmem:[#allocation2 + $0xbc] sm:$0xff]
      %v10394 = vld [vmem:[#allocation2 + $0xc4] sm:$0xff]
      %v10395 = vld [vmem:[#allocation2 + $0xcc] sm:$0xff]
      %v10396 = vld [vmem:[#allocation2 + $0xd4] sm:$0xff]
      %v10397 = vld [vmem:[#allocation2 + $0xdc] sm:$0xff]
      %v10398 = vld [vmem:[#allocation2 + $0xe4] sm:$0xff]
      %v10399 = vld [vmem:[#allocation2 + $0xec] sm:$0xff]
      %v10400 = vld [vmem:[#allocation2 + $0xf4] sm:$0xff]
      %v10401 = vld [vmem:[#allocation2 + $0xfc] sm:$0x3]
      %s10402 = scalar_lea.vmem %s3, 96
      %v10403 = vld [vmem:[%s10402] sm:$0xff]
      %v10404 = vld [vmem:[%s10402 + $0x8] sm:$0xff]
      %v10406 = vsel %vm7710, %v10375, 0
      %v10409 = vsel %vm7710, %v10376, 0
      %v10412 = vsel %vm7710, %v10377, 0
      %v10415 = vsel %vm7710, %v10378, 0
      %v10418 = vsel %vm7710, %v10379, 0
      %v10421 = vsel %vm7710, %v10380, 0
      %v10424 = vsel %vm7710, %v10381, 0
      %v10427 = vsel %vm7710, %v10382, 0
      %v10430 = vsel %vm7710, %v10383, 0
      %v10433 = vsel %vm7710, %v10384, 0
      %v10436 = vsel %vm7710, %v10385, 0
      %v10439 = vsel %vm7710, %v10386, 0
      %v10442 = vsel %vm7710, %v10387, 0
      %v10445 = vsel %vm7710, %v10388, 0
      %v10448 = vsel %vm7710, %v10389, 0
      %v10451 = vsel %vm7710, %v10390, 0
      %v10454 = vsel %vm7710, %v10391, 0
      %v10457 = vsel %vm7710, %v10392, 0
      %v10460 = vsel %vm7710, %v10393, 0
      %v10463 = vsel %vm7710, %v10394, 0
      %v10466 = vsel %vm7710, %v10395, 0
      %v10469 = vsel %vm7710, %v10396, 0
      %v10472 = vsel %vm7710, %v10397, 0
      %v10475 = vsel %vm7710, %v10398, 0
      %v10478 = vsel %vm7710, %v10399, 0
      %v10481 = vsel %vm7710, %v10400, 0
      %v10484 = vsel %vm7710, %v10401, 0
      %10486 = vmatpush.msra.mxu0 0.0
      %10487 = vmatpush.msra.mxu0 0.0
      %10488 = vmatpush.msra.mxu0 0.0
      %10489 = vmatpush.msra.mxu0 0.0
      %10490 = vmatpush.msra.mxu0 0.0
      %10491 = vmatpush.msra.mxu0 0.0
      %10492 = vmatpush.msra.mxu0 0.0
      %10493 = vmatpush.msra.mxu0 0.0
      %10494 = vmatpush.msra.mxu0 0.0
      %10495 = vmatpush.msra.mxu0 0.0
      %10496 = vmatpush.msra.mxu0 0.0
      %10497 = vmatpush.msra.mxu0 0.0
      %10498 = vmatpush.msra.mxu0 0.0
      %10499 = vmatpush.msra.mxu0 0.0
      %10500 = vmatpush.msra.mxu0 %v10404
      %10501 = vmatpush.msra.mxu0 %v10403
      %10502 = vmatmul.f32.gmra.mxu0 %v10406
      %v10503 = vpop.f32.mrf.mxu0
      %v10504 = vadd.f32 0.0, %v10503
      %10505 = vmatmul.f32.gmra.mxu0 %v10409
      %v10506 = vpop.f32.mrf.mxu0
      %v10507 = vadd.f32 0.0, %v10506
      %10508 = vmatmul.f32.gmra.mxu0 %v10412
      %v10509 = vpop.f32.mrf.mxu0
      %v10510 = vadd.f32 0.0, %v10509
      %10511 = vmatmul.f32.gmra.mxu0 %v10415
      %v10512 = vpop.f32.mrf.mxu0
      %v10513 = vadd.f32 0.0, %v10512
      %10514 = vmatmul.f32.gmra.mxu0 %v10418
      %v10515 = vpop.f32.mrf.mxu0
      %v10516 = vadd.f32 0.0, %v10515
      %10517 = vmatmul.f32.gmra.mxu0 %v10421
      %v10518 = vpop.f32.mrf.mxu0
      %v10519 = vadd.f32 0.0, %v10518
      %10520 = vmatmul.f32.gmra.mxu0 %v10424
      %v10521 = vpop.f32.mrf.mxu0
      %v10522 = vadd.f32 0.0, %v10521
      %10523 = vmatmul.f32.gmra.mxu0 %v10427
      %v10524 = vpop.f32.mrf.mxu0
      %v10525 = vadd.f32 0.0, %v10524
      %10526 = vmatmul.f32.gmra.mxu0 %v10430
      %v10527 = vpop.f32.mrf.mxu0
      %v10528 = vadd.f32 0.0, %v10527
      %10529 = vmatmul.f32.gmra.mxu0 %v10433
      %v10530 = vpop.f32.mrf.mxu0
      %v10531 = vadd.f32 0.0, %v10530
      %10532 = vmatmul.f32.gmra.mxu0 %v10436
      %v10533 = vpop.f32.mrf.mxu0
      %v10534 = vadd.f32 0.0, %v10533
      %10535 = vmatmul.f32.gmra.mxu0 %v10439
      %v10536 = vpop.f32.mrf.mxu0
      %v10537 = vadd.f32 0.0, %v10536
      %10538 = vmatmul.f32.gmra.mxu0 %v10442
      %v10539 = vpop.f32.mrf.mxu0
      %v10540 = vadd.f32 0.0, %v10539
      %10541 = vmatmul.f32.gmra.mxu0 %v10445
      %v10542 = vpop.f32.mrf.mxu0
      %v10543 = vadd.f32 0.0, %v10542
      %10544 = vmatmul.f32.gmra.mxu0 %v10448
      %v10545 = vpop.f32.mrf.mxu0
      %v10546 = vadd.f32 0.0, %v10545
      %10547 = vmatmul.f32.gmra.mxu0 %v10451
      %v10548 = vpop.f32.mrf.mxu0
      %v10549 = vadd.f32 0.0, %v10548
      %10550 = vmatmul.f32.gmra.mxu0 %v10454
      %v10551 = vpop.f32.mrf.mxu0
      %v10552 = vadd.f32 0.0, %v10551
      %10553 = vmatmul.f32.gmra.mxu0 %v10457
      %v10554 = vpop.f32.mrf.mxu0
      %v10555 = vadd.f32 0.0, %v10554
      %10556 = vmatmul.f32.gmra.mxu0 %v10460
      %v10557 = vpop.f32.mrf.mxu0
      %v10558 = vadd.f32 0.0, %v10557
      %10559 = vmatmul.f32.gmra.mxu0 %v10463
      %v10560 = vpop.f32.mrf.mxu0
      %v10561 = vadd.f32 0.0, %v10560
      %10562 = vmatmul.f32.gmra.mxu0 %v10466
      %v10563 = vpop.f32.mrf.mxu0
      %v10564 = vadd.f32 0.0, %v10563
      %10565 = vmatmul.f32.gmra.mxu0 %v10469
      %v10566 = vpop.f32.mrf.mxu0
      %v10567 = vadd.f32 0.0, %v10566
      %10568 = vmatmul.f32.gmra.mxu0 %v10472
      %v10569 = vpop.f32.mrf.mxu0
      %v10570 = vadd.f32 0.0, %v10569
      %10571 = vmatmul.f32.gmra.mxu0 %v10475
      %v10572 = vpop.f32.mrf.mxu0
      %v10573 = vadd.f32 0.0, %v10572
      %10574 = vmatmul.f32.gmra.mxu0 %v10478
      %v10575 = vpop.f32.mrf.mxu0
      %v10576 = vadd.f32 0.0, %v10575
      %10577 = vmatmul.f32.gmra.mxu0 %v10481
      %v10578 = vpop.f32.mrf.mxu0
      %v10579 = vadd.f32 0.0, %v10578
      %10580 = vmatmul.f32.gmra.mxu0 %v10484
      %v10581 = vpop.f32.mrf.mxu0
      %v10582 = vadd.f32 0.0, %v10581
      %10583 = vdwg.mxu0
      %v10584 = vadd.f32 %v10348, %v10504
      %v10585 = vadd.f32 %v10349, %v10507
      %v10586 = vadd.f32 %v10350, %v10510
      %v10587 = vadd.f32 %v10351, %v10513
      %v10588 = vadd.f32 %v10352, %v10516
      %v10589 = vadd.f32 %v10353, %v10519
      %v10590 = vadd.f32 %v10354, %v10522
      %v10591 = vadd.f32 %v10355, %v10525
      %v10592 = vadd.f32 %v10356, %v10528
      %v10593 = vadd.f32 %v10357, %v10531
      %v10594 = vadd.f32 %v10358, %v10534
      %v10595 = vadd.f32 %v10359, %v10537
      %v10596 = vadd.f32 %v10360, %v10540
      %v10597 = vadd.f32 %v10361, %v10543
      %v10598 = vadd.f32 %v10362, %v10546
      %v10599 = vadd.f32 %v10363, %v10549
      %v10600 = vadd.f32 %v10364, %v10552
      %v10601 = vadd.f32 %v10365, %v10555
      %v10602 = vadd.f32 %v10366, %v10558
      %v10603 = vadd.f32 %v10367, %v10561
      %v10604 = vadd.f32 %v10368, %v10564
      %v10605 = vadd.f32 %v10369, %v10567
      %v10606 = vadd.f32 %v10370, %v10570
      %v10607 = vadd.f32 %v10371, %v10573
      %v10608 = vadd.f32 %v10372, %v10576
      %v10609 = vadd.f32 %v10373, %v10579
      %v10610 = vadd.f32 %v10374, %v10582
      %v10611 = vld [vmem:[#allocation2 + $0x2d] sm:$0xff]
      %v10612 = vld [vmem:[#allocation2 + $0x35] sm:$0xff]
      %v10613 = vld [vmem:[#allocation2 + $0x3d] sm:$0xff]
      %v10614 = vld [vmem:[#allocation2 + $0x45] sm:$0xff]
      %v10615 = vld [vmem:[#allocation2 + $0x4d] sm:$0xff]
      %v10616 = vld [vmem:[#allocation2 + $0x55] sm:$0xff]
      %v10617 = vld [vmem:[#allocation2 + $0x5d] sm:$0xff]
      %v10618 = vld [vmem:[#allocation2 + $0x65] sm:$0xff]
      %v10619 = vld [vmem:[#allocation2 + $0x6d] sm:$0xff]
      %v10620 = vld [vmem:[#allocation2 + $0x75] sm:$0xff]
      %v10621 = vld [vmem:[#allocation2 + $0x7d] sm:$0xff]
      %v10622 = vld [vmem:[#allocation2 + $0x85] sm:$0xff]
      %v10623 = vld [vmem:[#allocation2 + $0x8d] sm:$0xff]
      %v10624 = vld [vmem:[#allocation2 + $0x95] sm:$0xff]
      %v10625 = vld [vmem:[#allocation2 + $0x9d] sm:$0xff]
      %v10626 = vld [vmem:[#allocation2 + $0xa5] sm:$0xff]
      %v10627 = vld [vmem:[#allocation2 + $0xad] sm:$0xff]
      %v10628 = vld [vmem:[#allocation2 + $0xb5] sm:$0xff]
      %v10629 = vld [vmem:[#allocation2 + $0xbd] sm:$0xff]
      %v10630 = vld [vmem:[#allocation2 + $0xc5] sm:$0xff]
      %v10631 = vld [vmem:[#allocation2 + $0xcd] sm:$0xff]
      %v10632 = vld [vmem:[#allocation2 + $0xd5] sm:$0xff]
      %v10633 = vld [vmem:[#allocation2 + $0xdd] sm:$0xff]
      %v10634 = vld [vmem:[#allocation2 + $0xe5] sm:$0xff]
      %v10635 = vld [vmem:[#allocation2 + $0xed] sm:$0xff]
      %v10636 = vld [vmem:[#allocation2 + $0xf5] sm:$0xff]
      %v10637 = vld [vmem:[#allocation2 + $0xfd] sm:$0x3]
      %s10638 = scalar_lea.vmem %s3, 112
      %v10639 = vld [vmem:[%s10638] sm:$0xff]
      %v10640 = vld [vmem:[%s10638 + $0x8] sm:$0xff]
      %v10642 = vsel %vm7710, %v10611, 0
      %v10645 = vsel %vm7710, %v10612, 0
      %v10648 = vsel %vm7710, %v10613, 0
      %v10651 = vsel %vm7710, %v10614, 0
      %v10654 = vsel %vm7710, %v10615, 0
      %v10657 = vsel %vm7710, %v10616, 0
      %v10660 = vsel %vm7710, %v10617, 0
      %v10663 = vsel %vm7710, %v10618, 0
      %v10666 = vsel %vm7710, %v10619, 0
      %v10669 = vsel %vm7710, %v10620, 0
      %v10672 = vsel %vm7710, %v10621, 0
      %v10675 = vsel %vm7710, %v10622, 0
      %v10678 = vsel %vm7710, %v10623, 0
      %v10681 = vsel %vm7710, %v10624, 0
      %v10684 = vsel %vm7710, %v10625, 0
      %v10687 = vsel %vm7710, %v10626, 0
      %v10690 = vsel %vm7710, %v10627, 0
      %v10693 = vsel %vm7710, %v10628, 0
      %v10696 = vsel %vm7710, %v10629, 0
      %v10699 = vsel %vm7710, %v10630, 0
      %v10702 = vsel %vm7710, %v10631, 0
      %v10705 = vsel %vm7710, %v10632, 0
      %v10708 = vsel %vm7710, %v10633, 0
      %v10711 = vsel %vm7710, %v10634, 0
      %v10714 = vsel %vm7710, %v10635, 0
      %v10717 = vsel %vm7710, %v10636, 0
      %v10720 = vsel %vm7710, %v10637, 0
      %10722 = vmatpush.msra.mxu0 0.0
      %10723 = vmatpush.msra.mxu0 0.0
      %10724 = vmatpush.msra.mxu0 0.0
      %10725 = vmatpush.msra.mxu0 0.0
      %10726 = vmatpush.msra.mxu0 0.0
      %10727 = vmatpush.msra.mxu0 0.0
      %10728 = vmatpush.msra.mxu0 0.0
      %10729 = vmatpush.msra.mxu0 0.0
      %10730 = vmatpush.msra.mxu0 0.0
      %10731 = vmatpush.msra.mxu0 0.0
      %10732 = vmatpush.msra.mxu0 0.0
      %10733 = vmatpush.msra.mxu0 0.0
      %10734 = vmatpush.msra.mxu0 0.0
      %10735 = vmatpush.msra.mxu0 0.0
      %10736 = vmatpush.msra.mxu0 %v10640
      %10737 = vmatpush.msra.mxu0 %v10639
      %10738 = vmatmul.f32.gmra.mxu0 %v10642
      %v10739 = vpop.f32.mrf.mxu0
      %v10740 = vadd.f32 0.0, %v10739
      %10741 = vmatmul.f32.gmra.mxu0 %v10645
      %v10742 = vpop.f32.mrf.mxu0
      %v10743 = vadd.f32 0.0, %v10742
      %10744 = vmatmul.f32.gmra.mxu0 %v10648
      %v10745 = vpop.f32.mrf.mxu0
      %v10746 = vadd.f32 0.0, %v10745
      %10747 = vmatmul.f32.gmra.mxu0 %v10651
      %v10748 = vpop.f32.mrf.mxu0
      %v10749 = vadd.f32 0.0, %v10748
      %10750 = vmatmul.f32.gmra.mxu0 %v10654
      %v10751 = vpop.f32.mrf.mxu0
      %v10752 = vadd.f32 0.0, %v10751
      %10753 = vmatmul.f32.gmra.mxu0 %v10657
      %v10754 = vpop.f32.mrf.mxu0
      %v10755 = vadd.f32 0.0, %v10754
      %10756 = vmatmul.f32.gmra.mxu0 %v10660
      %v10757 = vpop.f32.mrf.mxu0
      %v10758 = vadd.f32 0.0, %v10757
      %10759 = vmatmul.f32.gmra.mxu0 %v10663
      %v10760 = vpop.f32.mrf.mxu0
      %v10761 = vadd.f32 0.0, %v10760
      %10762 = vmatmul.f32.gmra.mxu0 %v10666
      %v10763 = vpop.f32.mrf.mxu0
      %v10764 = vadd.f32 0.0, %v10763
      %10765 = vmatmul.f32.gmra.mxu0 %v10669
      %v10766 = vpop.f32.mrf.mxu0
      %v10767 = vadd.f32 0.0, %v10766
      %10768 = vmatmul.f32.gmra.mxu0 %v10672
      %v10769 = vpop.f32.mrf.mxu0
      %v10770 = vadd.f32 0.0, %v10769
      %10771 = vmatmul.f32.gmra.mxu0 %v10675
      %v10772 = vpop.f32.mrf.mxu0
      %v10773 = vadd.f32 0.0, %v10772
      %10774 = vmatmul.f32.gmra.mxu0 %v10678
      %v10775 = vpop.f32.mrf.mxu0
      %v10776 = vadd.f32 0.0, %v10775
      %10777 = vmatmul.f32.gmra.mxu0 %v10681
      %v10778 = vpop.f32.mrf.mxu0
      %v10779 = vadd.f32 0.0, %v10778
      %10780 = vmatmul.f32.gmra.mxu0 %v10684
      %v10781 = vpop.f32.mrf.mxu0
      %v10782 = vadd.f32 0.0, %v10781
      %10783 = vmatmul.f32.gmra.mxu0 %v10687
      %v10784 = vpop.f32.mrf.mxu0
      %v10785 = vadd.f32 0.0, %v10784
      %10786 = vmatmul.f32.gmra.mxu0 %v10690
      %v10787 = vpop.f32.mrf.mxu0
      %v10788 = vadd.f32 0.0, %v10787
      %10789 = vmatmul.f32.gmra.mxu0 %v10693
      %v10790 = vpop.f32.mrf.mxu0
      %v10791 = vadd.f32 0.0, %v10790
      %10792 = vmatmul.f32.gmra.mxu0 %v10696
      %v10793 = vpop.f32.mrf.mxu0
      %v10794 = vadd.f32 0.0, %v10793
      %10795 = vmatmul.f32.gmra.mxu0 %v10699
      %v10796 = vpop.f32.mrf.mxu0
      %v10797 = vadd.f32 0.0, %v10796
      %10798 = vmatmul.f32.gmra.mxu0 %v10702
      %v10799 = vpop.f32.mrf.mxu0
      %v10800 = vadd.f32 0.0, %v10799
      %10801 = vmatmul.f32.gmra.mxu0 %v10705
      %v10802 = vpop.f32.mrf.mxu0
      %v10803 = vadd.f32 0.0, %v10802
      %10804 = vmatmul.f32.gmra.mxu0 %v10708
      %v10805 = vpop.f32.mrf.mxu0
      %v10806 = vadd.f32 0.0, %v10805
      %10807 = vmatmul.f32.gmra.mxu0 %v10711
      %v10808 = vpop.f32.mrf.mxu0
      %v10809 = vadd.f32 0.0, %v10808
      %10810 = vmatmul.f32.gmra.mxu0 %v10714
      %v10811 = vpop.f32.mrf.mxu0
      %v10812 = vadd.f32 0.0, %v10811
      %10813 = vmatmul.f32.gmra.mxu0 %v10717
      %v10814 = vpop.f32.mrf.mxu0
      %v10815 = vadd.f32 0.0, %v10814
      %10816 = vmatmul.f32.gmra.mxu0 %v10720
      %v10817 = vpop.f32.mrf.mxu0
      %v10818 = vadd.f32 0.0, %v10817
      %10819 = vdwg.mxu0
      %v10820 = vadd.f32 %v10584, %v10740
      %v10821 = vadd.f32 %v10585, %v10743
      %v10822 = vadd.f32 %v10586, %v10746
      %v10823 = vadd.f32 %v10587, %v10749
      %v10824 = vadd.f32 %v10588, %v10752
      %v10825 = vadd.f32 %v10589, %v10755
      %v10826 = vadd.f32 %v10590, %v10758
      %v10827 = vadd.f32 %v10591, %v10761
      %v10828 = vadd.f32 %v10592, %v10764
      %v10829 = vadd.f32 %v10593, %v10767
      %v10830 = vadd.f32 %v10594, %v10770
      %v10831 = vadd.f32 %v10595, %v10773
      %v10832 = vadd.f32 %v10596, %v10776
      %v10833 = vadd.f32 %v10597, %v10779
      %v10834 = vadd.f32 %v10598, %v10782
      %v10835 = vadd.f32 %v10599, %v10785
      %v10836 = vadd.f32 %v10600, %v10788
      %v10837 = vadd.f32 %v10601, %v10791
      %v10838 = vadd.f32 %v10602, %v10794
      %v10839 = vadd.f32 %v10603, %v10797
      %v10840 = vadd.f32 %v10604, %v10800
      %v10841 = vadd.f32 %v10605, %v10803
      %v10842 = vadd.f32 %v10606, %v10806
      %v10843 = vadd.f32 %v10607, %v10809
      %v10844 = vadd.f32 %v10608, %v10812
      %v10845 = vadd.f32 %v10609, %v10815
      %v10846 = vadd.f32 %v10610, %v10818
      %v10847 = vld [vmem:[#allocation2 + $0x2e] sm:$0xff]
      %v10848 = vld [vmem:[#allocation2 + $0x36] sm:$0xff]
      %v10849 = vld [vmem:[#allocation2 + $0x3e] sm:$0xff]
      %v10850 = vld [vmem:[#allocation2 + $0x46] sm:$0xff]
      %v10851 = vld [vmem:[#allocation2 + $0x4e] sm:$0xff]
      %v10852 = vld [vmem:[#allocation2 + $0x56] sm:$0xff]
      %v10853 = vld [vmem:[#allocation2 + $0x5e] sm:$0xff]
      %v10854 = vld [vmem:[#allocation2 + $0x66] sm:$0xff]
      %v10855 = vld [vmem:[#allocation2 + $0x6e] sm:$0xff]
      %v10856 = vld [vmem:[#allocation2 + $0x76] sm:$0xff]
      %v10857 = vld [vmem:[#allocation2 + $0x7e] sm:$0xff]
      %v10858 = vld [vmem:[#allocation2 + $0x86] sm:$0xff]
      %v10859 = vld [vmem:[#allocation2 + $0x8e] sm:$0xff]
      %v10860 = vld [vmem:[#allocation2 + $0x96] sm:$0xff]
      %v10861 = vld [vmem:[#allocation2 + $0x9e] sm:$0xff]
      %v10862 = vld [vmem:[#allocation2 + $0xa6] sm:$0xff]
      %v10863 = vld [vmem:[#allocation2 + $0xae] sm:$0xff]
      %v10864 = vld [vmem:[#allocation2 + $0xb6] sm:$0xff]
      %v10865 = vld [vmem:[#allocation2 + $0xbe] sm:$0xff]
      %v10866 = vld [vmem:[#allocation2 + $0xc6] sm:$0xff]
      %v10867 = vld [vmem:[#allocation2 + $0xce] sm:$0xff]
      %v10868 = vld [vmem:[#allocation2 + $0xd6] sm:$0xff]
      %v10869 = vld [vmem:[#allocation2 + $0xde] sm:$0xff]
      %v10870 = vld [vmem:[#allocation2 + $0xe6] sm:$0xff]
      %v10871 = vld [vmem:[#allocation2 + $0xee] sm:$0xff]
      %v10872 = vld [vmem:[#allocation2 + $0xf6] sm:$0xff]
      %v10873 = vld [vmem:[#allocation2 + $0xfe] sm:$0x3]
      %s10874 = scalar_lea.vmem %s3, 128
      %v10875 = vld [vmem:[%s10874] sm:$0xff]
      %v10876 = vld [vmem:[%s10874 + $0x8] sm:$0xff]
      %v10878 = vsel %vm7710, %v10847, 0
      %v10881 = vsel %vm7710, %v10848, 0
      %v10884 = vsel %vm7710, %v10849, 0
      %v10887 = vsel %vm7710, %v10850, 0
      %v10890 = vsel %vm7710, %v10851, 0
      %v10893 = vsel %vm7710, %v10852, 0
      %v10896 = vsel %vm7710, %v10853, 0
      %v10899 = vsel %vm7710, %v10854, 0
      %v10902 = vsel %vm7710, %v10855, 0
      %v10905 = vsel %vm7710, %v10856, 0
      %v10908 = vsel %vm7710, %v10857, 0
      %v10911 = vsel %vm7710, %v10858, 0
      %v10914 = vsel %vm7710, %v10859, 0
      %v10917 = vsel %vm7710, %v10860, 0
      %v10920 = vsel %vm7710, %v10861, 0
      %v10923 = vsel %vm7710, %v10862, 0
      %v10926 = vsel %vm7710, %v10863, 0
      %v10929 = vsel %vm7710, %v10864, 0
      %v10932 = vsel %vm7710, %v10865, 0
      %v10935 = vsel %vm7710, %v10866, 0
      %v10938 = vsel %vm7710, %v10867, 0
      %v10941 = vsel %vm7710, %v10868, 0
      %v10944 = vsel %vm7710, %v10869, 0
      %v10947 = vsel %vm7710, %v10870, 0
      %v10950 = vsel %vm7710, %v10871, 0
      %v10953 = vsel %vm7710, %v10872, 0
      %v10956 = vsel %vm7710, %v10873, 0
      %10958 = vmatpush.msra.mxu0 0.0
      %10959 = vmatpush.msra.mxu0 0.0
      %10960 = vmatpush.msra.mxu0 0.0
      %10961 = vmatpush.msra.mxu0 0.0
      %10962 = vmatpush.msra.mxu0 0.0
      %10963 = vmatpush.msra.mxu0 0.0
      %10964 = vmatpush.msra.mxu0 0.0
      %10965 = vmatpush.msra.mxu0 0.0
      %10966 = vmatpush.msra.mxu0 0.0
      %10967 = vmatpush.msra.mxu0 0.0
      %10968 = vmatpush.msra.mxu0 0.0
      %10969 = vmatpush.msra.mxu0 0.0
      %10970 = vmatpush.msra.mxu0 0.0
      %10971 = vmatpush.msra.mxu0 0.0
      %10972 = vmatpush.msra.mxu0 %v10876
      %10973 = vmatpush.msra.mxu0 %v10875
      %10974 = vmatmul.f32.gmra.mxu0 %v10878
      %v10975 = vpop.f32.mrf.mxu0
      %v10976 = vadd.f32 0.0, %v10975
      %10977 = vmatmul.f32.gmra.mxu0 %v10881
      %v10978 = vpop.f32.mrf.mxu0
      %v10979 = vadd.f32 0.0, %v10978
      %10980 = vmatmul.f32.gmra.mxu0 %v10884
      %v10981 = vpop.f32.mrf.mxu0
      %v10982 = vadd.f32 0.0, %v10981
      %10983 = vmatmul.f32.gmra.mxu0 %v10887
      %v10984 = vpop.f32.mrf.mxu0
      %v10985 = vadd.f32 0.0, %v10984
      %10986 = vmatmul.f32.gmra.mxu0 %v10890
      %v10987 = vpop.f32.mrf.mxu0
      %v10988 = vadd.f32 0.0, %v10987
      %10989 = vmatmul.f32.gmra.mxu0 %v10893
      %v10990 = vpop.f32.mrf.mxu0
      %v10991 = vadd.f32 0.0, %v10990
      %10992 = vmatmul.f32.gmra.mxu0 %v10896
      %v10993 = vpop.f32.mrf.mxu0
      %v10994 = vadd.f32 0.0, %v10993
      %10995 = vmatmul.f32.gmra.mxu0 %v10899
      %v10996 = vpop.f32.mrf.mxu0
      %v10997 = vadd.f32 0.0, %v10996
      %10998 = vmatmul.f32.gmra.mxu0 %v10902
      %v10999 = vpop.f32.mrf.mxu0
      %v11000 = vadd.f32 0.0, %v10999
      %11001 = vmatmul.f32.gmra.mxu0 %v10905
      %v11002 = vpop.f32.mrf.mxu0
      %v11003 = vadd.f32 0.0, %v11002
      %11004 = vmatmul.f32.gmra.mxu0 %v10908
      %v11005 = vpop.f32.mrf.mxu0
      %v11006 = vadd.f32 0.0, %v11005
      %11007 = vmatmul.f32.gmra.mxu0 %v10911
      %v11008 = vpop.f32.mrf.mxu0
      %v11009 = vadd.f32 0.0, %v11008
      %11010 = vmatmul.f32.gmra.mxu0 %v10914
      %v11011 = vpop.f32.mrf.mxu0
      %v11012 = vadd.f32 0.0, %v11011
      %11013 = vmatmul.f32.gmra.mxu0 %v10917
      %v11014 = vpop.f32.mrf.mxu0
      %v11015 = vadd.f32 0.0, %v11014
      %11016 = vmatmul.f32.gmra.mxu0 %v10920
      %v11017 = vpop.f32.mrf.mxu0
      %v11018 = vadd.f32 0.0, %v11017
      %11019 = vmatmul.f32.gmra.mxu0 %v10923
      %v11020 = vpop.f32.mrf.mxu0
      %v11021 = vadd.f32 0.0, %v11020
      %11022 = vmatmul.f32.gmra.mxu0 %v10926
      %v11023 = vpop.f32.mrf.mxu0
      %v11024 = vadd.f32 0.0, %v11023
      %11025 = vmatmul.f32.gmra.mxu0 %v10929
      %v11026 = vpop.f32.mrf.mxu0
      %v11027 = vadd.f32 0.0, %v11026
      %11028 = vmatmul.f32.gmra.mxu0 %v10932
      %v11029 = vpop.f32.mrf.mxu0
      %v11030 = vadd.f32 0.0, %v11029
      %11031 = vmatmul.f32.gmra.mxu0 %v10935
      %v11032 = vpop.f32.mrf.mxu0
      %v11033 = vadd.f32 0.0, %v11032
      %11034 = vmatmul.f32.gmra.mxu0 %v10938
      %v11035 = vpop.f32.mrf.mxu0
      %v11036 = vadd.f32 0.0, %v11035
      %11037 = vmatmul.f32.gmra.mxu0 %v10941
      %v11038 = vpop.f32.mrf.mxu0
      %v11039 = vadd.f32 0.0, %v11038
      %11040 = vmatmul.f32.gmra.mxu0 %v10944
      %v11041 = vpop.f32.mrf.mxu0
      %v11042 = vadd.f32 0.0, %v11041
      %11043 = vmatmul.f32.gmra.mxu0 %v10947
      %v11044 = vpop.f32.mrf.mxu0
      %v11045 = vadd.f32 0.0, %v11044
      %11046 = vmatmul.f32.gmra.mxu0 %v10950
      %v11047 = vpop.f32.mrf.mxu0
      %v11048 = vadd.f32 0.0, %v11047
      %11049 = vmatmul.f32.gmra.mxu0 %v10953
      %v11050 = vpop.f32.mrf.mxu0
      %v11051 = vadd.f32 0.0, %v11050
      %11052 = vmatmul.f32.gmra.mxu0 %v10956
      %v11053 = vpop.f32.mrf.mxu0
      %v11054 = vadd.f32 0.0, %v11053
      %11055 = vdwg.mxu0
      %v11056 = vadd.f32 %v10820, %v10976
      %v11057 = vadd.f32 %v10821, %v10979
      %v11058 = vadd.f32 %v10822, %v10982
      %v11059 = vadd.f32 %v10823, %v10985
      %v11060 = vadd.f32 %v10824, %v10988
      %v11061 = vadd.f32 %v10825, %v10991
      %v11062 = vadd.f32 %v10826, %v10994
      %v11063 = vadd.f32 %v10827, %v10997
      %v11064 = vadd.f32 %v10828, %v11000
      %v11065 = vadd.f32 %v10829, %v11003
      %v11066 = vadd.f32 %v10830, %v11006
      %v11067 = vadd.f32 %v10831, %v11009
      %v11068 = vadd.f32 %v10832, %v11012
      %v11069 = vadd.f32 %v10833, %v11015
      %v11070 = vadd.f32 %v10834, %v11018
      %v11071 = vadd.f32 %v10835, %v11021
      %v11072 = vadd.f32 %v10836, %v11024
      %v11073 = vadd.f32 %v10837, %v11027
      %v11074 = vadd.f32 %v10838, %v11030
      %v11075 = vadd.f32 %v10839, %v11033
      %v11076 = vadd.f32 %v10840, %v11036
      %v11077 = vadd.f32 %v10841, %v11039
      %v11078 = vadd.f32 %v10842, %v11042
      %v11079 = vadd.f32 %v10843, %v11045
      %v11080 = vadd.f32 %v10844, %v11048
      %v11081 = vadd.f32 %v10845, %v11051
      %v11082 = vadd.f32 %v10846, %v11054
      %v11083 = vmax.f32 %v11056, 0.0
      %v11084 = vmax.f32 %v11057, 0.0
      %v11085 = vmax.f32 %v11058, 0.0
      %v11086 = vmax.f32 %v11059, 0.0
      %v11087 = vmax.f32 %v11060, 0.0
      %v11088 = vmax.f32 %v11061, 0.0
      %v11089 = vmax.f32 %v11062, 0.0
      %v11090 = vmax.f32 %v11063, 0.0
      %v11091 = vmax.f32 %v11064, 0.0
      %v11092 = vmax.f32 %v11065, 0.0
      %v11093 = vmax.f32 %v11066, 0.0
      %v11094 = vmax.f32 %v11067, 0.0
      %v11095 = vmax.f32 %v11068, 0.0
      %v11096 = vmax.f32 %v11069, 0.0
      %v11097 = vmax.f32 %v11070, 0.0
      %v11098 = vmax.f32 %v11071, 0.0
      %v11099 = vmax.f32 %v11072, 0.0
      %v11100 = vmax.f32 %v11073, 0.0
      %v11101 = vmax.f32 %v11074, 0.0
      %v11102 = vmax.f32 %v11075, 0.0
      %v11103 = vmax.f32 %v11076, 0.0
      %v11104 = vmax.f32 %v11077, 0.0
      %v11105 = vmax.f32 %v11078, 0.0
      %v11106 = vmax.f32 %v11079, 0.0
      %v11107 = vmax.f32 %v11080, 0.0
      %v11108 = vmax.f32 %v11081, 0.0
      %v11109 = vmax.f32 %v11082, 0.0
      %vm11113 = vcmask 1040384
      %v11114 = vrot.slane %v11084, 7
      %v11115 = vrot.slane %v11085, 7
      %v11116 = vsel %vm11113, %v11114, %v11115
      %v11117 = vrot.slane %v11086, 7
      %v11118 = vsel %vm11113, %v11115, %v11117
      %v11121 = vmax.f32 %v11083, %v11116
      %v11122 = vmax.f32 %v11084, %v11118
      %vm11123 = vcmask 121856
      %v11124 = vsel %vm11123, %v234, 0
      %vm11126 = vcmask 1046528
      %v11128 = vsel %vm11126, %v11122, 0
      %11130 = vmatpush.msra.mxu0 0.0
      %11131 = vmatpush.msra.mxu0 0.0
      %11132 = vmatpush.msra.mxu0 0.0
      %11133 = vmatpush.msra.mxu0 0.0
      %11134 = vmatpush.msra.mxu0 0.0
      %11135 = vmatpush.msra.mxu0 0.0
      %11136 = vmatpush.msra.mxu0 0.0
      %11137 = vmatpush.msra.mxu0 0.0
      %11138 = vmatpush.msra.mxu0 0.0
      %11139 = vmatpush.msra.mxu0 0.0
      %11140 = vmatpush.msra.mxu0 0.0
      %11141 = vmatpush.msra.mxu0 0.0
      %11142 = vmatpush.msra.mxu0 0.0
      %11143 = vmatpush.msra.mxu0 0.0
      %11144 = vmatpush.msra.mxu0 %v11128
      %11145 = vmatpush.msra.mxu0 %v11121
      %11146 = vmatmul.f32.gmra.mxu0 %v11124
      %v11147 = vpop.f32.mrf.mxu0
      %v11148 = vadd.f32 0.0, %v11147
      %11149 = vdwg.mxu0
      %v11150 = vsel %vm11123, %v240, 0
      %11152 = vmatpush.msra.mxu0 0.0
      %11153 = vmatpush.msra.mxu0 0.0
      %11154 = vmatpush.msra.mxu0 0.0
      %11155 = vmatpush.msra.mxu0 0.0
      %11156 = vmatpush.msra.mxu0 0.0
      %11157 = vmatpush.msra.mxu0 0.0
      %11158 = vmatpush.msra.mxu0 0.0
      %11159 = vmatpush.msra.mxu0 0.0
      %11160 = vmatpush.msra.mxu0 0.0
      %11161 = vmatpush.msra.mxu0 0.0
      %11162 = vmatpush.msra.mxu0 0.0
      %11163 = vmatpush.msra.mxu0 0.0
      %11164 = vmatpush.msra.mxu0 0.0
      %11165 = vmatpush.msra.mxu0 0.0
      %11166 = vmatpush.msra.mxu0 %v11128
      %11167 = vmatpush.msra.mxu0 %v11121
      %11168 = vmatmul.f32.gmra.mxu0 %v11150
      %v11169 = vpop.f32.mrf.mxu0
      %v11170 = vadd.f32 0.0, %v11169
      %11171 = vdwg.mxu0
      %v11172 = vmax.f32 %v11148, %v11170
      %vm11173 = vcmask 260096
      %11174 = vst.msk [vmem:[%s224] sm:$0x7f] %vm11173, %v11172
      %v11178 = vrot.slane %v11088, 7
      %v11179 = vrot.slane %v11089, 7
      %v11180 = vsel %vm11113, %v11178, %v11179
      %v11181 = vrot.slane %v11090, 7
      %v11182 = vsel %vm11113, %v11179, %v11181
      %v11186 = vmax.f32 %v11086, %v11178
      %v11187 = vmax.f32 %v11087, %v11180
      %v11188 = vmax.f32 %v11088, %v11182
      %v11192 = vrot.slane %v11186, 6
      %v11193 = vrot.slane %v11187, 6
      %v11194 = vsel %vm8042, %v11192, %v11193
      %v11195 = vrot.slane %v11188, 6
      %v11196 = vsel %vm8042, %v11193, %v11195
      %v11198 = vsel %vm11126, %v11196, 0
      %11200 = vmatpush.msra.mxu0 0.0
      %11201 = vmatpush.msra.mxu0 0.0
      %11202 = vmatpush.msra.mxu0 0.0
      %11203 = vmatpush.msra.mxu0 0.0
      %11204 = vmatpush.msra.mxu0 0.0
      %11205 = vmatpush.msra.mxu0 0.0
      %11206 = vmatpush.msra.mxu0 0.0
      %11207 = vmatpush.msra.mxu0 0.0
      %11208 = vmatpush.msra.mxu0 0.0
      %11209 = vmatpush.msra.mxu0 0.0
      %11210 = vmatpush.msra.mxu0 0.0
      %11211 = vmatpush.msra.mxu0 0.0
      %11212 = vmatpush.msra.mxu0 0.0
      %11213 = vmatpush.msra.mxu0 0.0
      %11214 = vmatpush.msra.mxu0 %v11198
      %11215 = vmatpush.msra.mxu0 %v11194
      %11216 = vmatmul.f32.gmra.mxu0 %v11124
      %v11217 = vpop.f32.mrf.mxu0
      %v11218 = vadd.f32 0.0, %v11217
      %11219 = vdwg.mxu0
      %11220 = vmatpush.msra.mxu0 0.0
      %11221 = vmatpush.msra.mxu0 0.0
      %11222 = vmatpush.msra.mxu0 0.0
      %11223 = vmatpush.msra.mxu0 0.0
      %11224 = vmatpush.msra.mxu0 0.0
      %11225 = vmatpush.msra.mxu0 0.0
      %11226 = vmatpush.msra.mxu0 0.0
      %11227 = vmatpush.msra.mxu0 0.0
      %11228 = vmatpush.msra.mxu0 0.0
      %11229 = vmatpush.msra.mxu0 0.0
      %11230 = vmatpush.msra.mxu0 0.0
      %11231 = vmatpush.msra.mxu0 0.0
      %11232 = vmatpush.msra.mxu0 0.0
      %11233 = vmatpush.msra.mxu0 0.0
      %11234 = vmatpush.msra.mxu0 %v11198
      %11235 = vmatpush.msra.mxu0 %v11194
      %11236 = vmatmul.f32.gmra.mxu0 %v11150
      %v11237 = vpop.f32.mrf.mxu0
      %v11238 = vadd.f32 0.0, %v11237
      %11239 = vdwg.mxu0
      %v11240 = vmax.f32 %v11218, %v11238
      %11241 = vst.msk [vmem:[%s224 + $0x7] sm:$0x7f] %vm11173, %v11240
      %v11245 = vrot.slane %v11092, 7
      %v11246 = vrot.slane %v11093, 7
      %v11247 = vsel %vm11113, %v11245, %v11246
      %v11248 = vrot.slane %v11094, 7
      %v11249 = vsel %vm11113, %v11246, %v11248
      %v11253 = vmax.f32 %v11090, %v11245
      %v11254 = vmax.f32 %v11091, %v11247
      %v11255 = vmax.f32 %v11092, %v11249
      %v11259 = vrot.slane %v11253, 4
      %v11260 = vrot.slane %v11254, 4
      %v11261 = vsel %vm7951, %v11259, %v11260
      %v11262 = vrot.slane %v11255, 4
      %v11263 = vsel %vm7951, %v11260, %v11262
      %v11265 = vsel %vm11126, %v11263, 0
      %11267 = vmatpush.msra.mxu0 0.0
      %11268 = vmatpush.msra.mxu0 0.0
      %11269 = vmatpush.msra.mxu0 0.0
      %11270 = vmatpush.msra.mxu0 0.0
      %11271 = vmatpush.msra.mxu0 0.0
      %11272 = vmatpush.msra.mxu0 0.0
      %11273 = vmatpush.msra.mxu0 0.0
      %11274 = vmatpush.msra.mxu0 0.0
      %11275 = vmatpush.msra.mxu0 0.0
      %11276 = vmatpush.msra.mxu0 0.0
      %11277 = vmatpush.msra.mxu0 0.0
      %11278 = vmatpush.msra.mxu0 0.0
      %11279 = vmatpush.msra.mxu0 0.0
      %11280 = vmatpush.msra.mxu0 0.0
      %11281 = vmatpush.msra.mxu0 %v11265
      %11282 = vmatpush.msra.mxu0 %v11261
      %11283 = vmatmul.f32.gmra.mxu0 %v11124
      %v11284 = vpop.f32.mrf.mxu0
      %v11285 = vadd.f32 0.0, %v11284
      %11286 = vdwg.mxu0
      %11287 = vmatpush.msra.mxu0 0.0
      %11288 = vmatpush.msra.mxu0 0.0
      %11289 = vmatpush.msra.mxu0 0.0
      %11290 = vmatpush.msra.mxu0 0.0
      %11291 = vmatpush.msra.mxu0 0.0
      %11292 = vmatpush.msra.mxu0 0.0
      %11293 = vmatpush.msra.mxu0 0.0
      %11294 = vmatpush.msra.mxu0 0.0
      %11295 = vmatpush.msra.mxu0 0.0
      %11296 = vmatpush.msra.mxu0 0.0
      %11297 = vmatpush.msra.mxu0 0.0
      %11298 = vmatpush.msra.mxu0 0.0
      %11299 = vmatpush.msra.mxu0 0.0
      %11300 = vmatpush.msra.mxu0 0.0
      %11301 = vmatpush.msra.mxu0 %v11265
      %11302 = vmatpush.msra.mxu0 %v11261
      %11303 = vmatmul.f32.gmra.mxu0 %v11150
      %v11304 = vpop.f32.mrf.mxu0
      %v11305 = vadd.f32 0.0, %v11304
      %11306 = vdwg.mxu0
      %v11307 = vmax.f32 %v11285, %v11305
      %11308 = vst.msk [vmem:[%s224 + $0xe] sm:$0x7f] %vm11173, %v11307
      %v11311 = vrot.slane %v11096, 7
      %v11312 = vrot.slane %v11097, 7
      %v11313 = vsel %vm11113, %v11311, %v11312
      %v11317 = vmax.f32 %v11094, %v11311
      %v11318 = vmax.f32 %v11095, %v11313
      %v11319 = vmax.f32 %v11096, %v11312
      %v11323 = vrot.slane %v11317, 2
      %v11324 = vrot.slane %v11318, 2
      %v11325 = vsel %vm7862, %v11323, %v11324
      %v11326 = vrot.slane %v11319, 2
      %v11327 = vsel %vm7862, %v11324, %v11326
      %v11329 = vsel %vm11126, %v11327, 0
      %11331 = vmatpush.msra.mxu0 0.0
      %11332 = vmatpush.msra.mxu0 0.0
      %11333 = vmatpush.msra.mxu0 0.0
      %11334 = vmatpush.msra.mxu0 0.0
      %11335 = vmatpush.msra.mxu0 0.0
      %11336 = vmatpush.msra.mxu0 0.0
      %11337 = vmatpush.msra.mxu0 0.0
      %11338 = vmatpush.msra.mxu0 0.0
      %11339 = vmatpush.msra.mxu0 0.0
      %11340 = vmatpush.msra.mxu0 0.0
      %11341 = vmatpush.msra.mxu0 0.0
      %11342 = vmatpush.msra.mxu0 0.0
      %11343 = vmatpush.msra.mxu0 0.0
      %11344 = vmatpush.msra.mxu0 0.0
      %11345 = vmatpush.msra.mxu0 %v11329
      %11346 = vmatpush.msra.mxu0 %v11325
      %11347 = vmatmul.f32.gmra.mxu0 %v11124
      %v11348 = vpop.f32.mrf.mxu0
      %v11349 = vadd.f32 0.0, %v11348
      %11350 = vdwg.mxu0
      %11351 = vmatpush.msra.mxu0 0.0
      %11352 = vmatpush.msra.mxu0 0.0
      %11353 = vmatpush.msra.mxu0 0.0
      %11354 = vmatpush.msra.mxu0 0.0
      %11355 = vmatpush.msra.mxu0 0.0
      %11356 = vmatpush.msra.mxu0 0.0
      %11357 = vmatpush.msra.mxu0 0.0
      %11358 = vmatpush.msra.mxu0 0.0
      %11359 = vmatpush.msra.mxu0 0.0
      %11360 = vmatpush.msra.mxu0 0.0
      %11361 = vmatpush.msra.mxu0 0.0
      %11362 = vmatpush.msra.mxu0 0.0
      %11363 = vmatpush.msra.mxu0 0.0
      %11364 = vmatpush.msra.mxu0 0.0
      %11365 = vmatpush.msra.mxu0 %v11329
      %11366 = vmatpush.msra.mxu0 %v11325
      %11367 = vmatmul.f32.gmra.mxu0 %v11150
      %v11368 = vpop.f32.mrf.mxu0
      %v11369 = vadd.f32 0.0, %v11368
      %11370 = vdwg.mxu0
      %v11371 = vmax.f32 %v11349, %v11369
      %11372 = vst.msk [vmem:[%s224 + $0x15] sm:$0x7f] %vm11173, %v11371
      %v11376 = vrot.slane %v11099, 7
      %v11377 = vrot.slane %v11100, 7
      %v11378 = vsel %vm11113, %v11376, %v11377
      %v11379 = vrot.slane %v11101, 7
      %v11380 = vsel %vm11113, %v11377, %v11379
      %v11383 = vmax.f32 %v11098, %v11378
      %v11384 = vmax.f32 %v11099, %v11380
      %v11386 = vsel %vm11126, %v11384, 0
      %11388 = vmatpush.msra.mxu0 0.0
      %11389 = vmatpush.msra.mxu0 0.0
      %11390 = vmatpush.msra.mxu0 0.0
      %11391 = vmatpush.msra.mxu0 0.0
      %11392 = vmatpush.msra.mxu0 0.0
      %11393 = vmatpush.msra.mxu0 0.0
      %11394 = vmatpush.msra.mxu0 0.0
      %11395 = vmatpush.msra.mxu0 0.0
      %11396 = vmatpush.msra.mxu0 0.0
      %11397 = vmatpush.msra.mxu0 0.0
      %11398 = vmatpush.msra.mxu0 0.0
      %11399 = vmatpush.msra.mxu0 0.0
      %11400 = vmatpush.msra.mxu0 0.0
      %11401 = vmatpush.msra.mxu0 0.0
      %11402 = vmatpush.msra.mxu0 %v11386
      %11403 = vmatpush.msra.mxu0 %v11383
      %11404 = vmatmul.f32.gmra.mxu0 %v11124
      %v11405 = vpop.f32.mrf.mxu0
      %v11406 = vadd.f32 0.0, %v11405
      %11407 = vdwg.mxu0
      %11408 = vmatpush.msra.mxu0 0.0
      %11409 = vmatpush.msra.mxu0 0.0
      %11410 = vmatpush.msra.mxu0 0.0
      %11411 = vmatpush.msra.mxu0 0.0
      %11412 = vmatpush.msra.mxu0 0.0
      %11413 = vmatpush.msra.mxu0 0.0
      %11414 = vmatpush.msra.mxu0 0.0
      %11415 = vmatpush.msra.mxu0 0.0
      %11416 = vmatpush.msra.mxu0 0.0
      %11417 = vmatpush.msra.mxu0 0.0
      %11418 = vmatpush.msra.mxu0 0.0
      %11419 = vmatpush.msra.mxu0 0.0
      %11420 = vmatpush.msra.mxu0 0.0
      %11421 = vmatpush.msra.mxu0 0.0
      %11422 = vmatpush.msra.mxu0 %v11386
      %11423 = vmatpush.msra.mxu0 %v11383
      %11424 = vmatmul.f32.gmra.mxu0 %v11150
      %v11425 = vpop.f32.mrf.mxu0
      %v11426 = vadd.f32 0.0, %v11425
      %11427 = vdwg.mxu0
      %v11428 = vmax.f32 %v11406, %v11426
      %11429 = vst.msk [vmem:[%s224 + $0x1c] sm:$0x7f] %vm11173, %v11428
      %v11433 = vrot.slane %v11103, 7
      %v11434 = vrot.slane %v11104, 7
      %v11435 = vsel %vm11113, %v11433, %v11434
      %v11436 = vrot.slane %v11105, 7
      %v11437 = vsel %vm11113, %v11434, %v11436
      %v11441 = vmax.f32 %v11101, %v11433
      %v11442 = vmax.f32 %v11102, %v11435
      %v11443 = vmax.f32 %v11103, %v11437
      %v11447 = vrot.slane %v11441, 6
      %v11448 = vrot.slane %v11442, 6
      %v11449 = vsel %vm8042, %v11447, %v11448
      %v11450 = vrot.slane %v11443, 6
      %v11451 = vsel %vm8042, %v11448, %v11450
      %v11453 = vsel %vm11126, %v11451, 0
      %11455 = vmatpush.msra.mxu0 0.0
      %11456 = vmatpush.msra.mxu0 0.0
      %11457 = vmatpush.msra.mxu0 0.0
      %11458 = vmatpush.msra.mxu0 0.0
      %11459 = vmatpush.msra.mxu0 0.0
      %11460 = vmatpush.msra.mxu0 0.0
      %11461 = vmatpush.msra.mxu0 0.0
      %11462 = vmatpush.msra.mxu0 0.0
      %11463 = vmatpush.msra.mxu0 0.0
      %11464 = vmatpush.msra.mxu0 0.0
      %11465 = vmatpush.msra.mxu0 0.0
      %11466 = vmatpush.msra.mxu0 0.0
      %11467 = vmatpush.msra.mxu0 0.0
      %11468 = vmatpush.msra.mxu0 0.0
      %11469 = vmatpush.msra.mxu0 %v11453
      %11470 = vmatpush.msra.mxu0 %v11449
      %11471 = vmatmul.f32.gmra.mxu0 %v11124
      %v11472 = vpop.f32.mrf.mxu0
      %v11473 = vadd.f32 0.0, %v11472
      %11474 = vdwg.mxu0
      %11475 = vmatpush.msra.mxu0 0.0
      %11476 = vmatpush.msra.mxu0 0.0
      %11477 = vmatpush.msra.mxu0 0.0
      %11478 = vmatpush.msra.mxu0 0.0
      %11479 = vmatpush.msra.mxu0 0.0
      %11480 = vmatpush.msra.mxu0 0.0
      %11481 = vmatpush.msra.mxu0 0.0
      %11482 = vmatpush.msra.mxu0 0.0
      %11483 = vmatpush.msra.mxu0 0.0
      %11484 = vmatpush.msra.mxu0 0.0
      %11485 = vmatpush.msra.mxu0 0.0
      %11486 = vmatpush.msra.mxu0 0.0
      %11487 = vmatpush.msra.mxu0 0.0
      %11488 = vmatpush.msra.mxu0 0.0
      %11489 = vmatpush.msra.mxu0 %v11453
      %11490 = vmatpush.msra.mxu0 %v11449
      %11491 = vmatmul.f32.gmra.mxu0 %v11150
      %v11492 = vpop.f32.mrf.mxu0
      %v11493 = vadd.f32 0.0, %v11492
      %11494 = vdwg.mxu0
      %v11495 = vmax.f32 %v11473, %v11493
      %11496 = vst.msk [vmem:[%s224 + $0x23] sm:$0x7f] %vm11173, %v11495
      %v11500 = vrot.slane %v11107, 7
      %v11501 = vrot.slane %v11108, 7
      %v11502 = vsel %vm11113, %v11500, %v11501
      %v11503 = vrot.slane %v11109, 7
      %v11504 = vsel %vm11113, %v11501, %v11503
      %v11508 = vmax.f32 %v11105, %v11500
      %v11509 = vmax.f32 %v11106, %v11502
      %v11510 = vmax.f32 %v11107, %v11504
      %v11514 = vrot.slane %v11508, 4
      %v11515 = vrot.slane %v11509, 4
      %v11516 = vsel %vm7951, %v11514, %v11515
      %v11517 = vrot.slane %v11510, 4
      %v11518 = vsel %vm7951, %v11515, %v11517
      %v11520 = vsel %vm11126, %v11518, 0
      %11522 = vmatpush.msra.mxu0 0.0
      %11523 = vmatpush.msra.mxu0 0.0
      %11524 = vmatpush.msra.mxu0 0.0
      %11525 = vmatpush.msra.mxu0 0.0
      %11526 = vmatpush.msra.mxu0 0.0
      %11527 = vmatpush.msra.mxu0 0.0
      %11528 = vmatpush.msra.mxu0 0.0
      %11529 = vmatpush.msra.mxu0 0.0
      %11530 = vmatpush.msra.mxu0 0.0
      %11531 = vmatpush.msra.mxu0 0.0
      %11532 = vmatpush.msra.mxu0 0.0
      %11533 = vmatpush.msra.mxu0 0.0
      %11534 = vmatpush.msra.mxu0 0.0
      %11535 = vmatpush.msra.mxu0 0.0
      %11536 = vmatpush.msra.mxu0 %v11520
      %11537 = vmatpush.msra.mxu0 %v11516
      %11538 = vmatmul.f32.gmra.mxu0 %v11124
      %v11539 = vpop.f32.mrf.mxu0
      %v11540 = vadd.f32 0.0, %v11539
      %11541 = vdwg.mxu0
      %11542 = vmatpush.msra.mxu0 0.0
      %11543 = vmatpush.msra.mxu0 0.0
      %11544 = vmatpush.msra.mxu0 0.0
      %11545 = vmatpush.msra.mxu0 0.0
      %11546 = vmatpush.msra.mxu0 0.0
      %11547 = vmatpush.msra.mxu0 0.0
      %11548 = vmatpush.msra.mxu0 0.0
      %11549 = vmatpush.msra.mxu0 0.0
      %11550 = vmatpush.msra.mxu0 0.0
      %11551 = vmatpush.msra.mxu0 0.0
      %11552 = vmatpush.msra.mxu0 0.0
      %11553 = vmatpush.msra.mxu0 0.0
      %11554 = vmatpush.msra.mxu0 0.0
      %11555 = vmatpush.msra.mxu0 0.0
      %11556 = vmatpush.msra.mxu0 %v11520
      %11557 = vmatpush.msra.mxu0 %v11516
      %11558 = vmatmul.f32.gmra.mxu0 %v11150
      %v11559 = vpop.f32.mrf.mxu0
      %v11560 = vadd.f32 0.0, %v11559
      %11561 = vdwg.mxu0
      %v11562 = vmax.f32 %v11540, %v11560
      %11563 = vst.msk [vmem:[%s224 + $0x2a] sm:$0x7f] %vm11173, %v11562
      %p11564 = scmp.lt.s32.totalorder %s16, 1
      %s11565 = scalar_select %p11564, %s16, 1
      %s11566 = smul.addr %s11565, 7
      %s11567 = smul.addr %s11566, 8
      %s11568 = scalar_lea.vmem %s5, %s11567
      // Predicated region
      $region41: #{tpu_custom_call.1} parent=39 // pred_check
        %p11569 = pneg %p144
      $region42: #{tpu_custom_call.1} parent=39 // pred_check_branch
        %11571 = sbr.rel (%p11569) target = $region44
      $region43: #{tpu_custom_call.1} parent=39 // pred_region
        _
      $region44: #{tpu_custom_call.1} parent=39 // pred_fallthru
        _
    $region40: #{tpu_custom_call.1} parent=5 // pred_fallthru
      _
    %p11572 = scmp.le.s32.totalorder 2, %s11
    // Predicated region
    $region45: #{tpu_custom_call.1} parent=5 // pred_check
      %p11573 = pneg %p11572
    $region46: #{tpu_custom_call.1} parent=5 // pred_check_branch
      %11575 = sbr.rel (%p11573) target = $region48
    $region47: #{tpu_custom_call.1} parent=5 // pred_region
      %s11576 = ssub.s32 %s11, 2
      // Predicated region
      $region49: #{tpu_custom_call.1} parent=47 // pred_check
        %p11577 = pneg %p150
      $region50: #{tpu_custom_call.1} parent=47 // pred_check_branch
        %11579 = sbr.rel (%p11577) target = $region52
      $region51: #{tpu_custom_call.1} parent=47 // pred_region
        %p11580 = scmp.lt.s32.totalorder %s17, 1
        %s11581 = scalar_select %p11580, %s17, 1
        %s11582 = smul.addr %s11581, 7
        %s11583 = smul.addr %s11582, 8
        %s11584 = scalar_lea.vmem %s5, %s11583
      $region52: #{tpu_custom_call.1} parent=47 // pred_fallthru
        _
    $region48: #{tpu_custom_call.1} parent=5 // pred_fallthru
      _
  $region6: #{tpu_custom_call.1} parent=0 // loop_footer
    %s15 = sadd.s32 1, %s11
  $region7: #{tpu_custom_call.1} parent=0 // loop_footer_branch
    %10 = sbr.rel target = $region3
  $region8: #{tpu_custom_call.1} parent=0 // loop_exit
    _

</llo_original>
